<compile_context>
chip_gen: v6e
topology: v6e:2x2x1
jax: 0.10.0
libtpu: 0.0.40
codegen_flags: <defaults>
</compile_context>

<pallas_src>
import functools

import jax
import jax.numpy as jnp
from jax import lax
from jax.experimental import pallas as pl
from jax.experimental.pallas import tpu as pltpu

H = W = 16            # spatial size of the example input
HW = H * W
CIN = 32              # att_module in_channels (must be 32, see note above)
CMID = 32             # conv1 / conv2 / conv3 output channels
CA_MID = CIN // 2     # channel-attention bottleneck (ratio = 2)
DW_K = 5              # spatial-attention depthwise kernel size
DW_DIL = 2            # depthwise dilation
PADSA = 2 * (DW_K // 2)   # reflection pad inside depthwise_conv (= 4)
BATCH = 4             # example batch size


# ---------------------------------------------------------------------------
# Fused kernel (built per batch-block size; b_blk images lane-packed)
# ---------------------------------------------------------------------------
def _make_kernel(b_blk):
    cpk_in = b_blk * CIN      # lane-packed input channels
    cpk = b_blk * CMID        # lane-packed feature channels

    def kernel(x_ref, w1_ref, w2_ref, ca1_ref, ca2_ref,
               dw_w_ref, dw_b_ref, pw_w_ref, pw_b_ref, w3a_ref, w3b_ref,
               out_ref, xpad_ref, slab_ref, a2_ref, a2pad_ref):
        # x_ref    : (1, H, W, cpk_in)              lane-packed input tile
        # w1_ref   : (9*cpk_in, cpk) bf16           conv1 im2col block-diag weight
        # w2_ref   : (cpk, cpk)      bf16           conv2 1x1 block-diag (in,out)
        # ca1/ca2  : CA fc block-diag weights, bf16 (no bias)
        # dw_w_ref : (25, cpk) f32 taps, dw_b_ref: (1, cpk) f32
        # pw_w_ref : (cpk, cpk) bf16 block-diag (in,out), pw_b_ref: (1, cpk) f32
        # w3a/w3b  : (cpk, cpk) bf16 block-diag, (out,in) blocks
        # out_ref  : (b_blk, CMID, HW)              lane-dense output (NCHW order)
        # xpad_ref : (H+2, W+2, cpk_in) bf16        ReflectionPad2d(1) scratch
        # slab_ref : (HW, 9*cpk_in)    bf16         conv1 im2col scratch
        # a2_ref   : (HW, cpk)         f32          act2 scratch
        # a2pad_ref: (H+8, W+8, cpk)   f32          ReflectionPad2d(4) of act2
        bf16, f32 = jnp.bfloat16, jnp.float32

        # ---- ReflectionPad2d(1) of the lane-packed input (bf16 scratch) -----
        x = x_ref[0].astype(bf16)                              # (H, W, cpk_in)
        xpad_ref[1:1 + H, 1:1 + W, :] = x
        xpad_ref[0:1, 1:1 + W, :] = x[1:2]                     # top mirror
        xpad_ref[H + 1:H + 2, 1:1 + W, :] = x[H - 2:H - 1]     # bottom mirror
        xpad_ref[:, 0:1, :] = xpad_ref[:, 2:3, :]              # left mirror
        xpad_ref[:, W + 1:W + 2, :] = xpad_ref[:, W - 1:W, :]  # right mirror

        # ---- conv1 3x3 (no bias) as ONE im2col matmul -----------------------
        for t in range(9):
            dy, dx = divmod(t, 3)
            slab_ref[:, t * cpk_in:(t + 1) * cpk_in] = \
                xpad_ref[dy:dy + H, dx:dx + W, :].reshape(HW, cpk_in)
        c1 = jnp.dot(slab_ref[...], w1_ref[...],
                     preferred_element_type=f32)               # (HW, cpk)

        # ---- tanh -> conv2 1x1 (no bias) -> sigmoid == act2 -----------------
        a2 = jax.nn.sigmoid(jnp.dot(jnp.tanh(c1).astype(bf16), w2_ref[...],
                                    preferred_element_type=f32))   # (HW, cpk)
        a2_ref[...] = a2

        # ---- ChannelAttention gate: sigmoid(fc(avg) * fc(max)) --------------
        # avg/max pool over spatial; all b_blk images batched via lane packing.
        pooled = jnp.concatenate(
            [jnp.mean(a2, axis=0, keepdims=True),
             jnp.max(a2, axis=0, keepdims=True)], axis=0)          # (2, cpk)
        hid = jax.nn.relu(jnp.dot(pooled.astype(bf16), ca1_ref[...],
                                  preferred_element_type=f32))
        fc = jnp.dot(hid.astype(bf16), ca2_ref[...],
                     preferred_element_type=f32)                   # (2, cpk)
        gate = jax.nn.sigmoid(fc[0:1] * fc[1:2])                   # (1, cpk)

        # ---- SpatialAttention2: ReflectionPad2d(4) of act2, in VMEM ---------
        a2hw = a2.reshape(H, W, cpk)
        a2pad_ref[PADSA:PADSA + H, PADSA:PADSA + W, :] = a2hw
        for r in range(1, PADSA + 1):
            a2pad_ref[PADSA - r:PADSA - r + 1, PADSA:PADSA + W, :] = a2hw[r:r + 1]
            a2pad_ref[PADSA + H - 1 + r:PADSA + H + r, PADSA:PADSA + W, :] = \
                a2hw[H - 1 - r:H - r]
        for c in range(1, PADSA + 1):
            a2pad_ref[:, PADSA - c:PADSA - c + 1, :] = \
                a2pad_ref[:, PADSA + c:PADSA + c + 1, :]
            a2pad_ref[:, PADSA + W - 1 + c:PADSA + W + c, :] = \
                a2pad_ref[:, PADSA + W - 1 - c:PADSA + W - c, :]

        # ---- dilated 5x5 depthwise (+bias, ReLU), lane-packed on the VPU ----
        # column slabs hoisted: only DW_K sublane-offset slices per block.
        dww = dw_w_ref[...]                                        # (25, cpk)
        dwacc = jnp.zeros((HW, cpk), f32)
        for j in range(DW_K):
            colslab = a2pad_ref[:, DW_DIL * j:DW_DIL * j + W, :]   # (H+8, W, cpk)
            for i in range(DW_K):
                patch = colslab[DW_DIL * i:DW_DIL * i + H].reshape(HW, cpk)
                dwacc = dwacc + patch * dww[DW_K * i + j:DW_K * i + j + 1, :]
        dwr = jax.nn.relu(dwacc + dw_b_ref[...])

        # pointwise 1x1 (+bias); double sigmoid is in the reference
        # (depthwise_conv.sigmoid then SpatialAttention2.sigmoid).
        pw = jnp.dot(dwr.astype(bf16), pw_w_ref[...],
                     preferred_element_type=f32) + pw_b_ref[...]

        a2v = a2_ref[...]
        z1 = a2v * gate                                            # CA branch
        z2 = a2v * jax.nn.sigmoid(jax.nn.sigmoid(pw))              # SA branch

        # ---- conv3 (1x1, no bias) on concat([z1, z2]) as split A @ B^T ------
        # (out,in)-block-diag weights give a lane-dense (cpk, HW) output tile.
        dn_nt = (((1,), (1,)), ((), ()))
        outT = lax.dot_general(w3a_ref[...], z1.astype(bf16), dn_nt,
                               preferred_element_type=f32)
        outT = outT + lax.dot_general(w3b_ref[...], z2.astype(bf16), dn_nt,
                                      preferred_element_type=f32)
        out_ref[...] = outT.reshape(b_blk, CMID, HW)

    return kernel


# ---------------------------------------------------------------------------
# Wrapper: batch-fold selection, weight blocking, pallas_call
# ---------------------------------------------------------------------------
def _pick_b_blk(n):
    """Full batch per step on 1-TC chips (v5e/v6e); batch/2 on 2-TC chips."""
    try:
        kind = jax.devices()[0].device_kind.lower()
    except Exception:
        kind = ""
    two_tc = any(tag in kind for tag in ("v7", "7x", "v4"))
    b = n // 2 if (two_tc and n % 2 == 0 and n >= 2) else n
    while b > 1 and n % b:
        b -= 1
    return max(b, 1)


def _block_params(p, b_blk):
    """Tile / block-diagonalize the per-image weights for lane packing."""
    f32, bf16 = jnp.float32, jnp.bfloat16
    eye = jnp.eye(b_blk, dtype=f32)
    bd = lambda w: jnp.kron(eye, w.astype(f32))         # block-diag, b_blk copies
    rep = lambda w: jnp.tile(w.astype(f32), (1, b_blk))  # per-channel params
    w1_bd = jnp.concatenate([bd(p["w1"][t]) for t in range(9)], axis=0)
    return dict(
        w1=w1_bd.astype(bf16),                 # (9*b_blk*CIN, b_blk*CMID)
        w2=bd(p["w2"]).astype(bf16),           # (in, out) blocks
        ca1=bd(p["ca_w1"]).astype(bf16),
        ca2=bd(p["ca_w2"]).astype(bf16),
        dw_w=rep(p["dw_w"]),                   # (25, b_blk*CMID) f32
        dw_b=rep(p["dw_b"]),
        pw_w=bd(p["pw_w"]).astype(bf16),
        pw_b=rep(p["pw_b"]),
        w3a=bd(p["w3a"]).astype(bf16),         # (out, in) blocks
        w3b=bd(p["w3b"]).astype(bf16),
    )


def _fused_call(x_packed, bp, b_blk):
    nb = x_packed.shape[0]
    cpk_in = b_blk * CIN
    cpk = b_blk * CMID

    def full(a):
        return pl.BlockSpec(a.shape, lambda g: (0,) * a.ndim)

    return pl.pallas_call(
        _make_kernel(b_blk),
        out_shape=jax.ShapeDtypeStruct((nb * b_blk, CMID, HW), jnp.float32),
        grid=(nb,),
        in_specs=[
            pl.BlockSpec((1, H, W, cpk_in), lambda g: (g, 0, 0, 0)),
            full(bp["w1"]), full(bp["w2"]), full(bp["ca1"]), full(bp["ca2"]),
            full(bp["dw_w"]), full(bp["dw_b"]), full(bp["pw_w"]),
            full(bp["pw_b"]), full(bp["w3a"]), full(bp["w3b"]),
        ],
        out_specs=pl.BlockSpec((b_blk, CMID, HW), lambda g: (g, 0, 0)),
        scratch_shapes=[
            pltpu.VMEM((H + 2, W + 2, cpk_in), jnp.bfloat16),              # xpad
            pltpu.VMEM((HW, 9 * cpk_in), jnp.bfloat16),                    # im2col
            pltpu.VMEM((HW, cpk), jnp.float32),                            # act2
            pltpu.VMEM((H + 2 * PADSA, W + 2 * PADSA, cpk), jnp.float32),  # act2 pad
        ],
        compiler_params=pltpu.CompilerParams(dimension_semantics=("parallel",)),
    )(x_packed, bp["w1"], bp["w2"], bp["ca1"], bp["ca2"], bp["dw_w"],
      bp["dw_b"], bp["pw_w"], bp["pw_b"], bp["w3a"], bp["w3b"])


def init_params(key):
    ks = jax.random.split(key, 10)
    s = 0.1
    f32 = jnp.float32
    return dict(
        w1=s * jax.random.normal(ks[0], (9, CIN, CMID), f32),      # conv1 taps (dy*3+dx, in, out)
        w2=s * jax.random.normal(ks[1], (CMID, CMID), f32),        # conv2 1x1 (in, out)
        ca_w1=s * jax.random.normal(ks[2], (CMID, CA_MID), f32),   # CA fc1 (in, out), no bias
        ca_w2=s * jax.random.normal(ks[3], (CA_MID, CMID), f32),   # CA fc2 (in, out), no bias
        dw_w=s * jax.random.normal(ks[4], (DW_K * DW_K, CMID), f32),  # depthwise taps (kh*5+kw, C)
        dw_b=s * jax.random.normal(ks[5], (1, CMID), f32),
        pw_w=s * jax.random.normal(ks[6], (CMID, CMID), f32),      # pointwise (in, out)
        pw_b=s * jax.random.normal(ks[7], (1, CMID), f32),
        w3a=s * jax.random.normal(ks[8], (CMID, CMID), f32),       # conv3[:, :32] (out, in)
        w3b=s * jax.random.normal(ks[9], (CMID, CMID), f32),       # conv3[:, 32:] (out, in)
    )


@functools.partial(jax.jit, static_argnums=(2,))
def _forward_impl(x_nchw, params, b_blk):
    n = x_nchw.shape[0]
    nb = n // b_blk
    # Pack b_blk images' channels into the minor (lane) dim: one cheap XLA
    # transpose in the wrapper, everything stays lane-packed in the kernel.
    xp = x_nchw.reshape(nb, b_blk, CIN, H, W)
    xp = jnp.transpose(xp, (0, 3, 4, 1, 2)).reshape(nb, H, W, b_blk * CIN)
    bp = _block_params(params, b_blk)
    out = _fused_call(xp, bp, b_blk)              # (n, CMID, H*W), NCHW order
    return out.reshape(n, CMID, H, W)             # free reshape


def att_module_forward(x_nchw, params):
    return _forward_impl(x_nchw, params, _pick_b_blk(x_nchw.shape[0]))


if __name__ == "__main__":
    key = jax.random.PRNGKey(0)
    k_x, k_p = jax.random.split(key)
    x = jax.random.normal(k_x, (BATCH, CIN, H, W), jnp.float32)   # NCHW like PyTorch
    params = init_params(k_p)
    out = jax.block_until_ready(att_module_forward(x, params))
    assert out.shape == (BATCH, CMID, H, W)
    assert bool(jnp.all(jnp.isfinite(out)))
    print("KERNEL_OK")
</pallas_src>

<mosaic_0001>
module attributes {stable_mosaic.version = 11 : i64} {
  func.func @kernel(%arg0: i32, %arg1: memref<1x16x16x128xf32, #tpu.memory_space<vmem>>, %arg2: memref<1152x128xbf16, #tpu.memory_space<vmem>>, %arg3: memref<128x128xbf16, #tpu.memory_space<vmem>>, %arg4: memref<128x64xbf16, #tpu.memory_space<vmem>>, %arg5: memref<64x128xbf16, #tpu.memory_space<vmem>>, %arg6: memref<25x128xf32, #tpu.memory_space<vmem>>, %arg7: memref<1x128xf32, #tpu.memory_space<vmem>>, %arg8: memref<128x128xbf16, #tpu.memory_space<vmem>>, %arg9: memref<1x128xf32, #tpu.memory_space<vmem>>, %arg10: memref<128x128xbf16, #tpu.memory_space<vmem>>, %arg11: memref<128x128xbf16, #tpu.memory_space<vmem>>, %arg12: memref<4x32x256xf32, #tpu.memory_space<vmem>>, %arg13: memref<18x18x128xbf16, #tpu.memory_space<vmem>>, %arg14: memref<256x1152xbf16, #tpu.memory_space<vmem>>, %arg15: memref<256x128xf32, #tpu.memory_space<vmem>>, %arg16: memref<24x24x128xf32, #tpu.memory_space<vmem>>) attributes {dimension_semantics = [#tpu.dimension_semantics<parallel>], iteration_bounds = array<i64: 1>, scalar_prefetch = 0 : i64, scratch_operands = 4 : i64, tpu.core_type = #tpu.core_type<tc>, window_params = [{transform_indices = @transform_0, window_bounds = array<i64: 1, 16, 16, 128>}, {pipeline_mode = #tpu.pipeline_mode<synchronous>, transform_indices = @transform_1, window_bounds = array<i64: 1152, 128>}, {pipeline_mode = #tpu.pipeline_mode<synchronous>, transform_indices = @transform_2, window_bounds = array<i64: 128, 128>}, {pipeline_mode = #tpu.pipeline_mode<synchronous>, transform_indices = @transform_3, window_bounds = array<i64: 128, 64>}, {pipeline_mode = #tpu.pipeline_mode<synchronous>, transform_indices = @transform_4, window_bounds = array<i64: 64, 128>}, {pipeline_mode = #tpu.pipeline_mode<synchronous>, transform_indices = @transform_5, window_bounds = array<i64: 25, 128>}, {pipeline_mode = #tpu.pipeline_mode<synchronous>, transform_indices = @transform_6, window_bounds = array<i64: 1, 128>}, {pipeline_mode = #tpu.pipeline_mode<synchronous>, transform_indices = @transform_7, window_bounds = array<i64: 128, 128>}, {pipeline_mode = #tpu.pipeline_mode<synchronous>, transform_indices = @transform_8, window_bounds = array<i64: 1, 128>}, {pipeline_mode = #tpu.pipeline_mode<synchronous>, transform_indices = @transform_9, window_bounds = array<i64: 128, 128>}, {pipeline_mode = #tpu.pipeline_mode<synchronous>, transform_indices = @transform_10, window_bounds = array<i64: 128, 128>}, {transform_indices = @transform_11, window_bounds = array<i64: 4, 32, 256>}]} {
    %c0 = arith.constant 0 : index
    %c0_0 = arith.constant 0 : index
    %c0_1 = arith.constant 0 : index
    %c0_2 = arith.constant 0 : index
    %0 = vector.load %arg1[%c0, %c0_0, %c0_1, %c0_2] : memref<1x16x16x128xf32, #tpu.memory_space<vmem>>, vector<1x16x16x128xf32>
    %1 = vector.shape_cast %0 : vector<1x16x16x128xf32> to vector<16x16x128xf32>
    %2 = arith.truncf %1 : vector<16x16x128xf32> to vector<16x16x128xbf16>
    %c1 = arith.constant 1 : index
    %c1_3 = arith.constant 1 : index
    %c0_4 = arith.constant 0 : index
    %3 = vector.load %arg13[%c1, %c1_3, %c0_4] : memref<18x18x128xbf16, #tpu.memory_space<vmem>>, vector<16x16x128xbf16>
    tpu.vector_store %arg13[%c1, %c1_3, %c0_4], %2 {strides = array<i32>} : memref<18x18x128xbf16, #tpu.memory_space<vmem>>, vector<16x16x128xbf16>,
    %4 = vector.extract_strided_slice %2 {offsets = [1, 0, 0], sizes = [1, 16, 128], strides = [1, 1, 1]} : vector<16x16x128xbf16> to vector<1x16x128xbf16>
    %c0_5 = arith.constant 0 : index
    %c1_6 = arith.constant 1 : index
    %c0_7 = arith.constant 0 : index
    %5 = vector.load %arg13[%c0_5, %c1_6, %c0_7] : memref<18x18x128xbf16, #tpu.memory_space<vmem>>, vector<1x16x128xbf16>
    tpu.vector_store %arg13[%c0_5, %c1_6, %c0_7], %4 {strides = array<i32>} : memref<18x18x128xbf16, #tpu.memory_space<vmem>>, vector<1x16x128xbf16>,
    %6 = vector.extract_strided_slice %2 {offsets = [14, 0, 0], sizes = [1, 16, 128], strides = [1, 1, 1]} : vector<16x16x128xbf16> to vector<1x16x128xbf16>
    %c17 = arith.constant 17 : index
    %c1_8 = arith.constant 1 : index
    %c0_9 = arith.constant 0 : index
    %7 = vector.load %arg13[%c17, %c1_8, %c0_9] : memref<18x18x128xbf16, #tpu.memory_space<vmem>>, vector<1x16x128xbf16>
    tpu.vector_store %arg13[%c17, %c1_8, %c0_9], %6 {strides = array<i32>} : memref<18x18x128xbf16, #tpu.memory_space<vmem>>, vector<1x16x128xbf16>,
    %c0_10 = arith.constant 0 : index
    %c2 = arith.constant 2 : index
    %c0_11 = arith.constant 0 : index
    %8 = vector.load %arg13[%c0_10, %c2, %c0_11] : memref<18x18x128xbf16, #tpu.memory_space<vmem>>, vector<18x1x128xbf16>
    %c0_12 = arith.constant 0 : index
    %c0_13 = arith.constant 0 : index
    %c0_14 = arith.constant 0 : index
    %9 = vector.load %arg13[%c0_12, %c0_13, %c0_14] : memref<18x18x128xbf16, #tpu.memory_space<vmem>>, vector<18x1x128xbf16>
    tpu.vector_store %arg13[%c0_12, %c0_13, %c0_14], %8 {strides = array<i32>} : memref<18x18x128xbf16, #tpu.memory_space<vmem>>, vector<18x1x128xbf16>,
    %c0_15 = arith.constant 0 : index
    %c15 = arith.constant 15 : index
    %c0_16 = arith.constant 0 : index
    %10 = vector.load %arg13[%c0_15, %c15, %c0_16] : memref<18x18x128xbf16, #tpu.memory_space<vmem>>, vector<18x1x128xbf16>
    %c0_17 = arith.constant 0 : index
    %c17_18 = arith.constant 17 : index
    %c0_19 = arith.constant 0 : index
    %11 = vector.load %arg13[%c0_17, %c17_18, %c0_19] : memref<18x18x128xbf16, #tpu.memory_space<vmem>>, vector<18x1x128xbf16>
    tpu.vector_store %arg13[%c0_17, %c17_18, %c0_19], %10 {strides = array<i32>} : memref<18x18x128xbf16, #tpu.memory_space<vmem>>, vector<18x1x128xbf16>,
    %c0_20 = arith.constant 0 : index
    %c0_21 = arith.constant 0 : index
    %c0_22 = arith.constant 0 : index
    %12 = vector.load %arg13[%c0_20, %c0_21, %c0_22] : memref<18x18x128xbf16, #tpu.memory_space<vmem>>, vector<16x16x128xbf16>
    %13 = vector.shape_cast %12 : vector<16x16x128xbf16> to vector<256x128xbf16>
    %c0_23 = arith.constant 0 : index
    %c0_24 = arith.constant 0 : index
    %14 = vector.load %arg14[%c0_23, %c0_24] : memref<256x1152xbf16, #tpu.memory_space<vmem>>, vector<256x128xbf16>
    tpu.vector_store %arg14[%c0_23, %c0_24], %13 {strides = array<i32>} : memref<256x1152xbf16, #tpu.memory_space<vmem>>, vector<256x128xbf16>,
    %c0_25 = arith.constant 0 : index
    %c1_26 = arith.constant 1 : index
    %c0_27 = arith.constant 0 : index
    %15 = vector.load %arg13[%c0_25, %c1_26, %c0_27] : memref<18x18x128xbf16, #tpu.memory_space<vmem>>, vector<16x16x128xbf16>
    %16 = vector.shape_cast %15 : vector<16x16x128xbf16> to vector<256x128xbf16>
    %c0_28 = arith.constant 0 : index
    %c128 = arith.constant 128 : index
    %17 = vector.load %arg14[%c0_28, %c128] : memref<256x1152xbf16, #tpu.memory_space<vmem>>, vector<256x128xbf16>
    tpu.vector_store %arg14[%c0_28, %c128], %16 {strides = array<i32>} : memref<256x1152xbf16, #tpu.memory_space<vmem>>, vector<256x128xbf16>,
    %c0_29 = arith.constant 0 : index
    %c2_30 = arith.constant 2 : index
    %c0_31 = arith.constant 0 : index
    %18 = vector.load %arg13[%c0_29, %c2_30, %c0_31] : memref<18x18x128xbf16, #tpu.memory_space<vmem>>, vector<16x16x128xbf16>
    %19 = vector.shape_cast %18 : vector<16x16x128xbf16> to vector<256x128xbf16>
    %c0_32 = arith.constant 0 : index
    %c256 = arith.constant 256 : index
    %20 = vector.load %arg14[%c0_32, %c256] : memref<256x1152xbf16, #tpu.memory_space<vmem>>, vector<256x128xbf16>
    tpu.vector_store %arg14[%c0_32, %c256], %19 {strides = array<i32>} : memref<256x1152xbf16, #tpu.memory_space<vmem>>, vector<256x128xbf16>,
    %c1_33 = arith.constant 1 : index
    %c0_34 = arith.constant 0 : index
    %c0_35 = arith.constant 0 : index
    %21 = vector.load %arg13[%c1_33, %c0_34, %c0_35] : memref<18x18x128xbf16, #tpu.memory_space<vmem>>, vector<16x16x128xbf16>
    %22 = vector.shape_cast %21 : vector<16x16x128xbf16> to vector<256x128xbf16>
    %c0_36 = arith.constant 0 : index
    %c384 = arith.constant 384 : index
    %23 = vector.load %arg14[%c0_36, %c384] : memref<256x1152xbf16, #tpu.memory_space<vmem>>, vector<256x128xbf16>
    tpu.vector_store %arg14[%c0_36, %c384], %22 {strides = array<i32>} : memref<256x1152xbf16, #tpu.memory_space<vmem>>, vector<256x128xbf16>,
    %c1_37 = arith.constant 1 : index
    %c1_38 = arith.constant 1 : index
    %c0_39 = arith.constant 0 : index
    %24 = vector.load %arg13[%c1_37, %c1_38, %c0_39] : memref<18x18x128xbf16, #tpu.memory_space<vmem>>, vector<16x16x128xbf16>
    %25 = vector.shape_cast %24 : vector<16x16x128xbf16> to vector<256x128xbf16>
    %c0_40 = arith.constant 0 : index
    %c512 = arith.constant 512 : index
    %26 = vector.load %arg14[%c0_40, %c512] : memref<256x1152xbf16, #tpu.memory_space<vmem>>, vector<256x128xbf16>
    tpu.vector_store %arg14[%c0_40, %c512], %25 {strides = array<i32>} : memref<256x1152xbf16, #tpu.memory_space<vmem>>, vector<256x128xbf16>,
    %c1_41 = arith.constant 1 : index
    %c2_42 = arith.constant 2 : index
    %c0_43 = arith.constant 0 : index
    %27 = vector.load %arg13[%c1_41, %c2_42, %c0_43] : memref<18x18x128xbf16, #tpu.memory_space<vmem>>, vector<16x16x128xbf16>
    %28 = vector.shape_cast %27 : vector<16x16x128xbf16> to vector<256x128xbf16>
    %c0_44 = arith.constant 0 : index
    %c640 = arith.constant 640 : index
    %29 = vector.load %arg14[%c0_44, %c640] : memref<256x1152xbf16, #tpu.memory_space<vmem>>, vector<256x128xbf16>
    tpu.vector_store %arg14[%c0_44, %c640], %28 {strides = array<i32>} : memref<256x1152xbf16, #tpu.memory_space<vmem>>, vector<256x128xbf16>,
    %c2_45 = arith.constant 2 : index
    %c0_46 = arith.constant 0 : index
    %c0_47 = arith.constant 0 : index
    %30 = vector.load %arg13[%c2_45, %c0_46, %c0_47] : memref<18x18x128xbf16, #tpu.memory_space<vmem>>, vector<16x16x128xbf16>
    %31 = vector.shape_cast %30 : vector<16x16x128xbf16> to vector<256x128xbf16>
    %c0_48 = arith.constant 0 : index
    %c768 = arith.constant 768 : index
    %32 = vector.load %arg14[%c0_48, %c768] : memref<256x1152xbf16, #tpu.memory_space<vmem>>, vector<256x128xbf16>
    tpu.vector_store %arg14[%c0_48, %c768], %31 {strides = array<i32>} : memref<256x1152xbf16, #tpu.memory_space<vmem>>, vector<256x128xbf16>,
    %c2_49 = arith.constant 2 : index
    %c1_50 = arith.constant 1 : index
    %c0_51 = arith.constant 0 : index
    %33 = vector.load %arg13[%c2_49, %c1_50, %c0_51] : memref<18x18x128xbf16, #tpu.memory_space<vmem>>, vector<16x16x128xbf16>
    %34 = vector.shape_cast %33 : vector<16x16x128xbf16> to vector<256x128xbf16>
    %c0_52 = arith.constant 0 : index
    %c896 = arith.constant 896 : index
    %35 = vector.load %arg14[%c0_52, %c896] : memref<256x1152xbf16, #tpu.memory_space<vmem>>, vector<256x128xbf16>
    tpu.vector_store %arg14[%c0_52, %c896], %34 {strides = array<i32>} : memref<256x1152xbf16, #tpu.memory_space<vmem>>, vector<256x128xbf16>,
    %c2_53 = arith.constant 2 : index
    %c2_54 = arith.constant 2 : index
    %c0_55 = arith.constant 0 : index
    %36 = vector.load %arg13[%c2_53, %c2_54, %c0_55] : memref<18x18x128xbf16, #tpu.memory_space<vmem>>, vector<16x16x128xbf16>
    %37 = vector.shape_cast %36 : vector<16x16x128xbf16> to vector<256x128xbf16>
    %c0_56 = arith.constant 0 : index
    %c1024 = arith.constant 1024 : index
    %38 = vector.load %arg14[%c0_56, %c1024] : memref<256x1152xbf16, #tpu.memory_space<vmem>>, vector<256x128xbf16>
    tpu.vector_store %arg14[%c0_56, %c1024], %37 {strides = array<i32>} : memref<256x1152xbf16, #tpu.memory_space<vmem>>, vector<256x128xbf16>,
    %c0_57 = arith.constant 0 : index
    %c0_58 = arith.constant 0 : index
    %39 = vector.load %arg14[%c0_57, %c0_58] : memref<256x1152xbf16, #tpu.memory_space<vmem>>, vector<256x1152xbf16>
    %c0_59 = arith.constant 0 : index
    %c0_60 = arith.constant 0 : index
    %40 = vector.load %arg2[%c0_59, %c0_60] : memref<1152x128xbf16, #tpu.memory_space<vmem>>, vector<1152x128xbf16>
    %cst = arith.constant dense<0.000000e+00> : vector<256x128xf32>
    %41 = tpu.matmul %39, %40, %cst {dimension_numbers = #tpu.dot_dimension_numbers<[1], [0], [0], [1], [0, 0, 1, 1], [], []>} : vector<256x1152xbf16>, vector<1152x128xbf16>, vector<256x128xf32> -> vector<256x128xf32>
    %42 = math.tanh %41 : vector<256x128xf32>
    %43 = arith.truncf %42 : vector<256x128xf32> to vector<256x128xbf16>
    %c0_61 = arith.constant 0 : index
    %c0_62 = arith.constant 0 : index
    %44 = vector.load %arg3[%c0_61, %c0_62] : memref<128x128xbf16, #tpu.memory_space<vmem>>, vector<128x128xbf16>
    %cst_63 = arith.constant dense<0.000000e+00> : vector<256x128xf32>
    %45 = tpu.matmul %43, %44, %cst_63 {dimension_numbers = #tpu.dot_dimension_numbers<[1], [0], [0], [1], [0, 0, 1, 1], [], []>} : vector<256x128xbf16>, vector<128x128xbf16>, vector<256x128xf32> -> vector<256x128xf32>
    %46 = arith.negf %45 : vector<256x128xf32>
    %47 = math.exp %46 : vector<256x128xf32>
    %cst_64 = arith.constant 1.000000e+00 : f32
    %48 = vector.broadcast %cst_64 : f32 to vector<256x128xf32>
    %49 = arith.addf %48, %47 : vector<256x128xf32>
    %50 = arith.divf %48, %49 : vector<256x128xf32>
    %c0_65 = arith.constant 0 : index
    %c0_66 = arith.constant 0 : index
    %51 = vector.load %arg15[%c0_65, %c0_66] : memref<256x128xf32, #tpu.memory_space<vmem>>, vector<256x128xf32>
    tpu.vector_store %arg15[%c0_65, %c0_66], %50 {strides = array<i32>} : memref<256x128xf32, #tpu.memory_space<vmem>>, vector<256x128xf32>,
    %cst_67 = arith.constant dense<0.000000e+00> : vector<128xf32>
    %52 = vector.multi_reduction <add>, %50, %cst_67 [0] : vector<256x128xf32> to vector<128xf32>
    %53 = vector.shape_cast %52 : vector<128xf32> to vector<1x128xf32>
    %cst_68 = arith.constant 2.560000e+02 : f32
    %54 = vector.broadcast %cst_68 : f32 to vector<1x128xf32>
    %55 = arith.divf %53, %54 : vector<1x128xf32>
    %cst_69 = arith.constant dense<0xFF800000> : vector<128xf32>
    %56 = vector.multi_reduction <maximumf>, %50, %cst_69 [0] : vector<256x128xf32> to vector<128xf32>
    %57 = vector.shape_cast %56 : vector<128xf32> to vector<1x128xf32>
    %58 = tpu.concatenate %55, %57 in 0 : vector<1x128xf32>, vector<1x128xf32> -> vector<2x128xf32>
    %59 = arith.truncf %58 : vector<2x128xf32> to vector<2x128xbf16>
    %c0_70 = arith.constant 0 : index
    %c0_71 = arith.constant 0 : index
    %60 = vector.load %arg4[%c0_70, %c0_71] : memref<128x64xbf16, #tpu.memory_space<vmem>>, vector<128x64xbf16>
    %cst_72 = arith.constant dense<0.000000e+00> : vector<2x64xf32>
    %61 = tpu.matmul %59, %60, %cst_72 {dimension_numbers = #tpu.dot_dimension_numbers<[1], [0], [0], [1], [0, 0, 1, 1], [], []>} : vector<2x128xbf16>, vector<128x64xbf16>, vector<2x64xf32> -> vector<2x64xf32>
    %cst_73 = arith.constant 0.000000e+00 : f32
    %62 = vector.broadcast %cst_73 : f32 to vector<2x64xf32>
    %63 = arith.maximumf %61, %62 : vector<2x64xf32>
    %64 = arith.truncf %63 : vector<2x64xf32> to vector<2x64xbf16>
    %c0_74 = arith.constant 0 : index
    %c0_75 = arith.constant 0 : index
    %65 = vector.load %arg5[%c0_74, %c0_75] : memref<64x128xbf16, #tpu.memory_space<vmem>>, vector<64x128xbf16>
    %cst_76 = arith.constant dense<0.000000e+00> : vector<2x128xf32>
    %66 = tpu.matmul %64, %65, %cst_76 {dimension_numbers = #tpu.dot_dimension_numbers<[1], [0], [0], [1], [0, 0, 1, 1], [], []>} : vector<2x64xbf16>, vector<64x128xbf16>, vector<2x128xf32> -> vector<2x128xf32>
    %67 = vector.extract_strided_slice %66 {offsets = [0, 0], sizes = [1, 128], strides = [1, 1]} : vector<2x128xf32> to vector<1x128xf32>
    %68 = vector.extract_strided_slice %66 {offsets = [1, 0], sizes = [1, 128], strides = [1, 1]} : vector<2x128xf32> to vector<1x128xf32>
    %69 = arith.mulf %67, %68 : vector<1x128xf32>
    %70 = arith.negf %69 : vector<1x128xf32>
    %71 = math.exp %70 : vector<1x128xf32>
    %cst_77 = arith.constant 1.000000e+00 : f32
    %72 = vector.broadcast %cst_77 : f32 to vector<1x128xf32>
    %73 = arith.addf %72, %71 : vector<1x128xf32>
    %74 = arith.divf %72, %73 : vector<1x128xf32>
    %75 = vector.shape_cast %50 : vector<256x128xf32> to vector<16x16x128xf32>
    %c4 = arith.constant 4 : index
    %c4_78 = arith.constant 4 : index
    %c0_79 = arith.constant 0 : index
    %76 = vector.load %arg16[%c4, %c4_78, %c0_79] : memref<24x24x128xf32, #tpu.memory_space<vmem>>, vector<16x16x128xf32>
    tpu.vector_store %arg16[%c4, %c4_78, %c0_79], %75 {strides = array<i32>} : memref<24x24x128xf32, #tpu.memory_space<vmem>>, vector<16x16x128xf32>,
    %77 = vector.extract_strided_slice %75 {offsets = [1, 0, 0], sizes = [1, 16, 128], strides = [1, 1, 1]} : vector<16x16x128xf32> to vector<1x16x128xf32>
    %c3 = arith.constant 3 : index
    %c4_80 = arith.constant 4 : index
    %c0_81 = arith.constant 0 : index
    %78 = vector.load %arg16[%c3, %c4_80, %c0_81] : memref<24x24x128xf32, #tpu.memory_space<vmem>>, vector<1x16x128xf32>
    tpu.vector_store %arg16[%c3, %c4_80, %c0_81], %77 {strides = array<i32>} : memref<24x24x128xf32, #tpu.memory_space<vmem>>, vector<1x16x128xf32>,
    %79 = vector.extract_strided_slice %75 {offsets = [14, 0, 0], sizes = [1, 16, 128], strides = [1, 1, 1]} : vector<16x16x128xf32> to vector<1x16x128xf32>
    %c20 = arith.constant 20 : index
    %c4_82 = arith.constant 4 : index
    %c0_83 = arith.constant 0 : index
    %80 = vector.load %arg16[%c20, %c4_82, %c0_83] : memref<24x24x128xf32, #tpu.memory_space<vmem>>, vector<1x16x128xf32>
    tpu.vector_store %arg16[%c20, %c4_82, %c0_83], %79 {strides = array<i32>} : memref<24x24x128xf32, #tpu.memory_space<vmem>>, vector<1x16x128xf32>,
    %81 = vector.extract_strided_slice %75 {offsets = [2, 0, 0], sizes = [1, 16, 128], strides = [1, 1, 1]} : vector<16x16x128xf32> to vector<1x16x128xf32>
    %c2_84 = arith.constant 2 : index
    %c4_85 = arith.constant 4 : index
    %c0_86 = arith.constant 0 : index
    %82 = vector.load %arg16[%c2_84, %c4_85, %c0_86] : memref<24x24x128xf32, #tpu.memory_space<vmem>>, vector<1x16x128xf32>
    tpu.vector_store %arg16[%c2_84, %c4_85, %c0_86], %81 {strides = array<i32>} : memref<24x24x128xf32, #tpu.memory_space<vmem>>, vector<1x16x128xf32>,
    %83 = vector.extract_strided_slice %75 {offsets = [13, 0, 0], sizes = [1, 16, 128], strides = [1, 1, 1]} : vector<16x16x128xf32> to vector<1x16x128xf32>
    %c21 = arith.constant 21 : index
    %c4_87 = arith.constant 4 : index
    %c0_88 = arith.constant 0 : index
    %84 = vector.load %arg16[%c21, %c4_87, %c0_88] : memref<24x24x128xf32, #tpu.memory_space<vmem>>, vector<1x16x128xf32>
    tpu.vector_store %arg16[%c21, %c4_87, %c0_88], %83 {strides = array<i32>} : memref<24x24x128xf32, #tpu.memory_space<vmem>>, vector<1x16x128xf32>,
    %85 = vector.extract_strided_slice %75 {offsets = [3, 0, 0], sizes = [1, 16, 128], strides = [1, 1, 1]} : vector<16x16x128xf32> to vector<1x16x128xf32>
    %c1_89 = arith.constant 1 : index
    %c4_90 = arith.constant 4 : index
    %c0_91 = arith.constant 0 : index
    %86 = vector.load %arg16[%c1_89, %c4_90, %c0_91] : memref<24x24x128xf32, #tpu.memory_space<vmem>>, vector<1x16x128xf32>
    tpu.vector_store %arg16[%c1_89, %c4_90, %c0_91], %85 {strides = array<i32>} : memref<24x24x128xf32, #tpu.memory_space<vmem>>, vector<1x16x128xf32>,
    %87 = vector.extract_strided_slice %75 {offsets = [12, 0, 0], sizes = [1, 16, 128], strides = [1, 1, 1]} : vector<16x16x128xf32> to vector<1x16x128xf32>
    %c22 = arith.constant 22 : index
    %c4_92 = arith.constant 4 : index
    %c0_93 = arith.constant 0 : index
    %88 = vector.load %arg16[%c22, %c4_92, %c0_93] : memref<24x24x128xf32, #tpu.memory_space<vmem>>, vector<1x16x128xf32>
    tpu.vector_store %arg16[%c22, %c4_92, %c0_93], %87 {strides = array<i32>} : memref<24x24x128xf32, #tpu.memory_space<vmem>>, vector<1x16x128xf32>,
    %89 = vector.extract_strided_slice %75 {offsets = [4, 0, 0], sizes = [1, 16, 128], strides = [1, 1, 1]} : vector<16x16x128xf32> to vector<1x16x128xf32>
    %c0_94 = arith.constant 0 : index
    %c4_95 = arith.constant 4 : index
    %c0_96 = arith.constant 0 : index
    %90 = vector.load %arg16[%c0_94, %c4_95, %c0_96] : memref<24x24x128xf32, #tpu.memory_space<vmem>>, vector<1x16x128xf32>
    tpu.vector_store %arg16[%c0_94, %c4_95, %c0_96], %89 {strides = array<i32>} : memref<24x24x128xf32, #tpu.memory_space<vmem>>, vector<1x16x128xf32>,
    %91 = vector.extract_strided_slice %75 {offsets = [11, 0, 0], sizes = [1, 16, 128], strides = [1, 1, 1]} : vector<16x16x128xf32> to vector<1x16x128xf32>
    %c23 = arith.constant 23 : index
    %c4_97 = arith.constant 4 : index
    %c0_98 = arith.constant 0 : index
    %92 = vector.load %arg16[%c23, %c4_97, %c0_98] : memref<24x24x128xf32, #tpu.memory_space<vmem>>, vector<1x16x128xf32>
    tpu.vector_store %arg16[%c23, %c4_97, %c0_98], %91 {strides = array<i32>} : memref<24x24x128xf32, #tpu.memory_space<vmem>>, vector<1x16x128xf32>,
    %c0_99 = arith.constant 0 : index
    %c5 = arith.constant 5 : index
    %c0_100 = arith.constant 0 : index
    %93 = vector.load %arg16[%c0_99, %c5, %c0_100] : memref<24x24x128xf32, #tpu.memory_space<vmem>>, vector<24x1x128xf32>
    %c0_101 = arith.constant 0 : index
    %c3_102 = arith.constant 3 : index
    %c0_103 = arith.constant 0 : index
    %94 = vector.load %arg16[%c0_101, %c3_102, %c0_103] : memref<24x24x128xf32, #tpu.memory_space<vmem>>, vector<24x1x128xf32>
    tpu.vector_store %arg16[%c0_101, %c3_102, %c0_103], %93 {strides = array<i32>} : memref<24x24x128xf32, #tpu.memory_space<vmem>>, vector<24x1x128xf32>,
    %c0_104 = arith.constant 0 : index
    %c18 = arith.constant 18 : index
    %c0_105 = arith.constant 0 : index
    %95 = vector.load %arg16[%c0_104, %c18, %c0_105] : memref<24x24x128xf32, #tpu.memory_space<vmem>>, vector<24x1x128xf32>
    %c0_106 = arith.constant 0 : index
    %c20_107 = arith.constant 20 : index
    %c0_108 = arith.constant 0 : index
    %96 = vector.load %arg16[%c0_106, %c20_107, %c0_108] : memref<24x24x128xf32, #tpu.memory_space<vmem>>, vector<24x1x128xf32>
    tpu.vector_store %arg16[%c0_106, %c20_107, %c0_108], %95 {strides = array<i32>} : memref<24x24x128xf32, #tpu.memory_space<vmem>>, vector<24x1x128xf32>,
    %c0_109 = arith.constant 0 : index
    %c6 = arith.constant 6 : index
    %c0_110 = arith.constant 0 : index
    %97 = vector.load %arg16[%c0_109, %c6, %c0_110] : memref<24x24x128xf32, #tpu.memory_space<vmem>>, vector<24x1x128xf32>
    %c0_111 = arith.constant 0 : index
    %c2_112 = arith.constant 2 : index
    %c0_113 = arith.constant 0 : index
    %98 = vector.load %arg16[%c0_111, %c2_112, %c0_113] : memref<24x24x128xf32, #tpu.memory_space<vmem>>, vector<24x1x128xf32>
    tpu.vector_store %arg16[%c0_111, %c2_112, %c0_113], %97 {strides = array<i32>} : memref<24x24x128xf32, #tpu.memory_space<vmem>>, vector<24x1x128xf32>,
    %c0_114 = arith.constant 0 : index
    %c17_115 = arith.constant 17 : index
    %c0_116 = arith.constant 0 : index
    %99 = vector.load %arg16[%c0_114, %c17_115, %c0_116] : memref<24x24x128xf32, #tpu.memory_space<vmem>>, vector<24x1x128xf32>
    %c0_117 = arith.constant 0 : index
    %c21_118 = arith.constant 21 : index
    %c0_119 = arith.constant 0 : index
    %100 = vector.load %arg16[%c0_117, %c21_118, %c0_119] : memref<24x24x128xf32, #tpu.memory_space<vmem>>, vector<24x1x128xf32>
    tpu.vector_store %arg16[%c0_117, %c21_118, %c0_119], %99 {strides = array<i32>} : memref<24x24x128xf32, #tpu.memory_space<vmem>>, vector<24x1x128xf32>,
    %c0_120 = arith.constant 0 : index
    %c7 = arith.constant 7 : index
    %c0_121 = arith.constant 0 : index
    %101 = vector.load %arg16[%c0_120, %c7, %c0_121] : memref<24x24x128xf32, #tpu.memory_space<vmem>>, vector<24x1x128xf32>
    %c0_122 = arith.constant 0 : index
    %c1_123 = arith.constant 1 : index
    %c0_124 = arith.constant 0 : index
    %102 = vector.load %arg16[%c0_122, %c1_123, %c0_124] : memref<24x24x128xf32, #tpu.memory_space<vmem>>, vector<24x1x128xf32>
    tpu.vector_store %arg16[%c0_122, %c1_123, %c0_124], %101 {strides = array<i32>} : memref<24x24x128xf32, #tpu.memory_space<vmem>>, vector<24x1x128xf32>,
    %c0_125 = arith.constant 0 : index
    %c16 = arith.constant 16 : index
    %c0_126 = arith.constant 0 : index
    %103 = vector.load %arg16[%c0_125, %c16, %c0_126] : memref<24x24x128xf32, #tpu.memory_space<vmem>>, vector<24x1x128xf32>
    %c0_127 = arith.constant 0 : index
    %c22_128 = arith.constant 22 : index
    %c0_129 = arith.constant 0 : index
    %104 = vector.load %arg16[%c0_127, %c22_128, %c0_129] : memref<24x24x128xf32, #tpu.memory_space<vmem>>, vector<24x1x128xf32>
    tpu.vector_store %arg16[%c0_127, %c22_128, %c0_129], %103 {strides = array<i32>} : memref<24x24x128xf32, #tpu.memory_space<vmem>>, vector<24x1x128xf32>,
    %c0_130 = arith.constant 0 : index
    %c8 = arith.constant 8 : index
    %c0_131 = arith.constant 0 : index
    %105 = vector.load %arg16[%c0_130, %c8, %c0_131] : memref<24x24x128xf32, #tpu.memory_space<vmem>>, vector<24x1x128xf32>
    %c0_132 = arith.constant 0 : index
    %c0_133 = arith.constant 0 : index
    %c0_134 = arith.constant 0 : index
    %106 = vector.load %arg16[%c0_132, %c0_133, %c0_134] : memref<24x24x128xf32, #tpu.memory_space<vmem>>, vector<24x1x128xf32>
    tpu.vector_store %arg16[%c0_132, %c0_133, %c0_134], %105 {strides = array<i32>} : memref<24x24x128xf32, #tpu.memory_space<vmem>>, vector<24x1x128xf32>,
    %c0_135 = arith.constant 0 : index
    %c15_136 = arith.constant 15 : index
    %c0_137 = arith.constant 0 : index
    %107 = vector.load %arg16[%c0_135, %c15_136, %c0_137] : memref<24x24x128xf32, #tpu.memory_space<vmem>>, vector<24x1x128xf32>
    %c0_138 = arith.constant 0 : index
    %c23_139 = arith.constant 23 : index
    %c0_140 = arith.constant 0 : index
    %108 = vector.load %arg16[%c0_138, %c23_139, %c0_140] : memref<24x24x128xf32, #tpu.memory_space<vmem>>, vector<24x1x128xf32>
    tpu.vector_store %arg16[%c0_138, %c23_139, %c0_140], %107 {strides = array<i32>} : memref<24x24x128xf32, #tpu.memory_space<vmem>>, vector<24x1x128xf32>,
    %c0_141 = arith.constant 0 : index
    %c0_142 = arith.constant 0 : index
    %109 = vector.load %arg6[%c0_141, %c0_142] : memref<25x128xf32, #tpu.memory_space<vmem>>, vector<25x128xf32>
    %cst_143 = arith.constant 0.000000e+00 : f32
    %110 = vector.broadcast %cst_143 : f32 to vector<256x128xf32>
    %c0_144 = arith.constant 0 : index
    %c0_145 = arith.constant 0 : index
    %c0_146 = arith.constant 0 : index
    %111 = vector.load %arg16[%c0_144, %c0_145, %c0_146] : memref<24x24x128xf32, #tpu.memory_space<vmem>>, vector<24x16x128xf32>
    %112 = vector.extract_strided_slice %111 {offsets = [0, 0, 0], sizes = [16, 16, 128], strides = [1, 1, 1]} : vector<24x16x128xf32> to vector<16x16x128xf32>
    %113 = vector.shape_cast %112 : vector<16x16x128xf32> to vector<256x128xf32>
    %114 = vector.extract_strided_slice %109 {offsets = [0, 0], sizes = [1, 128], strides = [1, 1]} : vector<25x128xf32> to vector<1x128xf32>
    %115 = vector.broadcast %114 : vector<1x128xf32> to vector<256x128xf32>
    %116 = arith.mulf %113, %115 : vector<256x128xf32>
    %117 = arith.addf %110, %116 : vector<256x128xf32>
    %118 = vector.extract_strided_slice %111 {offsets = [2, 0, 0], sizes = [16, 16, 128], strides = [1, 1, 1]} : vector<24x16x128xf32> to vector<16x16x128xf32>
    %119 = vector.shape_cast %118 : vector<16x16x128xf32> to vector<256x128xf32>
    %120 = vector.extract_strided_slice %109 {offsets = [5, 0], sizes = [1, 128], strides = [1, 1]} : vector<25x128xf32> to vector<1x128xf32>
    %121 = vector.broadcast %120 : vector<1x128xf32> to vector<256x128xf32>
    %122 = arith.mulf %119, %121 : vector<256x128xf32>
    %123 = arith.addf %117, %122 : vector<256x128xf32>
    %124 = vector.extract_strided_slice %111 {offsets = [4, 0, 0], sizes = [16, 16, 128], strides = [1, 1, 1]} : vector<24x16x128xf32> to vector<16x16x128xf32>
    %125 = vector.shape_cast %124 : vector<16x16x128xf32> to vector<256x128xf32>
    %126 = vector.extract_strided_slice %109 {offsets = [10, 0], sizes = [1, 128], strides = [1, 1]} : vector<25x128xf32> to vector<1x128xf32>
    %127 = vector.broadcast %126 : vector<1x128xf32> to vector<256x128xf32>
    %128 = arith.mulf %125, %127 : vector<256x128xf32>
    %129 = arith.addf %123, %128 : vector<256x128xf32>
    %130 = vector.extract_strided_slice %111 {offsets = [6, 0, 0], sizes = [16, 16, 128], strides = [1, 1, 1]} : vector<24x16x128xf32> to vector<16x16x128xf32>
    %131 = vector.shape_cast %130 : vector<16x16x128xf32> to vector<256x128xf32>
    %132 = vector.extract_strided_slice %109 {offsets = [15, 0], sizes = [1, 128], strides = [1, 1]} : vector<25x128xf32> to vector<1x128xf32>
    %133 = vector.broadcast %132 : vector<1x128xf32> to vector<256x128xf32>
    %134 = arith.mulf %131, %133 : vector<256x128xf32>
    %135 = arith.addf %129, %134 : vector<256x128xf32>
    %136 = vector.extract_strided_slice %111 {offsets = [8, 0, 0], sizes = [16, 16, 128], strides = [1, 1, 1]} : vector<24x16x128xf32> to vector<16x16x128xf32>
    %137 = vector.shape_cast %136 : vector<16x16x128xf32> to vector<256x128xf32>
    %138 = vector.extract_strided_slice %109 {offsets = [20, 0], sizes = [1, 128], strides = [1, 1]} : vector<25x128xf32> to vector<1x128xf32>
    %139 = vector.broadcast %138 : vector<1x128xf32> to vector<256x128xf32>
    %140 = arith.mulf %137, %139 : vector<256x128xf32>
    %141 = arith.addf %135, %140 : vector<256x128xf32>
    %c0_147 = arith.constant 0 : index
    %c2_148 = arith.constant 2 : index
    %c0_149 = arith.constant 0 : index
    %142 = vector.load %arg16[%c0_147, %c2_148, %c0_149] : memref<24x24x128xf32, #tpu.memory_space<vmem>>, vector<24x16x128xf32>
    %143 = vector.extract_strided_slice %142 {offsets = [0, 0, 0], sizes = [16, 16, 128], strides = [1, 1, 1]} : vector<24x16x128xf32> to vector<16x16x128xf32>
    %144 = vector.shape_cast %143 : vector<16x16x128xf32> to vector<256x128xf32>
    %145 = vector.extract_strided_slice %109 {offsets = [1, 0], sizes = [1, 128], strides = [1, 1]} : vector<25x128xf32> to vector<1x128xf32>
    %146 = vector.broadcast %145 : vector<1x128xf32> to vector<256x128xf32>
    %147 = arith.mulf %144, %146 : vector<256x128xf32>
    %148 = arith.addf %141, %147 : vector<256x128xf32>
    %149 = vector.extract_strided_slice %142 {offsets = [2, 0, 0], sizes = [16, 16, 128], strides = [1, 1, 1]} : vector<24x16x128xf32> to vector<16x16x128xf32>
    %150 = vector.shape_cast %149 : vector<16x16x128xf32> to vector<256x128xf32>
    %151 = vector.extract_strided_slice %109 {offsets = [6, 0], sizes = [1, 128], strides = [1, 1]} : vector<25x128xf32> to vector<1x128xf32>
    %152 = vector.broadcast %151 : vector<1x128xf32> to vector<256x128xf32>
    %153 = arith.mulf %150, %152 : vector<256x128xf32>
    %154 = arith.addf %148, %153 : vector<256x128xf32>
    %155 = vector.extract_strided_slice %142 {offsets = [4, 0, 0], sizes = [16, 16, 128], strides = [1, 1, 1]} : vector<24x16x128xf32> to vector<16x16x128xf32>
    %156 = vector.shape_cast %155 : vector<16x16x128xf32> to vector<256x128xf32>
    %157 = vector.extract_strided_slice %109 {offsets = [11, 0], sizes = [1, 128], strides = [1, 1]} : vector<25x128xf32> to vector<1x128xf32>
    %158 = vector.broadcast %157 : vector<1x128xf32> to vector<256x128xf32>
    %159 = arith.mulf %156, %158 : vector<256x128xf32>
    %160 = arith.addf %154, %159 : vector<256x128xf32>
    %161 = vector.extract_strided_slice %142 {offsets = [6, 0, 0], sizes = [16, 16, 128], strides = [1, 1, 1]} : vector<24x16x128xf32> to vector<16x16x128xf32>
    %162 = vector.shape_cast %161 : vector<16x16x128xf32> to vector<256x128xf32>
    %163 = vector.extract_strided_slice %109 {offsets = [16, 0], sizes = [1, 128], strides = [1, 1]} : vector<25x128xf32> to vector<1x128xf32>
    %164 = vector.broadcast %163 : vector<1x128xf32> to vector<256x128xf32>
    %165 = arith.mulf %162, %164 : vector<256x128xf32>
    %166 = arith.addf %160, %165 : vector<256x128xf32>
    %167 = vector.extract_strided_slice %142 {offsets = [8, 0, 0], sizes = [16, 16, 128], strides = [1, 1, 1]} : vector<24x16x128xf32> to vector<16x16x128xf32>
    %168 = vector.shape_cast %167 : vector<16x16x128xf32> to vector<256x128xf32>
    %169 = vector.extract_strided_slice %109 {offsets = [21, 0], sizes = [1, 128], strides = [1, 1]} : vector<25x128xf32> to vector<1x128xf32>
    %170 = vector.broadcast %169 : vector<1x128xf32> to vector<256x128xf32>
    %171 = arith.mulf %168, %170 : vector<256x128xf32>
    %172 = arith.addf %166, %171 : vector<256x128xf32>
    %c0_150 = arith.constant 0 : index
    %c4_151 = arith.constant 4 : index
    %c0_152 = arith.constant 0 : index
    %173 = vector.load %arg16[%c0_150, %c4_151, %c0_152] : memref<24x24x128xf32, #tpu.memory_space<vmem>>, vector<24x16x128xf32>
    %174 = vector.extract_strided_slice %173 {offsets = [0, 0, 0], sizes = [16, 16, 128], strides = [1, 1, 1]} : vector<24x16x128xf32> to vector<16x16x128xf32>
    %175 = vector.shape_cast %174 : vector<16x16x128xf32> to vector<256x128xf32>
    %176 = vector.extract_strided_slice %109 {offsets = [2, 0], sizes = [1, 128], strides = [1, 1]} : vector<25x128xf32> to vector<1x128xf32>
    %177 = vector.broadcast %176 : vector<1x128xf32> to vector<256x128xf32>
    %178 = arith.mulf %175, %177 : vector<256x128xf32>
    %179 = arith.addf %172, %178 : vector<256x128xf32>
    %180 = vector.extract_strided_slice %173 {offsets = [2, 0, 0], sizes = [16, 16, 128], strides = [1, 1, 1]} : vector<24x16x128xf32> to vector<16x16x128xf32>
    %181 = vector.shape_cast %180 : vector<16x16x128xf32> to vector<256x128xf32>
    %182 = vector.extract_strided_slice %109 {offsets = [7, 0], sizes = [1, 128], strides = [1, 1]} : vector<25x128xf32> to vector<1x128xf32>
    %183 = vector.broadcast %182 : vector<1x128xf32> to vector<256x128xf32>
    %184 = arith.mulf %181, %183 : vector<256x128xf32>
    %185 = arith.addf %179, %184 : vector<256x128xf32>
    %186 = vector.extract_strided_slice %173 {offsets = [4, 0, 0], sizes = [16, 16, 128], strides = [1, 1, 1]} : vector<24x16x128xf32> to vector<16x16x128xf32>
    %187 = vector.shape_cast %186 : vector<16x16x128xf32> to vector<256x128xf32>
    %188 = vector.extract_strided_slice %109 {offsets = [12, 0], sizes = [1, 128], strides = [1, 1]} : vector<25x128xf32> to vector<1x128xf32>
    %189 = vector.broadcast %188 : vector<1x128xf32> to vector<256x128xf32>
    %190 = arith.mulf %187, %189 : vector<256x128xf32>
    %191 = arith.addf %185, %190 : vector<256x128xf32>
    %192 = vector.extract_strided_slice %173 {offsets = [6, 0, 0], sizes = [16, 16, 128], strides = [1, 1, 1]} : vector<24x16x128xf32> to vector<16x16x128xf32>
    %193 = vector.shape_cast %192 : vector<16x16x128xf32> to vector<256x128xf32>
    %194 = vector.extract_strided_slice %109 {offsets = [17, 0], sizes = [1, 128], strides = [1, 1]} : vector<25x128xf32> to vector<1x128xf32>
    %195 = vector.broadcast %194 : vector<1x128xf32> to vector<256x128xf32>
    %196 = arith.mulf %193, %195 : vector<256x128xf32>
    %197 = arith.addf %191, %196 : vector<256x128xf32>
    %198 = vector.extract_strided_slice %173 {offsets = [8, 0, 0], sizes = [16, 16, 128], strides = [1, 1, 1]} : vector<24x16x128xf32> to vector<16x16x128xf32>
    %199 = vector.shape_cast %198 : vector<16x16x128xf32> to vector<256x128xf32>
    %200 = vector.extract_strided_slice %109 {offsets = [22, 0], sizes = [1, 128], strides = [1, 1]} : vector<25x128xf32> to vector<1x128xf32>
    %201 = vector.broadcast %200 : vector<1x128xf32> to vector<256x128xf32>
    %202 = arith.mulf %199, %201 : vector<256x128xf32>
    %203 = arith.addf %197, %202 : vector<256x128xf32>
    %c0_153 = arith.constant 0 : index
    %c6_154 = arith.constant 6 : index
    %c0_155 = arith.constant 0 : index
    %204 = vector.load %arg16[%c0_153, %c6_154, %c0_155] : memref<24x24x128xf32, #tpu.memory_space<vmem>>, vector<24x16x128xf32>
    %205 = vector.extract_strided_slice %204 {offsets = [0, 0, 0], sizes = [16, 16, 128], strides = [1, 1, 1]} : vector<24x16x128xf32> to vector<16x16x128xf32>
    %206 = vector.shape_cast %205 : vector<16x16x128xf32> to vector<256x128xf32>
    %207 = vector.extract_strided_slice %109 {offsets = [3, 0], sizes = [1, 128], strides = [1, 1]} : vector<25x128xf32> to vector<1x128xf32>
    %208 = vector.broadcast %207 : vector<1x128xf32> to vector<256x128xf32>
    %209 = arith.mulf %206, %208 : vector<256x128xf32>
    %210 = arith.addf %203, %209 : vector<256x128xf32>
    %211 = vector.extract_strided_slice %204 {offsets = [2, 0, 0], sizes = [16, 16, 128], strides = [1, 1, 1]} : vector<24x16x128xf32> to vector<16x16x128xf32>
    %212 = vector.shape_cast %211 : vector<16x16x128xf32> to vector<256x128xf32>
    %213 = vector.extract_strided_slice %109 {offsets = [8, 0], sizes = [1, 128], strides = [1, 1]} : vector<25x128xf32> to vector<1x128xf32>
    %214 = vector.broadcast %213 : vector<1x128xf32> to vector<256x128xf32>
    %215 = arith.mulf %212, %214 : vector<256x128xf32>
    %216 = arith.addf %210, %215 : vector<256x128xf32>
    %217 = vector.extract_strided_slice %204 {offsets = [4, 0, 0], sizes = [16, 16, 128], strides = [1, 1, 1]} : vector<24x16x128xf32> to vector<16x16x128xf32>
    %218 = vector.shape_cast %217 : vector<16x16x128xf32> to vector<256x128xf32>
    %219 = vector.extract_strided_slice %109 {offsets = [13, 0], sizes = [1, 128], strides = [1, 1]} : vector<25x128xf32> to vector<1x128xf32>
    %220 = vector.broadcast %219 : vector<1x128xf32> to vector<256x128xf32>
    %221 = arith.mulf %218, %220 : vector<256x128xf32>
    %222 = arith.addf %216, %221 : vector<256x128xf32>
    %223 = vector.extract_strided_slice %204 {offsets = [6, 0, 0], sizes = [16, 16, 128], strides = [1, 1, 1]} : vector<24x16x128xf32> to vector<16x16x128xf32>
    %224 = vector.shape_cast %223 : vector<16x16x128xf32> to vector<256x128xf32>
    %225 = vector.extract_strided_slice %109 {offsets = [18, 0], sizes = [1, 128], strides = [1, 1]} : vector<25x128xf32> to vector<1x128xf32>
    %226 = vector.broadcast %225 : vector<1x128xf32> to vector<256x128xf32>
    %227 = arith.mulf %224, %226 : vector<256x128xf32>
    %228 = arith.addf %222, %227 : vector<256x128xf32>
    %229 = vector.extract_strided_slice %204 {offsets = [8, 0, 0], sizes = [16, 16, 128], strides = [1, 1, 1]} : vector<24x16x128xf32> to vector<16x16x128xf32>
    %230 = vector.shape_cast %229 : vector<16x16x128xf32> to vector<256x128xf32>
    %231 = vector.extract_strided_slice %109 {offsets = [23, 0], sizes = [1, 128], strides = [1, 1]} : vector<25x128xf32> to vector<1x128xf32>
    %232 = vector.broadcast %231 : vector<1x128xf32> to vector<256x128xf32>
    %233 = arith.mulf %230, %232 : vector<256x128xf32>
    %234 = arith.addf %228, %233 : vector<256x128xf32>
    %c0_156 = arith.constant 0 : index
    %c8_157 = arith.constant 8 : index
    %c0_158 = arith.constant 0 : index
    %235 = vector.load %arg16[%c0_156, %c8_157, %c0_158] : memref<24x24x128xf32, #tpu.memory_space<vmem>>, vector<24x16x128xf32>
    %236 = vector.extract_strided_slice %235 {offsets = [0, 0, 0], sizes = [16, 16, 128], strides = [1, 1, 1]} : vector<24x16x128xf32> to vector<16x16x128xf32>
    %237 = vector.shape_cast %236 : vector<16x16x128xf32> to vector<256x128xf32>
    %238 = vector.extract_strided_slice %109 {offsets = [4, 0], sizes = [1, 128], strides = [1, 1]} : vector<25x128xf32> to vector<1x128xf32>
    %239 = vector.broadcast %238 : vector<1x128xf32> to vector<256x128xf32>
    %240 = arith.mulf %237, %239 : vector<256x128xf32>
    %241 = arith.addf %234, %240 : vector<256x128xf32>
    %242 = vector.extract_strided_slice %235 {offsets = [2, 0, 0], sizes = [16, 16, 128], strides = [1, 1, 1]} : vector<24x16x128xf32> to vector<16x16x128xf32>
    %243 = vector.shape_cast %242 : vector<16x16x128xf32> to vector<256x128xf32>
    %244 = vector.extract_strided_slice %109 {offsets = [9, 0], sizes = [1, 128], strides = [1, 1]} : vector<25x128xf32> to vector<1x128xf32>
    %245 = vector.broadcast %244 : vector<1x128xf32> to vector<256x128xf32>
    %246 = arith.mulf %243, %245 : vector<256x128xf32>
    %247 = arith.addf %241, %246 : vector<256x128xf32>
    %248 = vector.extract_strided_slice %235 {offsets = [4, 0, 0], sizes = [16, 16, 128], strides = [1, 1, 1]} : vector<24x16x128xf32> to vector<16x16x128xf32>
    %249 = vector.shape_cast %248 : vector<16x16x128xf32> to vector<256x128xf32>
    %250 = vector.extract_strided_slice %109 {offsets = [14, 0], sizes = [1, 128], strides = [1, 1]} : vector<25x128xf32> to vector<1x128xf32>
    %251 = vector.broadcast %250 : vector<1x128xf32> to vector<256x128xf32>
    %252 = arith.mulf %249, %251 : vector<256x128xf32>
    %253 = arith.addf %247, %252 : vector<256x128xf32>
    %254 = vector.extract_strided_slice %235 {offsets = [6, 0, 0], sizes = [16, 16, 128], strides = [1, 1, 1]} : vector<24x16x128xf32> to vector<16x16x128xf32>
    %255 = vector.shape_cast %254 : vector<16x16x128xf32> to vector<256x128xf32>
    %256 = vector.extract_strided_slice %109 {offsets = [19, 0], sizes = [1, 128], strides = [1, 1]} : vector<25x128xf32> to vector<1x128xf32>
    %257 = vector.broadcast %256 : vector<1x128xf32> to vector<256x128xf32>
    %258 = arith.mulf %255, %257 : vector<256x128xf32>
    %259 = arith.addf %253, %258 : vector<256x128xf32>
    %260 = vector.extract_strided_slice %235 {offsets = [8, 0, 0], sizes = [16, 16, 128], strides = [1, 1, 1]} : vector<24x16x128xf32> to vector<16x16x128xf32>
    %261 = vector.shape_cast %260 : vector<16x16x128xf32> to vector<256x128xf32>
    %262 = vector.extract_strided_slice %109 {offsets = [24, 0], sizes = [1, 128], strides = [1, 1]} : vector<25x128xf32> to vector<1x128xf32>
    %263 = vector.broadcast %262 : vector<1x128xf32> to vector<256x128xf32>
    %264 = arith.mulf %261, %263 : vector<256x128xf32>
    %265 = arith.addf %259, %264 : vector<256x128xf32>
    %c0_159 = arith.constant 0 : index
    %c0_160 = arith.constant 0 : index
    %266 = vector.load %arg7[%c0_159, %c0_160] : memref<1x128xf32, #tpu.memory_space<vmem>>, vector<1x128xf32>
    %267 = vector.broadcast %266 : vector<1x128xf32> to vector<256x128xf32>
    %268 = arith.addf %265, %267 : vector<256x128xf32>
    %cst_161 = arith.constant 0.000000e+00 : f32
    %269 = vector.broadcast %cst_161 : f32 to vector<256x128xf32>
    %270 = arith.maximumf %268, %269 : vector<256x128xf32>
    %271 = arith.truncf %270 : vector<256x128xf32> to vector<256x128xbf16>
    %c0_162 = arith.constant 0 : index
    %c0_163 = arith.constant 0 : index
    %272 = vector.load %arg8[%c0_162, %c0_163] : memref<128x128xbf16, #tpu.memory_space<vmem>>, vector<128x128xbf16>
    %cst_164 = arith.constant dense<0.000000e+00> : vector<256x128xf32>
    %273 = tpu.matmul %271, %272, %cst_164 {dimension_numbers = #tpu.dot_dimension_numbers<[1], [0], [0], [1], [0, 0, 1, 1], [], []>} : vector<256x128xbf16>, vector<128x128xbf16>, vector<256x128xf32> -> vector<256x128xf32>
    %c0_165 = arith.constant 0 : index
    %c0_166 = arith.constant 0 : index
    %274 = vector.load %arg9[%c0_165, %c0_166] : memref<1x128xf32, #tpu.memory_space<vmem>>, vector<1x128xf32>
    %275 = vector.broadcast %274 : vector<1x128xf32> to vector<256x128xf32>
    %276 = arith.addf %273, %275 : vector<256x128xf32>
    %c0_167 = arith.constant 0 : index
    %c0_168 = arith.constant 0 : index
    %277 = vector.load %arg15[%c0_167, %c0_168] : memref<256x128xf32, #tpu.memory_space<vmem>>, vector<256x128xf32>
    %278 = vector.broadcast %74 : vector<1x128xf32> to vector<256x128xf32>
    %279 = arith.mulf %277, %278 : vector<256x128xf32>
    %280 = arith.negf %276 : vector<256x128xf32>
    %281 = math.exp %280 : vector<256x128xf32>
    %cst_169 = arith.constant 1.000000e+00 : f32
    %282 = vector.broadcast %cst_169 : f32 to vector<256x128xf32>
    %283 = arith.addf %282, %281 : vector<256x128xf32>
    %284 = arith.divf %282, %283 : vector<256x128xf32>
    %285 = arith.negf %284 : vector<256x128xf32>
    %286 = math.exp %285 : vector<256x128xf32>
    %cst_170 = arith.constant 1.000000e+00 : f32
    %287 = vector.broadcast %cst_170 : f32 to vector<256x128xf32>
    %288 = arith.addf %287, %286 : vector<256x128xf32>
    %289 = arith.divf %287, %288 : vector<256x128xf32>
    %290 = arith.mulf %277, %289 : vector<256x128xf32>
    %c0_171 = arith.constant 0 : index
    %c0_172 = arith.constant 0 : index
    %291 = vector.load %arg10[%c0_171, %c0_172] : memref<128x128xbf16, #tpu.memory_space<vmem>>, vector<128x128xbf16>
    %292 = arith.truncf %279 : vector<256x128xf32> to vector<256x128xbf16>
    %cst_173 = arith.constant dense<0.000000e+00> : vector<128x256xf32>
    %293 = tpu.matmul %291, %292, %cst_173 {dimension_numbers = #tpu.dot_dimension_numbers<[1], [1], [0], [0], [0, 0, 1, 0], [], []>} : vector<128x128xbf16>, vector<256x128xbf16>, vector<128x256xf32> -> vector<128x256xf32>
    %c0_174 = arith.constant 0 : index
    %c0_175 = arith.constant 0 : index
    %294 = vector.load %arg11[%c0_174, %c0_175] : memref<128x128xbf16, #tpu.memory_space<vmem>>, vector<128x128xbf16>
    %295 = arith.truncf %290 : vector<256x128xf32> to vector<256x128xbf16>
    %cst_176 = arith.constant dense<0.000000e+00> : vector<128x256xf32>
    %296 = tpu.matmul %294, %295, %cst_176 {dimension_numbers = #tpu.dot_dimension_numbers<[1], [1], [0], [0], [0, 0, 1, 0], [], []>} : vector<128x128xbf16>, vector<256x128xbf16>, vector<128x256xf32> -> vector<128x256xf32>
    %297 = arith.addf %293, %296 : vector<128x256xf32>
    %298 = vector.shape_cast %297 : vector<128x256xf32> to vector<4x32x256xf32>
    %c0_177 = arith.constant 0 : index
    %c0_178 = arith.constant 0 : index
    %c0_179 = arith.constant 0 : index
    %299 = vector.load %arg12[%c0_177, %c0_178, %c0_179] : memref<4x32x256xf32, #tpu.memory_space<vmem>>, vector<4x32x256xf32>
    tpu.vector_store %arg12[%c0_177, %c0_178, %c0_179], %298 {strides = array<i32>} : memref<4x32x256xf32, #tpu.memory_space<vmem>>, vector<4x32x256xf32>,
    return
  }
  func.func @transform_0(%arg0: i32) -> (i32, i32, i32, i32) {
    %c0_i32 = arith.constant 0 : i32
    %c0_i32_0 = arith.constant 0 : i32
    %c0_i32_1 = arith.constant 0 : i32
    %c0_i32_2 = arith.constant 0 : i32
    return %arg0, %c0_i32, %c0_i32_0, %c0_i32_1 : i32, i32, i32, i32
  }
  func.func @transform_1(%arg0: i32) -> (i32, i32) {
    %c0_i32 = arith.constant 0 : i32
    %c0_i32_0 = arith.constant 0 : i32
    %c0_i32_1 = arith.constant 0 : i32
    return %c0_i32, %c0_i32_0 : i32, i32
  }
  func.func @transform_2(%arg0: i32) -> (i32, i32) {
    %c0_i32 = arith.constant 0 : i32
    %c0_i32_0 = arith.constant 0 : i32
    %c0_i32_1 = arith.constant 0 : i32
    return %c0_i32, %c0_i32_0 : i32, i32
  }
  func.func @transform_3(%arg0: i32) -> (i32, i32) {
    %c0_i32 = arith.constant 0 : i32
    %c0_i32_0 = arith.constant 0 : i32
    %c0_i32_1 = arith.constant 0 : i32
    return %c0_i32, %c0_i32_0 : i32, i32
  }
  func.func @transform_4(%arg0: i32) -> (i32, i32) {
    %c0_i32 = arith.constant 0 : i32
    %c0_i32_0 = arith.constant 0 : i32
    %c0_i32_1 = arith.constant 0 : i32
    return %c0_i32, %c0_i32_0 : i32, i32
  }
  func.func @transform_5(%arg0: i32) -> (i32, i32) {
    %c0_i32 = arith.constant 0 : i32
    %c0_i32_0 = arith.constant 0 : i32
    %c0_i32_1 = arith.constant 0 : i32
    return %c0_i32, %c0_i32_0 : i32, i32
  }
  func.func @transform_6(%arg0: i32) -> (i32, i32) {
    %c0_i32 = arith.constant 0 : i32
    %c0_i32_0 = arith.constant 0 : i32
    %c0_i32_1 = arith.constant 0 : i32
    return %c0_i32, %c0_i32_0 : i32, i32
  }
  func.func @transform_7(%arg0: i32) -> (i32, i32) {
    %c0_i32 = arith.constant 0 : i32
    %c0_i32_0 = arith.constant 0 : i32
    %c0_i32_1 = arith.constant 0 : i32
    return %c0_i32, %c0_i32_0 : i32, i32
  }
  func.func @transform_8(%arg0: i32) -> (i32, i32) {
    %c0_i32 = arith.constant 0 : i32
    %c0_i32_0 = arith.constant 0 : i32
    %c0_i32_1 = arith.constant 0 : i32
    return %c0_i32, %c0_i32_0 : i32, i32
  }
  func.func @transform_9(%arg0: i32) -> (i32, i32) {
    %c0_i32 = arith.constant 0 : i32
    %c0_i32_0 = arith.constant 0 : i32
    %c0_i32_1 = arith.constant 0 : i32
    return %c0_i32, %c0_i32_0 : i32, i32
  }
  func.func @transform_10(%arg0: i32) -> (i32, i32) {
    %c0_i32 = arith.constant 0 : i32
    %c0_i32_0 = arith.constant 0 : i32
    %c0_i32_1 = arith.constant 0 : i32
    return %c0_i32, %c0_i32_0 : i32, i32
  }
  func.func @transform_11(%arg0: i32) -> (i32, i32, i32) {
    %c0_i32 = arith.constant 0 : i32
    %c0_i32_0 = arith.constant 0 : i32
    %c0_i32_1 = arith.constant 0 : i32
    return %arg0, %c0_i32, %c0_i32_0 : i32, i32, i32
  }
}

</mosaic_0001>

<llo_original>
// kernel: tile.19
$region0: #{tile.19}
  %s0 = inlined_call_operand.vmem [shape: f32[25,4,32], index: 0, kind: input, shape index: {}]
  %s1 = inlined_call_operand.vmem [shape: f32[25,128], index: 1, kind: output, shape index: {}]
  $region1: #{tile.19} parent=0
    #allocation0 [shape = 'u8[102400]{0}', space=vmem, size = 0x19000, scoped, tag = 'scoped mem for input reshape']
    %s3 = sshll.u32 1, 4
    %s4 = ssub.s32 %s3, 1
    %s5 = smul.addr 4, 24
    %s6 = scalar_lea.vmem %s0, %s5
    %v7 = vld [vmem:[%s6] sm:%s4]
    %s8 = scalar_lea.vmem [#allocation0], 192
    %9 = vst [vmem:[%s8] sm:%s4] %v7
    %s10 = smul.addr 4, 23
    %s11 = scalar_lea.vmem %s0, %s10
    %v12 = vld [vmem:[%s11] sm:%s4]
    %s13 = scalar_lea.vmem [#allocation0], 184
    %14 = vst [vmem:[%s13] sm:%s4] %v12
    %s15 = smul.addr 4, 22
    %s16 = scalar_lea.vmem %s0, %s15
    %v17 = vld [vmem:[%s16] sm:%s4]
    %s18 = scalar_lea.vmem [#allocation0], 176
    %19 = vst [vmem:[%s18] sm:%s4] %v17
    %s20 = smul.addr 4, 21
    %s21 = scalar_lea.vmem %s0, %s20
    %v22 = vld [vmem:[%s21] sm:%s4]
    %s23 = scalar_lea.vmem [#allocation0], 168
    %24 = vst [vmem:[%s23] sm:%s4] %v22
    %s25 = smul.addr 4, 20
    %s26 = scalar_lea.vmem %s0, %s25
    %v27 = vld [vmem:[%s26] sm:%s4]
    %s28 = scalar_lea.vmem [#allocation0], 160
    %29 = vst [vmem:[%s28] sm:%s4] %v27
    %s30 = smul.addr 4, 19
    %s31 = scalar_lea.vmem %s0, %s30
    %v32 = vld [vmem:[%s31] sm:%s4]
    %s33 = scalar_lea.vmem [#allocation0], 152
    %34 = vst [vmem:[%s33] sm:%s4] %v32
    %s35 = smul.addr 4, 18
    %s36 = scalar_lea.vmem %s0, %s35
    %v37 = vld [vmem:[%s36] sm:%s4]
    %s38 = scalar_lea.vmem [#allocation0], 144
    %39 = vst [vmem:[%s38] sm:%s4] %v37
    %s40 = smul.addr 4, 17
    %s41 = scalar_lea.vmem %s0, %s40
    %v42 = vld [vmem:[%s41] sm:%s4]
    %s43 = scalar_lea.vmem [#allocation0], 136
    %44 = vst [vmem:[%s43] sm:%s4] %v42
    %s45 = smul.addr 4, 16
    %s46 = scalar_lea.vmem %s0, %s45
    %v47 = vld [vmem:[%s46] sm:%s4]
    %s48 = scalar_lea.vmem [#allocation0], 128
    %49 = vst [vmem:[%s48] sm:%s4] %v47
    %s50 = smul.addr 4, 15
    %s51 = scalar_lea.vmem %s0, %s50
    %v52 = vld [vmem:[%s51] sm:%s4]
    %s53 = scalar_lea.vmem [#allocation0], 120
    %54 = vst [vmem:[%s53] sm:%s4] %v52
    %s55 = smul.addr 4, 14
    %s56 = scalar_lea.vmem %s0, %s55
    %v57 = vld [vmem:[%s56] sm:%s4]
    %s58 = scalar_lea.vmem [#allocation0], 112
    %59 = vst [vmem:[%s58] sm:%s4] %v57
    %s60 = smul.addr 4, 13
    %s61 = scalar_lea.vmem %s0, %s60
    %v62 = vld [vmem:[%s61] sm:%s4]
    %s63 = scalar_lea.vmem [#allocation0], 104
    %64 = vst [vmem:[%s63] sm:%s4] %v62
    %s65 = smul.addr 4, 12
    %s66 = scalar_lea.vmem %s0, %s65
    %v67 = vld [vmem:[%s66] sm:%s4]
    %s68 = scalar_lea.vmem [#allocation0], 96
    %69 = vst [vmem:[%s68] sm:%s4] %v67
    %s70 = smul.addr 4, 11
    %s71 = scalar_lea.vmem %s0, %s70
    %v72 = vld [vmem:[%s71] sm:%s4]
    %s73 = scalar_lea.vmem [#allocation0], 88
    %74 = vst [vmem:[%s73] sm:%s4] %v72
    %s75 = smul.addr 4, 10
    %s76 = scalar_lea.vmem %s0, %s75
    %v77 = vld [vmem:[%s76] sm:%s4]
    %s78 = scalar_lea.vmem [#allocation0], 80
    %79 = vst [vmem:[%s78] sm:%s4] %v77
    %s80 = smul.addr 4, 9
    %s81 = scalar_lea.vmem %s0, %s80
    %v82 = vld [vmem:[%s81] sm:%s4]
    %s83 = scalar_lea.vmem [#allocation0], 72
    %84 = vst [vmem:[%s83] sm:%s4] %v82
    %s85 = smul.addr 4, 8
    %s86 = scalar_lea.vmem %s0, %s85
    %v87 = vld [vmem:[%s86] sm:%s4]
    %s88 = scalar_lea.vmem [#allocation0], 64
    %89 = vst [vmem:[%s88] sm:%s4] %v87
    %s90 = smul.addr 4, 7
    %s91 = scalar_lea.vmem %s0, %s90
    %v92 = vld [vmem:[%s91] sm:%s4]
    %s93 = scalar_lea.vmem [#allocation0], 56
    %94 = vst [vmem:[%s93] sm:%s4] %v92
    %s95 = smul.addr 4, 6
    %s96 = scalar_lea.vmem %s0, %s95
    %v97 = vld [vmem:[%s96] sm:%s4]
    %s98 = scalar_lea.vmem [#allocation0], 48
    %99 = vst [vmem:[%s98] sm:%s4] %v97
    %s100 = smul.addr 4, 5
    %s101 = scalar_lea.vmem %s0, %s100
    %v102 = vld [vmem:[%s101] sm:%s4]
    %s103 = scalar_lea.vmem [#allocation0], 40
    %104 = vst [vmem:[%s103] sm:%s4] %v102
    %s105 = smul.addr 4, 4
    %s106 = scalar_lea.vmem %s0, %s105
    %v107 = vld [vmem:[%s106] sm:%s4]
    %s108 = scalar_lea.vmem [#allocation0], 32
    %109 = vst [vmem:[%s108] sm:%s4] %v107
    %s110 = smul.addr 4, 3
    %s111 = scalar_lea.vmem %s0, %s110
    %v112 = vld [vmem:[%s111] sm:%s4]
    %s113 = scalar_lea.vmem [#allocation0], 24
    %114 = vst [vmem:[%s113] sm:%s4] %v112
    %s115 = smul.addr 4, 2
    %s116 = scalar_lea.vmem %s0, %s115
    %v117 = vld [vmem:[%s116] sm:%s4]
    %s118 = scalar_lea.vmem [#allocation0], 16
    %119 = vst [vmem:[%s118] sm:%s4] %v117
    %s120 = scalar_lea.vmem %s0, 4
    %v121 = vld [vmem:[%s120] sm:%s4]
    %s122 = scalar_lea.vmem [#allocation0], 8
    %123 = vst [vmem:[%s122] sm:%s4] %v121
    %v124 = vld [vmem:[%s0] sm:%s4]
    %125 = vst [vmem:[#allocation0] sm:%s4] %v124
    %v126 = vld [vmem:[#allocation0] ss:$8 sm:$0xf]
    %v127 = vld [vmem:[#allocation0] ss:$8 sm:$0xf0]
    %vm128 = vcmask 1047556
    %v129 = vsel %vm128, %v127, %v126
    %vm130 = vcmask 261120
    %131 = vst.msk [vmem:[%s1] sm:$0xff] %vm130, %v129
    %s132 = scalar_lea.vmem [#allocation0], 64
    %v133 = vld [vmem:[%s132] ss:$8 sm:$0xf]
    %s134 = scalar_lea.vmem [#allocation0], 64
    %v135 = vld [vmem:[%s134] ss:$8 sm:$0xf0]
    %vm136 = vcmask 1047556
    %v137 = vsel %vm136, %v135, %v133
    %vm138 = vcmask 261120
    %s139 = scalar_lea.vmem %s1, 8
    %140 = vst.msk [vmem:[%s139] sm:$0xff] %vm138, %v137
    %s141 = scalar_lea.vmem [#allocation0], 128
    %v142 = vld [vmem:[%s141] ss:$8 sm:$0xf]
    %s143 = scalar_lea.vmem [#allocation0], 128
    %v144 = vld [vmem:[%s143] ss:$8 sm:$0xf0]
    %vm145 = vcmask 1047556
    %v146 = vsel %vm145, %v144, %v142
    %vm147 = vcmask 261120
    %s148 = scalar_lea.vmem %s1, 16
    %149 = vst.msk [vmem:[%s148] sm:$0xff] %vm147, %v146
    %s150 = scalar_lea.vmem [#allocation0], 192
    %v151 = vld [vmem:[%s150] sm:$0x1]
    %vm152 = vcmask 261120
    %s153 = scalar_lea.vmem %s1, 24
    %154 = vst.msk [vmem:[%s153] sm:$0x1] %vm152, %v151
    %s155 = scalar_lea.vmem [#allocation0], 3
    %v156 = vld [vmem:[%s155] ss:$8 sm:$0xf]
    %s157 = scalar_lea.vmem [#allocation0], 3
    %v158 = vld [vmem:[%s157] ss:$8 sm:$0xf0]
    %vm159 = vcmask 1047556
    %v160 = vsel %vm159, %v158, %v156
    %161 = vrot.lane.b32.xlu0 %v160, 96
    %v162 = vpop.permute.xlu0 %161
    %vm163 = vcmask 1048320
    %164 = vst.msk [vmem:[%s1] sm:$0xff] %vm163, %v162
    %s165 = scalar_lea.vmem [#allocation0], 67
    %v166 = vld [vmem:[%s165] ss:$8 sm:$0xf]
    %s167 = scalar_lea.vmem [#allocation0], 67
    %v168 = vld [vmem:[%s167] ss:$8 sm:$0xf0]
    %vm169 = vcmask 1047556
    %v170 = vsel %vm169, %v168, %v166
    %171 = vrot.lane.b32.xlu0 %v170, 96
    %v172 = vpop.permute.xlu0 %171
    %vm173 = vcmask 1048320
    %s174 = scalar_lea.vmem %s1, 8
    %175 = vst.msk [vmem:[%s174] sm:$0xff] %vm173, %v172
    %s176 = scalar_lea.vmem [#allocation0], 131
    %v177 = vld [vmem:[%s176] ss:$8 sm:$0xf]
    %s178 = scalar_lea.vmem [#allocation0], 131
    %v179 = vld [vmem:[%s178] ss:$8 sm:$0xf0]
    %vm180 = vcmask 1047556
    %v181 = vsel %vm180, %v179, %v177
    %182 = vrot.lane.b32.xlu0 %v181, 96
    %v183 = vpop.permute.xlu0 %182
    %vm184 = vcmask 1048320
    %s185 = scalar_lea.vmem %s1, 16
    %186 = vst.msk [vmem:[%s185] sm:$0xff] %vm184, %v183
    %s187 = scalar_lea.vmem [#allocation0], 195
    %v188 = vld [vmem:[%s187] sm:$0x1]
    %189 = vrot.lane.b32.xlu0 %v188, 96
    %v190 = vpop.permute.xlu0 %189
    %vm191 = vcmask 1048320
    %s192 = scalar_lea.vmem %s1, 24
    %193 = vst.msk [vmem:[%s192] sm:$0x1] %vm191, %v190
    %s194 = scalar_lea.vmem [#allocation0], 2
    %v195 = vld [vmem:[%s194] ss:$8 sm:$0xf]
    %s196 = scalar_lea.vmem [#allocation0], 2
    %v197 = vld [vmem:[%s196] ss:$8 sm:$0xf0]
    %vm198 = vcmask 1047556
    %v199 = vsel %vm198, %v197, %v195
    %200 = vrot.lane.b32.xlu0 %v199, 64
    %v201 = vpop.permute.xlu0 %200
    %vm202 = vcmask 785920
    %203 = vst.msk [vmem:[%s1] sm:$0xff] %vm202, %v201
    %s204 = scalar_lea.vmem [#allocation0], 66
    %v205 = vld [vmem:[%s204] ss:$8 sm:$0xf]
    %s206 = scalar_lea.vmem [#allocation0], 66
    %v207 = vld [vmem:[%s206] ss:$8 sm:$0xf0]
    %vm208 = vcmask 1047556
    %v209 = vsel %vm208, %v207, %v205
    %210 = vrot.lane.b32.xlu0 %v209, 64
    %v211 = vpop.permute.xlu0 %210
    %vm212 = vcmask 785920
    %s213 = scalar_lea.vmem %s1, 8
    %214 = vst.msk [vmem:[%s213] sm:$0xff] %vm212, %v211
    %s215 = scalar_lea.vmem [#allocation0], 130
    %v216 = vld [vmem:[%s215] ss:$8 sm:$0xf]
    %s217 = scalar_lea.vmem [#allocation0], 130
    %v218 = vld [vmem:[%s217] ss:$8 sm:$0xf0]
    %vm219 = vcmask 1047556
    %v220 = vsel %vm219, %v218, %v216
    %221 = vrot.lane.b32.xlu0 %v220, 64
    %v222 = vpop.permute.xlu0 %221
    %vm223 = vcmask 785920
    %s224 = scalar_lea.vmem %s1, 16
    %225 = vst.msk [vmem:[%s224] sm:$0xff] %vm223, %v222
    %s226 = scalar_lea.vmem [#allocation0], 194
    %v227 = vld [vmem:[%s226] sm:$0x1]
    %228 = vrot.lane.b32.xlu0 %v227, 64
    %v229 = vpop.permute.xlu0 %228
    %vm230 = vcmask 785920
    %s231 = scalar_lea.vmem %s1, 24
    %232 = vst.msk [vmem:[%s231] sm:$0x1] %vm230, %v229
    %s233 = scalar_lea.vmem [#allocation0], 1
    %v234 = vld [vmem:[%s233] ss:$8 sm:$0xf]
    %s235 = scalar_lea.vmem [#allocation0], 1
    %v236 = vld [vmem:[%s235] ss:$8 sm:$0xf0]
    %vm237 = vcmask 1047556
    %v238 = vsel %vm237, %v236, %v234
    %239 = vrot.lane.b32.xlu0 %v238, 32
    %v240 = vpop.permute.xlu0 %239
    %vm241 = vcmask 523520
    %242 = vst.msk [vmem:[%s1] sm:$0xff] %vm241, %v240
    %s243 = scalar_lea.vmem [#allocation0], 65
    %v244 = vld [vmem:[%s243] ss:$8 sm:$0xf]
    %s245 = scalar_lea.vmem [#allocation0], 65
    %v246 = vld [vmem:[%s245] ss:$8 sm:$0xf0]
    %vm247 = vcmask 1047556
    %v248 = vsel %vm247, %v246, %v244
    %249 = vrot.lane.b32.xlu0 %v248, 32
    %v250 = vpop.permute.xlu0 %249
    %vm251 = vcmask 523520
    %s252 = scalar_lea.vmem %s1, 8
    %253 = vst.msk [vmem:[%s252] sm:$0xff] %vm251, %v250
    %s254 = scalar_lea.vmem [#allocation0], 129
    %v255 = vld [vmem:[%s254] ss:$8 sm:$0xf]
    %s256 = scalar_lea.vmem [#allocation0], 129
    %v257 = vld [vmem:[%s256] ss:$8 sm:$0xf0]
    %vm258 = vcmask 1047556
    %v259 = vsel %vm258, %v257, %v255
    %260 = vrot.lane.b32.xlu0 %v259, 32
    %v261 = vpop.permute.xlu0 %260
    %vm262 = vcmask 523520
    %s263 = scalar_lea.vmem %s1, 16
    %264 = vst.msk [vmem:[%s263] sm:$0xff] %vm262, %v261
    %s265 = scalar_lea.vmem [#allocation0], 193
    %v266 = vld [vmem:[%s265] sm:$0x1]
    %267 = vrot.lane.b32.xlu0 %v266, 32
    %v268 = vpop.permute.xlu0 %267
    %vm269 = vcmask 523520
    %s270 = scalar_lea.vmem %s1, 24
    %271 = vst.msk [vmem:[%s270] sm:$0x1] %vm269, %v268

// kernel: _forward_impl.1
$region0: #{_forward_impl.1}
  #allocation0 [shape = 'u32[]', space=smem, size = 0x4, offset = 0x4, fixed_abs, tag = 'smem constant byte address 0x4 - core index']
  #allocation1 [shape = 'u32[144,128]{1,0:T(1,128)}', space=vmem, size = 0x12000, scoped, tag = 'internal scratch']
  #allocation2 [shape = 'bf16[18,18,128]{2,1,0:T(8,128)(2,1)}', space=vmem, size = 0x1b000, scoped, tag = 'scratch operand']
  #allocation3 [shape = 'bf16[256,1152]{1,0:T(8,128)(2,1)}', space=vmem, size = 0x90000, scoped, tag = 'scratch operand']
  #allocation4 [shape = 'f32[256,128]{1,0:T(8,128)}', space=vmem, size = 0x20000, scoped, tag = 'scratch operand']
  #allocation5 [shape = 'f32[24,24,128]{2,1,0:T(8,128)}', space=vmem, size = 0x48000, scoped, tag = 'scratch operand']
  %s0 = inlined_call_operand.vmem [shape: f32[1,16,16,128], index: 0, kind: input, shape index: {}]
  %s1 = inlined_call_operand.vmem [shape: bf16[1152,128], index: 1, kind: input, shape index: {}]
  %s2 = inlined_call_operand.vmem [shape: bf16[128,128], index: 2, kind: input, shape index: {}]
  %s3 = inlined_call_operand.vmem [shape: bf16[128,64], index: 3, kind: input, shape index: {}]
  %s4 = inlined_call_operand.vmem [shape: bf16[64,128], index: 4, kind: input, shape index: {}]
  %s5 = inlined_call_operand.vmem [shape: f32[25,128], index: 5, kind: input, shape index: {}]
  %s6 = inlined_call_operand.vmem [shape: f32[1,128], index: 6, kind: input, shape index: {}]
  %s7 = inlined_call_operand.vmem [shape: bf16[128,128], index: 7, kind: input, shape index: {}]
  %s8 = inlined_call_operand.vmem [shape: f32[1,128], index: 8, kind: input, shape index: {}]
  %s9 = inlined_call_operand.vmem [shape: bf16[128,128], index: 9, kind: input, shape index: {}]
  %s10 = inlined_call_operand.vmem [shape: bf16[128,128], index: 10, kind: input, shape index: {}]
  %s11 = inlined_call_operand.vmem [shape: f32[4,32,256], index: 11, kind: output, shape index: {}]
  %s12 = sld [smem:[#allocation0]]
  $region54: #{_forward_impl.1} parent=0
    _
  %s14 = ssub.s32 1, %s12
  %s15 = scalar_select 0, %s14, %s12
  // Predicated region
  $region2: #{_forward_impl.1} parent=0 // pred_check
    _
  $region3: #{_forward_impl.1} parent=0 // pred_check_branch
    %17 = sbr.rel (0) target = $region5
  $region4: #{_forward_impl.1} parent=0 // pred_region
    _
  $region5: #{_forward_impl.1} parent=0 // pred_fallthru
    _
  // Predicated region
  $region6: #{_forward_impl.1} parent=0 // pred_check
    _
  $region7: #{_forward_impl.1} parent=0 // pred_check_branch
    %19 = sbr.rel (0) target = $region9
  $region8: #{_forward_impl.1} parent=0 // pred_region
    _
  $region9: #{_forward_impl.1} parent=0 // pred_fallthru
    _
  // Predicated region
  $region10: #{_forward_impl.1} parent=0 // pred_check
    _
  $region11: #{_forward_impl.1} parent=0 // pred_check_branch
    %21 = sbr.rel (0) target = $region13
  $region12: #{_forward_impl.1} parent=0 // pred_region
    _
  $region13: #{_forward_impl.1} parent=0 // pred_fallthru
    _
  // Predicated region
  $region14: #{_forward_impl.1} parent=0 // pred_check
    _
  $region15: #{_forward_impl.1} parent=0 // pred_check_branch
    %23 = sbr.rel (0) target = $region17
  $region16: #{_forward_impl.1} parent=0 // pred_region
    _
  $region17: #{_forward_impl.1} parent=0 // pred_fallthru
    _
  // Predicated region
  $region18: #{_forward_impl.1} parent=0 // pred_check
    _
  $region19: #{_forward_impl.1} parent=0 // pred_check_branch
    %25 = sbr.rel (0) target = $region21
  $region20: #{_forward_impl.1} parent=0 // pred_region
    _
  $region21: #{_forward_impl.1} parent=0 // pred_fallthru
    _
  // Predicated region
  $region22: #{_forward_impl.1} parent=0 // pred_check
    _
  $region23: #{_forward_impl.1} parent=0 // pred_check_branch
    %27 = sbr.rel (0) target = $region25
  $region24: #{_forward_impl.1} parent=0 // pred_region
    _
  $region25: #{_forward_impl.1} parent=0 // pred_fallthru
    _
  // Predicated region
  $region26: #{_forward_impl.1} parent=0 // pred_check
    _
  $region27: #{_forward_impl.1} parent=0 // pred_check_branch
    %29 = sbr.rel (0) target = $region29
  $region28: #{_forward_impl.1} parent=0 // pred_region
    _
  $region29: #{_forward_impl.1} parent=0 // pred_fallthru
    _
  // Predicated region
  $region30: #{_forward_impl.1} parent=0 // pred_check
    _
  $region31: #{_forward_impl.1} parent=0 // pred_check_branch
    %31 = sbr.rel (0) target = $region33
  $region32: #{_forward_impl.1} parent=0 // pred_region
    _
  $region33: #{_forward_impl.1} parent=0 // pred_fallthru
    _
  // Predicated region
  $region34: #{_forward_impl.1} parent=0 // pred_check
    _
  $region35: #{_forward_impl.1} parent=0 // pred_check_branch
    %33 = sbr.rel (0) target = $region37
  $region36: #{_forward_impl.1} parent=0 // pred_region
    _
  $region37: #{_forward_impl.1} parent=0 // pred_fallthru
    _
  // Predicated region
  $region38: #{_forward_impl.1} parent=0 // pred_check
    _
  $region39: #{_forward_impl.1} parent=0 // pred_check_branch
    %35 = sbr.rel (0) target = $region41
  $region40: #{_forward_impl.1} parent=0 // pred_region
    _
  $region41: #{_forward_impl.1} parent=0 // pred_fallthru
    _
  // Predicated region
  $region42: #{_forward_impl.1} parent=0 // pred_check
    _
  $region43: #{_forward_impl.1} parent=0 // pred_check_branch
    %37 = sbr.rel (0) target = $region45
  $region44: #{_forward_impl.1} parent=0 // pred_region
    _
  $region45: #{_forward_impl.1} parent=0 // pred_fallthru
    _
  %v39 = vld [vmem:[%s0] sm:$0xff]
  %v40 = vld [vmem:[%s0 + $0x8] sm:$0xff]
  %v41 = vld [vmem:[%s0 + $0x10] sm:$0xff]
  %v42 = vld [vmem:[%s0 + $0x18] sm:$0xff]
  %v43 = vld [vmem:[%s0 + $0x20] sm:$0xff]
  %v44 = vld [vmem:[%s0 + $0x28] sm:$0xff]
  %v45 = vld [vmem:[%s0 + $0x30] sm:$0xff]
  %v46 = vld [vmem:[%s0 + $0x38] sm:$0xff]
  %v47 = vld [vmem:[%s0 + $0x40] sm:$0xff]
  %v48 = vld [vmem:[%s0 + $0x48] sm:$0xff]
  %v49 = vld [vmem:[%s0 + $0x50] sm:$0xff]
  %v50 = vld [vmem:[%s0 + $0x58] sm:$0xff]
  %v51 = vld [vmem:[%s0 + $0x60] sm:$0xff]
  %v52 = vld [vmem:[%s0 + $0x68] sm:$0xff]
  %v53 = vld [vmem:[%s0 + $0x70] sm:$0xff]
  %v54 = vld [vmem:[%s0 + $0x78] sm:$0xff]
  %v55 = vld [vmem:[%s0 + $0x80] sm:$0xff]
  %v56 = vld [vmem:[%s0 + $0x88] sm:$0xff]
  %v57 = vld [vmem:[%s0 + $0x90] sm:$0xff]
  %v58 = vld [vmem:[%s0 + $0x98] sm:$0xff]
  %v59 = vld [vmem:[%s0 + $0xa0] sm:$0xff]
  %v60 = vld [vmem:[%s0 + $0xa8] sm:$0xff]
  %v61 = vld [vmem:[%s0 + $0xb0] sm:$0xff]
  %v62 = vld [vmem:[%s0 + $0xb8] sm:$0xff]
  %v63 = vld [vmem:[%s0 + $0xc0] sm:$0xff]
  %v64 = vld [vmem:[%s0 + $0xc8] sm:$0xff]
  %v65 = vld [vmem:[%s0 + $0xd0] sm:$0xff]
  %v66 = vld [vmem:[%s0 + $0xd8] sm:$0xff]
  %v67 = vld [vmem:[%s0 + $0xe0] sm:$0xff]
  %v68 = vld [vmem:[%s0 + $0xe8] sm:$0xff]
  %v69 = vld [vmem:[%s0 + $0xf0] sm:$0xff]
  %v70 = vld [vmem:[%s0 + $0xf8] sm:$0xff]
  %v71 = vpack.c.bf16 %v40, %v39
  %v72 = vpack.c.bf16 %v42, %v41
  %v73 = vpack.c.bf16 %v44, %v43
  %v74 = vpack.c.bf16 %v46, %v45
  %v75 = vpack.c.bf16 %v48, %v47
  %v76 = vpack.c.bf16 %v50, %v49
  %v77 = vpack.c.bf16 %v52, %v51
  %v78 = vpack.c.bf16 %v54, %v53
  %v79 = vpack.c.bf16 %v56, %v55
  %v80 = vpack.c.bf16 %v58, %v57
  %v81 = vpack.c.bf16 %v60, %v59
  %v82 = vpack.c.bf16 %v62, %v61
  %v83 = vpack.c.bf16 %v64, %v63
  %v84 = vpack.c.bf16 %v66, %v65
  %v85 = vpack.c.bf16 %v68, %v67
  %v86 = vpack.c.bf16 %v70, %v69
  %v103 = vunpack.c.l.b16 %v71
  %v104 = vunpack.c.h.b16 %v71
  %v105 = vunpack.c.l.b16 %v72
  %v106 = vunpack.c.h.b16 %v72
  %v107 = vunpack.c.l.b16 %v73
  %v108 = vunpack.c.h.b16 %v73
  %v109 = vunpack.c.l.b16 %v74
  %v110 = vunpack.c.h.b16 %v74
  %v111 = vunpack.c.l.b16 %v75
  %v112 = vunpack.c.h.b16 %v75
  %v113 = vunpack.c.l.b16 %v76
  %v114 = vunpack.c.h.b16 %v76
  %v115 = vunpack.c.l.b16 %v77
  %v116 = vunpack.c.h.b16 %v77
  %v117 = vunpack.c.l.b16 %v78
  %v118 = vunpack.c.h.b16 %v78
  %v119 = vunpack.c.l.b16 %v79
  %v120 = vunpack.c.h.b16 %v79
  %v121 = vunpack.c.l.b16 %v80
  %v122 = vunpack.c.h.b16 %v80
  %v123 = vunpack.c.l.b16 %v81
  %v124 = vunpack.c.h.b16 %v81
  %v125 = vunpack.c.l.b16 %v82
  %v126 = vunpack.c.h.b16 %v82
  %v127 = vunpack.c.l.b16 %v83
  %v128 = vunpack.c.h.b16 %v83
  %v129 = vunpack.c.l.b16 %v84
  %v130 = vunpack.c.h.b16 %v84
  %v131 = vunpack.c.l.b16 %v85
  %v132 = vunpack.c.h.b16 %v85
  %v133 = vunpack.c.l.b16 %v86
  %v134 = vunpack.c.h.b16 %v86
  %v135 = vpack.c.b16 %v103, %v103
  %v136 = vpack.c.b16 %v104, %v104
  %v137 = vpack.c.b16 %v105, %v105
  %v138 = vpack.c.b16 %v106, %v106
  %v139 = vpack.c.b16 %v107, %v107
  %v140 = vpack.c.b16 %v108, %v108
  %v141 = vpack.c.b16 %v109, %v109
  %v142 = vpack.c.b16 %v110, %v110
  %v143 = vpack.c.b16 %v111, %v111
  %v144 = vpack.c.b16 %v112, %v112
  %v145 = vpack.c.b16 %v113, %v113
  %v146 = vpack.c.b16 %v114, %v114
  %v147 = vpack.c.b16 %v115, %v115
  %v148 = vpack.c.b16 %v116, %v116
  %v149 = vpack.c.b16 %v117, %v117
  %v150 = vpack.c.b16 %v118, %v118
  %v151 = vpack.c.b16 %v119, %v119
  %v152 = vpack.c.b16 %v120, %v120
  %v153 = vpack.c.b16 %v121, %v121
  %v154 = vpack.c.b16 %v122, %v122
  %v155 = vpack.c.b16 %v123, %v123
  %v156 = vpack.c.b16 %v124, %v124
  %v157 = vpack.c.b16 %v125, %v125
  %v158 = vpack.c.b16 %v126, %v126
  %v159 = vpack.c.b16 %v127, %v127
  %v160 = vpack.c.b16 %v128, %v128
  %v161 = vpack.c.b16 %v129, %v129
  %v162 = vpack.c.b16 %v130, %v130
  %v163 = vpack.c.b16 %v131, %v131
  %v164 = vpack.c.b16 %v132, %v132
  %v165 = vpack.c.b16 %v133, %v133
  %v166 = vpack.c.b16 %v134, %v134
  %vm167 = vsmask.f32 256
  %vm168 = vsmask.f32 4368
  %vm169 = vmor %vm167, %vm168
  %v171 = vshrl.u32 %v135, 16
  %v173 = vrot.slane %v171, 7
  %v174 = vshll.u32 %v135, 16
  %v176 = vor.u32 %v173, %v174
  %v177 = vrot.slane %v173, 4
  %v179 = vshrl.u32 %v136, 16
  %v181 = vrot.slane %v179, 7
  %v182 = vshll.u32 %v136, 16
  %v184 = vor.u32 %v181, %v182
  %v185 = vsel %vm169, %v177, %v184
  %v186 = vrot.slane %v181, 4
  %v188 = vshrl.u32 %v137, 16
  %v190 = vrot.slane %v188, 7
  %v191 = vshll.u32 %v137, 16
  %v193 = vor.u32 %v190, %v191
  %v194 = vrot.slane %v190, 4
  %v196 = vshrl.u32 %v138, 16
  %v198 = vrot.slane %v196, 7
  %v199 = vshll.u32 %v138, 16
  %v201 = vor.u32 %v198, %v199
  %v202 = vsel %vm169, %v194, %v201
  %v203 = vrot.slane %v198, 4
  %v205 = vshrl.u32 %v139, 16
  %v207 = vrot.slane %v205, 7
  %v208 = vshll.u32 %v139, 16
  %v210 = vor.u32 %v207, %v208
  %v211 = vrot.slane %v207, 4
  %v213 = vshrl.u32 %v140, 16
  %v215 = vrot.slane %v213, 7
  %v216 = vshll.u32 %v140, 16
  %v218 = vor.u32 %v215, %v216
  %v219 = vsel %vm169, %v211, %v218
  %v220 = vrot.slane %v215, 4
  %v222 = vshrl.u32 %v141, 16
  %v224 = vrot.slane %v222, 7
  %v225 = vshll.u32 %v141, 16
  %v227 = vor.u32 %v224, %v225
  %v228 = vrot.slane %v224, 4
  %v230 = vshrl.u32 %v142, 16
  %v232 = vrot.slane %v230, 7
  %v233 = vshll.u32 %v142, 16
  %v235 = vor.u32 %v232, %v233
  %v236 = vsel %vm169, %v228, %v235
  %v237 = vrot.slane %v232, 4
  %v239 = vshrl.u32 %v143, 16
  %v241 = vrot.slane %v239, 7
  %v242 = vshll.u32 %v143, 16
  %v244 = vor.u32 %v241, %v242
  %v245 = vrot.slane %v241, 4
  %v247 = vshrl.u32 %v144, 16
  %v249 = vrot.slane %v247, 7
  %v250 = vshll.u32 %v144, 16
  %v252 = vor.u32 %v249, %v250
  %v253 = vsel %vm169, %v245, %v252
  %v254 = vrot.slane %v249, 4
  %v256 = vshrl.u32 %v145, 16
  %v258 = vrot.slane %v256, 7
  %v259 = vshll.u32 %v145, 16
  %v261 = vor.u32 %v258, %v259
  %v262 = vrot.slane %v258, 4
  %v264 = vshrl.u32 %v146, 16
  %v266 = vrot.slane %v264, 7
  %v267 = vshll.u32 %v146, 16
  %v269 = vor.u32 %v266, %v267
  %v270 = vsel %vm169, %v262, %v269
  %v271 = vrot.slane %v266, 4
  %v273 = vshrl.u32 %v147, 16
  %v275 = vrot.slane %v273, 7
  %v276 = vshll.u32 %v147, 16
  %v278 = vor.u32 %v275, %v276
  %v279 = vrot.slane %v275, 4
  %v281 = vshrl.u32 %v148, 16
  %v283 = vrot.slane %v281, 7
  %v284 = vshll.u32 %v148, 16
  %v286 = vor.u32 %v283, %v284
  %v287 = vsel %vm169, %v279, %v286
  %v288 = vrot.slane %v283, 4
  %v290 = vshrl.u32 %v149, 16
  %v292 = vrot.slane %v290, 7
  %v293 = vshll.u32 %v149, 16
  %v295 = vor.u32 %v292, %v293
  %v296 = vrot.slane %v292, 4
  %v298 = vshrl.u32 %v150, 16
  %v300 = vrot.slane %v298, 7
  %v301 = vshll.u32 %v150, 16
  %v303 = vor.u32 %v300, %v301
  %v304 = vsel %vm169, %v296, %v303
  %v305 = vrot.slane %v300, 4
  %v307 = vshrl.u32 %v151, 16
  %v309 = vrot.slane %v307, 7
  %v310 = vshll.u32 %v151, 16
  %v312 = vor.u32 %v309, %v310
  %v313 = vrot.slane %v309, 4
  %v315 = vshrl.u32 %v152, 16
  %v317 = vrot.slane %v315, 7
  %v318 = vshll.u32 %v152, 16
  %v320 = vor.u32 %v317, %v318
  %v321 = vsel %vm169, %v313, %v320
  %v322 = vrot.slane %v317, 4
  %v324 = vshrl.u32 %v153, 16
  %v326 = vrot.slane %v324, 7
  %v327 = vshll.u32 %v153, 16
  %v329 = vor.u32 %v326, %v327
  %v330 = vrot.slane %v326, 4
  %v332 = vshrl.u32 %v154, 16
  %v334 = vrot.slane %v332, 7
  %v335 = vshll.u32 %v154, 16
  %v337 = vor.u32 %v334, %v335
  %v338 = vsel %vm169, %v330, %v337
  %v339 = vrot.slane %v334, 4
  %v341 = vshrl.u32 %v155, 16
  %v343 = vrot.slane %v341, 7
  %v344 = vshll.u32 %v155, 16
  %v346 = vor.u32 %v343, %v344
  %v347 = vrot.slane %v343, 4
  %v349 = vshrl.u32 %v156, 16
  %v351 = vrot.slane %v349, 7
  %v352 = vshll.u32 %v156, 16
  %v354 = vor.u32 %v351, %v352
  %v355 = vsel %vm169, %v347, %v354
  %v356 = vrot.slane %v351, 4
  %v358 = vshrl.u32 %v157, 16
  %v360 = vrot.slane %v358, 7
  %v361 = vshll.u32 %v157, 16
  %v363 = vor.u32 %v360, %v361
  %v364 = vrot.slane %v360, 4
  %v366 = vshrl.u32 %v158, 16
  %v368 = vrot.slane %v366, 7
  %v369 = vshll.u32 %v158, 16
  %v371 = vor.u32 %v368, %v369
  %v372 = vsel %vm169, %v364, %v371
  %v373 = vrot.slane %v368, 4
  %v375 = vshrl.u32 %v159, 16
  %v377 = vrot.slane %v375, 7
  %v378 = vshll.u32 %v159, 16
  %v380 = vor.u32 %v377, %v378
  %v381 = vrot.slane %v377, 4
  %v383 = vshrl.u32 %v160, 16
  %v385 = vrot.slane %v383, 7
  %v386 = vshll.u32 %v160, 16
  %v388 = vor.u32 %v385, %v386
  %v389 = vsel %vm169, %v381, %v388
  %v390 = vrot.slane %v385, 4
  %v392 = vshrl.u32 %v161, 16
  %v394 = vrot.slane %v392, 7
  %v395 = vshll.u32 %v161, 16
  %v397 = vor.u32 %v394, %v395
  %v398 = vrot.slane %v394, 4
  %v400 = vshrl.u32 %v162, 16
  %v402 = vrot.slane %v400, 7
  %v403 = vshll.u32 %v162, 16
  %v405 = vor.u32 %v402, %v403
  %v406 = vsel %vm169, %v398, %v405
  %v407 = vrot.slane %v402, 4
  %v409 = vshrl.u32 %v163, 16
  %v411 = vrot.slane %v409, 7
  %v412 = vshll.u32 %v163, 16
  %v414 = vor.u32 %v411, %v412
  %v415 = vrot.slane %v411, 4
  %v417 = vshrl.u32 %v164, 16
  %v419 = vrot.slane %v417, 7
  %v420 = vshll.u32 %v164, 16
  %v422 = vor.u32 %v419, %v420
  %v423 = vsel %vm169, %v415, %v422
  %v424 = vrot.slane %v419, 4
  %v426 = vshrl.u32 %v165, 16
  %v428 = vrot.slane %v426, 7
  %v429 = vshll.u32 %v165, 16
  %v431 = vor.u32 %v428, %v429
  %v432 = vrot.slane %v428, 4
  %v434 = vshrl.u32 %v166, 16
  %v436 = vrot.slane %v434, 7
  %v437 = vshll.u32 %v166, 16
  %v439 = vor.u32 %v436, %v437
  %v440 = vsel %vm169, %v432, %v439
  %v441 = vrot.slane %v436, 4
  %s490 = scalar_lea.vmem [#allocation2], 12
  %vm491 = vcmask 1043456
  %vm492 = vsmask.f32 7938
  %vm493 = vmand %vm491, %vm492
  %v494 = vld [vmem:[%s490] sm:$0xf]
  %v495 = vsel %vm493, %v176, %v494
  %496 = vst [vmem:[%s490] sm:$0xf] %v495
  %497 = vst [vmem:[%s490 + $0x4] sm:$0xf] %v185
  %vm498 = vcmask 1040384
  %vm499 = vmand %vm498, %vm167
  %v500 = vld [vmem:[%s490 + $0x8] sm:$0x1]
  %v501 = vsel %vm499, %v186, %v500
  %502 = vst [vmem:[%s490 + $0x8] sm:$0x1] %v501
  %v503 = vld [vmem:[%s490 + $0xc] sm:$0xf]
  %v504 = vsel %vm493, %v193, %v503
  %505 = vst [vmem:[%s490 + $0xc] sm:$0xf] %v504
  %506 = vst [vmem:[%s490 + $0x10] sm:$0xf] %v202
  %v507 = vld [vmem:[%s490 + $0x14] sm:$0x1]
  %v508 = vsel %vm499, %v203, %v507
  %509 = vst [vmem:[%s490 + $0x14] sm:$0x1] %v508
  %v510 = vld [vmem:[%s490 + $0x18] sm:$0xf]
  %v511 = vsel %vm493, %v210, %v510
  %512 = vst [vmem:[%s490 + $0x18] sm:$0xf] %v511
  %513 = vst [vmem:[%s490 + $0x1c] sm:$0xf] %v219
  %v514 = vld [vmem:[%s490 + $0x20] sm:$0x1]
  %v515 = vsel %vm499, %v220, %v514
  %516 = vst [vmem:[%s490 + $0x20] sm:$0x1] %v515
  %v517 = vld [vmem:[%s490 + $0x24] sm:$0xf]
  %v518 = vsel %vm493, %v227, %v517
  %519 = vst [vmem:[%s490 + $0x24] sm:$0xf] %v518
  %520 = vst [vmem:[%s490 + $0x28] sm:$0xf] %v236
  %v521 = vld [vmem:[%s490 + $0x2c] sm:$0x1]
  %v522 = vsel %vm499, %v237, %v521
  %523 = vst [vmem:[%s490 + $0x2c] sm:$0x1] %v522
  %v524 = vld [vmem:[%s490 + $0x30] sm:$0xf]
  %v525 = vsel %vm493, %v244, %v524
  %526 = vst [vmem:[%s490 + $0x30] sm:$0xf] %v525
  %527 = vst [vmem:[%s490 + $0x34] sm:$0xf] %v253
  %v528 = vld [vmem:[%s490 + $0x38] sm:$0x1]
  %v529 = vsel %vm499, %v254, %v528
  %530 = vst [vmem:[%s490 + $0x38] sm:$0x1] %v529
  %v531 = vld [vmem:[%s490 + $0x3c] sm:$0xf]
  %v532 = vsel %vm493, %v261, %v531
  %533 = vst [vmem:[%s490 + $0x3c] sm:$0xf] %v532
  %534 = vst [vmem:[%s490 + $0x40] sm:$0xf] %v270
  %v535 = vld [vmem:[%s490 + $0x44] sm:$0x1]
  %v536 = vsel %vm499, %v271, %v535
  %537 = vst [vmem:[%s490 + $0x44] sm:$0x1] %v536
  %v538 = vld [vmem:[%s490 + $0x48] sm:$0xf]
  %v539 = vsel %vm493, %v278, %v538
  %540 = vst [vmem:[%s490 + $0x48] sm:$0xf] %v539
  %541 = vst [vmem:[%s490 + $0x4c] sm:$0xf] %v287
  %v542 = vld [vmem:[%s490 + $0x50] sm:$0x1]
  %v543 = vsel %vm499, %v288, %v542
  %544 = vst [vmem:[%s490 + $0x50] sm:$0x1] %v543
  %v545 = vld [vmem:[%s490 + $0x54] sm:$0xf]
  %v546 = vsel %vm493, %v295, %v545
  %547 = vst [vmem:[%s490 + $0x54] sm:$0xf] %v546
  %548 = vst [vmem:[%s490 + $0x58] sm:$0xf] %v304
  %v549 = vld [vmem:[%s490 + $0x5c] sm:$0x1]
  %v550 = vsel %vm499, %v305, %v549
  %551 = vst [vmem:[%s490 + $0x5c] sm:$0x1] %v550
  %v552 = vld [vmem:[%s490 + $0x60] sm:$0xf]
  %v553 = vsel %vm493, %v312, %v552
  %554 = vst [vmem:[%s490 + $0x60] sm:$0xf] %v553
  %555 = vst [vmem:[%s490 + $0x64] sm:$0xf] %v321
  %v556 = vld [vmem:[%s490 + $0x68] sm:$0x1]
  %v557 = vsel %vm499, %v322, %v556
  %558 = vst [vmem:[%s490 + $0x68] sm:$0x1] %v557
  %v559 = vld [vmem:[%s490 + $0x6c] sm:$0xf]
  %v560 = vsel %vm493, %v329, %v559
  %561 = vst [vmem:[%s490 + $0x6c] sm:$0xf] %v560
  %562 = vst [vmem:[%s490 + $0x70] sm:$0xf] %v338
  %v563 = vld [vmem:[%s490 + $0x74] sm:$0x1]
  %v564 = vsel %vm499, %v339, %v563
  %565 = vst [vmem:[%s490 + $0x74] sm:$0x1] %v564
  %v566 = vld [vmem:[%s490 + $0x78] sm:$0xf]
  %v567 = vsel %vm493, %v346, %v566
  %568 = vst [vmem:[%s490 + $0x78] sm:$0xf] %v567
  %569 = vst [vmem:[%s490 + $0x7c] sm:$0xf] %v355
  %v570 = vld [vmem:[%s490 + $0x80] sm:$0x1]
  %v571 = vsel %vm499, %v356, %v570
  %572 = vst [vmem:[%s490 + $0x80] sm:$0x1] %v571
  %v573 = vld [vmem:[%s490 + $0x84] sm:$0xf]
  %v574 = vsel %vm493, %v363, %v573
  %575 = vst [vmem:[%s490 + $0x84] sm:$0xf] %v574
  %576 = vst [vmem:[%s490 + $0x88] sm:$0xf] %v372
  %v577 = vld [vmem:[%s490 + $0x8c] sm:$0x1]
  %v578 = vsel %vm499, %v373, %v577
  %579 = vst [vmem:[%s490 + $0x8c] sm:$0x1] %v578
  %v580 = vld [vmem:[%s490 + $0x90] sm:$0xf]
  %v581 = vsel %vm493, %v380, %v580
  %582 = vst [vmem:[%s490 + $0x90] sm:$0xf] %v581
  %583 = vst [vmem:[%s490 + $0x94] sm:$0xf] %v389
  %v584 = vld [vmem:[%s490 + $0x98] sm:$0x1]
  %v585 = vsel %vm499, %v390, %v584
  %586 = vst [vmem:[%s490 + $0x98] sm:$0x1] %v585
  %v587 = vld [vmem:[%s490 + $0x9c] sm:$0xf]
  %v588 = vsel %vm493, %v397, %v587
  %589 = vst [vmem:[%s490 + $0x9c] sm:$0xf] %v588
  %590 = vst [vmem:[%s490 + $0xa0] sm:$0xf] %v406
  %v591 = vld [vmem:[%s490 + $0xa4] sm:$0x1]
  %v592 = vsel %vm499, %v407, %v591
  %593 = vst [vmem:[%s490 + $0xa4] sm:$0x1] %v592
  %v594 = vld [vmem:[%s490 + $0xa8] sm:$0xf]
  %v595 = vsel %vm493, %v414, %v594
  %596 = vst [vmem:[%s490 + $0xa8] sm:$0xf] %v595
  %597 = vst [vmem:[%s490 + $0xac] sm:$0xf] %v423
  %v598 = vld [vmem:[%s490 + $0xb0] sm:$0x1]
  %v599 = vsel %vm499, %v424, %v598
  %600 = vst [vmem:[%s490 + $0xb0] sm:$0x1] %v599
  %v601 = vld [vmem:[%s490 + $0xb4] sm:$0xf]
  %v602 = vsel %vm493, %v431, %v601
  %603 = vst [vmem:[%s490 + $0xb4] sm:$0xf] %v602
  %604 = vst [vmem:[%s490 + $0xb8] sm:$0xf] %v440
  %v605 = vld [vmem:[%s490 + $0xbc] sm:$0x1]
  %v606 = vsel %vm499, %v441, %v605
  %607 = vst [vmem:[%s490 + $0xbc] sm:$0x1] %v606
  %v608 = vld [vmem:[#allocation2] sm:$0xf]
  %v609 = vsel %vm493, %v193, %v608
  %610 = vst [vmem:[#allocation2] sm:$0xf] %v609
  %611 = vst [vmem:[#allocation2 + $0x4] sm:$0xf] %v202
  %v612 = vld [vmem:[#allocation2 + $0x8] sm:$0x1]
  %v613 = vsel %vm499, %v203, %v612
  %614 = vst [vmem:[#allocation2 + $0x8] sm:$0x1] %v613
  %s615 = scalar_lea.vmem [#allocation2], 204
  %v616 = vld [vmem:[%s615] sm:$0xf]
  %v617 = vsel %vm493, %v414, %v616
  %618 = vst [vmem:[%s615] sm:$0xf] %v617
  %619 = vst [vmem:[%s615 + $0x4] sm:$0xf] %v423
  %v620 = vld [vmem:[%s615 + $0x8] sm:$0x1]
  %v621 = vsel %vm499, %v424, %v620
  %622 = vst [vmem:[%s615 + $0x8] sm:$0x1] %v621
  %v623 = vld [vmem:[#allocation2] sm:$0x2]
  %v624 = vld [vmem:[#allocation2 + $0xc] sm:$0x2]
  %v625 = vld [vmem:[#allocation2 + $0x18] sm:$0x2]
  %v626 = vld [vmem:[#allocation2 + $0x24] sm:$0x2]
  %v627 = vld [vmem:[#allocation2 + $0x30] sm:$0x2]
  %v628 = vld [vmem:[#allocation2 + $0x3c] sm:$0x2]
  %v629 = vld [vmem:[#allocation2 + $0x48] sm:$0x2]
  %v630 = vld [vmem:[#allocation2 + $0x54] sm:$0x2]
  %v631 = vld [vmem:[#allocation2 + $0x60] sm:$0x2]
  %v632 = vld [vmem:[#allocation2 + $0x6c] sm:$0x2]
  %v633 = vld [vmem:[#allocation2 + $0x78] sm:$0x2]
  %v634 = vld [vmem:[#allocation2 + $0x84] sm:$0x2]
  %v635 = vld [vmem:[#allocation2 + $0x90] sm:$0x2]
  %v636 = vld [vmem:[#allocation2 + $0x9c] sm:$0x2]
  %v637 = vld [vmem:[#allocation2 + $0xa8] sm:$0x2]
  %v638 = vld [vmem:[#allocation2 + $0xb4] sm:$0x2]
  %v639 = vld [vmem:[#allocation2 + $0xc0] sm:$0x2]
  %v640 = vld [vmem:[#allocation2 + $0xcc] sm:$0x2]
  %v659 = vrot.slane %v623, 5
  %v660 = vrot.slane %v659, 4
  %v661 = vrot.slane %v624, 5
  %v662 = vrot.slane %v661, 4
  %v663 = vrot.slane %v625, 5
  %v664 = vrot.slane %v663, 4
  %v665 = vrot.slane %v626, 5
  %v666 = vrot.slane %v665, 4
  %v667 = vrot.slane %v627, 5
  %v668 = vrot.slane %v667, 4
  %v669 = vrot.slane %v628, 5
  %v670 = vrot.slane %v669, 4
  %v671 = vrot.slane %v629, 5
  %v672 = vrot.slane %v671, 4
  %v673 = vrot.slane %v630, 5
  %v674 = vrot.slane %v673, 4
  %v675 = vrot.slane %v631, 5
  %v676 = vrot.slane %v675, 4
  %v677 = vrot.slane %v632, 5
  %v678 = vrot.slane %v677, 4
  %v679 = vrot.slane %v633, 5
  %v680 = vrot.slane %v679, 4
  %v681 = vrot.slane %v634, 5
  %v682 = vrot.slane %v681, 4
  %v683 = vrot.slane %v635, 5
  %v684 = vrot.slane %v683, 4
  %v685 = vrot.slane %v636, 5
  %v686 = vrot.slane %v685, 4
  %v687 = vrot.slane %v637, 5
  %v688 = vrot.slane %v687, 4
  %v689 = vrot.slane %v638, 5
  %v690 = vrot.slane %v689, 4
  %v691 = vrot.slane %v639, 5
  %v692 = vrot.slane %v691, 4
  %v693 = vrot.slane %v640, 5
  %v694 = vrot.slane %v693, 4
  %v713 = vld [vmem:[#allocation2] sm:$0x1]
  %v714 = vsel %vm499, %v660, %v713
  %715 = vst [vmem:[#allocation2] sm:$0x1] %v714
  %v716 = vld [vmem:[#allocation2 + $0xc] sm:$0x1]
  %v717 = vsel %vm499, %v662, %v716
  %718 = vst [vmem:[#allocation2 + $0xc] sm:$0x1] %v717
  %v719 = vld [vmem:[#allocation2 + $0x18] sm:$0x1]
  %v720 = vsel %vm499, %v664, %v719
  %721 = vst [vmem:[#allocation2 + $0x18] sm:$0x1] %v720
  %v722 = vld [vmem:[#allocation2 + $0x24] sm:$0x1]
  %v723 = vsel %vm499, %v666, %v722
  %724 = vst [vmem:[#allocation2 + $0x24] sm:$0x1] %v723
  %v725 = vld [vmem:[#allocation2 + $0x30] sm:$0x1]
  %v726 = vsel %vm499, %v668, %v725
  %727 = vst [vmem:[#allocation2 + $0x30] sm:$0x1] %v726
  %v728 = vld [vmem:[#allocation2 + $0x3c] sm:$0x1]
  %v729 = vsel %vm499, %v670, %v728
  %730 = vst [vmem:[#allocation2 + $0x3c] sm:$0x1] %v729
  %v731 = vld [vmem:[#allocation2 + $0x48] sm:$0x1]
  %v732 = vsel %vm499, %v672, %v731
  %733 = vst [vmem:[#allocation2 + $0x48] sm:$0x1] %v732
  %v734 = vld [vmem:[#allocation2 + $0x54] sm:$0x1]
  %v735 = vsel %vm499, %v674, %v734
  %736 = vst [vmem:[#allocation2 + $0x54] sm:$0x1] %v735
  %v737 = vld [vmem:[#allocation2 + $0x60] sm:$0x1]
  %v738 = vsel %vm499, %v676, %v737
  %739 = vst [vmem:[#allocation2 + $0x60] sm:$0x1] %v738
  %v740 = vld [vmem:[#allocation2 + $0x6c] sm:$0x1]
  %v741 = vsel %vm499, %v678, %v740
  %742 = vst [vmem:[#allocation2 + $0x6c] sm:$0x1] %v741
  %v743 = vld [vmem:[#allocation2 + $0x78] sm:$0x1]
  %v744 = vsel %vm499, %v680, %v743
  %745 = vst [vmem:[#allocation2 + $0x78] sm:$0x1] %v744
  %v746 = vld [vmem:[#allocation2 + $0x84] sm:$0x1]
  %v747 = vsel %vm499, %v682, %v746
  %748 = vst [vmem:[#allocation2 + $0x84] sm:$0x1] %v747
  %v749 = vld [vmem:[#allocation2 + $0x90] sm:$0x1]
  %v750 = vsel %vm499, %v684, %v749
  %751 = vst [vmem:[#allocation2 + $0x90] sm:$0x1] %v750
  %v752 = vld [vmem:[#allocation2 + $0x9c] sm:$0x1]
  %v753 = vsel %vm499, %v686, %v752
  %754 = vst [vmem:[#allocation2 + $0x9c] sm:$0x1] %v753
  %v755 = vld [vmem:[#allocation2 + $0xa8] sm:$0x1]
  %v756 = vsel %vm499, %v688, %v755
  %757 = vst [vmem:[#allocation2 + $0xa8] sm:$0x1] %v756
  %v758 = vld [vmem:[#allocation2 + $0xb4] sm:$0x1]
  %v759 = vsel %vm499, %v690, %v758
  %760 = vst [vmem:[#allocation2 + $0xb4] sm:$0x1] %v759
  %v761 = vld [vmem:[#allocation2 + $0xc0] sm:$0x1]
  %v762 = vsel %vm499, %v692, %v761
  %763 = vst [vmem:[#allocation2 + $0xc0] sm:$0x1] %v762
  %v764 = vld [vmem:[#allocation2 + $0xcc] sm:$0x1]
  %v765 = vsel %vm499, %v694, %v764
  %766 = vst [vmem:[#allocation2 + $0xcc] sm:$0x1] %v765
  %v767 = vld [vmem:[#allocation2 + $0x4] sm:$0x8]
  %v768 = vld [vmem:[#allocation2 + $0x10] sm:$0x8]
  %v769 = vld [vmem:[#allocation2 + $0x1c] sm:$0x8]
  %v770 = vld [vmem:[#allocation2 + $0x28] sm:$0x8]
  %v771 = vld [vmem:[#allocation2 + $0x34] sm:$0x8]
  %v772 = vld [vmem:[#allocation2 + $0x40] sm:$0x8]
  %v773 = vld [vmem:[#allocation2 + $0x4c] sm:$0x8]
  %v774 = vld [vmem:[#allocation2 + $0x58] sm:$0x8]
  %v775 = vld [vmem:[#allocation2 + $0x64] sm:$0x8]
  %v776 = vld [vmem:[#allocation2 + $0x70] sm:$0x8]
  %v777 = vld [vmem:[#allocation2 + $0x7c] sm:$0x8]
  %v778 = vld [vmem:[#allocation2 + $0x88] sm:$0x8]
  %v779 = vld [vmem:[#allocation2 + $0x94] sm:$0x8]
  %v780 = vld [vmem:[#allocation2 + $0xa0] sm:$0x8]
  %v781 = vld [vmem:[#allocation2 + $0xac] sm:$0x8]
  %v782 = vld [vmem:[#allocation2 + $0xb8] sm:$0x8]
  %v783 = vld [vmem:[#allocation2 + $0xc4] sm:$0x8]
  %v784 = vld [vmem:[#allocation2 + $0xd0] sm:$0x8]
  %v803 = vrot.slane %v767, 7
  %v804 = vrot.slane %v803, 4
  %v805 = vrot.slane %v768, 7
  %v806 = vrot.slane %v805, 4
  %v807 = vrot.slane %v769, 7
  %v808 = vrot.slane %v807, 4
  %v809 = vrot.slane %v770, 7
  %v810 = vrot.slane %v809, 4
  %v811 = vrot.slane %v771, 7
  %v812 = vrot.slane %v811, 4
  %v813 = vrot.slane %v772, 7
  %v814 = vrot.slane %v813, 4
  %v815 = vrot.slane %v773, 7
  %v816 = vrot.slane %v815, 4
  %v817 = vrot.slane %v774, 7
  %v818 = vrot.slane %v817, 4
  %v819 = vrot.slane %v775, 7
  %v820 = vrot.slane %v819, 4
  %v821 = vrot.slane %v776, 7
  %v822 = vrot.slane %v821, 4
  %v823 = vrot.slane %v777, 7
  %v824 = vrot.slane %v823, 4
  %v825 = vrot.slane %v778, 7
  %v826 = vrot.slane %v825, 4
  %v827 = vrot.slane %v779, 7
  %v828 = vrot.slane %v827, 4
  %v829 = vrot.slane %v780, 7
  %v830 = vrot.slane %v829, 4
  %v831 = vrot.slane %v781, 7
  %v832 = vrot.slane %v831, 4
  %v833 = vrot.slane %v782, 7
  %v834 = vrot.slane %v833, 4
  %v835 = vrot.slane %v783, 7
  %v836 = vrot.slane %v835, 4
  %v837 = vrot.slane %v784, 7
  %v838 = vrot.slane %v837, 4
  %vm857 = vmand %vm498, %vm492
  %v858 = vld [vmem:[#allocation2 + $0x8] sm:$0x1]
  %v859 = vsel %vm857, %v804, %v858
  %860 = vst [vmem:[#allocation2 + $0x8] sm:$0x1] %v859
  %v861 = vld [vmem:[#allocation2 + $0x14] sm:$0x1]
  %v862 = vsel %vm857, %v806, %v861
  %863 = vst [vmem:[#allocation2 + $0x14] sm:$0x1] %v862
  %v864 = vld [vmem:[#allocation2 + $0x20] sm:$0x1]
  %v865 = vsel %vm857, %v808, %v864
  %866 = vst [vmem:[#allocation2 + $0x20] sm:$0x1] %v865
  %v867 = vld [vmem:[#allocation2 + $0x2c] sm:$0x1]
  %v868 = vsel %vm857, %v810, %v867
  %869 = vst [vmem:[#allocation2 + $0x2c] sm:$0x1] %v868
  %v870 = vld [vmem:[#allocation2 + $0x38] sm:$0x1]
  %v871 = vsel %vm857, %v812, %v870
  %872 = vst [vmem:[#allocation2 + $0x38] sm:$0x1] %v871
  %v873 = vld [vmem:[#allocation2 + $0x44] sm:$0x1]
  %v874 = vsel %vm857, %v814, %v873
  %875 = vst [vmem:[#allocation2 + $0x44] sm:$0x1] %v874
  %v876 = vld [vmem:[#allocation2 + $0x50] sm:$0x1]
  %v877 = vsel %vm857, %v816, %v876
  %878 = vst [vmem:[#allocation2 + $0x50] sm:$0x1] %v877
  %v879 = vld [vmem:[#allocation2 + $0x5c] sm:$0x1]
  %v880 = vsel %vm857, %v818, %v879
  %881 = vst [vmem:[#allocation2 + $0x5c] sm:$0x1] %v880
  %v882 = vld [vmem:[#allocation2 + $0x68] sm:$0x1]
  %v883 = vsel %vm857, %v820, %v882
  %884 = vst [vmem:[#allocation2 + $0x68] sm:$0x1] %v883
  %v885 = vld [vmem:[#allocation2 + $0x74] sm:$0x1]
  %v886 = vsel %vm857, %v822, %v885
  %887 = vst [vmem:[#allocation2 + $0x74] sm:$0x1] %v886
  %v888 = vld [vmem:[#allocation2 + $0x80] sm:$0x1]
  %v889 = vsel %vm857, %v824, %v888
  %890 = vst [vmem:[#allocation2 + $0x80] sm:$0x1] %v889
  %v891 = vld [vmem:[#allocation2 + $0x8c] sm:$0x1]
  %v892 = vsel %vm857, %v826, %v891
  %893 = vst [vmem:[#allocation2 + $0x8c] sm:$0x1] %v892
  %v894 = vld [vmem:[#allocation2 + $0x98] sm:$0x1]
  %v895 = vsel %vm857, %v828, %v894
  %896 = vst [vmem:[#allocation2 + $0x98] sm:$0x1] %v895
  %v897 = vld [vmem:[#allocation2 + $0xa4] sm:$0x1]
  %v898 = vsel %vm857, %v830, %v897
  %899 = vst [vmem:[#allocation2 + $0xa4] sm:$0x1] %v898
  %v900 = vld [vmem:[#allocation2 + $0xb0] sm:$0x1]
  %v901 = vsel %vm857, %v832, %v900
  %902 = vst [vmem:[#allocation2 + $0xb0] sm:$0x1] %v901
  %v903 = vld [vmem:[#allocation2 + $0xbc] sm:$0x1]
  %v904 = vsel %vm857, %v834, %v903
  %905 = vst [vmem:[#allocation2 + $0xbc] sm:$0x1] %v904
  %v906 = vld [vmem:[#allocation2 + $0xc8] sm:$0x1]
  %v907 = vsel %vm857, %v836, %v906
  %908 = vst [vmem:[#allocation2 + $0xc8] sm:$0x1] %v907
  %v909 = vld [vmem:[#allocation2 + $0xd4] sm:$0x1]
  %v910 = vsel %vm857, %v838, %v909
  %911 = vst [vmem:[#allocation2 + $0xd4] sm:$0x1] %v910
  %v912 = vld [vmem:[#allocation2] sm:$0xf]
  %v913 = vld [vmem:[#allocation2 + $0x4] sm:$0xf]
  %v914 = vld [vmem:[#allocation2 + $0xc] sm:$0xf]
  %v915 = vld [vmem:[#allocation2 + $0x10] sm:$0xf]
  %v916 = vld [vmem:[#allocation2 + $0x18] sm:$0xf]
  %v917 = vld [vmem:[#allocation2 + $0x1c] sm:$0xf]
  %v918 = vld [vmem:[#allocation2 + $0x24] sm:$0xf]
  %v919 = vld [vmem:[#allocation2 + $0x28] sm:$0xf]
  %v920 = vld [vmem:[#allocation2 + $0x30] sm:$0xf]
  %v921 = vld [vmem:[#allocation2 + $0x34] sm:$0xf]
  %v922 = vld [vmem:[#allocation2 + $0x3c] sm:$0xf]
  %v923 = vld [vmem:[#allocation2 + $0x40] sm:$0xf]
  %v924 = vld [vmem:[#allocation2 + $0x48] sm:$0xf]
  %v925 = vld [vmem:[#allocation2 + $0x4c] sm:$0xf]
  %v926 = vld [vmem:[#allocation2 + $0x54] sm:$0xf]
  %v927 = vld [vmem:[#allocation2 + $0x58] sm:$0xf]
  %v928 = vld [vmem:[#allocation2 + $0x60] sm:$0xf]
  %v929 = vld [vmem:[#allocation2 + $0x64] sm:$0xf]
  %v930 = vld [vmem:[#allocation2 + $0x6c] sm:$0xf]
  %v931 = vld [vmem:[#allocation2 + $0x70] sm:$0xf]
  %v932 = vld [vmem:[#allocation2 + $0x78] sm:$0xf]
  %v933 = vld [vmem:[#allocation2 + $0x7c] sm:$0xf]
  %v934 = vld [vmem:[#allocation2 + $0x84] sm:$0xf]
  %v935 = vld [vmem:[#allocation2 + $0x88] sm:$0xf]
  %v936 = vld [vmem:[#allocation2 + $0x90] sm:$0xf]
  %v937 = vld [vmem:[#allocation2 + $0x94] sm:$0xf]
  %v938 = vld [vmem:[#allocation2 + $0x9c] sm:$0xf]
  %v939 = vld [vmem:[#allocation2 + $0xa0] sm:$0xf]
  %v940 = vld [vmem:[#allocation2 + $0xa8] sm:$0xf]
  %v941 = vld [vmem:[#allocation2 + $0xac] sm:$0xf]
  %v942 = vld [vmem:[#allocation2 + $0xb4] sm:$0xf]
  %v943 = vld [vmem:[#allocation2 + $0xb8] sm:$0xf]
  %944 = vst [vmem:[#allocation3] sm:$0xf] %v912
  %945 = vst [vmem:[#allocation3 + $0x24] sm:$0xf] %v913
  %946 = vst [vmem:[#allocation3 + $0x48] sm:$0xf] %v914
  %947 = vst [vmem:[#allocation3 + $0x6c] sm:$0xf] %v915
  %948 = vst [vmem:[#allocation3 + $0x90] sm:$0xf] %v916
  %949 = vst [vmem:[#allocation3 + $0xb4] sm:$0xf] %v917
  %950 = vst [vmem:[#allocation3 + $0xd8] sm:$0xf] %v918
  %951 = vst [vmem:[#allocation3 + $0xfc] sm:$0xf] %v919
  %952 = vst [vmem:[#allocation3 + $0x120] sm:$0xf] %v920
  %953 = vst [vmem:[#allocation3 + $0x144] sm:$0xf] %v921
  %954 = vst [vmem:[#allocation3 + $0x168] sm:$0xf] %v922
  %955 = vst [vmem:[#allocation3 + $0x18c] sm:$0xf] %v923
  %956 = vst [vmem:[#allocation3 + $0x1b0] sm:$0xf] %v924
  %957 = vst [vmem:[#allocation3 + $0x1d4] sm:$0xf] %v925
  %958 = vst [vmem:[#allocation3 + $0x1f8] sm:$0xf] %v926
  %959 = vst [vmem:[#allocation3 + $0x21c] sm:$0xf] %v927
  %960 = vst [vmem:[#allocation3 + $0x240] sm:$0xf] %v928
  %961 = vst [vmem:[#allocation3 + $0x264] sm:$0xf] %v929
  %962 = vst [vmem:[#allocation3 + $0x288] sm:$0xf] %v930
  %963 = vst [vmem:[#allocation3 + $0x2ac] sm:$0xf] %v931
  %964 = vst [vmem:[#allocation3 + $0x2d0] sm:$0xf] %v932
  %965 = vst [vmem:[#allocation3 + $0x2f4] sm:$0xf] %v933
  %966 = vst [vmem:[#allocation3 + $0x318] sm:$0xf] %v934
  %967 = vst [vmem:[#allocation3 + $0x33c] sm:$0xf] %v935
  %968 = vst [vmem:[#allocation3 + $0x360] sm:$0xf] %v936
  %969 = vst [vmem:[#allocation3 + $0x384] sm:$0xf] %v937
  %970 = vst [vmem:[#allocation3 + $0x3a8] sm:$0xf] %v938
  %971 = vst [vmem:[#allocation3 + $0x3cc] sm:$0xf] %v939
  %972 = vst [vmem:[#allocation3 + $0x3f0] sm:$0xf] %v940
  %973 = vst [vmem:[#allocation3 + $0x414] sm:$0xf] %v941
  %974 = vst [vmem:[#allocation3 + $0x438] sm:$0xf] %v942
  %975 = vst [vmem:[#allocation3 + $0x45c] sm:$0xf] %v943
  %v976 = vld [vmem:[#allocation2] sm:$0xf]
  %v977 = vld [vmem:[#allocation2 + $0x4] sm:$0xf]
  %v978 = vld [vmem:[#allocation2 + $0x8] sm:$0x1]
  %v979 = vld [vmem:[#allocation2 + $0xc] sm:$0xf]
  %v980 = vld [vmem:[#allocation2 + $0x10] sm:$0xf]
  %v981 = vld [vmem:[#allocation2 + $0x14] sm:$0x1]
  %v982 = vld [vmem:[#allocation2 + $0x18] sm:$0xf]
  %v983 = vld [vmem:[#allocation2 + $0x1c] sm:$0xf]
  %v984 = vld [vmem:[#allocation2 + $0x20] sm:$0x1]
  %v985 = vld [vmem:[#allocation2 + $0x24] sm:$0xf]
  %v986 = vld [vmem:[#allocation2 + $0x28] sm:$0xf]
  %v987 = vld [vmem:[#allocation2 + $0x2c] sm:$0x1]
  %v988 = vld [vmem:[#allocation2 + $0x30] sm:$0xf]
  %v989 = vld [vmem:[#allocation2 + $0x34] sm:$0xf]
  %v990 = vld [vmem:[#allocation2 + $0x38] sm:$0x1]
  %v991 = vld [vmem:[#allocation2 + $0x3c] sm:$0xf]
  %v992 = vld [vmem:[#allocation2 + $0x40] sm:$0xf]
  %v993 = vld [vmem:[#allocation2 + $0x44] sm:$0x1]
  %v994 = vld [vmem:[#allocation2 + $0x48] sm:$0xf]
  %v995 = vld [vmem:[#allocation2 + $0x4c] sm:$0xf]
  %v996 = vld [vmem:[#allocation2 + $0x50] sm:$0x1]
  %v997 = vld [vmem:[#allocation2 + $0x54] sm:$0xf]
  %v998 = vld [vmem:[#allocation2 + $0x58] sm:$0xf]
  %v999 = vld [vmem:[#allocation2 + $0x5c] sm:$0x1]
  %v1000 = vld [vmem:[#allocation2 + $0x60] sm:$0xf]
  %v1001 = vld [vmem:[#allocation2 + $0x64] sm:$0xf]
  %v1002 = vld [vmem:[#allocation2 + $0x68] sm:$0x1]
  %v1003 = vld [vmem:[#allocation2 + $0x6c] sm:$0xf]
  %v1004 = vld [vmem:[#allocation2 + $0x70] sm:$0xf]
  %v1005 = vld [vmem:[#allocation2 + $0x74] sm:$0x1]
  %v1006 = vld [vmem:[#allocation2 + $0x78] sm:$0xf]
  %v1007 = vld [vmem:[#allocation2 + $0x7c] sm:$0xf]
  %v1008 = vld [vmem:[#allocation2 + $0x80] sm:$0x1]
  %v1009 = vld [vmem:[#allocation2 + $0x84] sm:$0xf]
  %v1010 = vld [vmem:[#allocation2 + $0x88] sm:$0xf]
  %v1011 = vld [vmem:[#allocation2 + $0x8c] sm:$0x1]
  %v1012 = vld [vmem:[#allocation2 + $0x90] sm:$0xf]
  %v1013 = vld [vmem:[#allocation2 + $0x94] sm:$0xf]
  %v1014 = vld [vmem:[#allocation2 + $0x98] sm:$0x1]
  %v1015 = vld [vmem:[#allocation2 + $0x9c] sm:$0xf]
  %v1016 = vld [vmem:[#allocation2 + $0xa0] sm:$0xf]
  %v1017 = vld [vmem:[#allocation2 + $0xa4] sm:$0x1]
  %v1018 = vld [vmem:[#allocation2 + $0xa8] sm:$0xf]
  %v1019 = vld [vmem:[#allocation2 + $0xac] sm:$0xf]
  %v1020 = vld [vmem:[#allocation2 + $0xb0] sm:$0x1]
  %v1021 = vld [vmem:[#allocation2 + $0xb4] sm:$0xf]
  %v1022 = vld [vmem:[#allocation2 + $0xb8] sm:$0xf]
  %v1023 = vld [vmem:[#allocation2 + $0xbc] sm:$0x1]
  %vm1024 = vsmask.f32 3328
  %vm1025 = vsmask.f32 7440
  %vm1026 = vmor %vm1024, %vm1025
  %v1028 = vshrl.u32 %v976, 16
  %v1030 = vrot.slane %v1028, 4
  %v1031 = vshll.u32 %v976, 16
  %v1033 = vrot.slane %v1031, 5
  %v1034 = vor.u32 %v1030, %v1033
  %v1035 = vrot.slane %v1034, 4
  %v1037 = vshll.u32 %v977, 16
  %v1039 = vrot.slane %v1037, 5
  %v1040 = vsel %vm1026, %v1035, %v1039
  %v1041 = vshrl.u32 %v977, 16
  %v1043 = vrot.slane %v1041, 4
  %v1044 = vor.u32 %v1043, %v1039
  %v1045 = vrot.slane %v1044, 4
  %v1047 = vshll.u32 %v978, 16
  %v1049 = vrot.slane %v1047, 5
  %v1050 = vsel %vm1026, %v1045, %v1049
  %v1052 = vshrl.u32 %v979, 16
  %v1054 = vrot.slane %v1052, 4
  %v1055 = vshll.u32 %v979, 16
  %v1057 = vrot.slane %v1055, 5
  %v1058 = vor.u32 %v1054, %v1057
  %v1059 = vrot.slane %v1058, 4
  %v1061 = vshll.u32 %v980, 16
  %v1063 = vrot.slane %v1061, 5
  %v1064 = vsel %vm1026, %v1059, %v1063
  %v1065 = vshrl.u32 %v980, 16
  %v1067 = vrot.slane %v1065, 4
  %v1068 = vor.u32 %v1067, %v1063
  %v1069 = vrot.slane %v1068, 4
  %v1071 = vshll.u32 %v981, 16
  %v1073 = vrot.slane %v1071, 5
  %v1074 = vsel %vm1026, %v1069, %v1073
  %v1076 = vshrl.u32 %v982, 16
  %v1078 = vrot.slane %v1076, 4
  %v1079 = vshll.u32 %v982, 16
  %v1081 = vrot.slane %v1079, 5
  %v1082 = vor.u32 %v1078, %v1081
  %v1083 = vrot.slane %v1082, 4
  %v1085 = vshll.u32 %v983, 16
  %v1087 = vrot.slane %v1085, 5
  %v1088 = vsel %vm1026, %v1083, %v1087
  %v1089 = vshrl.u32 %v983, 16
  %v1091 = vrot.slane %v1089, 4
  %v1092 = vor.u32 %v1091, %v1087
  %v1093 = vrot.slane %v1092, 4
  %v1095 = vshll.u32 %v984, 16
  %v1097 = vrot.slane %v1095, 5
  %v1098 = vsel %vm1026, %v1093, %v1097
  %v1100 = vshrl.u32 %v985, 16
  %v1102 = vrot.slane %v1100, 4
  %v1103 = vshll.u32 %v985, 16
  %v1105 = vrot.slane %v1103, 5
  %v1106 = vor.u32 %v1102, %v1105
  %v1107 = vrot.slane %v1106, 4
  %v1109 = vshll.u32 %v986, 16
  %v1111 = vrot.slane %v1109, 5
  %v1112 = vsel %vm1026, %v1107, %v1111
  %v1113 = vshrl.u32 %v986, 16
  %v1115 = vrot.slane %v1113, 4
  %v1116 = vor.u32 %v1115, %v1111
  %v1117 = vrot.slane %v1116, 4
  %v1119 = vshll.u32 %v987, 16
  %v1121 = vrot.slane %v1119, 5
  %v1122 = vsel %vm1026, %v1117, %v1121
  %v1124 = vshrl.u32 %v988, 16
  %v1126 = vrot.slane %v1124, 4
  %v1127 = vshll.u32 %v988, 16
  %v1129 = vrot.slane %v1127, 5
  %v1130 = vor.u32 %v1126, %v1129
  %v1131 = vrot.slane %v1130, 4
  %v1133 = vshll.u32 %v989, 16
  %v1135 = vrot.slane %v1133, 5
  %v1136 = vsel %vm1026, %v1131, %v1135
  %v1137 = vshrl.u32 %v989, 16
  %v1139 = vrot.slane %v1137, 4
  %v1140 = vor.u32 %v1139, %v1135
  %v1141 = vrot.slane %v1140, 4
  %v1143 = vshll.u32 %v990, 16
  %v1145 = vrot.slane %v1143, 5
  %v1146 = vsel %vm1026, %v1141, %v1145
  %v1148 = vshrl.u32 %v991, 16
  %v1150 = vrot.slane %v1148, 4
  %v1151 = vshll.u32 %v991, 16
  %v1153 = vrot.slane %v1151, 5
  %v1154 = vor.u32 %v1150, %v1153
  %v1155 = vrot.slane %v1154, 4
  %v1157 = vshll.u32 %v992, 16
  %v1159 = vrot.slane %v1157, 5
  %v1160 = vsel %vm1026, %v1155, %v1159
  %v1161 = vshrl.u32 %v992, 16
  %v1163 = vrot.slane %v1161, 4
  %v1164 = vor.u32 %v1163, %v1159
  %v1165 = vrot.slane %v1164, 4
  %v1167 = vshll.u32 %v993, 16
  %v1169 = vrot.slane %v1167, 5
  %v1170 = vsel %vm1026, %v1165, %v1169
  %v1172 = vshrl.u32 %v994, 16
  %v1174 = vrot.slane %v1172, 4
  %v1175 = vshll.u32 %v994, 16
  %v1177 = vrot.slane %v1175, 5
  %v1178 = vor.u32 %v1174, %v1177
  %v1179 = vrot.slane %v1178, 4
  %v1181 = vshll.u32 %v995, 16
  %v1183 = vrot.slane %v1181, 5
  %v1184 = vsel %vm1026, %v1179, %v1183
  %v1185 = vshrl.u32 %v995, 16
  %v1187 = vrot.slane %v1185, 4
  %v1188 = vor.u32 %v1187, %v1183
  %v1189 = vrot.slane %v1188, 4
  %v1191 = vshll.u32 %v996, 16
  %v1193 = vrot.slane %v1191, 5
  %v1194 = vsel %vm1026, %v1189, %v1193
  %v1196 = vshrl.u32 %v997, 16
  %v1198 = vrot.slane %v1196, 4
  %v1199 = vshll.u32 %v997, 16
  %v1201 = vrot.slane %v1199, 5
  %v1202 = vor.u32 %v1198, %v1201
  %v1203 = vrot.slane %v1202, 4
  %v1205 = vshll.u32 %v998, 16
  %v1207 = vrot.slane %v1205, 5
  %v1208 = vsel %vm1026, %v1203, %v1207
  %v1209 = vshrl.u32 %v998, 16
  %v1211 = vrot.slane %v1209, 4
  %v1212 = vor.u32 %v1211, %v1207
  %v1213 = vrot.slane %v1212, 4
  %v1215 = vshll.u32 %v999, 16
  %v1217 = vrot.slane %v1215, 5
  %v1218 = vsel %vm1026, %v1213, %v1217
  %v1220 = vshrl.u32 %v1000, 16
  %v1222 = vrot.slane %v1220, 4
  %v1223 = vshll.u32 %v1000, 16
  %v1225 = vrot.slane %v1223, 5
  %v1226 = vor.u32 %v1222, %v1225
  %v1227 = vrot.slane %v1226, 4
  %v1229 = vshll.u32 %v1001, 16
  %v1231 = vrot.slane %v1229, 5
  %v1232 = vsel %vm1026, %v1227, %v1231
  %v1233 = vshrl.u32 %v1001, 16
  %v1235 = vrot.slane %v1233, 4
  %v1236 = vor.u32 %v1235, %v1231
  %v1237 = vrot.slane %v1236, 4
  %v1239 = vshll.u32 %v1002, 16
  %v1241 = vrot.slane %v1239, 5
  %v1242 = vsel %vm1026, %v1237, %v1241
  %v1244 = vshrl.u32 %v1003, 16
  %v1246 = vrot.slane %v1244, 4
  %v1247 = vshll.u32 %v1003, 16
  %v1249 = vrot.slane %v1247, 5
  %v1250 = vor.u32 %v1246, %v1249
  %v1251 = vrot.slane %v1250, 4
  %v1253 = vshll.u32 %v1004, 16
  %v1255 = vrot.slane %v1253, 5
  %v1256 = vsel %vm1026, %v1251, %v1255
  %v1257 = vshrl.u32 %v1004, 16
  %v1259 = vrot.slane %v1257, 4
  %v1260 = vor.u32 %v1259, %v1255
  %v1261 = vrot.slane %v1260, 4
  %v1263 = vshll.u32 %v1005, 16
  %v1265 = vrot.slane %v1263, 5
  %v1266 = vsel %vm1026, %v1261, %v1265
  %v1268 = vshrl.u32 %v1006, 16
  %v1270 = vrot.slane %v1268, 4
  %v1271 = vshll.u32 %v1006, 16
  %v1273 = vrot.slane %v1271, 5
  %v1274 = vor.u32 %v1270, %v1273
  %v1275 = vrot.slane %v1274, 4
  %v1277 = vshll.u32 %v1007, 16
  %v1279 = vrot.slane %v1277, 5
  %v1280 = vsel %vm1026, %v1275, %v1279
  %v1281 = vshrl.u32 %v1007, 16
  %v1283 = vrot.slane %v1281, 4
  %v1284 = vor.u32 %v1283, %v1279
  %v1285 = vrot.slane %v1284, 4
  %v1287 = vshll.u32 %v1008, 16
  %v1289 = vrot.slane %v1287, 5
  %v1290 = vsel %vm1026, %v1285, %v1289
  %v1292 = vshrl.u32 %v1009, 16
  %v1294 = vrot.slane %v1292, 4
  %v1295 = vshll.u32 %v1009, 16
  %v1297 = vrot.slane %v1295, 5
  %v1298 = vor.u32 %v1294, %v1297
  %v1299 = vrot.slane %v1298, 4
  %v1301 = vshll.u32 %v1010, 16
  %v1303 = vrot.slane %v1301, 5
  %v1304 = vsel %vm1026, %v1299, %v1303
  %v1305 = vshrl.u32 %v1010, 16
  %v1307 = vrot.slane %v1305, 4
  %v1308 = vor.u32 %v1307, %v1303
  %v1309 = vrot.slane %v1308, 4
  %v1311 = vshll.u32 %v1011, 16
  %v1313 = vrot.slane %v1311, 5
  %v1314 = vsel %vm1026, %v1309, %v1313
  %v1316 = vshrl.u32 %v1012, 16
  %v1318 = vrot.slane %v1316, 4
  %v1319 = vshll.u32 %v1012, 16
  %v1321 = vrot.slane %v1319, 5
  %v1322 = vor.u32 %v1318, %v1321
  %v1323 = vrot.slane %v1322, 4
  %v1325 = vshll.u32 %v1013, 16
  %v1327 = vrot.slane %v1325, 5
  %v1328 = vsel %vm1026, %v1323, %v1327
  %v1329 = vshrl.u32 %v1013, 16
  %v1331 = vrot.slane %v1329, 4
  %v1332 = vor.u32 %v1331, %v1327
  %v1333 = vrot.slane %v1332, 4
  %v1335 = vshll.u32 %v1014, 16
  %v1337 = vrot.slane %v1335, 5
  %v1338 = vsel %vm1026, %v1333, %v1337
  %v1340 = vshrl.u32 %v1015, 16
  %v1342 = vrot.slane %v1340, 4
  %v1343 = vshll.u32 %v1015, 16
  %v1345 = vrot.slane %v1343, 5
  %v1346 = vor.u32 %v1342, %v1345
  %v1347 = vrot.slane %v1346, 4
  %v1349 = vshll.u32 %v1016, 16
  %v1351 = vrot.slane %v1349, 5
  %v1352 = vsel %vm1026, %v1347, %v1351
  %v1353 = vshrl.u32 %v1016, 16
  %v1355 = vrot.slane %v1353, 4
  %v1356 = vor.u32 %v1355, %v1351
  %v1357 = vrot.slane %v1356, 4
  %v1359 = vshll.u32 %v1017, 16
  %v1361 = vrot.slane %v1359, 5
  %v1362 = vsel %vm1026, %v1357, %v1361
  %v1364 = vshrl.u32 %v1018, 16
  %v1366 = vrot.slane %v1364, 4
  %v1367 = vshll.u32 %v1018, 16
  %v1369 = vrot.slane %v1367, 5
  %v1370 = vor.u32 %v1366, %v1369
  %v1371 = vrot.slane %v1370, 4
  %v1373 = vshll.u32 %v1019, 16
  %v1375 = vrot.slane %v1373, 5
  %v1376 = vsel %vm1026, %v1371, %v1375
  %v1377 = vshrl.u32 %v1019, 16
  %v1379 = vrot.slane %v1377, 4
  %v1380 = vor.u32 %v1379, %v1375
  %v1381 = vrot.slane %v1380, 4
  %v1383 = vshll.u32 %v1020, 16
  %v1385 = vrot.slane %v1383, 5
  %v1386 = vsel %vm1026, %v1381, %v1385
  %v1388 = vshrl.u32 %v1021, 16
  %v1390 = vrot.slane %v1388, 4
  %v1391 = vshll.u32 %v1021, 16
  %v1393 = vrot.slane %v1391, 5
  %v1394 = vor.u32 %v1390, %v1393
  %v1395 = vrot.slane %v1394, 4
  %v1397 = vshll.u32 %v1022, 16
  %v1399 = vrot.slane %v1397, 5
  %v1400 = vsel %vm1026, %v1395, %v1399
  %v1401 = vshrl.u32 %v1022, 16
  %v1403 = vrot.slane %v1401, 4
  %v1404 = vor.u32 %v1403, %v1399
  %v1405 = vrot.slane %v1404, 4
  %v1407 = vshll.u32 %v1023, 16
  %v1409 = vrot.slane %v1407, 5
  %v1410 = vsel %vm1026, %v1405, %v1409
  %1443 = vst [vmem:[#allocation3 + $0x4] sm:$0xf] %v1040
  %1444 = vst [vmem:[#allocation3 + $0x28] sm:$0xf] %v1050
  %1445 = vst [vmem:[#allocation3 + $0x4c] sm:$0xf] %v1064
  %1446 = vst [vmem:[#allocation3 + $0x70] sm:$0xf] %v1074
  %1447 = vst [vmem:[#allocation3 + $0x94] sm:$0xf] %v1088
  %1448 = vst [vmem:[#allocation3 + $0xb8] sm:$0xf] %v1098
  %1449 = vst [vmem:[#allocation3 + $0xdc] sm:$0xf] %v1112
  %1450 = vst [vmem:[#allocation3 + $0x100] sm:$0xf] %v1122
  %1451 = vst [vmem:[#allocation3 + $0x124] sm:$0xf] %v1136
  %1452 = vst [vmem:[#allocation3 + $0x148] sm:$0xf] %v1146
  %1453 = vst [vmem:[#allocation3 + $0x16c] sm:$0xf] %v1160
  %1454 = vst [vmem:[#allocation3 + $0x190] sm:$0xf] %v1170
  %1455 = vst [vmem:[#allocation3 + $0x1b4] sm:$0xf] %v1184
  %1456 = vst [vmem:[#allocation3 + $0x1d8] sm:$0xf] %v1194
  %1457 = vst [vmem:[#allocation3 + $0x1fc] sm:$0xf] %v1208
  %1458 = vst [vmem:[#allocation3 + $0x220] sm:$0xf] %v1218
  %1459 = vst [vmem:[#allocation3 + $0x244] sm:$0xf] %v1232
  %1460 = vst [vmem:[#allocation3 + $0x268] sm:$0xf] %v1242
  %1461 = vst [vmem:[#allocation3 + $0x28c] sm:$0xf] %v1256
  %1462 = vst [vmem:[#allocation3 + $0x2b0] sm:$0xf] %v1266
  %1463 = vst [vmem:[#allocation3 + $0x2d4] sm:$0xf] %v1280
  %1464 = vst [vmem:[#allocation3 + $0x2f8] sm:$0xf] %v1290
  %1465 = vst [vmem:[#allocation3 + $0x31c] sm:$0xf] %v1304
  %1466 = vst [vmem:[#allocation3 + $0x340] sm:$0xf] %v1314
  %1467 = vst [vmem:[#allocation3 + $0x364] sm:$0xf] %v1328
  %1468 = vst [vmem:[#allocation3 + $0x388] sm:$0xf] %v1338
  %1469 = vst [vmem:[#allocation3 + $0x3ac] sm:$0xf] %v1352
  %1470 = vst [vmem:[#allocation3 + $0x3d0] sm:$0xf] %v1362
  %1471 = vst [vmem:[#allocation3 + $0x3f4] sm:$0xf] %v1376
  %1472 = vst [vmem:[#allocation3 + $0x418] sm:$0xf] %v1386
  %1473 = vst [vmem:[#allocation3 + $0x43c] sm:$0xf] %v1400
  %1474 = vst [vmem:[#allocation3 + $0x460] sm:$0xf] %v1410
  %v1475 = vld [vmem:[#allocation2] sm:$0xe]
  %v1476 = vld [vmem:[#allocation2 + $0x4] sm:$0xf]
  %v1477 = vld [vmem:[#allocation2 + $0x8] sm:$0x1]
  %v1478 = vld [vmem:[#allocation2 + $0xc] sm:$0xe]
  %v1479 = vld [vmem:[#allocation2 + $0x10] sm:$0xf]
  %v1480 = vld [vmem:[#allocation2 + $0x14] sm:$0x1]
  %v1481 = vld [vmem:[#allocation2 + $0x18] sm:$0xe]
  %v1482 = vld [vmem:[#allocation2 + $0x1c] sm:$0xf]
  %v1483 = vld [vmem:[#allocation2 + $0x20] sm:$0x1]
  %v1484 = vld [vmem:[#allocation2 + $0x24] sm:$0xe]
  %v1485 = vld [vmem:[#allocation2 + $0x28] sm:$0xf]
  %v1486 = vld [vmem:[#allocation2 + $0x2c] sm:$0x1]
  %v1487 = vld [vmem:[#allocation2 + $0x30] sm:$0xe]
  %v1488 = vld [vmem:[#allocation2 + $0x34] sm:$0xf]
  %v1489 = vld [vmem:[#allocation2 + $0x38] sm:$0x1]
  %v1490 = vld [vmem:[#allocation2 + $0x3c] sm:$0xe]
  %v1491 = vld [vmem:[#allocation2 + $0x40] sm:$0xf]
  %v1492 = vld [vmem:[#allocation2 + $0x44] sm:$0x1]
  %v1493 = vld [vmem:[#allocation2 + $0x48] sm:$0xe]
  %v1494 = vld [vmem:[#allocation2 + $0x4c] sm:$0xf]
  %v1495 = vld [vmem:[#allocation2 + $0x50] sm:$0x1]
  %v1496 = vld [vmem:[#allocation2 + $0x54] sm:$0xe]
  %v1497 = vld [vmem:[#allocation2 + $0x58] sm:$0xf]
  %v1498 = vld [vmem:[#allocation2 + $0x5c] sm:$0x1]
  %v1499 = vld [vmem:[#allocation2 + $0x60] sm:$0xe]
  %v1500 = vld [vmem:[#allocation2 + $0x64] sm:$0xf]
  %v1501 = vld [vmem:[#allocation2 + $0x68] sm:$0x1]
  %v1502 = vld [vmem:[#allocation2 + $0x6c] sm:$0xe]
  %v1503 = vld [vmem:[#allocation2 + $0x70] sm:$0xf]
  %v1504 = vld [vmem:[#allocation2 + $0x74] sm:$0x1]
  %v1505 = vld [vmem:[#allocation2 + $0x78] sm:$0xe]
  %v1506 = vld [vmem:[#allocation2 + $0x7c] sm:$0xf]
  %v1507 = vld [vmem:[#allocation2 + $0x80] sm:$0x1]
  %v1508 = vld [vmem:[#allocation2 + $0x84] sm:$0xe]
  %v1509 = vld [vmem:[#allocation2 + $0x88] sm:$0xf]
  %v1510 = vld [vmem:[#allocation2 + $0x8c] sm:$0x1]
  %v1511 = vld [vmem:[#allocation2 + $0x90] sm:$0xe]
  %v1512 = vld [vmem:[#allocation2 + $0x94] sm:$0xf]
  %v1513 = vld [vmem:[#allocation2 + $0x98] sm:$0x1]
  %v1514 = vld [vmem:[#allocation2 + $0x9c] sm:$0xe]
  %v1515 = vld [vmem:[#allocation2 + $0xa0] sm:$0xf]
  %v1516 = vld [vmem:[#allocation2 + $0xa4] sm:$0x1]
  %v1517 = vld [vmem:[#allocation2 + $0xa8] sm:$0xe]
  %v1518 = vld [vmem:[#allocation2 + $0xac] sm:$0xf]
  %v1519 = vld [vmem:[#allocation2 + $0xb0] sm:$0x1]
  %v1520 = vld [vmem:[#allocation2 + $0xb4] sm:$0xe]
  %v1521 = vld [vmem:[#allocation2 + $0xb8] sm:$0xf]
  %v1522 = vld [vmem:[#allocation2 + $0xbc] sm:$0x1]
  %vm1571 = vcmask 1042432
  %vm1572 = vcmask 1046532
  %vm1573 = vmor %vm1571, %vm1572
  %v1574 = vrot.slane %v1475, 5
  %v1575 = vrot.slane %v1574, 4
  %v1576 = vrot.slane %v1476, 5
  %v1577 = vsel %vm1573, %v1575, %v1576
  %v1578 = vrot.slane %v1576, 4
  %v1579 = vrot.slane %v1477, 5
  %v1580 = vsel %vm1573, %v1578, %v1579
  %v1581 = vrot.slane %v1478, 5
  %v1582 = vrot.slane %v1581, 4
  %v1583 = vrot.slane %v1479, 5
  %v1584 = vsel %vm1573, %v1582, %v1583
  %v1585 = vrot.slane %v1583, 4
  %v1586 = vrot.slane %v1480, 5
  %v1587 = vsel %vm1573, %v1585, %v1586
  %v1588 = vrot.slane %v1481, 5
  %v1589 = vrot.slane %v1588, 4
  %v1590 = vrot.slane %v1482, 5
  %v1591 = vsel %vm1573, %v1589, %v1590
  %v1592 = vrot.slane %v1590, 4
  %v1593 = vrot.slane %v1483, 5
  %v1594 = vsel %vm1573, %v1592, %v1593
  %v1595 = vrot.slane %v1484, 5
  %v1596 = vrot.slane %v1595, 4
  %v1597 = vrot.slane %v1485, 5
  %v1598 = vsel %vm1573, %v1596, %v1597
  %v1599 = vrot.slane %v1597, 4
  %v1600 = vrot.slane %v1486, 5
  %v1601 = vsel %vm1573, %v1599, %v1600
  %v1602 = vrot.slane %v1487, 5
  %v1603 = vrot.slane %v1602, 4
  %v1604 = vrot.slane %v1488, 5
  %v1605 = vsel %vm1573, %v1603, %v1604
  %v1606 = vrot.slane %v1604, 4
  %v1607 = vrot.slane %v1489, 5
  %v1608 = vsel %vm1573, %v1606, %v1607
  %v1609 = vrot.slane %v1490, 5
  %v1610 = vrot.slane %v1609, 4
  %v1611 = vrot.slane %v1491, 5
  %v1612 = vsel %vm1573, %v1610, %v1611
  %v1613 = vrot.slane %v1611, 4
  %v1614 = vrot.slane %v1492, 5
  %v1615 = vsel %vm1573, %v1613, %v1614
  %v1616 = vrot.slane %v1493, 5
  %v1617 = vrot.slane %v1616, 4
  %v1618 = vrot.slane %v1494, 5
  %v1619 = vsel %vm1573, %v1617, %v1618
  %v1620 = vrot.slane %v1618, 4
  %v1621 = vrot.slane %v1495, 5
  %v1622 = vsel %vm1573, %v1620, %v1621
  %v1623 = vrot.slane %v1496, 5
  %v1624 = vrot.slane %v1623, 4
  %v1625 = vrot.slane %v1497, 5
  %v1626 = vsel %vm1573, %v1624, %v1625
  %v1627 = vrot.slane %v1625, 4
  %v1628 = vrot.slane %v1498, 5
  %v1629 = vsel %vm1573, %v1627, %v1628
  %v1630 = vrot.slane %v1499, 5
  %v1631 = vrot.slane %v1630, 4
  %v1632 = vrot.slane %v1500, 5
  %v1633 = vsel %vm1573, %v1631, %v1632
  %v1634 = vrot.slane %v1632, 4
  %v1635 = vrot.slane %v1501, 5
  %v1636 = vsel %vm1573, %v1634, %v1635
  %v1637 = vrot.slane %v1502, 5
  %v1638 = vrot.slane %v1637, 4
  %v1639 = vrot.slane %v1503, 5
  %v1640 = vsel %vm1573, %v1638, %v1639
  %v1641 = vrot.slane %v1639, 4
  %v1642 = vrot.slane %v1504, 5
  %v1643 = vsel %vm1573, %v1641, %v1642
  %v1644 = vrot.slane %v1505, 5
  %v1645 = vrot.slane %v1644, 4
  %v1646 = vrot.slane %v1506, 5
  %v1647 = vsel %vm1573, %v1645, %v1646
  %v1648 = vrot.slane %v1646, 4
  %v1649 = vrot.slane %v1507, 5
  %v1650 = vsel %vm1573, %v1648, %v1649
  %v1651 = vrot.slane %v1508, 5
  %v1652 = vrot.slane %v1651, 4
  %v1653 = vrot.slane %v1509, 5
  %v1654 = vsel %vm1573, %v1652, %v1653
  %v1655 = vrot.slane %v1653, 4
  %v1656 = vrot.slane %v1510, 5
  %v1657 = vsel %vm1573, %v1655, %v1656
  %v1658 = vrot.slane %v1511, 5
  %v1659 = vrot.slane %v1658, 4
  %v1660 = vrot.slane %v1512, 5
  %v1661 = vsel %vm1573, %v1659, %v1660
  %v1662 = vrot.slane %v1660, 4
  %v1663 = vrot.slane %v1513, 5
  %v1664 = vsel %vm1573, %v1662, %v1663
  %v1665 = vrot.slane %v1514, 5
  %v1666 = vrot.slane %v1665, 4
  %v1667 = vrot.slane %v1515, 5
  %v1668 = vsel %vm1573, %v1666, %v1667
  %v1669 = vrot.slane %v1667, 4
  %v1670 = vrot.slane %v1516, 5
  %v1671 = vsel %vm1573, %v1669, %v1670
  %v1672 = vrot.slane %v1517, 5
  %v1673 = vrot.slane %v1672, 4
  %v1674 = vrot.slane %v1518, 5
  %v1675 = vsel %vm1573, %v1673, %v1674
  %v1676 = vrot.slane %v1674, 4
  %v1677 = vrot.slane %v1519, 5
  %v1678 = vsel %vm1573, %v1676, %v1677
  %v1679 = vrot.slane %v1520, 5
  %v1680 = vrot.slane %v1679, 4
  %v1681 = vrot.slane %v1521, 5
  %v1682 = vsel %vm1573, %v1680, %v1681
  %v1683 = vrot.slane %v1681, 4
  %v1684 = vrot.slane %v1522, 5
  %v1685 = vsel %vm1573, %v1683, %v1684
  %1718 = vst [vmem:[#allocation3 + $0x8] sm:$0xf] %v1577
  %1719 = vst [vmem:[#allocation3 + $0x2c] sm:$0xf] %v1580
  %1720 = vst [vmem:[#allocation3 + $0x50] sm:$0xf] %v1584
  %1721 = vst [vmem:[#allocation3 + $0x74] sm:$0xf] %v1587
  %1722 = vst [vmem:[#allocation3 + $0x98] sm:$0xf] %v1591
  %1723 = vst [vmem:[#allocation3 + $0xbc] sm:$0xf] %v1594
  %1724 = vst [vmem:[#allocation3 + $0xe0] sm:$0xf] %v1598
  %1725 = vst [vmem:[#allocation3 + $0x104] sm:$0xf] %v1601
  %1726 = vst [vmem:[#allocation3 + $0x128] sm:$0xf] %v1605
  %1727 = vst [vmem:[#allocation3 + $0x14c] sm:$0xf] %v1608
  %1728 = vst [vmem:[#allocation3 + $0x170] sm:$0xf] %v1612
  %1729 = vst [vmem:[#allocation3 + $0x194] sm:$0xf] %v1615
  %1730 = vst [vmem:[#allocation3 + $0x1b8] sm:$0xf] %v1619
  %1731 = vst [vmem:[#allocation3 + $0x1dc] sm:$0xf] %v1622
  %1732 = vst [vmem:[#allocation3 + $0x200] sm:$0xf] %v1626
  %1733 = vst [vmem:[#allocation3 + $0x224] sm:$0xf] %v1629
  %1734 = vst [vmem:[#allocation3 + $0x248] sm:$0xf] %v1633
  %1735 = vst [vmem:[#allocation3 + $0x26c] sm:$0xf] %v1636
  %1736 = vst [vmem:[#allocation3 + $0x290] sm:$0xf] %v1640
  %1737 = vst [vmem:[#allocation3 + $0x2b4] sm:$0xf] %v1643
  %1738 = vst [vmem:[#allocation3 + $0x2d8] sm:$0xf] %v1647
  %1739 = vst [vmem:[#allocation3 + $0x2fc] sm:$0xf] %v1650
  %1740 = vst [vmem:[#allocation3 + $0x320] sm:$0xf] %v1654
  %1741 = vst [vmem:[#allocation3 + $0x344] sm:$0xf] %v1657
  %1742 = vst [vmem:[#allocation3 + $0x368] sm:$0xf] %v1661
  %1743 = vst [vmem:[#allocation3 + $0x38c] sm:$0xf] %v1664
  %1744 = vst [vmem:[#allocation3 + $0x3b0] sm:$0xf] %v1668
  %1745 = vst [vmem:[#allocation3 + $0x3d4] sm:$0xf] %v1671
  %1746 = vst [vmem:[#allocation3 + $0x3f8] sm:$0xf] %v1675
  %1747 = vst [vmem:[#allocation3 + $0x41c] sm:$0xf] %v1678
  %1748 = vst [vmem:[#allocation3 + $0x440] sm:$0xf] %v1682
  %1749 = vst [vmem:[#allocation3 + $0x464] sm:$0xf] %v1685
  %v1750 = vld [vmem:[%s490] sm:$0xf]
  %v1751 = vld [vmem:[%s490 + $0x4] sm:$0xf]
  %v1752 = vld [vmem:[%s490 + $0xc] sm:$0xf]
  %v1753 = vld [vmem:[%s490 + $0x10] sm:$0xf]
  %v1754 = vld [vmem:[%s490 + $0x18] sm:$0xf]
  %v1755 = vld [vmem:[%s490 + $0x1c] sm:$0xf]
  %v1756 = vld [vmem:[%s490 + $0x24] sm:$0xf]
  %v1757 = vld [vmem:[%s490 + $0x28] sm:$0xf]
  %v1758 = vld [vmem:[%s490 + $0x30] sm:$0xf]
  %v1759 = vld [vmem:[%s490 + $0x34] sm:$0xf]
  %v1760 = vld [vmem:[%s490 + $0x3c] sm:$0xf]
  %v1761 = vld [vmem:[%s490 + $0x40] sm:$0xf]
  %v1762 = vld [vmem:[%s490 + $0x48] sm:$0xf]
  %v1763 = vld [vmem:[%s490 + $0x4c] sm:$0xf]
  %v1764 = vld [vmem:[%s490 + $0x54] sm:$0xf]
  %v1765 = vld [vmem:[%s490 + $0x58] sm:$0xf]
  %v1766 = vld [vmem:[%s490 + $0x60] sm:$0xf]
  %v1767 = vld [vmem:[%s490 + $0x64] sm:$0xf]
  %v1768 = vld [vmem:[%s490 + $0x6c] sm:$0xf]
  %v1769 = vld [vmem:[%s490 + $0x70] sm:$0xf]
  %v1770 = vld [vmem:[%s490 + $0x78] sm:$0xf]
  %v1771 = vld [vmem:[%s490 + $0x7c] sm:$0xf]
  %v1772 = vld [vmem:[%s490 + $0x84] sm:$0xf]
  %v1773 = vld [vmem:[%s490 + $0x88] sm:$0xf]
  %v1774 = vld [vmem:[%s490 + $0x90] sm:$0xf]
  %v1775 = vld [vmem:[%s490 + $0x94] sm:$0xf]
  %v1776 = vld [vmem:[%s490 + $0x9c] sm:$0xf]
  %v1777 = vld [vmem:[%s490 + $0xa0] sm:$0xf]
  %v1778 = vld [vmem:[%s490 + $0xa8] sm:$0xf]
  %v1779 = vld [vmem:[%s490 + $0xac] sm:$0xf]
  %v1780 = vld [vmem:[%s490 + $0xb4] sm:$0xf]
  %v1781 = vld [vmem:[%s490 + $0xb8] sm:$0xf]
  %1782 = vst [vmem:[#allocation3 + $0xc] sm:$0xf] %v1750
  %1783 = vst [vmem:[#allocation3 + $0x30] sm:$0xf] %v1751
  %1784 = vst [vmem:[#allocation3 + $0x54] sm:$0xf] %v1752
  %1785 = vst [vmem:[#allocation3 + $0x78] sm:$0xf] %v1753
  %1786 = vst [vmem:[#allocation3 + $0x9c] sm:$0xf] %v1754
  %1787 = vst [vmem:[#allocation3 + $0xc0] sm:$0xf] %v1755
  %1788 = vst [vmem:[#allocation3 + $0xe4] sm:$0xf] %v1756
  %1789 = vst [vmem:[#allocation3 + $0x108] sm:$0xf] %v1757
  %1790 = vst [vmem:[#allocation3 + $0x12c] sm:$0xf] %v1758
  %1791 = vst [vmem:[#allocation3 + $0x150] sm:$0xf] %v1759
  %1792 = vst [vmem:[#allocation3 + $0x174] sm:$0xf] %v1760
  %1793 = vst [vmem:[#allocation3 + $0x198] sm:$0xf] %v1761
  %1794 = vst [vmem:[#allocation3 + $0x1bc] sm:$0xf] %v1762
  %1795 = vst [vmem:[#allocation3 + $0x1e0] sm:$0xf] %v1763
  %1796 = vst [vmem:[#allocation3 + $0x204] sm:$0xf] %v1764
  %1797 = vst [vmem:[#allocation3 + $0x228] sm:$0xf] %v1765
  %1798 = vst [vmem:[#allocation3 + $0x24c] sm:$0xf] %v1766
  %1799 = vst [vmem:[#allocation3 + $0x270] sm:$0xf] %v1767
  %1800 = vst [vmem:[#allocation3 + $0x294] sm:$0xf] %v1768
  %1801 = vst [vmem:[#allocation3 + $0x2b8] sm:$0xf] %v1769
  %1802 = vst [vmem:[#allocation3 + $0x2dc] sm:$0xf] %v1770
  %1803 = vst [vmem:[#allocation3 + $0x300] sm:$0xf] %v1771
  %1804 = vst [vmem:[#allocation3 + $0x324] sm:$0xf] %v1772
  %1805 = vst [vmem:[#allocation3 + $0x348] sm:$0xf] %v1773
  %1806 = vst [vmem:[#allocation3 + $0x36c] sm:$0xf] %v1774
  %1807 = vst [vmem:[#allocation3 + $0x390] sm:$0xf] %v1775
  %1808 = vst [vmem:[#allocation3 + $0x3b4] sm:$0xf] %v1776
  %1809 = vst [vmem:[#allocation3 + $0x3d8] sm:$0xf] %v1777
  %1810 = vst [vmem:[#allocation3 + $0x3fc] sm:$0xf] %v1778
  %1811 = vst [vmem:[#allocation3 + $0x420] sm:$0xf] %v1779
  %1812 = vst [vmem:[#allocation3 + $0x444] sm:$0xf] %v1780
  %1813 = vst [vmem:[#allocation3 + $0x468] sm:$0xf] %v1781
  %v1814 = vld [vmem:[%s490] sm:$0xf]
  %v1815 = vld [vmem:[%s490 + $0x4] sm:$0xf]
  %v1816 = vld [vmem:[%s490 + $0x8] sm:$0x1]
  %v1817 = vld [vmem:[%s490 + $0xc] sm:$0xf]
  %v1818 = vld [vmem:[%s490 + $0x10] sm:$0xf]
  %v1819 = vld [vmem:[%s490 + $0x14] sm:$0x1]
  %v1820 = vld [vmem:[%s490 + $0x18] sm:$0xf]
  %v1821 = vld [vmem:[%s490 + $0x1c] sm:$0xf]
  %v1822 = vld [vmem:[%s490 + $0x20] sm:$0x1]
  %v1823 = vld [vmem:[%s490 + $0x24] sm:$0xf]
  %v1824 = vld [vmem:[%s490 + $0x28] sm:$0xf]
  %v1825 = vld [vmem:[%s490 + $0x2c] sm:$0x1]
  %v1826 = vld [vmem:[%s490 + $0x30] sm:$0xf]
  %v1827 = vld [vmem:[%s490 + $0x34] sm:$0xf]
  %v1828 = vld [vmem:[%s490 + $0x38] sm:$0x1]
  %v1829 = vld [vmem:[%s490 + $0x3c] sm:$0xf]
  %v1830 = vld [vmem:[%s490 + $0x40] sm:$0xf]
  %v1831 = vld [vmem:[%s490 + $0x44] sm:$0x1]
  %v1832 = vld [vmem:[%s490 + $0x48] sm:$0xf]
  %v1833 = vld [vmem:[%s490 + $0x4c] sm:$0xf]
  %v1834 = vld [vmem:[%s490 + $0x50] sm:$0x1]
  %v1835 = vld [vmem:[%s490 + $0x54] sm:$0xf]
  %v1836 = vld [vmem:[%s490 + $0x58] sm:$0xf]
  %v1837 = vld [vmem:[%s490 + $0x5c] sm:$0x1]
  %v1838 = vld [vmem:[%s490 + $0x60] sm:$0xf]
  %v1839 = vld [vmem:[%s490 + $0x64] sm:$0xf]
  %v1840 = vld [vmem:[%s490 + $0x68] sm:$0x1]
  %v1841 = vld [vmem:[%s490 + $0x6c] sm:$0xf]
  %v1842 = vld [vmem:[%s490 + $0x70] sm:$0xf]
  %v1843 = vld [vmem:[%s490 + $0x74] sm:$0x1]
  %v1844 = vld [vmem:[%s490 + $0x78] sm:$0xf]
  %v1845 = vld [vmem:[%s490 + $0x7c] sm:$0xf]
  %v1846 = vld [vmem:[%s490 + $0x80] sm:$0x1]
  %v1847 = vld [vmem:[%s490 + $0x84] sm:$0xf]
  %v1848 = vld [vmem:[%s490 + $0x88] sm:$0xf]
  %v1849 = vld [vmem:[%s490 + $0x8c] sm:$0x1]
  %v1850 = vld [vmem:[%s490 + $0x90] sm:$0xf]
  %v1851 = vld [vmem:[%s490 + $0x94] sm:$0xf]
  %v1852 = vld [vmem:[%s490 + $0x98] sm:$0x1]
  %v1853 = vld [vmem:[%s490 + $0x9c] sm:$0xf]
  %v1854 = vld [vmem:[%s490 + $0xa0] sm:$0xf]
  %v1855 = vld [vmem:[%s490 + $0xa4] sm:$0x1]
  %v1856 = vld [vmem:[%s490 + $0xa8] sm:$0xf]
  %v1857 = vld [vmem:[%s490 + $0xac] sm:$0xf]
  %v1858 = vld [vmem:[%s490 + $0xb0] sm:$0x1]
  %v1859 = vld [vmem:[%s490 + $0xb4] sm:$0xf]
  %v1860 = vld [vmem:[%s490 + $0xb8] sm:$0xf]
  %v1861 = vld [vmem:[%s490 + $0xbc] sm:$0x1]
  %v1863 = vshrl.u32 %v1814, 16
  %v1865 = vrot.slane %v1863, 4
  %v1866 = vshll.u32 %v1814, 16
  %v1868 = vrot.slane %v1866, 5
  %v1869 = vor.u32 %v1865, %v1868
  %v1870 = vrot.slane %v1869, 4
  %v1872 = vshll.u32 %v1815, 16
  %v1874 = vrot.slane %v1872, 5
  %v1875 = vsel %vm1026, %v1870, %v1874
  %v1876 = vshrl.u32 %v1815, 16
  %v1878 = vrot.slane %v1876, 4
  %v1879 = vor.u32 %v1878, %v1874
  %v1880 = vrot.slane %v1879, 4
  %v1882 = vshll.u32 %v1816, 16
  %v1884 = vrot.slane %v1882, 5
  %v1885 = vsel %vm1026, %v1880, %v1884
  %v1887 = vshrl.u32 %v1817, 16
  %v1889 = vrot.slane %v1887, 4
  %v1890 = vshll.u32 %v1817, 16
  %v1892 = vrot.slane %v1890, 5
  %v1893 = vor.u32 %v1889, %v1892
  %v1894 = vrot.slane %v1893, 4
  %v1896 = vshll.u32 %v1818, 16
  %v1898 = vrot.slane %v1896, 5
  %v1899 = vsel %vm1026, %v1894, %v1898
  %v1900 = vshrl.u32 %v1818, 16
  %v1902 = vrot.slane %v1900, 4
  %v1903 = vor.u32 %v1902, %v1898
  %v1904 = vrot.slane %v1903, 4
  %v1906 = vshll.u32 %v1819, 16
  %v1908 = vrot.slane %v1906, 5
  %v1909 = vsel %vm1026, %v1904, %v1908
  %v1911 = vshrl.u32 %v1820, 16
  %v1913 = vrot.slane %v1911, 4
  %v1914 = vshll.u32 %v1820, 16
  %v1916 = vrot.slane %v1914, 5
  %v1917 = vor.u32 %v1913, %v1916
  %v1918 = vrot.slane %v1917, 4
  %v1920 = vshll.u32 %v1821, 16
  %v1922 = vrot.slane %v1920, 5
  %v1923 = vsel %vm1026, %v1918, %v1922
  %v1924 = vshrl.u32 %v1821, 16
  %v1926 = vrot.slane %v1924, 4
  %v1927 = vor.u32 %v1926, %v1922
  %v1928 = vrot.slane %v1927, 4
  %v1930 = vshll.u32 %v1822, 16
  %v1932 = vrot.slane %v1930, 5
  %v1933 = vsel %vm1026, %v1928, %v1932
  %v1935 = vshrl.u32 %v1823, 16
  %v1937 = vrot.slane %v1935, 4
  %v1938 = vshll.u32 %v1823, 16
  %v1940 = vrot.slane %v1938, 5
  %v1941 = vor.u32 %v1937, %v1940
  %v1942 = vrot.slane %v1941, 4
  %v1944 = vshll.u32 %v1824, 16
  %v1946 = vrot.slane %v1944, 5
  %v1947 = vsel %vm1026, %v1942, %v1946
  %v1948 = vshrl.u32 %v1824, 16
  %v1950 = vrot.slane %v1948, 4
  %v1951 = vor.u32 %v1950, %v1946
  %v1952 = vrot.slane %v1951, 4
  %v1954 = vshll.u32 %v1825, 16
  %v1956 = vrot.slane %v1954, 5
  %v1957 = vsel %vm1026, %v1952, %v1956
  %v1959 = vshrl.u32 %v1826, 16
  %v1961 = vrot.slane %v1959, 4
  %v1962 = vshll.u32 %v1826, 16
  %v1964 = vrot.slane %v1962, 5
  %v1965 = vor.u32 %v1961, %v1964
  %v1966 = vrot.slane %v1965, 4
  %v1968 = vshll.u32 %v1827, 16
  %v1970 = vrot.slane %v1968, 5
  %v1971 = vsel %vm1026, %v1966, %v1970
  %v1972 = vshrl.u32 %v1827, 16
  %v1974 = vrot.slane %v1972, 4
  %v1975 = vor.u32 %v1974, %v1970
  %v1976 = vrot.slane %v1975, 4
  %v1978 = vshll.u32 %v1828, 16
  %v1980 = vrot.slane %v1978, 5
  %v1981 = vsel %vm1026, %v1976, %v1980
  %v1983 = vshrl.u32 %v1829, 16
  %v1985 = vrot.slane %v1983, 4
  %v1986 = vshll.u32 %v1829, 16
  %v1988 = vrot.slane %v1986, 5
  %v1989 = vor.u32 %v1985, %v1988
  %v1990 = vrot.slane %v1989, 4
  %v1992 = vshll.u32 %v1830, 16
  %v1994 = vrot.slane %v1992, 5
  %v1995 = vsel %vm1026, %v1990, %v1994
  %v1996 = vshrl.u32 %v1830, 16
  %v1998 = vrot.slane %v1996, 4
  %v1999 = vor.u32 %v1998, %v1994
  %v2000 = vrot.slane %v1999, 4
  %v2002 = vshll.u32 %v1831, 16
  %v2004 = vrot.slane %v2002, 5
  %v2005 = vsel %vm1026, %v2000, %v2004
  %v2007 = vshrl.u32 %v1832, 16
  %v2009 = vrot.slane %v2007, 4
  %v2010 = vshll.u32 %v1832, 16
  %v2012 = vrot.slane %v2010, 5
  %v2013 = vor.u32 %v2009, %v2012
  %v2014 = vrot.slane %v2013, 4
  %v2016 = vshll.u32 %v1833, 16
  %v2018 = vrot.slane %v2016, 5
  %v2019 = vsel %vm1026, %v2014, %v2018
  %v2020 = vshrl.u32 %v1833, 16
  %v2022 = vrot.slane %v2020, 4
  %v2023 = vor.u32 %v2022, %v2018
  %v2024 = vrot.slane %v2023, 4
  %v2026 = vshll.u32 %v1834, 16
  %v2028 = vrot.slane %v2026, 5
  %v2029 = vsel %vm1026, %v2024, %v2028
  %v2031 = vshrl.u32 %v1835, 16
  %v2033 = vrot.slane %v2031, 4
  %v2034 = vshll.u32 %v1835, 16
  %v2036 = vrot.slane %v2034, 5
  %v2037 = vor.u32 %v2033, %v2036
  %v2038 = vrot.slane %v2037, 4
  %v2040 = vshll.u32 %v1836, 16
  %v2042 = vrot.slane %v2040, 5
  %v2043 = vsel %vm1026, %v2038, %v2042
  %v2044 = vshrl.u32 %v1836, 16
  %v2046 = vrot.slane %v2044, 4
  %v2047 = vor.u32 %v2046, %v2042
  %v2048 = vrot.slane %v2047, 4
  %v2050 = vshll.u32 %v1837, 16
  %v2052 = vrot.slane %v2050, 5
  %v2053 = vsel %vm1026, %v2048, %v2052
  %v2055 = vshrl.u32 %v1838, 16
  %v2057 = vrot.slane %v2055, 4
  %v2058 = vshll.u32 %v1838, 16
  %v2060 = vrot.slane %v2058, 5
  %v2061 = vor.u32 %v2057, %v2060
  %v2062 = vrot.slane %v2061, 4
  %v2064 = vshll.u32 %v1839, 16
  %v2066 = vrot.slane %v2064, 5
  %v2067 = vsel %vm1026, %v2062, %v2066
  %v2068 = vshrl.u32 %v1839, 16
  %v2070 = vrot.slane %v2068, 4
  %v2071 = vor.u32 %v2070, %v2066
  %v2072 = vrot.slane %v2071, 4
  %v2074 = vshll.u32 %v1840, 16
  %v2076 = vrot.slane %v2074, 5
  %v2077 = vsel %vm1026, %v2072, %v2076
  %v2079 = vshrl.u32 %v1841, 16
  %v2081 = vrot.slane %v2079, 4
  %v2082 = vshll.u32 %v1841, 16
  %v2084 = vrot.slane %v2082, 5
  %v2085 = vor.u32 %v2081, %v2084
  %v2086 = vrot.slane %v2085, 4
  %v2088 = vshll.u32 %v1842, 16
  %v2090 = vrot.slane %v2088, 5
  %v2091 = vsel %vm1026, %v2086, %v2090
  %v2092 = vshrl.u32 %v1842, 16
  %v2094 = vrot.slane %v2092, 4
  %v2095 = vor.u32 %v2094, %v2090
  %v2096 = vrot.slane %v2095, 4
  %v2098 = vshll.u32 %v1843, 16
  %v2100 = vrot.slane %v2098, 5
  %v2101 = vsel %vm1026, %v2096, %v2100
  %v2103 = vshrl.u32 %v1844, 16
  %v2105 = vrot.slane %v2103, 4
  %v2106 = vshll.u32 %v1844, 16
  %v2108 = vrot.slane %v2106, 5
  %v2109 = vor.u32 %v2105, %v2108
  %v2110 = vrot.slane %v2109, 4
  %v2112 = vshll.u32 %v1845, 16
  %v2114 = vrot.slane %v2112, 5
  %v2115 = vsel %vm1026, %v2110, %v2114
  %v2116 = vshrl.u32 %v1845, 16
  %v2118 = vrot.slane %v2116, 4
  %v2119 = vor.u32 %v2118, %v2114
  %v2120 = vrot.slane %v2119, 4
  %v2122 = vshll.u32 %v1846, 16
  %v2124 = vrot.slane %v2122, 5
  %v2125 = vsel %vm1026, %v2120, %v2124
  %v2127 = vshrl.u32 %v1847, 16
  %v2129 = vrot.slane %v2127, 4
  %v2130 = vshll.u32 %v1847, 16
  %v2132 = vrot.slane %v2130, 5
  %v2133 = vor.u32 %v2129, %v2132
  %v2134 = vrot.slane %v2133, 4
  %v2136 = vshll.u32 %v1848, 16
  %v2138 = vrot.slane %v2136, 5
  %v2139 = vsel %vm1026, %v2134, %v2138
  %v2140 = vshrl.u32 %v1848, 16
  %v2142 = vrot.slane %v2140, 4
  %v2143 = vor.u32 %v2142, %v2138
  %v2144 = vrot.slane %v2143, 4
  %v2146 = vshll.u32 %v1849, 16
  %v2148 = vrot.slane %v2146, 5
  %v2149 = vsel %vm1026, %v2144, %v2148
  %v2151 = vshrl.u32 %v1850, 16
  %v2153 = vrot.slane %v2151, 4
  %v2154 = vshll.u32 %v1850, 16
  %v2156 = vrot.slane %v2154, 5
  %v2157 = vor.u32 %v2153, %v2156
  %v2158 = vrot.slane %v2157, 4
  %v2160 = vshll.u32 %v1851, 16
  %v2162 = vrot.slane %v2160, 5
  %v2163 = vsel %vm1026, %v2158, %v2162
  %v2164 = vshrl.u32 %v1851, 16
  %v2166 = vrot.slane %v2164, 4
  %v2167 = vor.u32 %v2166, %v2162
  %v2168 = vrot.slane %v2167, 4
  %v2170 = vshll.u32 %v1852, 16
  %v2172 = vrot.slane %v2170, 5
  %v2173 = vsel %vm1026, %v2168, %v2172
  %v2175 = vshrl.u32 %v1853, 16
  %v2177 = vrot.slane %v2175, 4
  %v2178 = vshll.u32 %v1853, 16
  %v2180 = vrot.slane %v2178, 5
  %v2181 = vor.u32 %v2177, %v2180
  %v2182 = vrot.slane %v2181, 4
  %v2184 = vshll.u32 %v1854, 16
  %v2186 = vrot.slane %v2184, 5
  %v2187 = vsel %vm1026, %v2182, %v2186
  %v2188 = vshrl.u32 %v1854, 16
  %v2190 = vrot.slane %v2188, 4
  %v2191 = vor.u32 %v2190, %v2186
  %v2192 = vrot.slane %v2191, 4
  %v2194 = vshll.u32 %v1855, 16
  %v2196 = vrot.slane %v2194, 5
  %v2197 = vsel %vm1026, %v2192, %v2196
  %v2199 = vshrl.u32 %v1856, 16
  %v2201 = vrot.slane %v2199, 4
  %v2202 = vshll.u32 %v1856, 16
  %v2204 = vrot.slane %v2202, 5
  %v2205 = vor.u32 %v2201, %v2204
  %v2206 = vrot.slane %v2205, 4
  %v2208 = vshll.u32 %v1857, 16
  %v2210 = vrot.slane %v2208, 5
  %v2211 = vsel %vm1026, %v2206, %v2210
  %v2212 = vshrl.u32 %v1857, 16
  %v2214 = vrot.slane %v2212, 4
  %v2215 = vor.u32 %v2214, %v2210
  %v2216 = vrot.slane %v2215, 4
  %v2218 = vshll.u32 %v1858, 16
  %v2220 = vrot.slane %v2218, 5
  %v2221 = vsel %vm1026, %v2216, %v2220
  %v2223 = vshrl.u32 %v1859, 16
  %v2225 = vrot.slane %v2223, 4
  %v2226 = vshll.u32 %v1859, 16
  %v2228 = vrot.slane %v2226, 5
  %v2229 = vor.u32 %v2225, %v2228
  %v2230 = vrot.slane %v2229, 4
  %v2232 = vshll.u32 %v1860, 16
  %v2234 = vrot.slane %v2232, 5
  %v2235 = vsel %vm1026, %v2230, %v2234
  %v2236 = vshrl.u32 %v1860, 16
  %v2238 = vrot.slane %v2236, 4
  %v2239 = vor.u32 %v2238, %v2234
  %v2240 = vrot.slane %v2239, 4
  %v2242 = vshll.u32 %v1861, 16
  %v2244 = vrot.slane %v2242, 5
  %v2245 = vsel %vm1026, %v2240, %v2244
  %2278 = vst [vmem:[#allocation3 + $0x10] sm:$0xf] %v1875
  %2279 = vst [vmem:[#allocation3 + $0x34] sm:$0xf] %v1885
  %2280 = vst [vmem:[#allocation3 + $0x58] sm:$0xf] %v1899
  %2281 = vst [vmem:[#allocation3 + $0x7c] sm:$0xf] %v1909
  %2282 = vst [vmem:[#allocation3 + $0xa0] sm:$0xf] %v1923
  %2283 = vst [vmem:[#allocation3 + $0xc4] sm:$0xf] %v1933
  %2284 = vst [vmem:[#allocation3 + $0xe8] sm:$0xf] %v1947
  %2285 = vst [vmem:[#allocation3 + $0x10c] sm:$0xf] %v1957
  %2286 = vst [vmem:[#allocation3 + $0x130] sm:$0xf] %v1971
  %2287 = vst [vmem:[#allocation3 + $0x154] sm:$0xf] %v1981
  %2288 = vst [vmem:[#allocation3 + $0x178] sm:$0xf] %v1995
  %2289 = vst [vmem:[#allocation3 + $0x19c] sm:$0xf] %v2005
  %2290 = vst [vmem:[#allocation3 + $0x1c0] sm:$0xf] %v2019
  %2291 = vst [vmem:[#allocation3 + $0x1e4] sm:$0xf] %v2029
  %2292 = vst [vmem:[#allocation3 + $0x208] sm:$0xf] %v2043
  %2293 = vst [vmem:[#allocation3 + $0x22c] sm:$0xf] %v2053
  %2294 = vst [vmem:[#allocation3 + $0x250] sm:$0xf] %v2067
  %2295 = vst [vmem:[#allocation3 + $0x274] sm:$0xf] %v2077
  %2296 = vst [vmem:[#allocation3 + $0x298] sm:$0xf] %v2091
  %2297 = vst [vmem:[#allocation3 + $0x2bc] sm:$0xf] %v2101
  %2298 = vst [vmem:[#allocation3 + $0x2e0] sm:$0xf] %v2115
  %2299 = vst [vmem:[#allocation3 + $0x304] sm:$0xf] %v2125
  %2300 = vst [vmem:[#allocation3 + $0x328] sm:$0xf] %v2139
  %2301 = vst [vmem:[#allocation3 + $0x34c] sm:$0xf] %v2149
  %2302 = vst [vmem:[#allocation3 + $0x370] sm:$0xf] %v2163
  %2303 = vst [vmem:[#allocation3 + $0x394] sm:$0xf] %v2173
  %2304 = vst [vmem:[#allocation3 + $0x3b8] sm:$0xf] %v2187
  %2305 = vst [vmem:[#allocation3 + $0x3dc] sm:$0xf] %v2197
  %2306 = vst [vmem:[#allocation3 + $0x400] sm:$0xf] %v2211
  %2307 = vst [vmem:[#allocation3 + $0x424] sm:$0xf] %v2221
  %2308 = vst [vmem:[#allocation3 + $0x448] sm:$0xf] %v2235
  %2309 = vst [vmem:[#allocation3 + $0x46c] sm:$0xf] %v2245
  %v2310 = vld [vmem:[%s490] sm:$0xe]
  %v2311 = vld [vmem:[%s490 + $0x4] sm:$0xf]
  %v2312 = vld [vmem:[%s490 + $0x8] sm:$0x1]
  %v2313 = vld [vmem:[%s490 + $0xc] sm:$0xe]
  %v2314 = vld [vmem:[%s490 + $0x10] sm:$0xf]
  %v2315 = vld [vmem:[%s490 + $0x14] sm:$0x1]
  %v2316 = vld [vmem:[%s490 + $0x18] sm:$0xe]
  %v2317 = vld [vmem:[%s490 + $0x1c] sm:$0xf]
  %v2318 = vld [vmem:[%s490 + $0x20] sm:$0x1]
  %v2319 = vld [vmem:[%s490 + $0x24] sm:$0xe]
  %v2320 = vld [vmem:[%s490 + $0x28] sm:$0xf]
  %v2321 = vld [vmem:[%s490 + $0x2c] sm:$0x1]
  %v2322 = vld [vmem:[%s490 + $0x30] sm:$0xe]
  %v2323 = vld [vmem:[%s490 + $0x34] sm:$0xf]
  %v2324 = vld [vmem:[%s490 + $0x38] sm:$0x1]
  %v2325 = vld [vmem:[%s490 + $0x3c] sm:$0xe]
  %v2326 = vld [vmem:[%s490 + $0x40] sm:$0xf]
  %v2327 = vld [vmem:[%s490 + $0x44] sm:$0x1]
  %v2328 = vld [vmem:[%s490 + $0x48] sm:$0xe]
  %v2329 = vld [vmem:[%s490 + $0x4c] sm:$0xf]
  %v2330 = vld [vmem:[%s490 + $0x50] sm:$0x1]
  %v2331 = vld [vmem:[%s490 + $0x54] sm:$0xe]
  %v2332 = vld [vmem:[%s490 + $0x58] sm:$0xf]
  %v2333 = vld [vmem:[%s490 + $0x5c] sm:$0x1]
  %v2334 = vld [vmem:[%s490 + $0x60] sm:$0xe]
  %v2335 = vld [vmem:[%s490 + $0x64] sm:$0xf]
  %v2336 = vld [vmem:[%s490 + $0x68] sm:$0x1]
  %v2337 = vld [vmem:[%s490 + $0x6c] sm:$0xe]
  %v2338 = vld [vmem:[%s490 + $0x70] sm:$0xf]
  %v2339 = vld [vmem:[%s490 + $0x74] sm:$0x1]
  %v2340 = vld [vmem:[%s490 + $0x78] sm:$0xe]
  %v2341 = vld [vmem:[%s490 + $0x7c] sm:$0xf]
  %v2342 = vld [vmem:[%s490 + $0x80] sm:$0x1]
  %v2343 = vld [vmem:[%s490 + $0x84] sm:$0xe]
  %v2344 = vld [vmem:[%s490 + $0x88] sm:$0xf]
  %v2345 = vld [vmem:[%s490 + $0x8c] sm:$0x1]
  %v2346 = vld [vmem:[%s490 + $0x90] sm:$0xe]
  %v2347 = vld [vmem:[%s490 + $0x94] sm:$0xf]
  %v2348 = vld [vmem:[%s490 + $0x98] sm:$0x1]
  %v2349 = vld [vmem:[%s490 + $0x9c] sm:$0xe]
  %v2350 = vld [vmem:[%s490 + $0xa0] sm:$0xf]
  %v2351 = vld [vmem:[%s490 + $0xa4] sm:$0x1]
  %v2352 = vld [vmem:[%s490 + $0xa8] sm:$0xe]
  %v2353 = vld [vmem:[%s490 + $0xac] sm:$0xf]
  %v2354 = vld [vmem:[%s490 + $0xb0] sm:$0x1]
  %v2355 = vld [vmem:[%s490 + $0xb4] sm:$0xe]
  %v2356 = vld [vmem:[%s490 + $0xb8] sm:$0xf]
  %v2357 = vld [vmem:[%s490 + $0xbc] sm:$0x1]
  %v2406 = vrot.slane %v2310, 5
  %v2407 = vrot.slane %v2406, 4
  %v2408 = vrot.slane %v2311, 5
  %v2409 = vsel %vm1573, %v2407, %v2408
  %v2410 = vrot.slane %v2408, 4
  %v2411 = vrot.slane %v2312, 5
  %v2412 = vsel %vm1573, %v2410, %v2411
  %v2413 = vrot.slane %v2313, 5
  %v2414 = vrot.slane %v2413, 4
  %v2415 = vrot.slane %v2314, 5
  %v2416 = vsel %vm1573, %v2414, %v2415
  %v2417 = vrot.slane %v2415, 4
  %v2418 = vrot.slane %v2315, 5
  %v2419 = vsel %vm1573, %v2417, %v2418
  %v2420 = vrot.slane %v2316, 5
  %v2421 = vrot.slane %v2420, 4
  %v2422 = vrot.slane %v2317, 5
  %v2423 = vsel %vm1573, %v2421, %v2422
  %v2424 = vrot.slane %v2422, 4
  %v2425 = vrot.slane %v2318, 5
  %v2426 = vsel %vm1573, %v2424, %v2425
  %v2427 = vrot.slane %v2319, 5
  %v2428 = vrot.slane %v2427, 4
  %v2429 = vrot.slane %v2320, 5
  %v2430 = vsel %vm1573, %v2428, %v2429
  %v2431 = vrot.slane %v2429, 4
  %v2432 = vrot.slane %v2321, 5
  %v2433 = vsel %vm1573, %v2431, %v2432
  %v2434 = vrot.slane %v2322, 5
  %v2435 = vrot.slane %v2434, 4
  %v2436 = vrot.slane %v2323, 5
  %v2437 = vsel %vm1573, %v2435, %v2436
  %v2438 = vrot.slane %v2436, 4
  %v2439 = vrot.slane %v2324, 5
  %v2440 = vsel %vm1573, %v2438, %v2439
  %v2441 = vrot.slane %v2325, 5
  %v2442 = vrot.slane %v2441, 4
  %v2443 = vrot.slane %v2326, 5
  %v2444 = vsel %vm1573, %v2442, %v2443
  %v2445 = vrot.slane %v2443, 4
  %v2446 = vrot.slane %v2327, 5
  %v2447 = vsel %vm1573, %v2445, %v2446
  %v2448 = vrot.slane %v2328, 5
  %v2449 = vrot.slane %v2448, 4
  %v2450 = vrot.slane %v2329, 5
  %v2451 = vsel %vm1573, %v2449, %v2450
  %v2452 = vrot.slane %v2450, 4
  %v2453 = vrot.slane %v2330, 5
  %v2454 = vsel %vm1573, %v2452, %v2453
  %v2455 = vrot.slane %v2331, 5
  %v2456 = vrot.slane %v2455, 4
  %v2457 = vrot.slane %v2332, 5
  %v2458 = vsel %vm1573, %v2456, %v2457
  %v2459 = vrot.slane %v2457, 4
  %v2460 = vrot.slane %v2333, 5
  %v2461 = vsel %vm1573, %v2459, %v2460
  %v2462 = vrot.slane %v2334, 5
  %v2463 = vrot.slane %v2462, 4
  %v2464 = vrot.slane %v2335, 5
  %v2465 = vsel %vm1573, %v2463, %v2464
  %v2466 = vrot.slane %v2464, 4
  %v2467 = vrot.slane %v2336, 5
  %v2468 = vsel %vm1573, %v2466, %v2467
  %v2469 = vrot.slane %v2337, 5
  %v2470 = vrot.slane %v2469, 4
  %v2471 = vrot.slane %v2338, 5
  %v2472 = vsel %vm1573, %v2470, %v2471
  %v2473 = vrot.slane %v2471, 4
  %v2474 = vrot.slane %v2339, 5
  %v2475 = vsel %vm1573, %v2473, %v2474
  %v2476 = vrot.slane %v2340, 5
  %v2477 = vrot.slane %v2476, 4
  %v2478 = vrot.slane %v2341, 5
  %v2479 = vsel %vm1573, %v2477, %v2478
  %v2480 = vrot.slane %v2478, 4
  %v2481 = vrot.slane %v2342, 5
  %v2482 = vsel %vm1573, %v2480, %v2481
  %v2483 = vrot.slane %v2343, 5
  %v2484 = vrot.slane %v2483, 4
  %v2485 = vrot.slane %v2344, 5
  %v2486 = vsel %vm1573, %v2484, %v2485
  %v2487 = vrot.slane %v2485, 4
  %v2488 = vrot.slane %v2345, 5
  %v2489 = vsel %vm1573, %v2487, %v2488
  %v2490 = vrot.slane %v2346, 5
  %v2491 = vrot.slane %v2490, 4
  %v2492 = vrot.slane %v2347, 5
  %v2493 = vsel %vm1573, %v2491, %v2492
  %v2494 = vrot.slane %v2492, 4
  %v2495 = vrot.slane %v2348, 5
  %v2496 = vsel %vm1573, %v2494, %v2495
  %v2497 = vrot.slane %v2349, 5
  %v2498 = vrot.slane %v2497, 4
  %v2499 = vrot.slane %v2350, 5
  %v2500 = vsel %vm1573, %v2498, %v2499
  %v2501 = vrot.slane %v2499, 4
  %v2502 = vrot.slane %v2351, 5
  %v2503 = vsel %vm1573, %v2501, %v2502
  %v2504 = vrot.slane %v2352, 5
  %v2505 = vrot.slane %v2504, 4
  %v2506 = vrot.slane %v2353, 5
  %v2507 = vsel %vm1573, %v2505, %v2506
  %v2508 = vrot.slane %v2506, 4
  %v2509 = vrot.slane %v2354, 5
  %v2510 = vsel %vm1573, %v2508, %v2509
  %v2511 = vrot.slane %v2355, 5
  %v2512 = vrot.slane %v2511, 4
  %v2513 = vrot.slane %v2356, 5
  %v2514 = vsel %vm1573, %v2512, %v2513
  %v2515 = vrot.slane %v2513, 4
  %v2516 = vrot.slane %v2357, 5
  %v2517 = vsel %vm1573, %v2515, %v2516
  %2550 = vst [vmem:[#allocation3 + $0x14] sm:$0xf] %v2409
  %2551 = vst [vmem:[#allocation3 + $0x38] sm:$0xf] %v2412
  %2552 = vst [vmem:[#allocation3 + $0x5c] sm:$0xf] %v2416
  %2553 = vst [vmem:[#allocation3 + $0x80] sm:$0xf] %v2419
  %2554 = vst [vmem:[#allocation3 + $0xa4] sm:$0xf] %v2423
  %2555 = vst [vmem:[#allocation3 + $0xc8] sm:$0xf] %v2426
  %2556 = vst [vmem:[#allocation3 + $0xec] sm:$0xf] %v2430
  %2557 = vst [vmem:[#allocation3 + $0x110] sm:$0xf] %v2433
  %2558 = vst [vmem:[#allocation3 + $0x134] sm:$0xf] %v2437
  %2559 = vst [vmem:[#allocation3 + $0x158] sm:$0xf] %v2440
  %2560 = vst [vmem:[#allocation3 + $0x17c] sm:$0xf] %v2444
  %2561 = vst [vmem:[#allocation3 + $0x1a0] sm:$0xf] %v2447
  %2562 = vst [vmem:[#allocation3 + $0x1c4] sm:$0xf] %v2451
  %2563 = vst [vmem:[#allocation3 + $0x1e8] sm:$0xf] %v2454
  %2564 = vst [vmem:[#allocation3 + $0x20c] sm:$0xf] %v2458
  %2565 = vst [vmem:[#allocation3 + $0x230] sm:$0xf] %v2461
  %2566 = vst [vmem:[#allocation3 + $0x254] sm:$0xf] %v2465
  %2567 = vst [vmem:[#allocation3 + $0x278] sm:$0xf] %v2468
  %2568 = vst [vmem:[#allocation3 + $0x29c] sm:$0xf] %v2472
  %2569 = vst [vmem:[#allocation3 + $0x2c0] sm:$0xf] %v2475
  %2570 = vst [vmem:[#allocation3 + $0x2e4] sm:$0xf] %v2479
  %2571 = vst [vmem:[#allocation3 + $0x308] sm:$0xf] %v2482
  %2572 = vst [vmem:[#allocation3 + $0x32c] sm:$0xf] %v2486
  %2573 = vst [vmem:[#allocation3 + $0x350] sm:$0xf] %v2489
  %2574 = vst [vmem:[#allocation3 + $0x374] sm:$0xf] %v2493
  %2575 = vst [vmem:[#allocation3 + $0x398] sm:$0xf] %v2496
  %2576 = vst [vmem:[#allocation3 + $0x3bc] sm:$0xf] %v2500
  %2577 = vst [vmem:[#allocation3 + $0x3e0] sm:$0xf] %v2503
  %2578 = vst [vmem:[#allocation3 + $0x404] sm:$0xf] %v2507
  %2579 = vst [vmem:[#allocation3 + $0x428] sm:$0xf] %v2510
  %2580 = vst [vmem:[#allocation3 + $0x44c] sm:$0xf] %v2514
  %2581 = vst [vmem:[#allocation3 + $0x470] sm:$0xf] %v2517
  %s2582 = scalar_lea.vmem [#allocation2], 24
  %v2583 = vld [vmem:[%s2582] sm:$0xf]
  %v2584 = vld [vmem:[%s2582 + $0x4] sm:$0xf]
  %v2585 = vld [vmem:[%s2582 + $0xc] sm:$0xf]
  %v2586 = vld [vmem:[%s2582 + $0x10] sm:$0xf]
  %v2587 = vld [vmem:[%s2582 + $0x18] sm:$0xf]
  %v2588 = vld [vmem:[%s2582 + $0x1c] sm:$0xf]
  %v2589 = vld [vmem:[%s2582 + $0x24] sm:$0xf]
  %v2590 = vld [vmem:[%s2582 + $0x28] sm:$0xf]
  %v2591 = vld [vmem:[%s2582 + $0x30] sm:$0xf]
  %v2592 = vld [vmem:[%s2582 + $0x34] sm:$0xf]
  %v2593 = vld [vmem:[%s2582 + $0x3c] sm:$0xf]
  %v2594 = vld [vmem:[%s2582 + $0x40] sm:$0xf]
  %v2595 = vld [vmem:[%s2582 + $0x48] sm:$0xf]
  %v2596 = vld [vmem:[%s2582 + $0x4c] sm:$0xf]
  %v2597 = vld [vmem:[%s2582 + $0x54] sm:$0xf]
  %v2598 = vld [vmem:[%s2582 + $0x58] sm:$0xf]
  %v2599 = vld [vmem:[%s2582 + $0x60] sm:$0xf]
  %v2600 = vld [vmem:[%s2582 + $0x64] sm:$0xf]
  %v2601 = vld [vmem:[%s2582 + $0x6c] sm:$0xf]
  %v2602 = vld [vmem:[%s2582 + $0x70] sm:$0xf]
  %v2603 = vld [vmem:[%s2582 + $0x78] sm:$0xf]
  %v2604 = vld [vmem:[%s2582 + $0x7c] sm:$0xf]
  %v2605 = vld [vmem:[%s2582 + $0x84] sm:$0xf]
  %v2606 = vld [vmem:[%s2582 + $0x88] sm:$0xf]
  %v2607 = vld [vmem:[%s2582 + $0x90] sm:$0xf]
  %v2608 = vld [vmem:[%s2582 + $0x94] sm:$0xf]
  %v2609 = vld [vmem:[%s2582 + $0x9c] sm:$0xf]
  %v2610 = vld [vmem:[%s2582 + $0xa0] sm:$0xf]
  %v2611 = vld [vmem:[%s2582 + $0xa8] sm:$0xf]
  %v2612 = vld [vmem:[%s2582 + $0xac] sm:$0xf]
  %v2613 = vld [vmem:[%s2582 + $0xb4] sm:$0xf]
  %v2614 = vld [vmem:[%s2582 + $0xb8] sm:$0xf]
  %2615 = vst [vmem:[#allocation3 + $0x18] sm:$0xf] %v2583
  %2616 = vst [vmem:[#allocation3 + $0x3c] sm:$0xf] %v2584
  %2617 = vst [vmem:[#allocation3 + $0x60] sm:$0xf] %v2585
  %2618 = vst [vmem:[#allocation3 + $0x84] sm:$0xf] %v2586
  %2619 = vst [vmem:[#allocation3 + $0xa8] sm:$0xf] %v2587
  %2620 = vst [vmem:[#allocation3 + $0xcc] sm:$0xf] %v2588
  %2621 = vst [vmem:[#allocation3 + $0xf0] sm:$0xf] %v2589
  %2622 = vst [vmem:[#allocation3 + $0x114] sm:$0xf] %v2590
  %2623 = vst [vmem:[#allocation3 + $0x138] sm:$0xf] %v2591
  %2624 = vst [vmem:[#allocation3 + $0x15c] sm:$0xf] %v2592
  %2625 = vst [vmem:[#allocation3 + $0x180] sm:$0xf] %v2593
  %2626 = vst [vmem:[#allocation3 + $0x1a4] sm:$0xf] %v2594
  %2627 = vst [vmem:[#allocation3 + $0x1c8] sm:$0xf] %v2595
  %2628 = vst [vmem:[#allocation3 + $0x1ec] sm:$0xf] %v2596
  %2629 = vst [vmem:[#allocation3 + $0x210] sm:$0xf] %v2597
  %2630 = vst [vmem:[#allocation3 + $0x234] sm:$0xf] %v2598
  %2631 = vst [vmem:[#allocation3 + $0x258] sm:$0xf] %v2599
  %2632 = vst [vmem:[#allocation3 + $0x27c] sm:$0xf] %v2600
  %2633 = vst [vmem:[#allocation3 + $0x2a0] sm:$0xf] %v2601
  %2634 = vst [vmem:[#allocation3 + $0x2c4] sm:$0xf] %v2602
  %2635 = vst [vmem:[#allocation3 + $0x2e8] sm:$0xf] %v2603
  %2636 = vst [vmem:[#allocation3 + $0x30c] sm:$0xf] %v2604
  %2637 = vst [vmem:[#allocation3 + $0x330] sm:$0xf] %v2605
  %2638 = vst [vmem:[#allocation3 + $0x354] sm:$0xf] %v2606
  %2639 = vst [vmem:[#allocation3 + $0x378] sm:$0xf] %v2607
  %2640 = vst [vmem:[#allocation3 + $0x39c] sm:$0xf] %v2608
  %2641 = vst [vmem:[#allocation3 + $0x3c0] sm:$0xf] %v2609
  %2642 = vst [vmem:[#allocation3 + $0x3e4] sm:$0xf] %v2610
  %2643 = vst [vmem:[#allocation3 + $0x408] sm:$0xf] %v2611
  %2644 = vst [vmem:[#allocation3 + $0x42c] sm:$0xf] %v2612
  %2645 = vst [vmem:[#allocation3 + $0x450] sm:$0xf] %v2613
  %2646 = vst [vmem:[#allocation3 + $0x474] sm:$0xf] %v2614
  %v2647 = vld [vmem:[%s2582] sm:$0xf]
  %v2648 = vld [vmem:[%s2582 + $0x4] sm:$0xf]
  %v2649 = vld [vmem:[%s2582 + $0x8] sm:$0x1]
  %v2650 = vld [vmem:[%s2582 + $0xc] sm:$0xf]
  %v2651 = vld [vmem:[%s2582 + $0x10] sm:$0xf]
  %v2652 = vld [vmem:[%s2582 + $0x14] sm:$0x1]
  %v2653 = vld [vmem:[%s2582 + $0x18] sm:$0xf]
  %v2654 = vld [vmem:[%s2582 + $0x1c] sm:$0xf]
  %v2655 = vld [vmem:[%s2582 + $0x20] sm:$0x1]
  %v2656 = vld [vmem:[%s2582 + $0x24] sm:$0xf]
  %v2657 = vld [vmem:[%s2582 + $0x28] sm:$0xf]
  %v2658 = vld [vmem:[%s2582 + $0x2c] sm:$0x1]
  %v2659 = vld [vmem:[%s2582 + $0x30] sm:$0xf]
  %v2660 = vld [vmem:[%s2582 + $0x34] sm:$0xf]
  %v2661 = vld [vmem:[%s2582 + $0x38] sm:$0x1]
  %v2662 = vld [vmem:[%s2582 + $0x3c] sm:$0xf]
  %v2663 = vld [vmem:[%s2582 + $0x40] sm:$0xf]
  %v2664 = vld [vmem:[%s2582 + $0x44] sm:$0x1]
  %v2665 = vld [vmem:[%s2582 + $0x48] sm:$0xf]
  %v2666 = vld [vmem:[%s2582 + $0x4c] sm:$0xf]
  %v2667 = vld [vmem:[%s2582 + $0x50] sm:$0x1]
  %v2668 = vld [vmem:[%s2582 + $0x54] sm:$0xf]
  %v2669 = vld [vmem:[%s2582 + $0x58] sm:$0xf]
  %v2670 = vld [vmem:[%s2582 + $0x5c] sm:$0x1]
  %v2671 = vld [vmem:[%s2582 + $0x60] sm:$0xf]
  %v2672 = vld [vmem:[%s2582 + $0x64] sm:$0xf]
  %v2673 = vld [vmem:[%s2582 + $0x68] sm:$0x1]
  %v2674 = vld [vmem:[%s2582 + $0x6c] sm:$0xf]
  %v2675 = vld [vmem:[%s2582 + $0x70] sm:$0xf]
  %v2676 = vld [vmem:[%s2582 + $0x74] sm:$0x1]
  %v2677 = vld [vmem:[%s2582 + $0x78] sm:$0xf]
  %v2678 = vld [vmem:[%s2582 + $0x7c] sm:$0xf]
  %v2679 = vld [vmem:[%s2582 + $0x80] sm:$0x1]
  %v2680 = vld [vmem:[%s2582 + $0x84] sm:$0xf]
  %v2681 = vld [vmem:[%s2582 + $0x88] sm:$0xf]
  %v2682 = vld [vmem:[%s2582 + $0x8c] sm:$0x1]
  %v2683 = vld [vmem:[%s2582 + $0x90] sm:$0xf]
  %v2684 = vld [vmem:[%s2582 + $0x94] sm:$0xf]
  %v2685 = vld [vmem:[%s2582 + $0x98] sm:$0x1]
  %v2686 = vld [vmem:[%s2582 + $0x9c] sm:$0xf]
  %v2687 = vld [vmem:[%s2582 + $0xa0] sm:$0xf]
  %v2688 = vld [vmem:[%s2582 + $0xa4] sm:$0x1]
  %v2689 = vld [vmem:[%s2582 + $0xa8] sm:$0xf]
  %v2690 = vld [vmem:[%s2582 + $0xac] sm:$0xf]
  %v2691 = vld [vmem:[%s2582 + $0xb0] sm:$0x1]
  %v2692 = vld [vmem:[%s2582 + $0xb4] sm:$0xf]
  %v2693 = vld [vmem:[%s2582 + $0xb8] sm:$0xf]
  %v2694 = vld [vmem:[%s2582 + $0xbc] sm:$0x1]
  %v2696 = vshrl.u32 %v2647, 16
  %v2698 = vrot.slane %v2696, 4
  %v2699 = vshll.u32 %v2647, 16
  %v2701 = vrot.slane %v2699, 5
  %v2702 = vor.u32 %v2698, %v2701
  %v2703 = vrot.slane %v2702, 4
  %v2705 = vshll.u32 %v2648, 16
  %v2707 = vrot.slane %v2705, 5
  %v2708 = vsel %vm1026, %v2703, %v2707
  %v2709 = vshrl.u32 %v2648, 16
  %v2711 = vrot.slane %v2709, 4
  %v2712 = vor.u32 %v2711, %v2707
  %v2713 = vrot.slane %v2712, 4
  %v2715 = vshll.u32 %v2649, 16
  %v2717 = vrot.slane %v2715, 5
  %v2718 = vsel %vm1026, %v2713, %v2717
  %v2720 = vshrl.u32 %v2650, 16
  %v2722 = vrot.slane %v2720, 4
  %v2723 = vshll.u32 %v2650, 16
  %v2725 = vrot.slane %v2723, 5
  %v2726 = vor.u32 %v2722, %v2725
  %v2727 = vrot.slane %v2726, 4
  %v2729 = vshll.u32 %v2651, 16
  %v2731 = vrot.slane %v2729, 5
  %v2732 = vsel %vm1026, %v2727, %v2731
  %v2733 = vshrl.u32 %v2651, 16
  %v2735 = vrot.slane %v2733, 4
  %v2736 = vor.u32 %v2735, %v2731
  %v2737 = vrot.slane %v2736, 4
  %v2739 = vshll.u32 %v2652, 16
  %v2741 = vrot.slane %v2739, 5
  %v2742 = vsel %vm1026, %v2737, %v2741
  %v2744 = vshrl.u32 %v2653, 16
  %v2746 = vrot.slane %v2744, 4
  %v2747 = vshll.u32 %v2653, 16
  %v2749 = vrot.slane %v2747, 5
  %v2750 = vor.u32 %v2746, %v2749
  %v2751 = vrot.slane %v2750, 4
  %v2753 = vshll.u32 %v2654, 16
  %v2755 = vrot.slane %v2753, 5
  %v2756 = vsel %vm1026, %v2751, %v2755
  %v2757 = vshrl.u32 %v2654, 16
  %v2759 = vrot.slane %v2757, 4
  %v2760 = vor.u32 %v2759, %v2755
  %v2761 = vrot.slane %v2760, 4
  %v2763 = vshll.u32 %v2655, 16
  %v2765 = vrot.slane %v2763, 5
  %v2766 = vsel %vm1026, %v2761, %v2765
  %v2768 = vshrl.u32 %v2656, 16
  %v2770 = vrot.slane %v2768, 4
  %v2771 = vshll.u32 %v2656, 16
  %v2773 = vrot.slane %v2771, 5
  %v2774 = vor.u32 %v2770, %v2773
  %v2775 = vrot.slane %v2774, 4
  %v2777 = vshll.u32 %v2657, 16
  %v2779 = vrot.slane %v2777, 5
  %v2780 = vsel %vm1026, %v2775, %v2779
  %v2781 = vshrl.u32 %v2657, 16
  %v2783 = vrot.slane %v2781, 4
  %v2784 = vor.u32 %v2783, %v2779
  %v2785 = vrot.slane %v2784, 4
  %v2787 = vshll.u32 %v2658, 16
  %v2789 = vrot.slane %v2787, 5
  %v2790 = vsel %vm1026, %v2785, %v2789
  %v2792 = vshrl.u32 %v2659, 16
  %v2794 = vrot.slane %v2792, 4
  %v2795 = vshll.u32 %v2659, 16
  %v2797 = vrot.slane %v2795, 5
  %v2798 = vor.u32 %v2794, %v2797
  %v2799 = vrot.slane %v2798, 4
  %v2801 = vshll.u32 %v2660, 16
  %v2803 = vrot.slane %v2801, 5
  %v2804 = vsel %vm1026, %v2799, %v2803
  %v2805 = vshrl.u32 %v2660, 16
  %v2807 = vrot.slane %v2805, 4
  %v2808 = vor.u32 %v2807, %v2803
  %v2809 = vrot.slane %v2808, 4
  %v2811 = vshll.u32 %v2661, 16
  %v2813 = vrot.slane %v2811, 5
  %v2814 = vsel %vm1026, %v2809, %v2813
  %v2816 = vshrl.u32 %v2662, 16
  %v2818 = vrot.slane %v2816, 4
  %v2819 = vshll.u32 %v2662, 16
  %v2821 = vrot.slane %v2819, 5
  %v2822 = vor.u32 %v2818, %v2821
  %v2823 = vrot.slane %v2822, 4
  %v2825 = vshll.u32 %v2663, 16
  %v2827 = vrot.slane %v2825, 5
  %v2828 = vsel %vm1026, %v2823, %v2827
  %v2829 = vshrl.u32 %v2663, 16
  %v2831 = vrot.slane %v2829, 4
  %v2832 = vor.u32 %v2831, %v2827
  %v2833 = vrot.slane %v2832, 4
  %v2835 = vshll.u32 %v2664, 16
  %v2837 = vrot.slane %v2835, 5
  %v2838 = vsel %vm1026, %v2833, %v2837
  %v2840 = vshrl.u32 %v2665, 16
  %v2842 = vrot.slane %v2840, 4
  %v2843 = vshll.u32 %v2665, 16
  %v2845 = vrot.slane %v2843, 5
  %v2846 = vor.u32 %v2842, %v2845
  %v2847 = vrot.slane %v2846, 4
  %v2849 = vshll.u32 %v2666, 16
  %v2851 = vrot.slane %v2849, 5
  %v2852 = vsel %vm1026, %v2847, %v2851
  %v2853 = vshrl.u32 %v2666, 16
  %v2855 = vrot.slane %v2853, 4
  %v2856 = vor.u32 %v2855, %v2851
  %v2857 = vrot.slane %v2856, 4
  %v2859 = vshll.u32 %v2667, 16
  %v2861 = vrot.slane %v2859, 5
  %v2862 = vsel %vm1026, %v2857, %v2861
  %v2864 = vshrl.u32 %v2668, 16
  %v2866 = vrot.slane %v2864, 4
  %v2867 = vshll.u32 %v2668, 16
  %v2869 = vrot.slane %v2867, 5
  %v2870 = vor.u32 %v2866, %v2869
  %v2871 = vrot.slane %v2870, 4
  %v2873 = vshll.u32 %v2669, 16
  %v2875 = vrot.slane %v2873, 5
  %v2876 = vsel %vm1026, %v2871, %v2875
  %v2877 = vshrl.u32 %v2669, 16
  %v2879 = vrot.slane %v2877, 4
  %v2880 = vor.u32 %v2879, %v2875
  %v2881 = vrot.slane %v2880, 4
  %v2883 = vshll.u32 %v2670, 16
  %v2885 = vrot.slane %v2883, 5
  %v2886 = vsel %vm1026, %v2881, %v2885
  %v2888 = vshrl.u32 %v2671, 16
  %v2890 = vrot.slane %v2888, 4
  %v2891 = vshll.u32 %v2671, 16
  %v2893 = vrot.slane %v2891, 5
  %v2894 = vor.u32 %v2890, %v2893
  %v2895 = vrot.slane %v2894, 4
  %v2897 = vshll.u32 %v2672, 16
  %v2899 = vrot.slane %v2897, 5
  %v2900 = vsel %vm1026, %v2895, %v2899
  %v2901 = vshrl.u32 %v2672, 16
  %v2903 = vrot.slane %v2901, 4
  %v2904 = vor.u32 %v2903, %v2899
  %v2905 = vrot.slane %v2904, 4
  %v2907 = vshll.u32 %v2673, 16
  %v2909 = vrot.slane %v2907, 5
  %v2910 = vsel %vm1026, %v2905, %v2909
  %v2912 = vshrl.u32 %v2674, 16
  %v2914 = vrot.slane %v2912, 4
  %v2915 = vshll.u32 %v2674, 16
  %v2917 = vrot.slane %v2915, 5
  %v2918 = vor.u32 %v2914, %v2917
  %v2919 = vrot.slane %v2918, 4
  %v2921 = vshll.u32 %v2675, 16
  %v2923 = vrot.slane %v2921, 5
  %v2924 = vsel %vm1026, %v2919, %v2923
  %v2925 = vshrl.u32 %v2675, 16
  %v2927 = vrot.slane %v2925, 4
  %v2928 = vor.u32 %v2927, %v2923
  %v2929 = vrot.slane %v2928, 4
  %v2931 = vshll.u32 %v2676, 16
  %v2933 = vrot.slane %v2931, 5
  %v2934 = vsel %vm1026, %v2929, %v2933
  %v2936 = vshrl.u32 %v2677, 16
  %v2938 = vrot.slane %v2936, 4
  %v2939 = vshll.u32 %v2677, 16
  %v2941 = vrot.slane %v2939, 5
  %v2942 = vor.u32 %v2938, %v2941
  %v2943 = vrot.slane %v2942, 4
  %v2945 = vshll.u32 %v2678, 16
  %v2947 = vrot.slane %v2945, 5
  %v2948 = vsel %vm1026, %v2943, %v2947
  %v2949 = vshrl.u32 %v2678, 16
  %v2951 = vrot.slane %v2949, 4
  %v2952 = vor.u32 %v2951, %v2947
  %v2953 = vrot.slane %v2952, 4
  %v2955 = vshll.u32 %v2679, 16
  %v2957 = vrot.slane %v2955, 5
  %v2958 = vsel %vm1026, %v2953, %v2957
  %v2960 = vshrl.u32 %v2680, 16
  %v2962 = vrot.slane %v2960, 4
  %v2963 = vshll.u32 %v2680, 16
  %v2965 = vrot.slane %v2963, 5
  %v2966 = vor.u32 %v2962, %v2965
  %v2967 = vrot.slane %v2966, 4
  %v2969 = vshll.u32 %v2681, 16
  %v2971 = vrot.slane %v2969, 5
  %v2972 = vsel %vm1026, %v2967, %v2971
  %v2973 = vshrl.u32 %v2681, 16
  %v2975 = vrot.slane %v2973, 4
  %v2976 = vor.u32 %v2975, %v2971
  %v2977 = vrot.slane %v2976, 4
  %v2979 = vshll.u32 %v2682, 16
  %v2981 = vrot.slane %v2979, 5
  %v2982 = vsel %vm1026, %v2977, %v2981
  %v2984 = vshrl.u32 %v2683, 16
  %v2986 = vrot.slane %v2984, 4
  %v2987 = vshll.u32 %v2683, 16
  %v2989 = vrot.slane %v2987, 5
  %v2990 = vor.u32 %v2986, %v2989
  %v2991 = vrot.slane %v2990, 4
  %v2993 = vshll.u32 %v2684, 16
  %v2995 = vrot.slane %v2993, 5
  %v2996 = vsel %vm1026, %v2991, %v2995
  %v2997 = vshrl.u32 %v2684, 16
  %v2999 = vrot.slane %v2997, 4
  %v3000 = vor.u32 %v2999, %v2995
  %v3001 = vrot.slane %v3000, 4
  %v3003 = vshll.u32 %v2685, 16
  %v3005 = vrot.slane %v3003, 5
  %v3006 = vsel %vm1026, %v3001, %v3005
  %v3008 = vshrl.u32 %v2686, 16
  %v3010 = vrot.slane %v3008, 4
  %v3011 = vshll.u32 %v2686, 16
  %v3013 = vrot.slane %v3011, 5
  %v3014 = vor.u32 %v3010, %v3013
  %v3015 = vrot.slane %v3014, 4
  %v3017 = vshll.u32 %v2687, 16
  %v3019 = vrot.slane %v3017, 5
  %v3020 = vsel %vm1026, %v3015, %v3019
  %v3021 = vshrl.u32 %v2687, 16
  %v3023 = vrot.slane %v3021, 4
  %v3024 = vor.u32 %v3023, %v3019
  %v3025 = vrot.slane %v3024, 4
  %v3027 = vshll.u32 %v2688, 16
  %v3029 = vrot.slane %v3027, 5
  %v3030 = vsel %vm1026, %v3025, %v3029
  %v3032 = vshrl.u32 %v2689, 16
  %v3034 = vrot.slane %v3032, 4
  %v3035 = vshll.u32 %v2689, 16
  %v3037 = vrot.slane %v3035, 5
  %v3038 = vor.u32 %v3034, %v3037
  %v3039 = vrot.slane %v3038, 4
  %v3041 = vshll.u32 %v2690, 16
  %v3043 = vrot.slane %v3041, 5
  %v3044 = vsel %vm1026, %v3039, %v3043
  %v3045 = vshrl.u32 %v2690, 16
  %v3047 = vrot.slane %v3045, 4
  %v3048 = vor.u32 %v3047, %v3043
  %v3049 = vrot.slane %v3048, 4
  %v3051 = vshll.u32 %v2691, 16
  %v3053 = vrot.slane %v3051, 5
  %v3054 = vsel %vm1026, %v3049, %v3053
  %v3056 = vshrl.u32 %v2692, 16
  %v3058 = vrot.slane %v3056, 4
  %v3059 = vshll.u32 %v2692, 16
  %v3061 = vrot.slane %v3059, 5
  %v3062 = vor.u32 %v3058, %v3061
  %v3063 = vrot.slane %v3062, 4
  %v3065 = vshll.u32 %v2693, 16
  %v3067 = vrot.slane %v3065, 5
  %v3068 = vsel %vm1026, %v3063, %v3067
  %v3069 = vshrl.u32 %v2693, 16
  %v3071 = vrot.slane %v3069, 4
  %v3072 = vor.u32 %v3071, %v3067
  %v3073 = vrot.slane %v3072, 4
  %v3075 = vshll.u32 %v2694, 16
  %v3077 = vrot.slane %v3075, 5
  %v3078 = vsel %vm1026, %v3073, %v3077
  %3111 = vst [vmem:[#allocation3 + $0x1c] sm:$0xf] %v2708
  %3112 = vst [vmem:[#allocation3 + $0x40] sm:$0xf] %v2718
  %3113 = vst [vmem:[#allocation3 + $0x64] sm:$0xf] %v2732
  %3114 = vst [vmem:[#allocation3 + $0x88] sm:$0xf] %v2742
  %3115 = vst [vmem:[#allocation3 + $0xac] sm:$0xf] %v2756
  %3116 = vst [vmem:[#allocation3 + $0xd0] sm:$0xf] %v2766
  %3117 = vst [vmem:[#allocation3 + $0xf4] sm:$0xf] %v2780
  %3118 = vst [vmem:[#allocation3 + $0x118] sm:$0xf] %v2790
  %3119 = vst [vmem:[#allocation3 + $0x13c] sm:$0xf] %v2804
  %3120 = vst [vmem:[#allocation3 + $0x160] sm:$0xf] %v2814
  %3121 = vst [vmem:[#allocation3 + $0x184] sm:$0xf] %v2828
  %3122 = vst [vmem:[#allocation3 + $0x1a8] sm:$0xf] %v2838
  %3123 = vst [vmem:[#allocation3 + $0x1cc] sm:$0xf] %v2852
  %3124 = vst [vmem:[#allocation3 + $0x1f0] sm:$0xf] %v2862
  %3125 = vst [vmem:[#allocation3 + $0x214] sm:$0xf] %v2876
  %3126 = vst [vmem:[#allocation3 + $0x238] sm:$0xf] %v2886
  %3127 = vst [vmem:[#allocation3 + $0x25c] sm:$0xf] %v2900
  %3128 = vst [vmem:[#allocation3 + $0x280] sm:$0xf] %v2910
  %3129 = vst [vmem:[#allocation3 + $0x2a4] sm:$0xf] %v2924
  %3130 = vst [vmem:[#allocation3 + $0x2c8] sm:$0xf] %v2934
  %3131 = vst [vmem:[#allocation3 + $0x2ec] sm:$0xf] %v2948
  %3132 = vst [vmem:[#allocation3 + $0x310] sm:$0xf] %v2958
  %3133 = vst [vmem:[#allocation3 + $0x334] sm:$0xf] %v2972
  %3134 = vst [vmem:[#allocation3 + $0x358] sm:$0xf] %v2982
  %3135 = vst [vmem:[#allocation3 + $0x37c] sm:$0xf] %v2996
  %3136 = vst [vmem:[#allocation3 + $0x3a0] sm:$0xf] %v3006
  %3137 = vst [vmem:[#allocation3 + $0x3c4] sm:$0xf] %v3020
  %3138 = vst [vmem:[#allocation3 + $0x3e8] sm:$0xf] %v3030
  %3139 = vst [vmem:[#allocation3 + $0x40c] sm:$0xf] %v3044
  %3140 = vst [vmem:[#allocation3 + $0x430] sm:$0xf] %v3054
  %3141 = vst [vmem:[#allocation3 + $0x454] sm:$0xf] %v3068
  %3142 = vst [vmem:[#allocation3 + $0x478] sm:$0xf] %v3078
  %v3143 = vld [vmem:[%s2582] sm:$0xe]
  %v3144 = vld [vmem:[%s2582 + $0x4] sm:$0xf]
  %v3145 = vld [vmem:[%s2582 + $0x8] sm:$0x1]
  %v3146 = vld [vmem:[%s2582 + $0xc] sm:$0xe]
  %v3147 = vld [vmem:[%s2582 + $0x10] sm:$0xf]
  %v3148 = vld [vmem:[%s2582 + $0x14] sm:$0x1]
  %v3149 = vld [vmem:[%s2582 + $0x18] sm:$0xe]
  %v3150 = vld [vmem:[%s2582 + $0x1c] sm:$0xf]
  %v3151 = vld [vmem:[%s2582 + $0x20] sm:$0x1]
  %v3152 = vld [vmem:[%s2582 + $0x24] sm:$0xe]
  %v3153 = vld [vmem:[%s2582 + $0x28] sm:$0xf]
  %v3154 = vld [vmem:[%s2582 + $0x2c] sm:$0x1]
  %v3155 = vld [vmem:[%s2582 + $0x30] sm:$0xe]
  %v3156 = vld [vmem:[%s2582 + $0x34] sm:$0xf]
  %v3157 = vld [vmem:[%s2582 + $0x38] sm:$0x1]
  %v3158 = vld [vmem:[%s2582 + $0x3c] sm:$0xe]
  %v3159 = vld [vmem:[%s2582 + $0x40] sm:$0xf]
  %v3160 = vld [vmem:[%s2582 + $0x44] sm:$0x1]
  %v3161 = vld [vmem:[%s2582 + $0x48] sm:$0xe]
  %v3162 = vld [vmem:[%s2582 + $0x4c] sm:$0xf]
  %v3163 = vld [vmem:[%s2582 + $0x50] sm:$0x1]
  %v3164 = vld [vmem:[%s2582 + $0x54] sm:$0xe]
  %v3165 = vld [vmem:[%s2582 + $0x58] sm:$0xf]
  %v3166 = vld [vmem:[%s2582 + $0x5c] sm:$0x1]
  %v3167 = vld [vmem:[%s2582 + $0x60] sm:$0xe]
  %v3168 = vld [vmem:[%s2582 + $0x64] sm:$0xf]
  %v3169 = vld [vmem:[%s2582 + $0x68] sm:$0x1]
  %v3170 = vld [vmem:[%s2582 + $0x6c] sm:$0xe]
  %v3171 = vld [vmem:[%s2582 + $0x70] sm:$0xf]
  %v3172 = vld [vmem:[%s2582 + $0x74] sm:$0x1]
  %v3173 = vld [vmem:[%s2582 + $0x78] sm:$0xe]
  %v3174 = vld [vmem:[%s2582 + $0x7c] sm:$0xf]
  %v3175 = vld [vmem:[%s2582 + $0x80] sm:$0x1]
  %v3176 = vld [vmem:[%s2582 + $0x84] sm:$0xe]
  %v3177 = vld [vmem:[%s2582 + $0x88] sm:$0xf]
  %v3178 = vld [vmem:[%s2582 + $0x8c] sm:$0x1]
  %v3179 = vld [vmem:[%s2582 + $0x90] sm:$0xe]
  %v3180 = vld [vmem:[%s2582 + $0x94] sm:$0xf]
  %v3181 = vld [vmem:[%s2582 + $0x98] sm:$0x1]
  %v3182 = vld [vmem:[%s2582 + $0x9c] sm:$0xe]
  %v3183 = vld [vmem:[%s2582 + $0xa0] sm:$0xf]
  %v3184 = vld [vmem:[%s2582 + $0xa4] sm:$0x1]
  %v3185 = vld [vmem:[%s2582 + $0xa8] sm:$0xe]
  %v3186 = vld [vmem:[%s2582 + $0xac] sm:$0xf]
  %v3187 = vld [vmem:[%s2582 + $0xb0] sm:$0x1]
  %v3188 = vld [vmem:[%s2582 + $0xb4] sm:$0xe]
  %v3189 = vld [vmem:[%s2582 + $0xb8] sm:$0xf]
  %v3190 = vld [vmem:[%s2582 + $0xbc] sm:$0x1]
  %v3239 = vrot.slane %v3143, 5
  %v3240 = vrot.slane %v3239, 4
  %v3241 = vrot.slane %v3144, 5
  %v3242 = vsel %vm1573, %v3240, %v3241
  %v3243 = vrot.slane %v3241, 4
  %v3244 = vrot.slane %v3145, 5
  %v3245 = vsel %vm1573, %v3243, %v3244
  %v3246 = vrot.slane %v3146, 5
  %v3247 = vrot.slane %v3246, 4
  %v3248 = vrot.slane %v3147, 5
  %v3249 = vsel %vm1573, %v3247, %v3248
  %v3250 = vrot.slane %v3248, 4
  %v3251 = vrot.slane %v3148, 5
  %v3252 = vsel %vm1573, %v3250, %v3251
  %v3253 = vrot.slane %v3149, 5
  %v3254 = vrot.slane %v3253, 4
  %v3255 = vrot.slane %v3150, 5
  %v3256 = vsel %vm1573, %v3254, %v3255
  %v3257 = vrot.slane %v3255, 4
  %v3258 = vrot.slane %v3151, 5
  %v3259 = vsel %vm1573, %v3257, %v3258
  %v3260 = vrot.slane %v3152, 5
  %v3261 = vrot.slane %v3260, 4
  %v3262 = vrot.slane %v3153, 5
  %v3263 = vsel %vm1573, %v3261, %v3262
  %v3264 = vrot.slane %v3262, 4
  %v3265 = vrot.slane %v3154, 5
  %v3266 = vsel %vm1573, %v3264, %v3265
  %v3267 = vrot.slane %v3155, 5
  %v3268 = vrot.slane %v3267, 4
  %v3269 = vrot.slane %v3156, 5
  %v3270 = vsel %vm1573, %v3268, %v3269
  %v3271 = vrot.slane %v3269, 4
  %v3272 = vrot.slane %v3157, 5
  %v3273 = vsel %vm1573, %v3271, %v3272
  %v3274 = vrot.slane %v3158, 5
  %v3275 = vrot.slane %v3274, 4
  %v3276 = vrot.slane %v3159, 5
  %v3277 = vsel %vm1573, %v3275, %v3276
  %v3278 = vrot.slane %v3276, 4
  %v3279 = vrot.slane %v3160, 5
  %v3280 = vsel %vm1573, %v3278, %v3279
  %v3281 = vrot.slane %v3161, 5
  %v3282 = vrot.slane %v3281, 4
  %v3283 = vrot.slane %v3162, 5
  %v3284 = vsel %vm1573, %v3282, %v3283
  %v3285 = vrot.slane %v3283, 4
  %v3286 = vrot.slane %v3163, 5
  %v3287 = vsel %vm1573, %v3285, %v3286
  %v3288 = vrot.slane %v3164, 5
  %v3289 = vrot.slane %v3288, 4
  %v3290 = vrot.slane %v3165, 5
  %v3291 = vsel %vm1573, %v3289, %v3290
  %v3292 = vrot.slane %v3290, 4
  %v3293 = vrot.slane %v3166, 5
  %v3294 = vsel %vm1573, %v3292, %v3293
  %v3295 = vrot.slane %v3167, 5
  %v3296 = vrot.slane %v3295, 4
  %v3297 = vrot.slane %v3168, 5
  %v3298 = vsel %vm1573, %v3296, %v3297
  %v3299 = vrot.slane %v3297, 4
  %v3300 = vrot.slane %v3169, 5
  %v3301 = vsel %vm1573, %v3299, %v3300
  %v3302 = vrot.slane %v3170, 5
  %v3303 = vrot.slane %v3302, 4
  %v3304 = vrot.slane %v3171, 5
  %v3305 = vsel %vm1573, %v3303, %v3304
  %v3306 = vrot.slane %v3304, 4
  %v3307 = vrot.slane %v3172, 5
  %v3308 = vsel %vm1573, %v3306, %v3307
  %v3309 = vrot.slane %v3173, 5
  %v3310 = vrot.slane %v3309, 4
  %v3311 = vrot.slane %v3174, 5
  %v3312 = vsel %vm1573, %v3310, %v3311
  %v3313 = vrot.slane %v3311, 4
  %v3314 = vrot.slane %v3175, 5
  %v3315 = vsel %vm1573, %v3313, %v3314
  %v3316 = vrot.slane %v3176, 5
  %v3317 = vrot.slane %v3316, 4
  %v3318 = vrot.slane %v3177, 5
  %v3319 = vsel %vm1573, %v3317, %v3318
  %v3320 = vrot.slane %v3318, 4
  %v3321 = vrot.slane %v3178, 5
  %v3322 = vsel %vm1573, %v3320, %v3321
  %v3323 = vrot.slane %v3179, 5
  %v3324 = vrot.slane %v3323, 4
  %v3325 = vrot.slane %v3180, 5
  %v3326 = vsel %vm1573, %v3324, %v3325
  %v3327 = vrot.slane %v3325, 4
  %v3328 = vrot.slane %v3181, 5
  %v3329 = vsel %vm1573, %v3327, %v3328
  %v3330 = vrot.slane %v3182, 5
  %v3331 = vrot.slane %v3330, 4
  %v3332 = vrot.slane %v3183, 5
  %v3333 = vsel %vm1573, %v3331, %v3332
  %v3334 = vrot.slane %v3332, 4
  %v3335 = vrot.slane %v3184, 5
  %v3336 = vsel %vm1573, %v3334, %v3335
  %v3337 = vrot.slane %v3185, 5
  %v3338 = vrot.slane %v3337, 4
  %v3339 = vrot.slane %v3186, 5
  %v3340 = vsel %vm1573, %v3338, %v3339
  %v3341 = vrot.slane %v3339, 4
  %v3342 = vrot.slane %v3187, 5
  %v3343 = vsel %vm1573, %v3341, %v3342
  %v3344 = vrot.slane %v3188, 5
  %v3345 = vrot.slane %v3344, 4
  %v3346 = vrot.slane %v3189, 5
  %v3347 = vsel %vm1573, %v3345, %v3346
  %v3348 = vrot.slane %v3346, 4
  %v3349 = vrot.slane %v3190, 5
  %v3350 = vsel %vm1573, %v3348, %v3349
  %3383 = vst [vmem:[#allocation3 + $0x20] sm:$0xf] %v3242
  %3384 = vst [vmem:[#allocation3 + $0x44] sm:$0xf] %v3245
  %3385 = vst [vmem:[#allocation3 + $0x68] sm:$0xf] %v3249
  %3386 = vst [vmem:[#allocation3 + $0x8c] sm:$0xf] %v3252
  %3387 = vst [vmem:[#allocation3 + $0xb0] sm:$0xf] %v3256
  %3388 = vst [vmem:[#allocation3 + $0xd4] sm:$0xf] %v3259
  %3389 = vst [vmem:[#allocation3 + $0xf8] sm:$0xf] %v3263
  %3390 = vst [vmem:[#allocation3 + $0x11c] sm:$0xf] %v3266
  %3391 = vst [vmem:[#allocation3 + $0x140] sm:$0xf] %v3270
  %3392 = vst [vmem:[#allocation3 + $0x164] sm:$0xf] %v3273
  %3393 = vst [vmem:[#allocation3 + $0x188] sm:$0xf] %v3277
  %3394 = vst [vmem:[#allocation3 + $0x1ac] sm:$0xf] %v3280
  %3395 = vst [vmem:[#allocation3 + $0x1d0] sm:$0xf] %v3284
  %3396 = vst [vmem:[#allocation3 + $0x1f4] sm:$0xf] %v3287
  %3397 = vst [vmem:[#allocation3 + $0x218] sm:$0xf] %v3291
  %3398 = vst [vmem:[#allocation3 + $0x23c] sm:$0xf] %v3294
  %3399 = vst [vmem:[#allocation3 + $0x260] sm:$0xf] %v3298
  %3400 = vst [vmem:[#allocation3 + $0x284] sm:$0xf] %v3301
  %3401 = vst [vmem:[#allocation3 + $0x2a8] sm:$0xf] %v3305
  %3402 = vst [vmem:[#allocation3 + $0x2cc] sm:$0xf] %v3308
  %3403 = vst [vmem:[#allocation3 + $0x2f0] sm:$0xf] %v3312
  %3404 = vst [vmem:[#allocation3 + $0x314] sm:$0xf] %v3315
  %3405 = vst [vmem:[#allocation3 + $0x338] sm:$0xf] %v3319
  %3406 = vst [vmem:[#allocation3 + $0x35c] sm:$0xf] %v3322
  %3407 = vst [vmem:[#allocation3 + $0x380] sm:$0xf] %v3326
  %3408 = vst [vmem:[#allocation3 + $0x3a4] sm:$0xf] %v3329
  %3409 = vst [vmem:[#allocation3 + $0x3c8] sm:$0xf] %v3333
  %3410 = vst [vmem:[#allocation3 + $0x3ec] sm:$0xf] %v3336
  %3411 = vst [vmem:[#allocation3 + $0x410] sm:$0xf] %v3340
  %3412 = vst [vmem:[#allocation3 + $0x434] sm:$0xf] %v3343
  %3413 = vst [vmem:[#allocation3 + $0x458] sm:$0xf] %v3347
  %3414 = vst [vmem:[#allocation3 + $0x47c] sm:$0xf] %v3350
  %v3415 = vld [vmem:[#allocation3] sm:$0xff]
  %v3416 = vld [vmem:[#allocation3 + $0x8] sm:$0xff]
  %v3417 = vld [vmem:[#allocation3 + $0x10] sm:$0xff]
  %v3418 = vld [vmem:[#allocation3 + $0x18] sm:$0xff]
  %v3419 = vld [vmem:[#allocation3 + $0x20] sm:$0xf]
  %v3420 = vld [vmem:[#allocation3 + $0x24] sm:$0xff]
  %v3421 = vld [vmem:[#allocation3 + $0x2c] sm:$0xff]
  %v3422 = vld [vmem:[#allocation3 + $0x34] sm:$0xff]
  %v3423 = vld [vmem:[#allocation3 + $0x3c] sm:$0xff]
  %v3424 = vld [vmem:[#allocation3 + $0x44] sm:$0xf]
  %v3425 = vld [vmem:[#allocation3 + $0x48] sm:$0xff]
  %v3426 = vld [vmem:[#allocation3 + $0x50] sm:$0xff]
  %v3427 = vld [vmem:[#allocation3 + $0x58] sm:$0xff]
  %v3428 = vld [vmem:[#allocation3 + $0x60] sm:$0xff]
  %v3429 = vld [vmem:[#allocation3 + $0x68] sm:$0xf]
  %v3430 = vld [vmem:[#allocation3 + $0x6c] sm:$0xff]
  %v3431 = vld [vmem:[#allocation3 + $0x74] sm:$0xff]
  %v3432 = vld [vmem:[#allocation3 + $0x7c] sm:$0xff]
  %v3433 = vld [vmem:[#allocation3 + $0x84] sm:$0xff]
  %v3434 = vld [vmem:[#allocation3 + $0x8c] sm:$0xf]
  %v3435 = vld [vmem:[#allocation3 + $0x90] sm:$0xff]
  %v3436 = vld [vmem:[#allocation3 + $0x98] sm:$0xff]
  %v3437 = vld [vmem:[#allocation3 + $0xa0] sm:$0xff]
  %v3438 = vld [vmem:[#allocation3 + $0xa8] sm:$0xff]
  %v3439 = vld [vmem:[#allocation3 + $0xb0] sm:$0xf]
  %v3440 = vld [vmem:[#allocation3 + $0xb4] sm:$0xff]
  %v3441 = vld [vmem:[#allocation3 + $0xbc] sm:$0xff]
  %v3442 = vld [vmem:[#allocation3 + $0xc4] sm:$0xff]
  %v3443 = vld [vmem:[#allocation3 + $0xcc] sm:$0xff]
  %v3444 = vld [vmem:[#allocation3 + $0xd4] sm:$0xf]
  %v3445 = vld [vmem:[#allocation3 + $0xd8] sm:$0xff]
  %v3446 = vld [vmem:[#allocation3 + $0xe0] sm:$0xff]
  %v3447 = vld [vmem:[#allocation3 + $0xe8] sm:$0xff]
  %v3448 = vld [vmem:[#allocation3 + $0xf0] sm:$0xff]
  %v3449 = vld [vmem:[#allocation3 + $0xf8] sm:$0xf]
  %v3450 = vld [vmem:[#allocation3 + $0xfc] sm:$0xff]
  %v3451 = vld [vmem:[#allocation3 + $0x104] sm:$0xff]
  %v3452 = vld [vmem:[#allocation3 + $0x10c] sm:$0xff]
  %v3453 = vld [vmem:[#allocation3 + $0x114] sm:$0xff]
  %v3454 = vld [vmem:[#allocation3 + $0x11c] sm:$0xf]
  %v3455 = vld [vmem:[#allocation3 + $0x120] sm:$0xff]
  %v3456 = vld [vmem:[#allocation3 + $0x128] sm:$0xff]
  %v3457 = vld [vmem:[#allocation3 + $0x130] sm:$0xff]
  %v3458 = vld [vmem:[#allocation3 + $0x138] sm:$0xff]
  %v3459 = vld [vmem:[#allocation3 + $0x140] sm:$0xf]
  %v3460 = vld [vmem:[#allocation3 + $0x144] sm:$0xff]
  %v3461 = vld [vmem:[#allocation3 + $0x14c] sm:$0xff]
  %v3462 = vld [vmem:[#allocation3 + $0x154] sm:$0xff]
  %v3463 = vld [vmem:[#allocation3 + $0x15c] sm:$0xff]
  %v3464 = vld [vmem:[#allocation3 + $0x164] sm:$0xf]
  %v3465 = vld [vmem:[#allocation3 + $0x168] sm:$0xff]
  %v3466 = vld [vmem:[#allocation3 + $0x170] sm:$0xff]
  %v3467 = vld [vmem:[#allocation3 + $0x178] sm:$0xff]
  %v3468 = vld [vmem:[#allocation3 + $0x180] sm:$0xff]
  %v3469 = vld [vmem:[#allocation3 + $0x188] sm:$0xf]
  %v3470 = vld [vmem:[#allocation3 + $0x18c] sm:$0xff]
  %v3471 = vld [vmem:[#allocation3 + $0x194] sm:$0xff]
  %v3472 = vld [vmem:[#allocation3 + $0x19c] sm:$0xff]
  %v3473 = vld [vmem:[#allocation3 + $0x1a4] sm:$0xff]
  %v3474 = vld [vmem:[#allocation3 + $0x1ac] sm:$0xf]
  %v3475 = vld [vmem:[#allocation3 + $0x1b0] sm:$0xff]
  %v3476 = vld [vmem:[#allocation3 + $0x1b8] sm:$0xff]
  %v3477 = vld [vmem:[#allocation3 + $0x1c0] sm:$0xff]
  %v3478 = vld [vmem:[#allocation3 + $0x1c8] sm:$0xff]
  %v3479 = vld [vmem:[#allocation3 + $0x1d0] sm:$0xf]
  %v3480 = vld [vmem:[#allocation3 + $0x1d4] sm:$0xff]
  %v3481 = vld [vmem:[#allocation3 + $0x1dc] sm:$0xff]
  %v3482 = vld [vmem:[#allocation3 + $0x1e4] sm:$0xff]
  %v3483 = vld [vmem:[#allocation3 + $0x1ec] sm:$0xff]
  %v3484 = vld [vmem:[#allocation3 + $0x1f4] sm:$0xf]
  %v3485 = vld [vmem:[#allocation3 + $0x1f8] sm:$0xff]
  %v3486 = vld [vmem:[#allocation3 + $0x200] sm:$0xff]
  %v3487 = vld [vmem:[#allocation3 + $0x208] sm:$0xff]
  %v3488 = vld [vmem:[#allocation3 + $0x210] sm:$0xff]
  %v3489 = vld [vmem:[#allocation3 + $0x218] sm:$0xf]
  %v3490 = vld [vmem:[#allocation3 + $0x21c] sm:$0xff]
  %v3491 = vld [vmem:[#allocation3 + $0x224] sm:$0xff]
  %v3492 = vld [vmem:[#allocation3 + $0x22c] sm:$0xff]
  %v3493 = vld [vmem:[#allocation3 + $0x234] sm:$0xff]
  %v3494 = vld [vmem:[#allocation3 + $0x23c] sm:$0xf]
  %v3495 = vld [vmem:[#allocation3 + $0x240] sm:$0xff]
  %v3496 = vld [vmem:[#allocation3 + $0x248] sm:$0xff]
  %v3497 = vld [vmem:[#allocation3 + $0x250] sm:$0xff]
  %v3498 = vld [vmem:[#allocation3 + $0x258] sm:$0xff]
  %v3499 = vld [vmem:[#allocation3 + $0x260] sm:$0xf]
  %v3500 = vld [vmem:[#allocation3 + $0x264] sm:$0xff]
  %v3501 = vld [vmem:[#allocation3 + $0x26c] sm:$0xff]
  %v3502 = vld [vmem:[#allocation3 + $0x274] sm:$0xff]
  %v3503 = vld [vmem:[#allocation3 + $0x27c] sm:$0xff]
  %v3504 = vld [vmem:[#allocation3 + $0x284] sm:$0xf]
  %v3505 = vld [vmem:[#allocation3 + $0x288] sm:$0xff]
  %v3506 = vld [vmem:[#allocation3 + $0x290] sm:$0xff]
  %v3507 = vld [vmem:[#allocation3 + $0x298] sm:$0xff]
  %v3508 = vld [vmem:[#allocation3 + $0x2a0] sm:$0xff]
  %v3509 = vld [vmem:[#allocation3 + $0x2a8] sm:$0xf]
  %v3510 = vld [vmem:[#allocation3 + $0x2ac] sm:$0xff]
  %v3511 = vld [vmem:[#allocation3 + $0x2b4] sm:$0xff]
  %v3512 = vld [vmem:[#allocation3 + $0x2bc] sm:$0xff]
  %v3513 = vld [vmem:[#allocation3 + $0x2c4] sm:$0xff]
  %v3514 = vld [vmem:[#allocation3 + $0x2cc] sm:$0xf]
  %v3515 = vld [vmem:[#allocation3 + $0x2d0] sm:$0xff]
  %v3516 = vld [vmem:[#allocation3 + $0x2d8] sm:$0xff]
  %v3517 = vld [vmem:[#allocation3 + $0x2e0] sm:$0xff]
  %v3518 = vld [vmem:[#allocation3 + $0x2e8] sm:$0xff]
  %v3519 = vld [vmem:[#allocation3 + $0x2f0] sm:$0xf]
  %v3520 = vld [vmem:[#allocation3 + $0x2f4] sm:$0xff]
  %v3521 = vld [vmem:[#allocation3 + $0x2fc] sm:$0xff]
  %v3522 = vld [vmem:[#allocation3 + $0x304] sm:$0xff]
  %v3523 = vld [vmem:[#allocation3 + $0x30c] sm:$0xff]
  %v3524 = vld [vmem:[#allocation3 + $0x314] sm:$0xf]
  %v3525 = vld [vmem:[#allocation3 + $0x318] sm:$0xff]
  %v3526 = vld [vmem:[#allocation3 + $0x320] sm:$0xff]
  %v3527 = vld [vmem:[#allocation3 + $0x328] sm:$0xff]
  %v3528 = vld [vmem:[#allocation3 + $0x330] sm:$0xff]
  %v3529 = vld [vmem:[#allocation3 + $0x338] sm:$0xf]
  %v3530 = vld [vmem:[#allocation3 + $0x33c] sm:$0xff]
  %v3531 = vld [vmem:[#allocation3 + $0x344] sm:$0xff]
  %v3532 = vld [vmem:[#allocation3 + $0x34c] sm:$0xff]
  %v3533 = vld [vmem:[#allocation3 + $0x354] sm:$0xff]
  %v3534 = vld [vmem:[#allocation3 + $0x35c] sm:$0xf]
  %v3535 = vld [vmem:[#allocation3 + $0x360] sm:$0xff]
  %v3536 = vld [vmem:[#allocation3 + $0x368] sm:$0xff]
  %v3537 = vld [vmem:[#allocation3 + $0x370] sm:$0xff]
  %v3538 = vld [vmem:[#allocation3 + $0x378] sm:$0xff]
  %v3539 = vld [vmem:[#allocation3 + $0x380] sm:$0xf]
  %v3540 = vld [vmem:[#allocation3 + $0x384] sm:$0xff]
  %v3541 = vld [vmem:[#allocation3 + $0x38c] sm:$0xff]
  %v3542 = vld [vmem:[#allocation3 + $0x394] sm:$0xff]
  %v3543 = vld [vmem:[#allocation3 + $0x39c] sm:$0xff]
  %v3544 = vld [vmem:[#allocation3 + $0x3a4] sm:$0xf]
  %v3545 = vld [vmem:[#allocation3 + $0x3a8] sm:$0xff]
  %v3546 = vld [vmem:[#allocation3 + $0x3b0] sm:$0xff]
  %v3547 = vld [vmem:[#allocation3 + $0x3b8] sm:$0xff]
  %v3548 = vld [vmem:[#allocation3 + $0x3c0] sm:$0xff]
  %v3549 = vld [vmem:[#allocation3 + $0x3c8] sm:$0xf]
  %v3550 = vld [vmem:[#allocation3 + $0x3cc] sm:$0xff]
  %v3551 = vld [vmem:[#allocation3 + $0x3d4] sm:$0xff]
  %v3552 = vld [vmem:[#allocation3 + $0x3dc] sm:$0xff]
  %v3553 = vld [vmem:[#allocation3 + $0x3e4] sm:$0xff]
  %v3554 = vld [vmem:[#allocation3 + $0x3ec] sm:$0xf]
  %v3555 = vld [vmem:[#allocation3 + $0x3f0] sm:$0xff]
  %v3556 = vld [vmem:[#allocation3 + $0x3f8] sm:$0xff]
  %v3557 = vld [vmem:[#allocation3 + $0x400] sm:$0xff]
  %v3558 = vld [vmem:[#allocation3 + $0x408] sm:$0xff]
  %v3559 = vld [vmem:[#allocation3 + $0x410] sm:$0xf]
  %v3560 = vld [vmem:[#allocation3 + $0x414] sm:$0xff]
  %v3561 = vld [vmem:[#allocation3 + $0x41c] sm:$0xff]
  %v3562 = vld [vmem:[#allocation3 + $0x424] sm:$0xff]
  %v3563 = vld [vmem:[#allocation3 + $0x42c] sm:$0xff]
  %v3564 = vld [vmem:[#allocation3 + $0x434] sm:$0xf]
  %v3565 = vld [vmem:[#allocation3 + $0x438] sm:$0xff]
  %v3566 = vld [vmem:[#allocation3 + $0x440] sm:$0xff]
  %v3567 = vld [vmem:[#allocation3 + $0x448] sm:$0xff]
  %v3568 = vld [vmem:[#allocation3 + $0x450] sm:$0xff]
  %v3569 = vld [vmem:[#allocation3 + $0x458] sm:$0xf]
  %v3570 = vld [vmem:[#allocation3 + $0x45c] sm:$0xff]
  %v3571 = vld [vmem:[#allocation3 + $0x464] sm:$0xff]
  %v3572 = vld [vmem:[#allocation3 + $0x46c] sm:$0xff]
  %v3573 = vld [vmem:[#allocation3 + $0x474] sm:$0xff]
  %v3574 = vld [vmem:[#allocation3 + $0x47c] sm:$0xf]
  %v3575 = vld [vmem:[%s1] sm:$0xf]
  %v3576 = vld [vmem:[%s1 + $0x4] sm:$0xf]
  %v3577 = vld [vmem:[%s1 + $0x8] sm:$0xf]
  %v3578 = vld [vmem:[%s1 + $0xc] sm:$0xf]
  %v3579 = vld [vmem:[%s1 + $0x10] sm:$0xf]
  %v3580 = vld [vmem:[%s1 + $0x14] sm:$0xf]
  %v3581 = vld [vmem:[%s1 + $0x18] sm:$0xf]
  %v3582 = vld [vmem:[%s1 + $0x1c] sm:$0xf]
  %v3583 = vld [vmem:[%s1 + $0x20] sm:$0xf]
  %v3584 = vld [vmem:[%s1 + $0x24] sm:$0xf]
  %v3585 = vld [vmem:[%s1 + $0x28] sm:$0xf]
  %v3586 = vld [vmem:[%s1 + $0x2c] sm:$0xf]
  %v3587 = vld [vmem:[%s1 + $0x30] sm:$0xf]
  %v3588 = vld [vmem:[%s1 + $0x34] sm:$0xf]
  %v3589 = vld [vmem:[%s1 + $0x38] sm:$0xf]
  %v3590 = vld [vmem:[%s1 + $0x3c] sm:$0xf]
  %v3591 = vld [vmem:[%s1 + $0x40] sm:$0xf]
  %v3592 = vld [vmem:[%s1 + $0x44] sm:$0xf]
  %v3593 = vld [vmem:[%s1 + $0x48] sm:$0xf]
  %v3594 = vld [vmem:[%s1 + $0x4c] sm:$0xf]
  %v3595 = vld [vmem:[%s1 + $0x50] sm:$0xf]
  %v3596 = vld [vmem:[%s1 + $0x54] sm:$0xf]
  %v3597 = vld [vmem:[%s1 + $0x58] sm:$0xf]
  %v3598 = vld [vmem:[%s1 + $0x5c] sm:$0xf]
  %v3599 = vld [vmem:[%s1 + $0x60] sm:$0xf]
  %v3600 = vld [vmem:[%s1 + $0x64] sm:$0xf]
  %v3601 = vld [vmem:[%s1 + $0x68] sm:$0xf]
  %v3602 = vld [vmem:[%s1 + $0x6c] sm:$0xf]
  %v3603 = vld [vmem:[%s1 + $0x70] sm:$0xf]
  %v3604 = vld [vmem:[%s1 + $0x74] sm:$0xf]
  %v3605 = vld [vmem:[%s1 + $0x78] sm:$0xf]
  %v3606 = vld [vmem:[%s1 + $0x7c] sm:$0xf]
  %v3607 = vld [vmem:[%s1 + $0x80] sm:$0xf]
  %v3608 = vld [vmem:[%s1 + $0x84] sm:$0xf]
  %v3609 = vld [vmem:[%s1 + $0x88] sm:$0xf]
  %v3610 = vld [vmem:[%s1 + $0x8c] sm:$0xf]
  %v3611 = vld [vmem:[%s1 + $0x90] sm:$0xf]
  %v3612 = vld [vmem:[%s1 + $0x94] sm:$0xf]
  %v3613 = vld [vmem:[%s1 + $0x98] sm:$0xf]
  %v3614 = vld [vmem:[%s1 + $0x9c] sm:$0xf]
  %v3615 = vld [vmem:[%s1 + $0xa0] sm:$0xf]
  %v3616 = vld [vmem:[%s1 + $0xa4] sm:$0xf]
  %v3617 = vld [vmem:[%s1 + $0xa8] sm:$0xf]
  %v3618 = vld [vmem:[%s1 + $0xac] sm:$0xf]
  %v3619 = vld [vmem:[%s1 + $0xb0] sm:$0xf]
  %v3620 = vld [vmem:[%s1 + $0xb4] sm:$0xf]
  %v3621 = vld [vmem:[%s1 + $0xb8] sm:$0xf]
  %v3622 = vld [vmem:[%s1 + $0xbc] sm:$0xf]
  %v3623 = vld [vmem:[%s1 + $0xc0] sm:$0xf]
  %v3624 = vld [vmem:[%s1 + $0xc4] sm:$0xf]
  %v3625 = vld [vmem:[%s1 + $0xc8] sm:$0xf]
  %v3626 = vld [vmem:[%s1 + $0xcc] sm:$0xf]
  %v3627 = vld [vmem:[%s1 + $0xd0] sm:$0xf]
  %v3628 = vld [vmem:[%s1 + $0xd4] sm:$0xf]
  %v3629 = vld [vmem:[%s1 + $0xd8] sm:$0xf]
  %v3630 = vld [vmem:[%s1 + $0xdc] sm:$0xf]
  %v3631 = vld [vmem:[%s1 + $0xe0] sm:$0xf]
  %v3632 = vld [vmem:[%s1 + $0xe4] sm:$0xf]
  %v3633 = vld [vmem:[%s1 + $0xe8] sm:$0xf]
  %v3634 = vld [vmem:[%s1 + $0xec] sm:$0xf]
  %v3635 = vld [vmem:[%s1 + $0xf0] sm:$0xf]
  %v3636 = vld [vmem:[%s1 + $0xf4] sm:$0xf]
  %v3637 = vld [vmem:[%s1 + $0xf8] sm:$0xf]
  %v3638 = vld [vmem:[%s1 + $0xfc] sm:$0xf]
  %v3639 = vld [vmem:[%s1 + $0x100] sm:$0xf]
  %v3640 = vld [vmem:[%s1 + $0x104] sm:$0xf]
  %v3641 = vld [vmem:[%s1 + $0x108] sm:$0xf]
  %v3642 = vld [vmem:[%s1 + $0x10c] sm:$0xf]
  %v3643 = vld [vmem:[%s1 + $0x110] sm:$0xf]
  %v3644 = vld [vmem:[%s1 + $0x114] sm:$0xf]
  %v3645 = vld [vmem:[%s1 + $0x118] sm:$0xf]
  %v3646 = vld [vmem:[%s1 + $0x11c] sm:$0xf]
  %v3647 = vld [vmem:[%s1 + $0x120] sm:$0xf]
  %v3648 = vld [vmem:[%s1 + $0x124] sm:$0xf]
  %v3649 = vld [vmem:[%s1 + $0x128] sm:$0xf]
  %v3650 = vld [vmem:[%s1 + $0x12c] sm:$0xf]
  %v3651 = vld [vmem:[%s1 + $0x130] sm:$0xf]
  %v3652 = vld [vmem:[%s1 + $0x134] sm:$0xf]
  %v3653 = vld [vmem:[%s1 + $0x138] sm:$0xf]
  %v3654 = vld [vmem:[%s1 + $0x13c] sm:$0xf]
  %v3655 = vld [vmem:[%s1 + $0x140] sm:$0xf]
  %v3656 = vld [vmem:[%s1 + $0x144] sm:$0xf]
  %v3657 = vld [vmem:[%s1 + $0x148] sm:$0xf]
  %v3658 = vld [vmem:[%s1 + $0x14c] sm:$0xf]
  %v3659 = vld [vmem:[%s1 + $0x150] sm:$0xf]
  %v3660 = vld [vmem:[%s1 + $0x154] sm:$0xf]
  %v3661 = vld [vmem:[%s1 + $0x158] sm:$0xf]
  %v3662 = vld [vmem:[%s1 + $0x15c] sm:$0xf]
  %v3663 = vld [vmem:[%s1 + $0x160] sm:$0xf]
  %v3664 = vld [vmem:[%s1 + $0x164] sm:$0xf]
  %v3665 = vld [vmem:[%s1 + $0x168] sm:$0xf]
  %v3666 = vld [vmem:[%s1 + $0x16c] sm:$0xf]
  %v3667 = vld [vmem:[%s1 + $0x170] sm:$0xf]
  %v3668 = vld [vmem:[%s1 + $0x174] sm:$0xf]
  %v3669 = vld [vmem:[%s1 + $0x178] sm:$0xf]
  %v3670 = vld [vmem:[%s1 + $0x17c] sm:$0xf]
  %v3671 = vld [vmem:[%s1 + $0x180] sm:$0xf]
  %v3672 = vld [vmem:[%s1 + $0x184] sm:$0xf]
  %v3673 = vld [vmem:[%s1 + $0x188] sm:$0xf]
  %v3674 = vld [vmem:[%s1 + $0x18c] sm:$0xf]
  %v3675 = vld [vmem:[%s1 + $0x190] sm:$0xf]
  %v3676 = vld [vmem:[%s1 + $0x194] sm:$0xf]
  %v3677 = vld [vmem:[%s1 + $0x198] sm:$0xf]
  %v3678 = vld [vmem:[%s1 + $0x19c] sm:$0xf]
  %v3679 = vld [vmem:[%s1 + $0x1a0] sm:$0xf]
  %v3680 = vld [vmem:[%s1 + $0x1a4] sm:$0xf]
  %v3681 = vld [vmem:[%s1 + $0x1a8] sm:$0xf]
  %v3682 = vld [vmem:[%s1 + $0x1ac] sm:$0xf]
  %v3683 = vld [vmem:[%s1 + $0x1b0] sm:$0xf]
  %v3684 = vld [vmem:[%s1 + $0x1b4] sm:$0xf]
  %v3685 = vld [vmem:[%s1 + $0x1b8] sm:$0xf]
  %v3686 = vld [vmem:[%s1 + $0x1bc] sm:$0xf]
  %v3687 = vld [vmem:[%s1 + $0x1c0] sm:$0xf]
  %v3688 = vld [vmem:[%s1 + $0x1c4] sm:$0xf]
  %v3689 = vld [vmem:[%s1 + $0x1c8] sm:$0xf]
  %v3690 = vld [vmem:[%s1 + $0x1cc] sm:$0xf]
  %v3691 = vld [vmem:[%s1 + $0x1d0] sm:$0xf]
  %v3692 = vld [vmem:[%s1 + $0x1d4] sm:$0xf]
  %v3693 = vld [vmem:[%s1 + $0x1d8] sm:$0xf]
  %v3694 = vld [vmem:[%s1 + $0x1dc] sm:$0xf]
  %v3695 = vld [vmem:[%s1 + $0x1e0] sm:$0xf]
  %v3696 = vld [vmem:[%s1 + $0x1e4] sm:$0xf]
  %v3697 = vld [vmem:[%s1 + $0x1e8] sm:$0xf]
  %v3698 = vld [vmem:[%s1 + $0x1ec] sm:$0xf]
  %v3699 = vld [vmem:[%s1 + $0x1f0] sm:$0xf]
  %v3700 = vld [vmem:[%s1 + $0x1f4] sm:$0xf]
  %v3701 = vld [vmem:[%s1 + $0x1f8] sm:$0xf]
  %v3702 = vld [vmem:[%s1 + $0x1fc] sm:$0xf]
  %v3703 = vld [vmem:[%s1 + $0x200] sm:$0xf]
  %v3704 = vld [vmem:[%s1 + $0x204] sm:$0xf]
  %v3705 = vld [vmem:[%s1 + $0x208] sm:$0xf]
  %v3706 = vld [vmem:[%s1 + $0x20c] sm:$0xf]
  %v3707 = vld [vmem:[%s1 + $0x210] sm:$0xf]
  %v3708 = vld [vmem:[%s1 + $0x214] sm:$0xf]
  %v3709 = vld [vmem:[%s1 + $0x218] sm:$0xf]
  %v3710 = vld [vmem:[%s1 + $0x21c] sm:$0xf]
  %v3711 = vld [vmem:[%s1 + $0x220] sm:$0xf]
  %v3712 = vld [vmem:[%s1 + $0x224] sm:$0xf]
  %v3713 = vld [vmem:[%s1 + $0x228] sm:$0xf]
  %v3714 = vld [vmem:[%s1 + $0x22c] sm:$0xf]
  %v3715 = vld [vmem:[%s1 + $0x230] sm:$0xf]
  %v3716 = vld [vmem:[%s1 + $0x234] sm:$0xf]
  %v3717 = vld [vmem:[%s1 + $0x238] sm:$0xf]
  %v3718 = vld [vmem:[%s1 + $0x23c] sm:$0xf]
  %v3879 = vunpack.c.l.b16 %v3415
  %v3880 = vunpack.c.h.b16 %v3415
  %v3881 = vunpack.c.l.b16 %v3416
  %v3882 = vunpack.c.h.b16 %v3416
  %v3883 = vunpack.c.l.b16 %v3417
  %v3884 = vunpack.c.h.b16 %v3417
  %v3885 = vunpack.c.l.b16 %v3418
  %v3886 = vunpack.c.h.b16 %v3418
  %v3887 = vunpack.c.l.b16 %v3419
  %v3888 = vunpack.c.l.b16 %v3420
  %v3889 = vunpack.c.h.b16 %v3420
  %v3890 = vunpack.c.l.b16 %v3421
  %v3891 = vunpack.c.h.b16 %v3421
  %v3892 = vunpack.c.l.b16 %v3422
  %v3893 = vunpack.c.h.b16 %v3422
  %v3894 = vunpack.c.l.b16 %v3423
  %v3895 = vunpack.c.h.b16 %v3423
  %v3896 = vunpack.c.l.b16 %v3424
  %v3897 = vunpack.c.l.b16 %v3425
  %v3898 = vunpack.c.h.b16 %v3425
  %v3899 = vunpack.c.l.b16 %v3426
  %v3900 = vunpack.c.h.b16 %v3426
  %v3901 = vunpack.c.l.b16 %v3427
  %v3902 = vunpack.c.h.b16 %v3427
  %v3903 = vunpack.c.l.b16 %v3428
  %v3904 = vunpack.c.h.b16 %v3428
  %v3905 = vunpack.c.l.b16 %v3429
  %v3906 = vunpack.c.l.b16 %v3430
  %v3907 = vunpack.c.h.b16 %v3430
  %v3908 = vunpack.c.l.b16 %v3431
  %v3909 = vunpack.c.h.b16 %v3431
  %v3910 = vunpack.c.l.b16 %v3432
  %v3911 = vunpack.c.h.b16 %v3432
  %v3912 = vunpack.c.l.b16 %v3433
  %v3913 = vunpack.c.h.b16 %v3433
  %v3914 = vunpack.c.l.b16 %v3434
  %v3915 = vunpack.c.l.b16 %v3435
  %v3916 = vunpack.c.h.b16 %v3435
  %v3917 = vunpack.c.l.b16 %v3436
  %v3918 = vunpack.c.h.b16 %v3436
  %v3919 = vunpack.c.l.b16 %v3437
  %v3920 = vunpack.c.h.b16 %v3437
  %v3921 = vunpack.c.l.b16 %v3438
  %v3922 = vunpack.c.h.b16 %v3438
  %v3923 = vunpack.c.l.b16 %v3439
  %v3924 = vunpack.c.l.b16 %v3440
  %v3925 = vunpack.c.h.b16 %v3440
  %v3926 = vunpack.c.l.b16 %v3441
  %v3927 = vunpack.c.h.b16 %v3441
  %v3928 = vunpack.c.l.b16 %v3442
  %v3929 = vunpack.c.h.b16 %v3442
  %v3930 = vunpack.c.l.b16 %v3443
  %v3931 = vunpack.c.h.b16 %v3443
  %v3932 = vunpack.c.l.b16 %v3444
  %v3933 = vunpack.c.l.b16 %v3445
  %v3934 = vunpack.c.h.b16 %v3445
  %v3935 = vunpack.c.l.b16 %v3446
  %v3936 = vunpack.c.h.b16 %v3446
  %v3937 = vunpack.c.l.b16 %v3447
  %v3938 = vunpack.c.h.b16 %v3447
  %v3939 = vunpack.c.l.b16 %v3448
  %v3940 = vunpack.c.h.b16 %v3448
  %v3941 = vunpack.c.l.b16 %v3449
  %v3942 = vunpack.c.l.b16 %v3450
  %v3943 = vunpack.c.h.b16 %v3450
  %v3944 = vunpack.c.l.b16 %v3451
  %v3945 = vunpack.c.h.b16 %v3451
  %v3946 = vunpack.c.l.b16 %v3452
  %v3947 = vunpack.c.h.b16 %v3452
  %v3948 = vunpack.c.l.b16 %v3453
  %v3949 = vunpack.c.h.b16 %v3453
  %v3950 = vunpack.c.l.b16 %v3454
  %v3951 = vunpack.c.l.b16 %v3455
  %v3952 = vunpack.c.h.b16 %v3455
  %v3953 = vunpack.c.l.b16 %v3456
  %v3954 = vunpack.c.h.b16 %v3456
  %v3955 = vunpack.c.l.b16 %v3457
  %v3956 = vunpack.c.h.b16 %v3457
  %v3957 = vunpack.c.l.b16 %v3458
  %v3958 = vunpack.c.h.b16 %v3458
  %v3959 = vunpack.c.l.b16 %v3459
  %v3960 = vunpack.c.l.b16 %v3460
  %v3961 = vunpack.c.h.b16 %v3460
  %v3962 = vunpack.c.l.b16 %v3461
  %v3963 = vunpack.c.h.b16 %v3461
  %v3964 = vunpack.c.l.b16 %v3462
  %v3965 = vunpack.c.h.b16 %v3462
  %v3966 = vunpack.c.l.b16 %v3463
  %v3967 = vunpack.c.h.b16 %v3463
  %v3968 = vunpack.c.l.b16 %v3464
  %v3969 = vunpack.c.l.b16 %v3465
  %v3970 = vunpack.c.h.b16 %v3465
  %v3971 = vunpack.c.l.b16 %v3466
  %v3972 = vunpack.c.h.b16 %v3466
  %v3973 = vunpack.c.l.b16 %v3467
  %v3974 = vunpack.c.h.b16 %v3467
  %v3975 = vunpack.c.l.b16 %v3468
  %v3976 = vunpack.c.h.b16 %v3468
  %v3977 = vunpack.c.l.b16 %v3469
  %v3978 = vunpack.c.l.b16 %v3470
  %v3979 = vunpack.c.h.b16 %v3470
  %v3980 = vunpack.c.l.b16 %v3471
  %v3981 = vunpack.c.h.b16 %v3471
  %v3982 = vunpack.c.l.b16 %v3472
  %v3983 = vunpack.c.h.b16 %v3472
  %v3984 = vunpack.c.l.b16 %v3473
  %v3985 = vunpack.c.h.b16 %v3473
  %v3986 = vunpack.c.l.b16 %v3474
  %v3987 = vunpack.c.l.b16 %v3475
  %v3988 = vunpack.c.h.b16 %v3475
  %v3989 = vunpack.c.l.b16 %v3476
  %v3990 = vunpack.c.h.b16 %v3476
  %v3991 = vunpack.c.l.b16 %v3477
  %v3992 = vunpack.c.h.b16 %v3477
  %v3993 = vunpack.c.l.b16 %v3478
  %v3994 = vunpack.c.h.b16 %v3478
  %v3995 = vunpack.c.l.b16 %v3479
  %v3996 = vunpack.c.l.b16 %v3480
  %v3997 = vunpack.c.h.b16 %v3480
  %v3998 = vunpack.c.l.b16 %v3481
  %v3999 = vunpack.c.h.b16 %v3481
  %v4000 = vunpack.c.l.b16 %v3482
  %v4001 = vunpack.c.h.b16 %v3482
  %v4002 = vunpack.c.l.b16 %v3483
  %v4003 = vunpack.c.h.b16 %v3483
  %v4004 = vunpack.c.l.b16 %v3484
  %v4005 = vunpack.c.l.b16 %v3485
  %v4006 = vunpack.c.h.b16 %v3485
  %v4007 = vunpack.c.l.b16 %v3486
  %v4008 = vunpack.c.h.b16 %v3486
  %v4009 = vunpack.c.l.b16 %v3487
  %v4010 = vunpack.c.h.b16 %v3487
  %v4011 = vunpack.c.l.b16 %v3488
  %v4012 = vunpack.c.h.b16 %v3488
  %v4013 = vunpack.c.l.b16 %v3489
  %v4014 = vunpack.c.l.b16 %v3490
  %v4015 = vunpack.c.h.b16 %v3490
  %v4016 = vunpack.c.l.b16 %v3491
  %v4017 = vunpack.c.h.b16 %v3491
  %v4018 = vunpack.c.l.b16 %v3492
  %v4019 = vunpack.c.h.b16 %v3492
  %v4020 = vunpack.c.l.b16 %v3493
  %v4021 = vunpack.c.h.b16 %v3493
  %v4022 = vunpack.c.l.b16 %v3494
  %v4023 = vunpack.c.l.b16 %v3495
  %v4024 = vunpack.c.h.b16 %v3495
  %v4025 = vunpack.c.l.b16 %v3496
  %v4026 = vunpack.c.h.b16 %v3496
  %v4027 = vunpack.c.l.b16 %v3497
  %v4028 = vunpack.c.h.b16 %v3497
  %v4029 = vunpack.c.l.b16 %v3498
  %v4030 = vunpack.c.h.b16 %v3498
  %v4031 = vunpack.c.l.b16 %v3499
  %v4032 = vunpack.c.l.b16 %v3500
  %v4033 = vunpack.c.h.b16 %v3500
  %v4034 = vunpack.c.l.b16 %v3501
  %v4035 = vunpack.c.h.b16 %v3501
  %v4036 = vunpack.c.l.b16 %v3502
  %v4037 = vunpack.c.h.b16 %v3502
  %v4038 = vunpack.c.l.b16 %v3503
  %v4039 = vunpack.c.h.b16 %v3503
  %v4040 = vunpack.c.l.b16 %v3504
  %v4041 = vunpack.c.l.b16 %v3505
  %v4042 = vunpack.c.h.b16 %v3505
  %v4043 = vunpack.c.l.b16 %v3506
  %v4044 = vunpack.c.h.b16 %v3506
  %v4045 = vunpack.c.l.b16 %v3507
  %v4046 = vunpack.c.h.b16 %v3507
  %v4047 = vunpack.c.l.b16 %v3508
  %v4048 = vunpack.c.h.b16 %v3508
  %v4049 = vunpack.c.l.b16 %v3509
  %v4050 = vunpack.c.l.b16 %v3510
  %v4051 = vunpack.c.h.b16 %v3510
  %v4052 = vunpack.c.l.b16 %v3511
  %v4053 = vunpack.c.h.b16 %v3511
  %v4054 = vunpack.c.l.b16 %v3512
  %v4055 = vunpack.c.h.b16 %v3512
  %v4056 = vunpack.c.l.b16 %v3513
  %v4057 = vunpack.c.h.b16 %v3513
  %v4058 = vunpack.c.l.b16 %v3514
  %v4059 = vunpack.c.l.b16 %v3515
  %v4060 = vunpack.c.h.b16 %v3515
  %v4061 = vunpack.c.l.b16 %v3516
  %v4062 = vunpack.c.h.b16 %v3516
  %v4063 = vunpack.c.l.b16 %v3517
  %v4064 = vunpack.c.h.b16 %v3517
  %v4065 = vunpack.c.l.b16 %v3518
  %v4066 = vunpack.c.h.b16 %v3518
  %v4067 = vunpack.c.l.b16 %v3519
  %v4068 = vunpack.c.l.b16 %v3520
  %v4069 = vunpack.c.h.b16 %v3520
  %v4070 = vunpack.c.l.b16 %v3521
  %v4071 = vunpack.c.h.b16 %v3521
  %v4072 = vunpack.c.l.b16 %v3522
  %v4073 = vunpack.c.h.b16 %v3522
  %v4074 = vunpack.c.l.b16 %v3523
  %v4075 = vunpack.c.h.b16 %v3523
  %v4076 = vunpack.c.l.b16 %v3524
  %v4077 = vunpack.c.l.b16 %v3525
  %v4078 = vunpack.c.h.b16 %v3525
  %v4079 = vunpack.c.l.b16 %v3526
  %v4080 = vunpack.c.h.b16 %v3526
  %v4081 = vunpack.c.l.b16 %v3527
  %v4082 = vunpack.c.h.b16 %v3527
  %v4083 = vunpack.c.l.b16 %v3528
  %v4084 = vunpack.c.h.b16 %v3528
  %v4085 = vunpack.c.l.b16 %v3529
  %v4086 = vunpack.c.l.b16 %v3530
  %v4087 = vunpack.c.h.b16 %v3530
  %v4088 = vunpack.c.l.b16 %v3531
  %v4089 = vunpack.c.h.b16 %v3531
  %v4090 = vunpack.c.l.b16 %v3532
  %v4091 = vunpack.c.h.b16 %v3532
  %v4092 = vunpack.c.l.b16 %v3533
  %v4093 = vunpack.c.h.b16 %v3533
  %v4094 = vunpack.c.l.b16 %v3534
  %v4095 = vunpack.c.l.b16 %v3535
  %v4096 = vunpack.c.h.b16 %v3535
  %v4097 = vunpack.c.l.b16 %v3536
  %v4098 = vunpack.c.h.b16 %v3536
  %v4099 = vunpack.c.l.b16 %v3537
  %v4100 = vunpack.c.h.b16 %v3537
  %v4101 = vunpack.c.l.b16 %v3538
  %v4102 = vunpack.c.h.b16 %v3538
  %v4103 = vunpack.c.l.b16 %v3539
  %v4104 = vunpack.c.l.b16 %v3540
  %v4105 = vunpack.c.h.b16 %v3540
  %v4106 = vunpack.c.l.b16 %v3541
  %v4107 = vunpack.c.h.b16 %v3541
  %v4108 = vunpack.c.l.b16 %v3542
  %v4109 = vunpack.c.h.b16 %v3542
  %v4110 = vunpack.c.l.b16 %v3543
  %v4111 = vunpack.c.h.b16 %v3543
  %v4112 = vunpack.c.l.b16 %v3544
  %v4113 = vunpack.c.l.b16 %v3545
  %v4114 = vunpack.c.h.b16 %v3545
  %v4115 = vunpack.c.l.b16 %v3546
  %v4116 = vunpack.c.h.b16 %v3546
  %v4117 = vunpack.c.l.b16 %v3547
  %v4118 = vunpack.c.h.b16 %v3547
  %v4119 = vunpack.c.l.b16 %v3548
  %v4120 = vunpack.c.h.b16 %v3548
  %v4121 = vunpack.c.l.b16 %v3549
  %v4122 = vunpack.c.l.b16 %v3550
  %v4123 = vunpack.c.h.b16 %v3550
  %v4124 = vunpack.c.l.b16 %v3551
  %v4125 = vunpack.c.h.b16 %v3551
  %v4126 = vunpack.c.l.b16 %v3552
  %v4127 = vunpack.c.h.b16 %v3552
  %v4128 = vunpack.c.l.b16 %v3553
  %v4129 = vunpack.c.h.b16 %v3553
  %v4130 = vunpack.c.l.b16 %v3554
  %v4131 = vunpack.c.l.b16 %v3555
  %v4132 = vunpack.c.h.b16 %v3555
  %v4133 = vunpack.c.l.b16 %v3556
  %v4134 = vunpack.c.h.b16 %v3556
  %v4135 = vunpack.c.l.b16 %v3557
  %v4136 = vunpack.c.h.b16 %v3557
  %v4137 = vunpack.c.l.b16 %v3558
  %v4138 = vunpack.c.h.b16 %v3558
  %v4139 = vunpack.c.l.b16 %v3559
  %v4140 = vunpack.c.l.b16 %v3560
  %v4141 = vunpack.c.h.b16 %v3560
  %v4142 = vunpack.c.l.b16 %v3561
  %v4143 = vunpack.c.h.b16 %v3561
  %v4144 = vunpack.c.l.b16 %v3562
  %v4145 = vunpack.c.h.b16 %v3562
  %v4146 = vunpack.c.l.b16 %v3563
  %v4147 = vunpack.c.h.b16 %v3563
  %v4148 = vunpack.c.l.b16 %v3564
  %v4149 = vunpack.c.l.b16 %v3565
  %v4150 = vunpack.c.h.b16 %v3565
  %v4151 = vunpack.c.l.b16 %v3566
  %v4152 = vunpack.c.h.b16 %v3566
  %v4153 = vunpack.c.l.b16 %v3567
  %v4154 = vunpack.c.h.b16 %v3567
  %v4155 = vunpack.c.l.b16 %v3568
  %v4156 = vunpack.c.h.b16 %v3568
  %v4157 = vunpack.c.l.b16 %v3569
  %v4158 = vunpack.c.l.b16 %v3570
  %v4159 = vunpack.c.h.b16 %v3570
  %v4160 = vunpack.c.l.b16 %v3571
  %v4161 = vunpack.c.h.b16 %v3571
  %v4162 = vunpack.c.l.b16 %v3572
  %v4163 = vunpack.c.h.b16 %v3572
  %v4164 = vunpack.c.l.b16 %v3573
  %v4165 = vunpack.c.h.b16 %v3573
  %v4166 = vunpack.c.l.b16 %v3574
  %v4167 = vpack.c.b16 %v3888, %v3879
  %v4168 = vpack.c.b16 %v3889, %v3880
  %v4169 = vpack.c.b16 %v3890, %v3881
  %v4170 = vpack.c.b16 %v3891, %v3882
  %v4171 = vpack.c.b16 %v3892, %v3883
  %v4172 = vpack.c.b16 %v3893, %v3884
  %v4173 = vpack.c.b16 %v3894, %v3885
  %v4174 = vpack.c.b16 %v3895, %v3886
  %v4175 = vpack.c.b16 %v3896, %v3887
  %v4176 = vpack.c.b16 %v3906, %v3897
  %v4177 = vpack.c.b16 %v3907, %v3898
  %v4178 = vpack.c.b16 %v3908, %v3899
  %v4179 = vpack.c.b16 %v3909, %v3900
  %v4180 = vpack.c.b16 %v3910, %v3901
  %v4181 = vpack.c.b16 %v3911, %v3902
  %v4182 = vpack.c.b16 %v3912, %v3903
  %v4183 = vpack.c.b16 %v3913, %v3904
  %v4184 = vpack.c.b16 %v3914, %v3905
  %v4185 = vpack.c.b16 %v3924, %v3915
  %v4186 = vpack.c.b16 %v3925, %v3916
  %v4187 = vpack.c.b16 %v3926, %v3917
  %v4188 = vpack.c.b16 %v3927, %v3918
  %v4189 = vpack.c.b16 %v3928, %v3919
  %v4190 = vpack.c.b16 %v3929, %v3920
  %v4191 = vpack.c.b16 %v3930, %v3921
  %v4192 = vpack.c.b16 %v3931, %v3922
  %v4193 = vpack.c.b16 %v3932, %v3923
  %v4194 = vpack.c.b16 %v3942, %v3933
  %v4195 = vpack.c.b16 %v3943, %v3934
  %v4196 = vpack.c.b16 %v3944, %v3935
  %v4197 = vpack.c.b16 %v3945, %v3936
  %v4198 = vpack.c.b16 %v3946, %v3937
  %v4199 = vpack.c.b16 %v3947, %v3938
  %v4200 = vpack.c.b16 %v3948, %v3939
  %v4201 = vpack.c.b16 %v3949, %v3940
  %v4202 = vpack.c.b16 %v3950, %v3941
  %v4203 = vpack.c.b16 %v3960, %v3951
  %v4204 = vpack.c.b16 %v3961, %v3952
  %v4205 = vpack.c.b16 %v3962, %v3953
  %v4206 = vpack.c.b16 %v3963, %v3954
  %v4207 = vpack.c.b16 %v3964, %v3955
  %v4208 = vpack.c.b16 %v3965, %v3956
  %v4209 = vpack.c.b16 %v3966, %v3957
  %v4210 = vpack.c.b16 %v3967, %v3958
  %v4211 = vpack.c.b16 %v3968, %v3959
  %v4212 = vpack.c.b16 %v3978, %v3969
  %v4213 = vpack.c.b16 %v3979, %v3970
  %v4214 = vpack.c.b16 %v3980, %v3971
  %v4215 = vpack.c.b16 %v3981, %v3972
  %v4216 = vpack.c.b16 %v3982, %v3973
  %v4217 = vpack.c.b16 %v3983, %v3974
  %v4218 = vpack.c.b16 %v3984, %v3975
  %v4219 = vpack.c.b16 %v3985, %v3976
  %v4220 = vpack.c.b16 %v3986, %v3977
  %v4221 = vpack.c.b16 %v3996, %v3987
  %v4222 = vpack.c.b16 %v3997, %v3988
  %v4223 = vpack.c.b16 %v3998, %v3989
  %v4224 = vpack.c.b16 %v3999, %v3990
  %v4225 = vpack.c.b16 %v4000, %v3991
  %v4226 = vpack.c.b16 %v4001, %v3992
  %v4227 = vpack.c.b16 %v4002, %v3993
  %v4228 = vpack.c.b16 %v4003, %v3994
  %v4229 = vpack.c.b16 %v4004, %v3995
  %v4230 = vpack.c.b16 %v4014, %v4005
  %v4231 = vpack.c.b16 %v4015, %v4006
  %v4232 = vpack.c.b16 %v4016, %v4007
  %v4233 = vpack.c.b16 %v4017, %v4008
  %v4234 = vpack.c.b16 %v4018, %v4009
  %v4235 = vpack.c.b16 %v4019, %v4010
  %v4236 = vpack.c.b16 %v4020, %v4011
  %v4237 = vpack.c.b16 %v4021, %v4012
  %v4238 = vpack.c.b16 %v4022, %v4013
  %v4239 = vpack.c.b16 %v4032, %v4023
  %v4240 = vpack.c.b16 %v4033, %v4024
  %v4241 = vpack.c.b16 %v4034, %v4025
  %v4242 = vpack.c.b16 %v4035, %v4026
  %v4243 = vpack.c.b16 %v4036, %v4027
  %v4244 = vpack.c.b16 %v4037, %v4028
  %v4245 = vpack.c.b16 %v4038, %v4029
  %v4246 = vpack.c.b16 %v4039, %v4030
  %v4247 = vpack.c.b16 %v4040, %v4031
  %v4248 = vpack.c.b16 %v4050, %v4041
  %v4249 = vpack.c.b16 %v4051, %v4042
  %v4250 = vpack.c.b16 %v4052, %v4043
  %v4251 = vpack.c.b16 %v4053, %v4044
  %v4252 = vpack.c.b16 %v4054, %v4045
  %v4253 = vpack.c.b16 %v4055, %v4046
  %v4254 = vpack.c.b16 %v4056, %v4047
  %v4255 = vpack.c.b16 %v4057, %v4048
  %v4256 = vpack.c.b16 %v4058, %v4049
  %v4257 = vpack.c.b16 %v4068, %v4059
  %v4258 = vpack.c.b16 %v4069, %v4060
  %v4259 = vpack.c.b16 %v4070, %v4061
  %v4260 = vpack.c.b16 %v4071, %v4062
  %v4261 = vpack.c.b16 %v4072, %v4063
  %v4262 = vpack.c.b16 %v4073, %v4064
  %v4263 = vpack.c.b16 %v4074, %v4065
  %v4264 = vpack.c.b16 %v4075, %v4066
  %v4265 = vpack.c.b16 %v4076, %v4067
  %v4266 = vpack.c.b16 %v4086, %v4077
  %v4267 = vpack.c.b16 %v4087, %v4078
  %v4268 = vpack.c.b16 %v4088, %v4079
  %v4269 = vpack.c.b16 %v4089, %v4080
  %v4270 = vpack.c.b16 %v4090, %v4081
  %v4271 = vpack.c.b16 %v4091, %v4082
  %v4272 = vpack.c.b16 %v4092, %v4083
  %v4273 = vpack.c.b16 %v4093, %v4084
  %v4274 = vpack.c.b16 %v4094, %v4085
  %v4275 = vpack.c.b16 %v4104, %v4095
  %v4276 = vpack.c.b16 %v4105, %v4096
  %v4277 = vpack.c.b16 %v4106, %v4097
  %v4278 = vpack.c.b16 %v4107, %v4098
  %v4279 = vpack.c.b16 %v4108, %v4099
  %v4280 = vpack.c.b16 %v4109, %v4100
  %v4281 = vpack.c.b16 %v4110, %v4101
  %v4282 = vpack.c.b16 %v4111, %v4102
  %v4283 = vpack.c.b16 %v4112, %v4103
  %v4284 = vpack.c.b16 %v4122, %v4113
  %v4285 = vpack.c.b16 %v4123, %v4114
  %v4286 = vpack.c.b16 %v4124, %v4115
  %v4287 = vpack.c.b16 %v4125, %v4116
  %v4288 = vpack.c.b16 %v4126, %v4117
  %v4289 = vpack.c.b16 %v4127, %v4118
  %v4290 = vpack.c.b16 %v4128, %v4119
  %v4291 = vpack.c.b16 %v4129, %v4120
  %v4292 = vpack.c.b16 %v4130, %v4121
  %v4293 = vpack.c.b16 %v4140, %v4131
  %v4294 = vpack.c.b16 %v4141, %v4132
  %v4295 = vpack.c.b16 %v4142, %v4133
  %v4296 = vpack.c.b16 %v4143, %v4134
  %v4297 = vpack.c.b16 %v4144, %v4135
  %v4298 = vpack.c.b16 %v4145, %v4136
  %v4299 = vpack.c.b16 %v4146, %v4137
  %v4300 = vpack.c.b16 %v4147, %v4138
  %v4301 = vpack.c.b16 %v4148, %v4139
  %v4302 = vpack.c.b16 %v4158, %v4149
  %v4303 = vpack.c.b16 %v4159, %v4150
  %v4304 = vpack.c.b16 %v4160, %v4151
  %v4305 = vpack.c.b16 %v4161, %v4152
  %v4306 = vpack.c.b16 %v4162, %v4153
  %v4307 = vpack.c.b16 %v4163, %v4154
  %v4308 = vpack.c.b16 %v4164, %v4155
  %v4309 = vpack.c.b16 %v4165, %v4156
  %v4310 = vpack.c.b16 %v4166, %v4157
  %v4599 = vunpack.c.l.b16 %v3575
  %v4600 = vunpack.c.l.b16 %v3576
  %v4601 = vunpack.c.l.b16 %v3577
  %v4602 = vunpack.c.l.b16 %v3578
  %v4603 = vunpack.c.l.b16 %v3579
  %v4604 = vunpack.c.l.b16 %v3580
  %v4605 = vunpack.c.l.b16 %v3581
  %v4606 = vunpack.c.l.b16 %v3582
  %v4607 = vunpack.c.l.b16 %v3583
  %v4608 = vunpack.c.l.b16 %v3584
  %v4609 = vunpack.c.l.b16 %v3585
  %v4610 = vunpack.c.l.b16 %v3586
  %v4611 = vunpack.c.l.b16 %v3587
  %v4612 = vunpack.c.l.b16 %v3588
  %v4613 = vunpack.c.l.b16 %v3589
  %v4614 = vunpack.c.l.b16 %v3590
  %v4615 = vunpack.c.l.b16 %v3591
  %v4616 = vunpack.c.l.b16 %v3592
  %v4617 = vunpack.c.l.b16 %v3593
  %v4618 = vunpack.c.l.b16 %v3594
  %v4619 = vunpack.c.l.b16 %v3595
  %v4620 = vunpack.c.l.b16 %v3596
  %v4621 = vunpack.c.l.b16 %v3597
  %v4622 = vunpack.c.l.b16 %v3598
  %v4623 = vunpack.c.l.b16 %v3599
  %v4624 = vunpack.c.l.b16 %v3600
  %v4625 = vunpack.c.l.b16 %v3601
  %v4626 = vunpack.c.l.b16 %v3602
  %v4627 = vunpack.c.l.b16 %v3603
  %v4628 = vunpack.c.l.b16 %v3604
  %v4629 = vunpack.c.l.b16 %v3605
  %v4630 = vunpack.c.l.b16 %v3606
  %v4631 = vunpack.c.l.b16 %v3607
  %v4632 = vunpack.c.l.b16 %v3608
  %v4633 = vunpack.c.l.b16 %v3609
  %v4634 = vunpack.c.l.b16 %v3610
  %v4635 = vunpack.c.l.b16 %v3611
  %v4636 = vunpack.c.l.b16 %v3612
  %v4637 = vunpack.c.l.b16 %v3613
  %v4638 = vunpack.c.l.b16 %v3614
  %v4639 = vunpack.c.l.b16 %v3615
  %v4640 = vunpack.c.l.b16 %v3616
  %v4641 = vunpack.c.l.b16 %v3617
  %v4642 = vunpack.c.l.b16 %v3618
  %v4643 = vunpack.c.l.b16 %v3619
  %v4644 = vunpack.c.l.b16 %v3620
  %v4645 = vunpack.c.l.b16 %v3621
  %v4646 = vunpack.c.l.b16 %v3622
  %v4647 = vunpack.c.l.b16 %v3623
  %v4648 = vunpack.c.l.b16 %v3624
  %v4649 = vunpack.c.l.b16 %v3625
  %v4650 = vunpack.c.l.b16 %v3626
  %v4651 = vunpack.c.l.b16 %v3627
  %v4652 = vunpack.c.l.b16 %v3628
  %v4653 = vunpack.c.l.b16 %v3629
  %v4654 = vunpack.c.l.b16 %v3630
  %v4655 = vunpack.c.l.b16 %v3631
  %v4656 = vunpack.c.l.b16 %v3632
  %v4657 = vunpack.c.l.b16 %v3633
  %v4658 = vunpack.c.l.b16 %v3634
  %v4659 = vunpack.c.l.b16 %v3635
  %v4660 = vunpack.c.l.b16 %v3636
  %v4661 = vunpack.c.l.b16 %v3637
  %v4662 = vunpack.c.l.b16 %v3638
  %v4663 = vunpack.c.l.b16 %v3639
  %v4664 = vunpack.c.l.b16 %v3640
  %v4665 = vunpack.c.l.b16 %v3641
  %v4666 = vunpack.c.l.b16 %v3642
  %v4667 = vunpack.c.l.b16 %v3643
  %v4668 = vunpack.c.l.b16 %v3644
  %v4669 = vunpack.c.l.b16 %v3645
  %v4670 = vunpack.c.l.b16 %v3646
  %v4671 = vunpack.c.l.b16 %v3647
  %v4672 = vunpack.c.l.b16 %v3648
  %v4673 = vunpack.c.l.b16 %v3649
  %v4674 = vunpack.c.l.b16 %v3650
  %v4675 = vunpack.c.l.b16 %v3651
  %v4676 = vunpack.c.l.b16 %v3652
  %v4677 = vunpack.c.l.b16 %v3653
  %v4678 = vunpack.c.l.b16 %v3654
  %v4679 = vunpack.c.l.b16 %v3655
  %v4680 = vunpack.c.l.b16 %v3656
  %v4681 = vunpack.c.l.b16 %v3657
  %v4682 = vunpack.c.l.b16 %v3658
  %v4683 = vunpack.c.l.b16 %v3659
  %v4684 = vunpack.c.l.b16 %v3660
  %v4685 = vunpack.c.l.b16 %v3661
  %v4686 = vunpack.c.l.b16 %v3662
  %v4687 = vunpack.c.l.b16 %v3663
  %v4688 = vunpack.c.l.b16 %v3664
  %v4689 = vunpack.c.l.b16 %v3665
  %v4690 = vunpack.c.l.b16 %v3666
  %v4691 = vunpack.c.l.b16 %v3667
  %v4692 = vunpack.c.l.b16 %v3668
  %v4693 = vunpack.c.l.b16 %v3669
  %v4694 = vunpack.c.l.b16 %v3670
  %v4695 = vunpack.c.l.b16 %v3671
  %v4696 = vunpack.c.l.b16 %v3672
  %v4697 = vunpack.c.l.b16 %v3673
  %v4698 = vunpack.c.l.b16 %v3674
  %v4699 = vunpack.c.l.b16 %v3675
  %v4700 = vunpack.c.l.b16 %v3676
  %v4701 = vunpack.c.l.b16 %v3677
  %v4702 = vunpack.c.l.b16 %v3678
  %v4703 = vunpack.c.l.b16 %v3679
  %v4704 = vunpack.c.l.b16 %v3680
  %v4705 = vunpack.c.l.b16 %v3681
  %v4706 = vunpack.c.l.b16 %v3682
  %v4707 = vunpack.c.l.b16 %v3683
  %v4708 = vunpack.c.l.b16 %v3684
  %v4709 = vunpack.c.l.b16 %v3685
  %v4710 = vunpack.c.l.b16 %v3686
  %v4711 = vunpack.c.l.b16 %v3687
  %v4712 = vunpack.c.l.b16 %v3688
  %v4713 = vunpack.c.l.b16 %v3689
  %v4714 = vunpack.c.l.b16 %v3690
  %v4715 = vunpack.c.l.b16 %v3691
  %v4716 = vunpack.c.l.b16 %v3692
  %v4717 = vunpack.c.l.b16 %v3693
  %v4718 = vunpack.c.l.b16 %v3694
  %v4719 = vunpack.c.l.b16 %v3695
  %v4720 = vunpack.c.l.b16 %v3696
  %v4721 = vunpack.c.l.b16 %v3697
  %v4722 = vunpack.c.l.b16 %v3698
  %v4723 = vunpack.c.l.b16 %v3699
  %v4724 = vunpack.c.l.b16 %v3700
  %v4725 = vunpack.c.l.b16 %v3701
  %v4726 = vunpack.c.l.b16 %v3702
  %v4727 = vunpack.c.l.b16 %v3703
  %v4728 = vunpack.c.l.b16 %v3704
  %v4729 = vunpack.c.l.b16 %v3705
  %v4730 = vunpack.c.l.b16 %v3706
  %v4731 = vunpack.c.l.b16 %v3707
  %v4732 = vunpack.c.l.b16 %v3708
  %v4733 = vunpack.c.l.b16 %v3709
  %v4734 = vunpack.c.l.b16 %v3710
  %v4735 = vunpack.c.l.b16 %v3711
  %v4736 = vunpack.c.l.b16 %v3712
  %v4737 = vunpack.c.l.b16 %v3713
  %v4738 = vunpack.c.l.b16 %v3714
  %v4739 = vunpack.c.l.b16 %v3715
  %v4740 = vunpack.c.l.b16 %v3716
  %v4741 = vunpack.c.l.b16 %v3717
  %v4742 = vunpack.c.l.b16 %v3718
  %v4743 = vpack.c.b16 %v4600, %v4599
  %v4744 = vpack.c.b16 %v4602, %v4601
  %v4745 = vpack.c.b16 %v4604, %v4603
  %v4746 = vpack.c.b16 %v4606, %v4605
  %v4747 = vpack.c.b16 %v4608, %v4607
  %v4748 = vpack.c.b16 %v4610, %v4609
  %v4749 = vpack.c.b16 %v4612, %v4611
  %v4750 = vpack.c.b16 %v4614, %v4613
  %v4751 = vpack.c.b16 %v4616, %v4615
  %v4752 = vpack.c.b16 %v4618, %v4617
  %v4753 = vpack.c.b16 %v4620, %v4619
  %v4754 = vpack.c.b16 %v4622, %v4621
  %v4755 = vpack.c.b16 %v4624, %v4623
  %v4756 = vpack.c.b16 %v4626, %v4625
  %v4757 = vpack.c.b16 %v4628, %v4627
  %v4758 = vpack.c.b16 %v4630, %v4629
  %v4759 = vpack.c.b16 %v4632, %v4631
  %v4760 = vpack.c.b16 %v4634, %v4633
  %v4761 = vpack.c.b16 %v4636, %v4635
  %v4762 = vpack.c.b16 %v4638, %v4637
  %v4763 = vpack.c.b16 %v4640, %v4639
  %v4764 = vpack.c.b16 %v4642, %v4641
  %v4765 = vpack.c.b16 %v4644, %v4643
  %v4766 = vpack.c.b16 %v4646, %v4645
  %v4767 = vpack.c.b16 %v4648, %v4647
  %v4768 = vpack.c.b16 %v4650, %v4649
  %v4769 = vpack.c.b16 %v4652, %v4651
  %v4770 = vpack.c.b16 %v4654, %v4653
  %v4771 = vpack.c.b16 %v4656, %v4655
  %v4772 = vpack.c.b16 %v4658, %v4657
  %v4773 = vpack.c.b16 %v4660, %v4659
  %v4774 = vpack.c.b16 %v4662, %v4661
  %v4775 = vpack.c.b16 %v4664, %v4663
  %v4776 = vpack.c.b16 %v4666, %v4665
  %v4777 = vpack.c.b16 %v4668, %v4667
  %v4778 = vpack.c.b16 %v4670, %v4669
  %v4779 = vpack.c.b16 %v4672, %v4671
  %v4780 = vpack.c.b16 %v4674, %v4673
  %v4781 = vpack.c.b16 %v4676, %v4675
  %v4782 = vpack.c.b16 %v4678, %v4677
  %v4783 = vpack.c.b16 %v4680, %v4679
  %v4784 = vpack.c.b16 %v4682, %v4681
  %v4785 = vpack.c.b16 %v4684, %v4683
  %v4786 = vpack.c.b16 %v4686, %v4685
  %v4787 = vpack.c.b16 %v4688, %v4687
  %v4788 = vpack.c.b16 %v4690, %v4689
  %v4789 = vpack.c.b16 %v4692, %v4691
  %v4790 = vpack.c.b16 %v4694, %v4693
  %v4791 = vpack.c.b16 %v4696, %v4695
  %v4792 = vpack.c.b16 %v4698, %v4697
  %v4793 = vpack.c.b16 %v4700, %v4699
  %v4794 = vpack.c.b16 %v4702, %v4701
  %v4795 = vpack.c.b16 %v4704, %v4703
  %v4796 = vpack.c.b16 %v4706, %v4705
  %v4797 = vpack.c.b16 %v4708, %v4707
  %v4798 = vpack.c.b16 %v4710, %v4709
  %v4799 = vpack.c.b16 %v4712, %v4711
  %v4800 = vpack.c.b16 %v4714, %v4713
  %v4801 = vpack.c.b16 %v4716, %v4715
  %v4802 = vpack.c.b16 %v4718, %v4717
  %v4803 = vpack.c.b16 %v4720, %v4719
  %v4804 = vpack.c.b16 %v4722, %v4721
  %v4805 = vpack.c.b16 %v4724, %v4723
  %v4806 = vpack.c.b16 %v4726, %v4725
  %v4807 = vpack.c.b16 %v4728, %v4727
  %v4808 = vpack.c.b16 %v4730, %v4729
  %v4809 = vpack.c.b16 %v4732, %v4731
  %v4810 = vpack.c.b16 %v4734, %v4733
  %v4811 = vpack.c.b16 %v4736, %v4735
  %v4812 = vpack.c.b16 %v4738, %v4737
  %v4813 = vpack.c.b16 %v4740, %v4739
  %v4814 = vpack.c.b16 %v4742, %v4741
  %4887 = vmatprep.subr.bf16.mxu0 0
  %4888 = vmatpush1.bf16.msra.mxu0 %v4750
  %4889 = vmatprep.subr.bf16.mxu0 0
  %4890 = vmatpush1.bf16.msra.mxu0 %v4749
  %4891 = vmatprep.subr.bf16.mxu0 0
  %4892 = vmatpush1.bf16.msra.mxu0 %v4748
  %4893 = vmatprep.subr.bf16.mxu0 0
  %4894 = vmatpush1.bf16.msra.mxu0 %v4747
  %4895 = vmatprep.subr.bf16.mxu0 0
  %4896 = vmatpush1.bf16.msra.mxu0 %v4746
  %4897 = vmatprep.subr.bf16.mxu0 0
  %4898 = vmatpush1.bf16.msra.mxu0 %v4745
  %4899 = vmatprep.subr.bf16.mxu0 0
  %4900 = vmatpush1.bf16.msra.mxu0 %v4744
  %4901 = vmatprep.subr.bf16.mxu0 0
  %4902 = vmatpush1.bf16.msra.mxu0 %v4743
  %4903 = vmatprep.subr.bf16.mxu0 0
  %4904 = vmatpush2.bf16.msra.mxu0 %v4758
  %4905 = vmatprep.subr.bf16.mxu0 0
  %4906 = vmatpush2.bf16.msra.mxu0 %v4757
  %4907 = vmatprep.subr.bf16.mxu0 0
  %4908 = vmatpush2.bf16.msra.mxu0 %v4756
  %4909 = vmatprep.subr.bf16.mxu0 0
  %4910 = vmatpush2.bf16.msra.mxu0 %v4755
  %4911 = vmatprep.subr.bf16.mxu0 0
  %4912 = vmatpush2.bf16.msra.mxu0 %v4754
  %4913 = vmatprep.subr.bf16.mxu0 0
  %4914 = vmatpush2.bf16.msra.mxu0 %v4753
  %4915 = vmatprep.subr.bf16.mxu0 0
  %4916 = vmatpush2.bf16.msra.mxu0 %v4752
  %4917 = vmatprep.subr.bf16.mxu0 0
  %4918 = vmatpush2.bf16.msra.mxu0 %v4751
  %4919 = vmatprep.mubr.bf16.mxu0 %v4168
  %4920 = vmatmul.mubr.bf16.gmra.mxu0 %v4167
  %v4921 = vpop.f32.mrf.mxu0
  %v4922 = vadd.f32 0.0, %v4921
  %v4923 = vpop.f32.mrf.mxu0
  %v4924 = vpop.f32.mrf.mxu0
  %v4925 = vadd.f32 0.0, %v4924
  %v4926 = vpop.f32.mrf.mxu0
  %4927 = vmatprep.mubr.bf16.mxu0 %v4177
  %4928 = vmatmul.mubr.bf16.gmra.mxu0 %v4176
  %v4929 = vpop.f32.mrf.mxu0
  %v4930 = vadd.f32 0.0, %v4929
  %v4931 = vpop.f32.mrf.mxu0
  %v4932 = vpop.f32.mrf.mxu0
  %v4933 = vadd.f32 0.0, %v4932
  %v4934 = vpop.f32.mrf.mxu0
  %4935 = vmatprep.mubr.bf16.mxu0 %v4186
  %4936 = vmatmul.mubr.bf16.gmra.mxu0 %v4185
  %v4937 = vpop.f32.mrf.mxu0
  %v4938 = vadd.f32 0.0, %v4937
  %v4939 = vpop.f32.mrf.mxu0
  %v4940 = vpop.f32.mrf.mxu0
  %v4941 = vadd.f32 0.0, %v4940
  %v4942 = vpop.f32.mrf.mxu0
  %4943 = vmatprep.mubr.bf16.mxu0 %v4195
  %4944 = vmatmul.mubr.bf16.gmra.mxu0 %v4194
  %v4945 = vpop.f32.mrf.mxu0
  %v4946 = vadd.f32 0.0, %v4945
  %v4947 = vpop.f32.mrf.mxu0
  %v4948 = vpop.f32.mrf.mxu0
  %v4949 = vadd.f32 0.0, %v4948
  %v4950 = vpop.f32.mrf.mxu0
  %4951 = vmatprep.mubr.bf16.mxu0 %v4204
  %4952 = vmatmul.mubr.bf16.gmra.mxu0 %v4203
  %v4953 = vpop.f32.mrf.mxu0
  %v4954 = vadd.f32 0.0, %v4953
  %v4955 = vpop.f32.mrf.mxu0
  %v4956 = vpop.f32.mrf.mxu0
  %v4957 = vadd.f32 0.0, %v4956
  %v4958 = vpop.f32.mrf.mxu0
  %4959 = vmatprep.mubr.bf16.mxu0 %v4213
  %4960 = vmatmul.mubr.bf16.gmra.mxu0 %v4212
  %v4961 = vpop.f32.mrf.mxu0
  %v4962 = vadd.f32 0.0, %v4961
  %v4963 = vpop.f32.mrf.mxu0
  %v4964 = vpop.f32.mrf.mxu0
  %v4965 = vadd.f32 0.0, %v4964
  %v4966 = vpop.f32.mrf.mxu0
  %4967 = vmatprep.mubr.bf16.mxu0 %v4222
  %4968 = vmatmul.mubr.bf16.gmra.mxu0 %v4221
  %v4969 = vpop.f32.mrf.mxu0
  %v4970 = vadd.f32 0.0, %v4969
  %v4971 = vpop.f32.mrf.mxu0
  %v4972 = vpop.f32.mrf.mxu0
  %v4973 = vadd.f32 0.0, %v4972
  %v4974 = vpop.f32.mrf.mxu0
  %4975 = vmatprep.mubr.bf16.mxu0 %v4231
  %4976 = vmatmul.mubr.bf16.gmra.mxu0 %v4230
  %v4977 = vpop.f32.mrf.mxu0
  %v4978 = vadd.f32 0.0, %v4977
  %v4979 = vpop.f32.mrf.mxu0
  %v4980 = vpop.f32.mrf.mxu0
  %v4981 = vadd.f32 0.0, %v4980
  %v4982 = vpop.f32.mrf.mxu0
  %4983 = vmatprep.mubr.bf16.mxu0 %v4240
  %4984 = vmatmul.mubr.bf16.gmra.mxu0 %v4239
  %v4985 = vpop.f32.mrf.mxu0
  %v4986 = vadd.f32 0.0, %v4985
  %v4987 = vpop.f32.mrf.mxu0
  %v4988 = vpop.f32.mrf.mxu0
  %v4989 = vadd.f32 0.0, %v4988
  %v4990 = vpop.f32.mrf.mxu0
  %4991 = vmatprep.mubr.bf16.mxu0 %v4249
  %4992 = vmatmul.mubr.bf16.gmra.mxu0 %v4248
  %v4993 = vpop.f32.mrf.mxu0
  %v4994 = vadd.f32 0.0, %v4993
  %v4995 = vpop.f32.mrf.mxu0
  %v4996 = vpop.f32.mrf.mxu0
  %v4997 = vadd.f32 0.0, %v4996
  %v4998 = vpop.f32.mrf.mxu0
  %4999 = vmatprep.mubr.bf16.mxu0 %v4258
  %5000 = vmatmul.mubr.bf16.gmra.mxu0 %v4257
  %v5001 = vpop.f32.mrf.mxu0
  %v5002 = vadd.f32 0.0, %v5001
  %v5003 = vpop.f32.mrf.mxu0
  %v5004 = vpop.f32.mrf.mxu0
  %v5005 = vadd.f32 0.0, %v5004
  %v5006 = vpop.f32.mrf.mxu0
  %5007 = vmatprep.mubr.bf16.mxu0 %v4267
  %5008 = vmatmul.mubr.bf16.gmra.mxu0 %v4266
  %v5009 = vpop.f32.mrf.mxu0
  %v5010 = vadd.f32 0.0, %v5009
  %v5011 = vpop.f32.mrf.mxu0
  %v5012 = vpop.f32.mrf.mxu0
  %v5013 = vadd.f32 0.0, %v5012
  %v5014 = vpop.f32.mrf.mxu0
  %5015 = vmatprep.mubr.bf16.mxu0 %v4276
  %5016 = vmatmul.mubr.bf16.gmra.mxu0 %v4275
  %v5017 = vpop.f32.mrf.mxu0
  %v5018 = vadd.f32 0.0, %v5017
  %v5019 = vpop.f32.mrf.mxu0
  %v5020 = vpop.f32.mrf.mxu0
  %v5021 = vadd.f32 0.0, %v5020
  %v5022 = vpop.f32.mrf.mxu0
  %5023 = vmatprep.mubr.bf16.mxu0 %v4285
  %5024 = vmatmul.mubr.bf16.gmra.mxu0 %v4284
  %v5025 = vpop.f32.mrf.mxu0
  %v5026 = vadd.f32 0.0, %v5025
  %v5027 = vpop.f32.mrf.mxu0
  %v5028 = vpop.f32.mrf.mxu0
  %v5029 = vadd.f32 0.0, %v5028
  %v5030 = vpop.f32.mrf.mxu0
  %5031 = vmatprep.mubr.bf16.mxu0 %v4294
  %5032 = vmatmul.mubr.bf16.gmra.mxu0 %v4293
  %v5033 = vpop.f32.mrf.mxu0
  %v5034 = vadd.f32 0.0, %v5033
  %v5035 = vpop.f32.mrf.mxu0
  %v5036 = vpop.f32.mrf.mxu0
  %v5037 = vadd.f32 0.0, %v5036
  %v5038 = vpop.f32.mrf.mxu0
  %5039 = vmatprep.mubr.bf16.mxu0 %v4303
  %5040 = vmatmul.mubr.bf16.gmra.mxu0 %v4302
  %v5041 = vpop.f32.mrf.mxu0
  %v5042 = vadd.f32 0.0, %v5041
  %v5043 = vpop.f32.mrf.mxu0
  %v5044 = vpop.f32.mrf.mxu0
  %v5045 = vadd.f32 0.0, %v5044
  %v5046 = vpop.f32.mrf.mxu0
  %5047 = vdwg.mxu0
  %5048 = vmatprep.subr.bf16.mxu0 0
  %5049 = vmatpush1.bf16.msra.mxu0 %v4766
  %5050 = vmatprep.subr.bf16.mxu0 0
  %5051 = vmatpush1.bf16.msra.mxu0 %v4765
  %5052 = vmatprep.subr.bf16.mxu0 0
  %5053 = vmatpush1.bf16.msra.mxu0 %v4764
  %5054 = vmatprep.subr.bf16.mxu0 0
  %5055 = vmatpush1.bf16.msra.mxu0 %v4763
  %5056 = vmatprep.subr.bf16.mxu0 0
  %5057 = vmatpush1.bf16.msra.mxu0 %v4762
  %5058 = vmatprep.subr.bf16.mxu0 0
  %5059 = vmatpush1.bf16.msra.mxu0 %v4761
  %5060 = vmatprep.subr.bf16.mxu0 0
  %5061 = vmatpush1.bf16.msra.mxu0 %v4760
  %5062 = vmatprep.subr.bf16.mxu0 0
  %5063 = vmatpush1.bf16.msra.mxu0 %v4759
  %5064 = vmatprep.subr.bf16.mxu0 0
  %5065 = vmatpush2.bf16.msra.mxu0 %v4774
  %5066 = vmatprep.subr.bf16.mxu0 0
  %5067 = vmatpush2.bf16.msra.mxu0 %v4773
  %5068 = vmatprep.subr.bf16.mxu0 0
  %5069 = vmatpush2.bf16.msra.mxu0 %v4772
  %5070 = vmatprep.subr.bf16.mxu0 0
  %5071 = vmatpush2.bf16.msra.mxu0 %v4771
  %5072 = vmatprep.subr.bf16.mxu0 0
  %5073 = vmatpush2.bf16.msra.mxu0 %v4770
  %5074 = vmatprep.subr.bf16.mxu0 0
  %5075 = vmatpush2.bf16.msra.mxu0 %v4769
  %5076 = vmatprep.subr.bf16.mxu0 0
  %5077 = vmatpush2.bf16.msra.mxu0 %v4768
  %5078 = vmatprep.subr.bf16.mxu0 0
  %5079 = vmatpush2.bf16.msra.mxu0 %v4767
  %5080 = vmatprep.mubr.bf16.mxu0 %v4170
  %5081 = vmatmul.mubr.bf16.gmra.mxu0 %v4169
  %v5082 = vpop.f32.mrf.mxu0
  %v5083 = vadd.f32 %v4922, %v5082
  %v5084 = vpop.f32.mrf.mxu0
  %v5085 = vpop.f32.mrf.mxu0
  %v5086 = vadd.f32 %v4925, %v5085
  %v5087 = vpop.f32.mrf.mxu0
  %5088 = vmatprep.mubr.bf16.mxu0 %v4179
  %5089 = vmatmul.mubr.bf16.gmra.mxu0 %v4178
  %v5090 = vpop.f32.mrf.mxu0
  %v5091 = vadd.f32 %v4930, %v5090
  %v5092 = vpop.f32.mrf.mxu0
  %v5093 = vpop.f32.mrf.mxu0
  %v5094 = vadd.f32 %v4933, %v5093
  %v5095 = vpop.f32.mrf.mxu0
  %5096 = vmatprep.mubr.bf16.mxu0 %v4188
  %5097 = vmatmul.mubr.bf16.gmra.mxu0 %v4187
  %v5098 = vpop.f32.mrf.mxu0
  %v5099 = vadd.f32 %v4938, %v5098
  %v5100 = vpop.f32.mrf.mxu0
  %v5101 = vpop.f32.mrf.mxu0
  %v5102 = vadd.f32 %v4941, %v5101
  %v5103 = vpop.f32.mrf.mxu0
  %5104 = vmatprep.mubr.bf16.mxu0 %v4197
  %5105 = vmatmul.mubr.bf16.gmra.mxu0 %v4196
  %v5106 = vpop.f32.mrf.mxu0
  %v5107 = vadd.f32 %v4946, %v5106
  %v5108 = vpop.f32.mrf.mxu0
  %v5109 = vpop.f32.mrf.mxu0
  %v5110 = vadd.f32 %v4949, %v5109
  %v5111 = vpop.f32.mrf.mxu0
  %5112 = vmatprep.mubr.bf16.mxu0 %v4206
  %5113 = vmatmul.mubr.bf16.gmra.mxu0 %v4205
  %v5114 = vpop.f32.mrf.mxu0
  %v5115 = vadd.f32 %v4954, %v5114
  %v5116 = vpop.f32.mrf.mxu0
  %v5117 = vpop.f32.mrf.mxu0
  %v5118 = vadd.f32 %v4957, %v5117
  %v5119 = vpop.f32.mrf.mxu0
  %5120 = vmatprep.mubr.bf16.mxu0 %v4215
  %5121 = vmatmul.mubr.bf16.gmra.mxu0 %v4214
  %v5122 = vpop.f32.mrf.mxu0
  %v5123 = vadd.f32 %v4962, %v5122
  %v5124 = vpop.f32.mrf.mxu0
  %v5125 = vpop.f32.mrf.mxu0
  %v5126 = vadd.f32 %v4965, %v5125
  %v5127 = vpop.f32.mrf.mxu0
  %5128 = vmatprep.mubr.bf16.mxu0 %v4224
  %5129 = vmatmul.mubr.bf16.gmra.mxu0 %v4223
  %v5130 = vpop.f32.mrf.mxu0
  %v5131 = vadd.f32 %v4970, %v5130
  %v5132 = vpop.f32.mrf.mxu0
  %v5133 = vpop.f32.mrf.mxu0
  %v5134 = vadd.f32 %v4973, %v5133
  %v5135 = vpop.f32.mrf.mxu0
  %5136 = vmatprep.mubr.bf16.mxu0 %v4233
  %5137 = vmatmul.mubr.bf16.gmra.mxu0 %v4232
  %v5138 = vpop.f32.mrf.mxu0
  %v5139 = vadd.f32 %v4978, %v5138
  %v5140 = vpop.f32.mrf.mxu0
  %v5141 = vpop.f32.mrf.mxu0
  %v5142 = vadd.f32 %v4981, %v5141
  %v5143 = vpop.f32.mrf.mxu0
  %5144 = vmatprep.mubr.bf16.mxu0 %v4242
  %5145 = vmatmul.mubr.bf16.gmra.mxu0 %v4241
  %v5146 = vpop.f32.mrf.mxu0
  %v5147 = vadd.f32 %v4986, %v5146
  %v5148 = vpop.f32.mrf.mxu0
  %v5149 = vpop.f32.mrf.mxu0
  %v5150 = vadd.f32 %v4989, %v5149
  %v5151 = vpop.f32.mrf.mxu0
  %5152 = vmatprep.mubr.bf16.mxu0 %v4251
  %5153 = vmatmul.mubr.bf16.gmra.mxu0 %v4250
  %v5154 = vpop.f32.mrf.mxu0
  %v5155 = vadd.f32 %v4994, %v5154
  %v5156 = vpop.f32.mrf.mxu0
  %v5157 = vpop.f32.mrf.mxu0
  %v5158 = vadd.f32 %v4997, %v5157
  %v5159 = vpop.f32.mrf.mxu0
  %5160 = vmatprep.mubr.bf16.mxu0 %v4260
  %5161 = vmatmul.mubr.bf16.gmra.mxu0 %v4259
  %v5162 = vpop.f32.mrf.mxu0
  %v5163 = vadd.f32 %v5002, %v5162
  %v5164 = vpop.f32.mrf.mxu0
  %v5165 = vpop.f32.mrf.mxu0
  %v5166 = vadd.f32 %v5005, %v5165
  %v5167 = vpop.f32.mrf.mxu0
  %5168 = vmatprep.mubr.bf16.mxu0 %v4269
  %5169 = vmatmul.mubr.bf16.gmra.mxu0 %v4268
  %v5170 = vpop.f32.mrf.mxu0
  %v5171 = vadd.f32 %v5010, %v5170
  %v5172 = vpop.f32.mrf.mxu0
  %v5173 = vpop.f32.mrf.mxu0
  %v5174 = vadd.f32 %v5013, %v5173
  %v5175 = vpop.f32.mrf.mxu0
  %5176 = vmatprep.mubr.bf16.mxu0 %v4278
  %5177 = vmatmul.mubr.bf16.gmra.mxu0 %v4277
  %v5178 = vpop.f32.mrf.mxu0
  %v5179 = vadd.f32 %v5018, %v5178
  %v5180 = vpop.f32.mrf.mxu0
  %v5181 = vpop.f32.mrf.mxu0
  %v5182 = vadd.f32 %v5021, %v5181
  %v5183 = vpop.f32.mrf.mxu0
  %5184 = vmatprep.mubr.bf16.mxu0 %v4287
  %5185 = vmatmul.mubr.bf16.gmra.mxu0 %v4286
  %v5186 = vpop.f32.mrf.mxu0
  %v5187 = vadd.f32 %v5026, %v5186
  %v5188 = vpop.f32.mrf.mxu0
  %v5189 = vpop.f32.mrf.mxu0
  %v5190 = vadd.f32 %v5029, %v5189
  %v5191 = vpop.f32.mrf.mxu0
  %5192 = vmatprep.mubr.bf16.mxu0 %v4296
  %5193 = vmatmul.mubr.bf16.gmra.mxu0 %v4295
  %v5194 = vpop.f32.mrf.mxu0
  %v5195 = vadd.f32 %v5034, %v5194
  %v5196 = vpop.f32.mrf.mxu0
  %v5197 = vpop.f32.mrf.mxu0
  %v5198 = vadd.f32 %v5037, %v5197
  %v5199 = vpop.f32.mrf.mxu0
  %5200 = vmatprep.mubr.bf16.mxu0 %v4305
  %5201 = vmatmul.mubr.bf16.gmra.mxu0 %v4304
  %v5202 = vpop.f32.mrf.mxu0
  %v5203 = vadd.f32 %v5042, %v5202
  %v5204 = vpop.f32.mrf.mxu0
  %v5205 = vpop.f32.mrf.mxu0
  %v5206 = vadd.f32 %v5045, %v5205
  %v5207 = vpop.f32.mrf.mxu0
  %5208 = vdwg.mxu0
  %5209 = vmatprep.subr.bf16.mxu0 0
  %5210 = vmatpush1.bf16.msra.mxu0 %v4782
  %5211 = vmatprep.subr.bf16.mxu0 0
  %5212 = vmatpush1.bf16.msra.mxu0 %v4781
  %5213 = vmatprep.subr.bf16.mxu0 0
  %5214 = vmatpush1.bf16.msra.mxu0 %v4780
  %5215 = vmatprep.subr.bf16.mxu0 0
  %5216 = vmatpush1.bf16.msra.mxu0 %v4779
  %5217 = vmatprep.subr.bf16.mxu0 0
  %5218 = vmatpush1.bf16.msra.mxu0 %v4778
  %5219 = vmatprep.subr.bf16.mxu0 0
  %5220 = vmatpush1.bf16.msra.mxu0 %v4777
  %5221 = vmatprep.subr.bf16.mxu0 0
  %5222 = vmatpush1.bf16.msra.mxu0 %v4776
  %5223 = vmatprep.subr.bf16.mxu0 0
  %5224 = vmatpush1.bf16.msra.mxu0 %v4775
  %5225 = vmatprep.subr.bf16.mxu0 0
  %5226 = vmatpush2.bf16.msra.mxu0 %v4790
  %5227 = vmatprep.subr.bf16.mxu0 0
  %5228 = vmatpush2.bf16.msra.mxu0 %v4789
  %5229 = vmatprep.subr.bf16.mxu0 0
  %5230 = vmatpush2.bf16.msra.mxu0 %v4788
  %5231 = vmatprep.subr.bf16.mxu0 0
  %5232 = vmatpush2.bf16.msra.mxu0 %v4787
  %5233 = vmatprep.subr.bf16.mxu0 0
  %5234 = vmatpush2.bf16.msra.mxu0 %v4786
  %5235 = vmatprep.subr.bf16.mxu0 0
  %5236 = vmatpush2.bf16.msra.mxu0 %v4785
  %5237 = vmatprep.subr.bf16.mxu0 0
  %5238 = vmatpush2.bf16.msra.mxu0 %v4784
  %5239 = vmatprep.subr.bf16.mxu0 0
  %5240 = vmatpush2.bf16.msra.mxu0 %v4783
  %5241 = vmatprep.mubr.bf16.mxu0 %v4172
  %5242 = vmatmul.mubr.bf16.gmra.mxu0 %v4171
  %v5243 = vpop.f32.mrf.mxu0
  %v5244 = vadd.f32 %v5083, %v5243
  %v5245 = vpop.f32.mrf.mxu0
  %v5246 = vpop.f32.mrf.mxu0
  %v5247 = vadd.f32 %v5086, %v5246
  %v5248 = vpop.f32.mrf.mxu0
  %5249 = vmatprep.mubr.bf16.mxu0 %v4181
  %5250 = vmatmul.mubr.bf16.gmra.mxu0 %v4180
  %v5251 = vpop.f32.mrf.mxu0
  %v5252 = vadd.f32 %v5091, %v5251
  %v5253 = vpop.f32.mrf.mxu0
  %v5254 = vpop.f32.mrf.mxu0
  %v5255 = vadd.f32 %v5094, %v5254
  %v5256 = vpop.f32.mrf.mxu0
  %5257 = vmatprep.mubr.bf16.mxu0 %v4190
  %5258 = vmatmul.mubr.bf16.gmra.mxu0 %v4189
  %v5259 = vpop.f32.mrf.mxu0
  %v5260 = vadd.f32 %v5099, %v5259
  %v5261 = vpop.f32.mrf.mxu0
  %v5262 = vpop.f32.mrf.mxu0
  %v5263 = vadd.f32 %v5102, %v5262
  %v5264 = vpop.f32.mrf.mxu0
  %5265 = vmatprep.mubr.bf16.mxu0 %v4199
  %5266 = vmatmul.mubr.bf16.gmra.mxu0 %v4198
  %v5267 = vpop.f32.mrf.mxu0
  %v5268 = vadd.f32 %v5107, %v5267
  %v5269 = vpop.f32.mrf.mxu0
  %v5270 = vpop.f32.mrf.mxu0
  %v5271 = vadd.f32 %v5110, %v5270
  %v5272 = vpop.f32.mrf.mxu0
  %5273 = vmatprep.mubr.bf16.mxu0 %v4208
  %5274 = vmatmul.mubr.bf16.gmra.mxu0 %v4207
  %v5275 = vpop.f32.mrf.mxu0
  %v5276 = vadd.f32 %v5115, %v5275
  %v5277 = vpop.f32.mrf.mxu0
  %v5278 = vpop.f32.mrf.mxu0
  %v5279 = vadd.f32 %v5118, %v5278
  %v5280 = vpop.f32.mrf.mxu0
  %5281 = vmatprep.mubr.bf16.mxu0 %v4217
  %5282 = vmatmul.mubr.bf16.gmra.mxu0 %v4216
  %v5283 = vpop.f32.mrf.mxu0
  %v5284 = vadd.f32 %v5123, %v5283
  %v5285 = vpop.f32.mrf.mxu0
  %v5286 = vpop.f32.mrf.mxu0
  %v5287 = vadd.f32 %v5126, %v5286
  %v5288 = vpop.f32.mrf.mxu0
  %5289 = vmatprep.mubr.bf16.mxu0 %v4226
  %5290 = vmatmul.mubr.bf16.gmra.mxu0 %v4225
  %v5291 = vpop.f32.mrf.mxu0
  %v5292 = vadd.f32 %v5131, %v5291
  %v5293 = vpop.f32.mrf.mxu0
  %v5294 = vpop.f32.mrf.mxu0
  %v5295 = vadd.f32 %v5134, %v5294
  %v5296 = vpop.f32.mrf.mxu0
  %5297 = vmatprep.mubr.bf16.mxu0 %v4235
  %5298 = vmatmul.mubr.bf16.gmra.mxu0 %v4234
  %v5299 = vpop.f32.mrf.mxu0
  %v5300 = vadd.f32 %v5139, %v5299
  %v5301 = vpop.f32.mrf.mxu0
  %v5302 = vpop.f32.mrf.mxu0
  %v5303 = vadd.f32 %v5142, %v5302
  %v5304 = vpop.f32.mrf.mxu0
  %5305 = vmatprep.mubr.bf16.mxu0 %v4244
  %5306 = vmatmul.mubr.bf16.gmra.mxu0 %v4243
  %v5307 = vpop.f32.mrf.mxu0
  %v5308 = vadd.f32 %v5147, %v5307
  %v5309 = vpop.f32.mrf.mxu0
  %v5310 = vpop.f32.mrf.mxu0
  %v5311 = vadd.f32 %v5150, %v5310
  %v5312 = vpop.f32.mrf.mxu0
  %5313 = vmatprep.mubr.bf16.mxu0 %v4253
  %5314 = vmatmul.mubr.bf16.gmra.mxu0 %v4252
  %v5315 = vpop.f32.mrf.mxu0
  %v5316 = vadd.f32 %v5155, %v5315
  %v5317 = vpop.f32.mrf.mxu0
  %v5318 = vpop.f32.mrf.mxu0
  %v5319 = vadd.f32 %v5158, %v5318
  %v5320 = vpop.f32.mrf.mxu0
  %5321 = vmatprep.mubr.bf16.mxu0 %v4262
  %5322 = vmatmul.mubr.bf16.gmra.mxu0 %v4261
  %v5323 = vpop.f32.mrf.mxu0
  %v5324 = vadd.f32 %v5163, %v5323
  %v5325 = vpop.f32.mrf.mxu0
  %v5326 = vpop.f32.mrf.mxu0
  %v5327 = vadd.f32 %v5166, %v5326
  %v5328 = vpop.f32.mrf.mxu0
  %5329 = vmatprep.mubr.bf16.mxu0 %v4271
  %5330 = vmatmul.mubr.bf16.gmra.mxu0 %v4270
  %v5331 = vpop.f32.mrf.mxu0
  %v5332 = vadd.f32 %v5171, %v5331
  %v5333 = vpop.f32.mrf.mxu0
  %v5334 = vpop.f32.mrf.mxu0
  %v5335 = vadd.f32 %v5174, %v5334
  %v5336 = vpop.f32.mrf.mxu0
  %5337 = vmatprep.mubr.bf16.mxu0 %v4280
  %5338 = vmatmul.mubr.bf16.gmra.mxu0 %v4279
  %v5339 = vpop.f32.mrf.mxu0
  %v5340 = vadd.f32 %v5179, %v5339
  %v5341 = vpop.f32.mrf.mxu0
  %v5342 = vpop.f32.mrf.mxu0
  %v5343 = vadd.f32 %v5182, %v5342
  %v5344 = vpop.f32.mrf.mxu0
  %5345 = vmatprep.mubr.bf16.mxu0 %v4289
  %5346 = vmatmul.mubr.bf16.gmra.mxu0 %v4288
  %v5347 = vpop.f32.mrf.mxu0
  %v5348 = vadd.f32 %v5187, %v5347
  %v5349 = vpop.f32.mrf.mxu0
  %v5350 = vpop.f32.mrf.mxu0
  %v5351 = vadd.f32 %v5190, %v5350
  %v5352 = vpop.f32.mrf.mxu0
  %5353 = vmatprep.mubr.bf16.mxu0 %v4298
  %5354 = vmatmul.mubr.bf16.gmra.mxu0 %v4297
  %v5355 = vpop.f32.mrf.mxu0
  %v5356 = vadd.f32 %v5195, %v5355
  %v5357 = vpop.f32.mrf.mxu0
  %v5358 = vpop.f32.mrf.mxu0
  %v5359 = vadd.f32 %v5198, %v5358
  %v5360 = vpop.f32.mrf.mxu0
  %5361 = vmatprep.mubr.bf16.mxu0 %v4307
  %5362 = vmatmul.mubr.bf16.gmra.mxu0 %v4306
  %v5363 = vpop.f32.mrf.mxu0
  %v5364 = vadd.f32 %v5203, %v5363
  %v5365 = vpop.f32.mrf.mxu0
  %v5366 = vpop.f32.mrf.mxu0
  %v5367 = vadd.f32 %v5206, %v5366
  %v5368 = vpop.f32.mrf.mxu0
  %5369 = vdwg.mxu0
  %5370 = vmatprep.subr.bf16.mxu0 0
  %5371 = vmatpush1.bf16.msra.mxu0 %v4798
  %5372 = vmatprep.subr.bf16.mxu0 0
  %5373 = vmatpush1.bf16.msra.mxu0 %v4797
  %5374 = vmatprep.subr.bf16.mxu0 0
  %5375 = vmatpush1.bf16.msra.mxu0 %v4796
  %5376 = vmatprep.subr.bf16.mxu0 0
  %5377 = vmatpush1.bf16.msra.mxu0 %v4795
  %5378 = vmatprep.subr.bf16.mxu0 0
  %5379 = vmatpush1.bf16.msra.mxu0 %v4794
  %5380 = vmatprep.subr.bf16.mxu0 0
  %5381 = vmatpush1.bf16.msra.mxu0 %v4793
  %5382 = vmatprep.subr.bf16.mxu0 0
  %5383 = vmatpush1.bf16.msra.mxu0 %v4792
  %5384 = vmatprep.subr.bf16.mxu0 0
  %5385 = vmatpush1.bf16.msra.mxu0 %v4791
  %5386 = vmatprep.subr.bf16.mxu0 0
  %5387 = vmatpush2.bf16.msra.mxu0 %v4806
  %5388 = vmatprep.subr.bf16.mxu0 0
  %5389 = vmatpush2.bf16.msra.mxu0 %v4805
  %5390 = vmatprep.subr.bf16.mxu0 0
  %5391 = vmatpush2.bf16.msra.mxu0 %v4804
  %5392 = vmatprep.subr.bf16.mxu0 0
  %5393 = vmatpush2.bf16.msra.mxu0 %v4803
  %5394 = vmatprep.subr.bf16.mxu0 0
  %5395 = vmatpush2.bf16.msra.mxu0 %v4802
  %5396 = vmatprep.subr.bf16.mxu0 0
  %5397 = vmatpush2.bf16.msra.mxu0 %v4801
  %5398 = vmatprep.subr.bf16.mxu0 0
  %5399 = vmatpush2.bf16.msra.mxu0 %v4800
  %5400 = vmatprep.subr.bf16.mxu0 0
  %5401 = vmatpush2.bf16.msra.mxu0 %v4799
  %5402 = vmatprep.mubr.bf16.mxu0 %v4174
  %5403 = vmatmul.mubr.bf16.gmra.mxu0 %v4173
  %v5404 = vpop.f32.mrf.mxu0
  %v5405 = vadd.f32 %v5244, %v5404
  %v5406 = vpop.f32.mrf.mxu0
  %v5407 = vpop.f32.mrf.mxu0
  %v5408 = vadd.f32 %v5247, %v5407
  %v5409 = vpop.f32.mrf.mxu0
  %5410 = vmatprep.mubr.bf16.mxu0 %v4183
  %5411 = vmatmul.mubr.bf16.gmra.mxu0 %v4182
  %v5412 = vpop.f32.mrf.mxu0
  %v5413 = vadd.f32 %v5252, %v5412
  %v5414 = vpop.f32.mrf.mxu0
  %v5415 = vpop.f32.mrf.mxu0
  %v5416 = vadd.f32 %v5255, %v5415
  %v5417 = vpop.f32.mrf.mxu0
  %5418 = vmatprep.mubr.bf16.mxu0 %v4192
  %5419 = vmatmul.mubr.bf16.gmra.mxu0 %v4191
  %v5420 = vpop.f32.mrf.mxu0
  %v5421 = vadd.f32 %v5260, %v5420
  %v5422 = vpop.f32.mrf.mxu0
  %v5423 = vpop.f32.mrf.mxu0
  %v5424 = vadd.f32 %v5263, %v5423
  %v5425 = vpop.f32.mrf.mxu0
  %5426 = vmatprep.mubr.bf16.mxu0 %v4201
  %5427 = vmatmul.mubr.bf16.gmra.mxu0 %v4200
  %v5428 = vpop.f32.mrf.mxu0
  %v5429 = vadd.f32 %v5268, %v5428
  %v5430 = vpop.f32.mrf.mxu0
  %v5431 = vpop.f32.mrf.mxu0
  %v5432 = vadd.f32 %v5271, %v5431
  %v5433 = vpop.f32.mrf.mxu0
  %5434 = vmatprep.mubr.bf16.mxu0 %v4210
  %5435 = vmatmul.mubr.bf16.gmra.mxu0 %v4209
  %v5436 = vpop.f32.mrf.mxu0
  %v5437 = vadd.f32 %v5276, %v5436
  %v5438 = vpop.f32.mrf.mxu0
  %v5439 = vpop.f32.mrf.mxu0
  %v5440 = vadd.f32 %v5279, %v5439
  %v5441 = vpop.f32.mrf.mxu0
  %5442 = vmatprep.mubr.bf16.mxu0 %v4219
  %5443 = vmatmul.mubr.bf16.gmra.mxu0 %v4218
  %v5444 = vpop.f32.mrf.mxu0
  %v5445 = vadd.f32 %v5284, %v5444
  %v5446 = vpop.f32.mrf.mxu0
  %v5447 = vpop.f32.mrf.mxu0
  %v5448 = vadd.f32 %v5287, %v5447
  %v5449 = vpop.f32.mrf.mxu0
  %5450 = vmatprep.mubr.bf16.mxu0 %v4228
  %5451 = vmatmul.mubr.bf16.gmra.mxu0 %v4227
  %v5452 = vpop.f32.mrf.mxu0
  %v5453 = vadd.f32 %v5292, %v5452
  %v5454 = vpop.f32.mrf.mxu0
  %v5455 = vpop.f32.mrf.mxu0
  %v5456 = vadd.f32 %v5295, %v5455
  %v5457 = vpop.f32.mrf.mxu0
  %5458 = vmatprep.mubr.bf16.mxu0 %v4237
  %5459 = vmatmul.mubr.bf16.gmra.mxu0 %v4236
  %v5460 = vpop.f32.mrf.mxu0
  %v5461 = vadd.f32 %v5300, %v5460
  %v5462 = vpop.f32.mrf.mxu0
  %v5463 = vpop.f32.mrf.mxu0
  %v5464 = vadd.f32 %v5303, %v5463
  %v5465 = vpop.f32.mrf.mxu0
  %5466 = vmatprep.mubr.bf16.mxu0 %v4246
  %5467 = vmatmul.mubr.bf16.gmra.mxu0 %v4245
  %v5468 = vpop.f32.mrf.mxu0
  %v5469 = vadd.f32 %v5308, %v5468
  %v5470 = vpop.f32.mrf.mxu0
  %v5471 = vpop.f32.mrf.mxu0
  %v5472 = vadd.f32 %v5311, %v5471
  %v5473 = vpop.f32.mrf.mxu0
  %5474 = vmatprep.mubr.bf16.mxu0 %v4255
  %5475 = vmatmul.mubr.bf16.gmra.mxu0 %v4254
  %v5476 = vpop.f32.mrf.mxu0
  %v5477 = vadd.f32 %v5316, %v5476
  %v5478 = vpop.f32.mrf.mxu0
  %v5479 = vpop.f32.mrf.mxu0
  %v5480 = vadd.f32 %v5319, %v5479
  %v5481 = vpop.f32.mrf.mxu0
  %5482 = vmatprep.mubr.bf16.mxu0 %v4264
  %5483 = vmatmul.mubr.bf16.gmra.mxu0 %v4263
  %v5484 = vpop.f32.mrf.mxu0
  %v5485 = vadd.f32 %v5324, %v5484
  %v5486 = vpop.f32.mrf.mxu0
  %v5487 = vpop.f32.mrf.mxu0
  %v5488 = vadd.f32 %v5327, %v5487
  %v5489 = vpop.f32.mrf.mxu0
  %5490 = vmatprep.mubr.bf16.mxu0 %v4273
  %5491 = vmatmul.mubr.bf16.gmra.mxu0 %v4272
  %v5492 = vpop.f32.mrf.mxu0
  %v5493 = vadd.f32 %v5332, %v5492
  %v5494 = vpop.f32.mrf.mxu0
  %v5495 = vpop.f32.mrf.mxu0
  %v5496 = vadd.f32 %v5335, %v5495
  %v5497 = vpop.f32.mrf.mxu0
  %5498 = vmatprep.mubr.bf16.mxu0 %v4282
  %5499 = vmatmul.mubr.bf16.gmra.mxu0 %v4281
  %v5500 = vpop.f32.mrf.mxu0
  %v5501 = vadd.f32 %v5340, %v5500
  %v5502 = vpop.f32.mrf.mxu0
  %v5503 = vpop.f32.mrf.mxu0
  %v5504 = vadd.f32 %v5343, %v5503
  %v5505 = vpop.f32.mrf.mxu0
  %5506 = vmatprep.mubr.bf16.mxu0 %v4291
  %5507 = vmatmul.mubr.bf16.gmra.mxu0 %v4290
  %v5508 = vpop.f32.mrf.mxu0
  %v5509 = vadd.f32 %v5348, %v5508
  %v5510 = vpop.f32.mrf.mxu0
  %v5511 = vpop.f32.mrf.mxu0
  %v5512 = vadd.f32 %v5351, %v5511
  %v5513 = vpop.f32.mrf.mxu0
  %5514 = vmatprep.mubr.bf16.mxu0 %v4300
  %5515 = vmatmul.mubr.bf16.gmra.mxu0 %v4299
  %v5516 = vpop.f32.mrf.mxu0
  %v5517 = vadd.f32 %v5356, %v5516
  %v5518 = vpop.f32.mrf.mxu0
  %v5519 = vpop.f32.mrf.mxu0
  %v5520 = vadd.f32 %v5359, %v5519
  %v5521 = vpop.f32.mrf.mxu0
  %5522 = vmatprep.mubr.bf16.mxu0 %v4309
  %5523 = vmatmul.mubr.bf16.gmra.mxu0 %v4308
  %v5524 = vpop.f32.mrf.mxu0
  %v5525 = vadd.f32 %v5364, %v5524
  %v5526 = vpop.f32.mrf.mxu0
  %v5527 = vpop.f32.mrf.mxu0
  %v5528 = vadd.f32 %v5367, %v5527
  %v5529 = vpop.f32.mrf.mxu0
  %5530 = vdwg.mxu0
  %5531 = vmatprep.subr.bf16.mxu0 0
  %5532 = vmatpush1.bf16.msra.mxu0 %v4814
  %5533 = vmatprep.subr.bf16.mxu0 0
  %5534 = vmatpush1.bf16.msra.mxu0 %v4813
  %5535 = vmatprep.subr.bf16.mxu0 0
  %5536 = vmatpush1.bf16.msra.mxu0 %v4812
  %5537 = vmatprep.subr.bf16.mxu0 0
  %5538 = vmatpush1.bf16.msra.mxu0 %v4811
  %5539 = vmatprep.subr.bf16.mxu0 0
  %5540 = vmatpush1.bf16.msra.mxu0 %v4810
  %5541 = vmatprep.subr.bf16.mxu0 0
  %5542 = vmatpush1.bf16.msra.mxu0 %v4809
  %5543 = vmatprep.subr.bf16.mxu0 0
  %5544 = vmatpush1.bf16.msra.mxu0 %v4808
  %5545 = vmatprep.subr.bf16.mxu0 0
  %5546 = vmatpush1.bf16.msra.mxu0 %v4807
  %5547 = vmatprep.subr.bf16.mxu0 0
  %5548 = vmatpush2.bf16.msra.mxu0 0
  %5549 = vmatprep.subr.bf16.mxu0 0
  %5550 = vmatpush2.bf16.msra.mxu0 0
  %5551 = vmatprep.subr.bf16.mxu0 0
  %5552 = vmatpush2.bf16.msra.mxu0 0
  %5553 = vmatprep.subr.bf16.mxu0 0
  %5554 = vmatpush2.bf16.msra.mxu0 0
  %5555 = vmatprep.subr.bf16.mxu0 0
  %5556 = vmatpush2.bf16.msra.mxu0 0
  %5557 = vmatprep.subr.bf16.mxu0 0
  %5558 = vmatpush2.bf16.msra.mxu0 0
  %5559 = vmatprep.subr.bf16.mxu0 0
  %5560 = vmatpush2.bf16.msra.mxu0 0
  %5561 = vmatprep.subr.bf16.mxu0 0
  %5562 = vmatpush2.bf16.msra.mxu0 0
  %5563 = vmatprep.mubr.bf16.mxu0 0
  %5564 = vmatmul.mubr.bf16.gmra.mxu0 %v4175
  %v5565 = vpop.f32.mrf.mxu0
  %v5566 = vadd.f32 %v5405, %v5565
  %v5567 = vpop.f32.mrf.mxu0
  %v5568 = vpop.f32.mrf.mxu0
  %v5569 = vadd.f32 %v5408, %v5568
  %v5570 = vpop.f32.mrf.mxu0
  %5571 = vmatprep.mubr.bf16.mxu0 0
  %5572 = vmatmul.mubr.bf16.gmra.mxu0 %v4184
  %v5573 = vpop.f32.mrf.mxu0
  %v5574 = vadd.f32 %v5413, %v5573
  %v5575 = vpop.f32.mrf.mxu0
  %v5576 = vpop.f32.mrf.mxu0
  %v5577 = vadd.f32 %v5416, %v5576
  %v5578 = vpop.f32.mrf.mxu0
  %5579 = vmatprep.mubr.bf16.mxu0 0
  %5580 = vmatmul.mubr.bf16.gmra.mxu0 %v4193
  %v5581 = vpop.f32.mrf.mxu0
  %v5582 = vadd.f32 %v5421, %v5581
  %v5583 = vpop.f32.mrf.mxu0
  %v5584 = vpop.f32.mrf.mxu0
  %v5585 = vadd.f32 %v5424, %v5584
  %v5586 = vpop.f32.mrf.mxu0
  %5587 = vmatprep.mubr.bf16.mxu0 0
  %5588 = vmatmul.mubr.bf16.gmra.mxu0 %v4202
  %v5589 = vpop.f32.mrf.mxu0
  %v5590 = vadd.f32 %v5429, %v5589
  %v5591 = vpop.f32.mrf.mxu0
  %v5592 = vpop.f32.mrf.mxu0
  %v5593 = vadd.f32 %v5432, %v5592
  %v5594 = vpop.f32.mrf.mxu0
  %5595 = vmatprep.mubr.bf16.mxu0 0
  %5596 = vmatmul.mubr.bf16.gmra.mxu0 %v4211
  %v5597 = vpop.f32.mrf.mxu0
  %v5598 = vadd.f32 %v5437, %v5597
  %v5599 = vpop.f32.mrf.mxu0
  %v5600 = vpop.f32.mrf.mxu0
  %v5601 = vadd.f32 %v5440, %v5600
  %v5602 = vpop.f32.mrf.mxu0
  %5603 = vmatprep.mubr.bf16.mxu0 0
  %5604 = vmatmul.mubr.bf16.gmra.mxu0 %v4220
  %v5605 = vpop.f32.mrf.mxu0
  %v5606 = vadd.f32 %v5445, %v5605
  %v5607 = vpop.f32.mrf.mxu0
  %v5608 = vpop.f32.mrf.mxu0
  %v5609 = vadd.f32 %v5448, %v5608
  %v5610 = vpop.f32.mrf.mxu0
  %5611 = vmatprep.mubr.bf16.mxu0 0
  %5612 = vmatmul.mubr.bf16.gmra.mxu0 %v4229
  %v5613 = vpop.f32.mrf.mxu0
  %v5614 = vadd.f32 %v5453, %v5613
  %v5615 = vpop.f32.mrf.mxu0
  %v5616 = vpop.f32.mrf.mxu0
  %v5617 = vadd.f32 %v5456, %v5616
  %v5618 = vpop.f32.mrf.mxu0
  %5619 = vmatprep.mubr.bf16.mxu0 0
  %5620 = vmatmul.mubr.bf16.gmra.mxu0 %v4238
  %v5621 = vpop.f32.mrf.mxu0
  %v5622 = vadd.f32 %v5461, %v5621
  %v5623 = vpop.f32.mrf.mxu0
  %v5624 = vpop.f32.mrf.mxu0
  %v5625 = vadd.f32 %v5464, %v5624
  %v5626 = vpop.f32.mrf.mxu0
  %5627 = vmatprep.mubr.bf16.mxu0 0
  %5628 = vmatmul.mubr.bf16.gmra.mxu0 %v4247
  %v5629 = vpop.f32.mrf.mxu0
  %v5630 = vadd.f32 %v5469, %v5629
  %v5631 = vpop.f32.mrf.mxu0
  %v5632 = vpop.f32.mrf.mxu0
  %v5633 = vadd.f32 %v5472, %v5632
  %v5634 = vpop.f32.mrf.mxu0
  %5635 = vmatprep.mubr.bf16.mxu0 0
  %5636 = vmatmul.mubr.bf16.gmra.mxu0 %v4256
  %v5637 = vpop.f32.mrf.mxu0
  %v5638 = vadd.f32 %v5477, %v5637
  %v5639 = vpop.f32.mrf.mxu0
  %v5640 = vpop.f32.mrf.mxu0
  %v5641 = vadd.f32 %v5480, %v5640
  %v5642 = vpop.f32.mrf.mxu0
  %5643 = vmatprep.mubr.bf16.mxu0 0
  %5644 = vmatmul.mubr.bf16.gmra.mxu0 %v4265
  %v5645 = vpop.f32.mrf.mxu0
  %v5646 = vadd.f32 %v5485, %v5645
  %v5647 = vpop.f32.mrf.mxu0
  %v5648 = vpop.f32.mrf.mxu0
  %v5649 = vadd.f32 %v5488, %v5648
  %v5650 = vpop.f32.mrf.mxu0
  %5651 = vmatprep.mubr.bf16.mxu0 0
  %5652 = vmatmul.mubr.bf16.gmra.mxu0 %v4274
  %v5653 = vpop.f32.mrf.mxu0
  %v5654 = vadd.f32 %v5493, %v5653
  %v5655 = vpop.f32.mrf.mxu0
  %v5656 = vpop.f32.mrf.mxu0
  %v5657 = vadd.f32 %v5496, %v5656
  %v5658 = vpop.f32.mrf.mxu0
  %5659 = vmatprep.mubr.bf16.mxu0 0
  %5660 = vmatmul.mubr.bf16.gmra.mxu0 %v4283
  %v5661 = vpop.f32.mrf.mxu0
  %v5662 = vadd.f32 %v5501, %v5661
  %v5663 = vpop.f32.mrf.mxu0
  %v5664 = vpop.f32.mrf.mxu0
  %v5665 = vadd.f32 %v5504, %v5664
  %v5666 = vpop.f32.mrf.mxu0
  %5667 = vmatprep.mubr.bf16.mxu0 0
  %5668 = vmatmul.mubr.bf16.gmra.mxu0 %v4292
  %v5669 = vpop.f32.mrf.mxu0
  %v5670 = vadd.f32 %v5509, %v5669
  %v5671 = vpop.f32.mrf.mxu0
  %v5672 = vpop.f32.mrf.mxu0
  %v5673 = vadd.f32 %v5512, %v5672
  %v5674 = vpop.f32.mrf.mxu0
  %5675 = vmatprep.mubr.bf16.mxu0 0
  %5676 = vmatmul.mubr.bf16.gmra.mxu0 %v4301
  %v5677 = vpop.f32.mrf.mxu0
  %v5678 = vadd.f32 %v5517, %v5677
  %v5679 = vpop.f32.mrf.mxu0
  %v5680 = vpop.f32.mrf.mxu0
  %v5681 = vadd.f32 %v5520, %v5680
  %v5682 = vpop.f32.mrf.mxu0
  %5683 = vmatprep.mubr.bf16.mxu0 0
  %5684 = vmatmul.mubr.bf16.gmra.mxu0 %v4310
  %v5685 = vpop.f32.mrf.mxu0
  %v5686 = vadd.f32 %v5525, %v5685
  %v5687 = vpop.f32.mrf.mxu0
  %v5688 = vpop.f32.mrf.mxu0
  %v5689 = vadd.f32 %v5528, %v5688
  %v5690 = vpop.f32.mrf.mxu0
  %5691 = vdwg.mxu0
  %v5692 = vtanh.pop %v5566
  %v5693 = vtanh.pop %v5569
  %v5694 = vtanh.pop %v5574
  %v5695 = vtanh.pop %v5577
  %v5696 = vtanh.pop %v5582
  %v5697 = vtanh.pop %v5585
  %v5698 = vtanh.pop %v5590
  %v5699 = vtanh.pop %v5593
  %v5700 = vtanh.pop %v5598
  %v5701 = vtanh.pop %v5601
  %v5702 = vtanh.pop %v5606
  %v5703 = vtanh.pop %v5609
  %v5704 = vtanh.pop %v5614
  %v5705 = vtanh.pop %v5617
  %v5706 = vtanh.pop %v5622
  %v5707 = vtanh.pop %v5625
  %v5708 = vtanh.pop %v5630
  %v5709 = vtanh.pop %v5633
  %v5710 = vtanh.pop %v5638
  %v5711 = vtanh.pop %v5641
  %v5712 = vtanh.pop %v5646
  %v5713 = vtanh.pop %v5649
  %v5714 = vtanh.pop %v5654
  %v5715 = vtanh.pop %v5657
  %v5716 = vtanh.pop %v5662
  %v5717 = vtanh.pop %v5665
  %v5718 = vtanh.pop %v5670
  %v5719 = vtanh.pop %v5673
  %v5720 = vtanh.pop %v5678
  %v5721 = vtanh.pop %v5681
  %v5722 = vtanh.pop %v5686
  %v5723 = vtanh.pop %v5689
  %v5724 = vpack.c.bf16 %v5693, %v5692
  %v5725 = vpack.c.bf16 %v5695, %v5694
  %v5726 = vpack.c.bf16 %v5697, %v5696
  %v5727 = vpack.c.bf16 %v5699, %v5698
  %v5728 = vpack.c.bf16 %v5701, %v5700
  %v5729 = vpack.c.bf16 %v5703, %v5702
  %v5730 = vpack.c.bf16 %v5705, %v5704
  %v5731 = vpack.c.bf16 %v5707, %v5706
  %v5732 = vpack.c.bf16 %v5709, %v5708
  %v5733 = vpack.c.bf16 %v5711, %v5710
  %v5734 = vpack.c.bf16 %v5713, %v5712
  %v5735 = vpack.c.bf16 %v5715, %v5714
  %v5736 = vpack.c.bf16 %v5717, %v5716
  %v5737 = vpack.c.bf16 %v5719, %v5718
  %v5738 = vpack.c.bf16 %v5721, %v5720
  %v5739 = vpack.c.bf16 %v5723, %v5722
  %v5740 = vld [vmem:[%s2] sm:$0xf]
  %v5741 = vld [vmem:[%s2 + $0x4] sm:$0xf]
  %v5742 = vld [vmem:[%s2 + $0x8] sm:$0xf]
  %v5743 = vld [vmem:[%s2 + $0xc] sm:$0xf]
  %v5744 = vld [vmem:[%s2 + $0x10] sm:$0xf]
  %v5745 = vld [vmem:[%s2 + $0x14] sm:$0xf]
  %v5746 = vld [vmem:[%s2 + $0x18] sm:$0xf]
  %v5747 = vld [vmem:[%s2 + $0x1c] sm:$0xf]
  %v5748 = vld [vmem:[%s2 + $0x20] sm:$0xf]
  %v5749 = vld [vmem:[%s2 + $0x24] sm:$0xf]
  %v5750 = vld [vmem:[%s2 + $0x28] sm:$0xf]
  %v5751 = vld [vmem:[%s2 + $0x2c] sm:$0xf]
  %v5752 = vld [vmem:[%s2 + $0x30] sm:$0xf]
  %v5753 = vld [vmem:[%s2 + $0x34] sm:$0xf]
  %v5754 = vld [vmem:[%s2 + $0x38] sm:$0xf]
  %v5755 = vld [vmem:[%s2 + $0x3c] sm:$0xf]
  %v5772 = vunpack.c.l.b16 %v5740
  %v5773 = vunpack.c.l.b16 %v5741
  %v5774 = vunpack.c.l.b16 %v5742
  %v5775 = vunpack.c.l.b16 %v5743
  %v5776 = vunpack.c.l.b16 %v5744
  %v5777 = vunpack.c.l.b16 %v5745
  %v5778 = vunpack.c.l.b16 %v5746
  %v5779 = vunpack.c.l.b16 %v5747
  %v5780 = vunpack.c.l.b16 %v5748
  %v5781 = vunpack.c.l.b16 %v5749
  %v5782 = vunpack.c.l.b16 %v5750
  %v5783 = vunpack.c.l.b16 %v5751
  %v5784 = vunpack.c.l.b16 %v5752
  %v5785 = vunpack.c.l.b16 %v5753
  %v5786 = vunpack.c.l.b16 %v5754
  %v5787 = vunpack.c.l.b16 %v5755
  %v5788 = vpack.c.b16 %v5773, %v5772
  %v5789 = vpack.c.b16 %v5775, %v5774
  %v5790 = vpack.c.b16 %v5777, %v5776
  %v5791 = vpack.c.b16 %v5779, %v5778
  %v5792 = vpack.c.b16 %v5781, %v5780
  %v5793 = vpack.c.b16 %v5783, %v5782
  %v5794 = vpack.c.b16 %v5785, %v5784
  %v5795 = vpack.c.b16 %v5787, %v5786
  %5804 = vmatprep.subr.bf16.mxu0 0
  %5805 = vmatpush1.bf16.msra.mxu0 %v5795
  %5806 = vmatprep.subr.bf16.mxu0 0
  %5807 = vmatpush1.bf16.msra.mxu0 %v5794
  %5808 = vmatprep.subr.bf16.mxu0 0
  %5809 = vmatpush1.bf16.msra.mxu0 %v5793
  %5810 = vmatprep.subr.bf16.mxu0 0
  %5811 = vmatpush1.bf16.msra.mxu0 %v5792
  %5812 = vmatprep.subr.bf16.mxu0 0
  %5813 = vmatpush1.bf16.msra.mxu0 %v5791
  %5814 = vmatprep.subr.bf16.mxu0 0
  %5815 = vmatpush1.bf16.msra.mxu0 %v5790
  %5816 = vmatprep.subr.bf16.mxu0 0
  %5817 = vmatpush1.bf16.msra.mxu0 %v5789
  %5818 = vmatprep.subr.bf16.mxu0 0
  %5819 = vmatpush1.bf16.msra.mxu0 %v5788
  %5820 = vmatprep.subr.bf16.mxu0 0
  %5821 = vmatpush2.bf16.msra.mxu0 0
  %5822 = vmatprep.subr.bf16.mxu0 0
  %5823 = vmatpush2.bf16.msra.mxu0 0
  %5824 = vmatprep.subr.bf16.mxu0 0
  %5825 = vmatpush2.bf16.msra.mxu0 0
  %5826 = vmatprep.subr.bf16.mxu0 0
  %5827 = vmatpush2.bf16.msra.mxu0 0
  %5828 = vmatprep.subr.bf16.mxu0 0
  %5829 = vmatpush2.bf16.msra.mxu0 0
  %5830 = vmatprep.subr.bf16.mxu0 0
  %5831 = vmatpush2.bf16.msra.mxu0 0
  %5832 = vmatprep.subr.bf16.mxu0 0
  %5833 = vmatpush2.bf16.msra.mxu0 0
  %5834 = vmatprep.subr.bf16.mxu0 0
  %5835 = vmatpush2.bf16.msra.mxu0 0
  %5836 = vmatprep.mubr.bf16.mxu0 0
  %5837 = vmatmul.mubr.bf16.gmra.mxu0 %v5724
  %v5838 = vpop.f32.mrf.mxu0
  %v5839 = vadd.f32 0.0, %v5838
  %v5840 = vpop.f32.mrf.mxu0
  %v5841 = vpop.f32.mrf.mxu0
  %v5842 = vadd.f32 0.0, %v5841
  %v5843 = vpop.f32.mrf.mxu0
  %5844 = vmatprep.mubr.bf16.mxu0 0
  %5845 = vmatmul.mubr.bf16.gmra.mxu0 %v5725
  %v5846 = vpop.f32.mrf.mxu0
  %v5847 = vadd.f32 0.0, %v5846
  %v5848 = vpop.f32.mrf.mxu0
  %v5849 = vpop.f32.mrf.mxu0
  %v5850 = vadd.f32 0.0, %v5849
  %v5851 = vpop.f32.mrf.mxu0
  %5852 = vmatprep.mubr.bf16.mxu0 0
  %5853 = vmatmul.mubr.bf16.gmra.mxu0 %v5726
  %v5854 = vpop.f32.mrf.mxu0
  %v5855 = vadd.f32 0.0, %v5854
  %v5856 = vpop.f32.mrf.mxu0
  %v5857 = vpop.f32.mrf.mxu0
  %v5858 = vadd.f32 0.0, %v5857
  %v5859 = vpop.f32.mrf.mxu0
  %5860 = vmatprep.mubr.bf16.mxu0 0
  %5861 = vmatmul.mubr.bf16.gmra.mxu0 %v5727
  %v5862 = vpop.f32.mrf.mxu0
  %v5863 = vadd.f32 0.0, %v5862
  %v5864 = vpop.f32.mrf.mxu0
  %v5865 = vpop.f32.mrf.mxu0
  %v5866 = vadd.f32 0.0, %v5865
  %v5867 = vpop.f32.mrf.mxu0
  %5868 = vmatprep.mubr.bf16.mxu0 0
  %5869 = vmatmul.mubr.bf16.gmra.mxu0 %v5728
  %v5870 = vpop.f32.mrf.mxu0
  %v5871 = vadd.f32 0.0, %v5870
  %v5872 = vpop.f32.mrf.mxu0
  %v5873 = vpop.f32.mrf.mxu0
  %v5874 = vadd.f32 0.0, %v5873
  %v5875 = vpop.f32.mrf.mxu0
  %5876 = vmatprep.mubr.bf16.mxu0 0
  %5877 = vmatmul.mubr.bf16.gmra.mxu0 %v5729
  %v5878 = vpop.f32.mrf.mxu0
  %v5879 = vadd.f32 0.0, %v5878
  %v5880 = vpop.f32.mrf.mxu0
  %v5881 = vpop.f32.mrf.mxu0
  %v5882 = vadd.f32 0.0, %v5881
  %v5883 = vpop.f32.mrf.mxu0
  %5884 = vmatprep.mubr.bf16.mxu0 0
  %5885 = vmatmul.mubr.bf16.gmra.mxu0 %v5730
  %v5886 = vpop.f32.mrf.mxu0
  %v5887 = vadd.f32 0.0, %v5886
  %v5888 = vpop.f32.mrf.mxu0
  %v5889 = vpop.f32.mrf.mxu0
  %v5890 = vadd.f32 0.0, %v5889
  %v5891 = vpop.f32.mrf.mxu0
  %5892 = vmatprep.mubr.bf16.mxu0 0
  %5893 = vmatmul.mubr.bf16.gmra.mxu0 %v5731
  %v5894 = vpop.f32.mrf.mxu0
  %v5895 = vadd.f32 0.0, %v5894
  %v5896 = vpop.f32.mrf.mxu0
  %v5897 = vpop.f32.mrf.mxu0
  %v5898 = vadd.f32 0.0, %v5897
  %v5899 = vpop.f32.mrf.mxu0
  %5900 = vmatprep.mubr.bf16.mxu0 0
  %5901 = vmatmul.mubr.bf16.gmra.mxu0 %v5732
  %v5902 = vpop.f32.mrf.mxu0
  %v5903 = vadd.f32 0.0, %v5902
  %v5904 = vpop.f32.mrf.mxu0
  %v5905 = vpop.f32.mrf.mxu0
  %v5906 = vadd.f32 0.0, %v5905
  %v5907 = vpop.f32.mrf.mxu0
  %5908 = vmatprep.mubr.bf16.mxu0 0
  %5909 = vmatmul.mubr.bf16.gmra.mxu0 %v5733
  %v5910 = vpop.f32.mrf.mxu0
  %v5911 = vadd.f32 0.0, %v5910
  %v5912 = vpop.f32.mrf.mxu0
  %v5913 = vpop.f32.mrf.mxu0
  %v5914 = vadd.f32 0.0, %v5913
  %v5915 = vpop.f32.mrf.mxu0
  %5916 = vmatprep.mubr.bf16.mxu0 0
  %5917 = vmatmul.mubr.bf16.gmra.mxu0 %v5734
  %v5918 = vpop.f32.mrf.mxu0
  %v5919 = vadd.f32 0.0, %v5918
  %v5920 = vpop.f32.mrf.mxu0
  %v5921 = vpop.f32.mrf.mxu0
  %v5922 = vadd.f32 0.0, %v5921
  %v5923 = vpop.f32.mrf.mxu0
  %5924 = vmatprep.mubr.bf16.mxu0 0
  %5925 = vmatmul.mubr.bf16.gmra.mxu0 %v5735
  %v5926 = vpop.f32.mrf.mxu0
  %v5927 = vadd.f32 0.0, %v5926
  %v5928 = vpop.f32.mrf.mxu0
  %v5929 = vpop.f32.mrf.mxu0
  %v5930 = vadd.f32 0.0, %v5929
  %v5931 = vpop.f32.mrf.mxu0
  %5932 = vmatprep.mubr.bf16.mxu0 0
  %5933 = vmatmul.mubr.bf16.gmra.mxu0 %v5736
  %v5934 = vpop.f32.mrf.mxu0
  %v5935 = vadd.f32 0.0, %v5934
  %v5936 = vpop.f32.mrf.mxu0
  %v5937 = vpop.f32.mrf.mxu0
  %v5938 = vadd.f32 0.0, %v5937
  %v5939 = vpop.f32.mrf.mxu0
  %5940 = vmatprep.mubr.bf16.mxu0 0
  %5941 = vmatmul.mubr.bf16.gmra.mxu0 %v5737
  %v5942 = vpop.f32.mrf.mxu0
  %v5943 = vadd.f32 0.0, %v5942
  %v5944 = vpop.f32.mrf.mxu0
  %v5945 = vpop.f32.mrf.mxu0
  %v5946 = vadd.f32 0.0, %v5945
  %v5947 = vpop.f32.mrf.mxu0
  %5948 = vmatprep.mubr.bf16.mxu0 0
  %5949 = vmatmul.mubr.bf16.gmra.mxu0 %v5738
  %v5950 = vpop.f32.mrf.mxu0
  %v5951 = vadd.f32 0.0, %v5950
  %v5952 = vpop.f32.mrf.mxu0
  %v5953 = vpop.f32.mrf.mxu0
  %v5954 = vadd.f32 0.0, %v5953
  %v5955 = vpop.f32.mrf.mxu0
  %5956 = vmatprep.mubr.bf16.mxu0 0
  %5957 = vmatmul.mubr.bf16.gmra.mxu0 %v5739
  %v5958 = vpop.f32.mrf.mxu0
  %v5959 = vadd.f32 0.0, %v5958
  %v5960 = vpop.f32.mrf.mxu0
  %v5961 = vpop.f32.mrf.mxu0
  %v5962 = vadd.f32 0.0, %v5961
  %v5963 = vpop.f32.mrf.mxu0
  %5964 = vdwg.mxu0
  %v5965 = vxor.u32 %v5839, 2147483648
  %v5966 = vxor.u32 %v5842, 2147483648
  %v5967 = vxor.u32 %v5847, 2147483648
  %v5968 = vxor.u32 %v5850, 2147483648
  %v5969 = vxor.u32 %v5855, 2147483648
  %v5970 = vxor.u32 %v5858, 2147483648
  %v5971 = vxor.u32 %v5863, 2147483648
  %v5972 = vxor.u32 %v5866, 2147483648
  %v5973 = vxor.u32 %v5871, 2147483648
  %v5974 = vxor.u32 %v5874, 2147483648
  %v5975 = vxor.u32 %v5879, 2147483648
  %v5976 = vxor.u32 %v5882, 2147483648
  %v5977 = vxor.u32 %v5887, 2147483648
  %v5978 = vxor.u32 %v5890, 2147483648
  %v5979 = vxor.u32 %v5895, 2147483648
  %v5980 = vxor.u32 %v5898, 2147483648
  %v5981 = vxor.u32 %v5903, 2147483648
  %v5982 = vxor.u32 %v5906, 2147483648
  %v5983 = vxor.u32 %v5911, 2147483648
  %v5984 = vxor.u32 %v5914, 2147483648
  %v5985 = vxor.u32 %v5919, 2147483648
  %v5986 = vxor.u32 %v5922, 2147483648
  %v5987 = vxor.u32 %v5927, 2147483648
  %v5988 = vxor.u32 %v5930, 2147483648
  %v5989 = vxor.u32 %v5935, 2147483648
  %v5990 = vxor.u32 %v5938, 2147483648
  %v5991 = vxor.u32 %v5943, 2147483648
  %v5992 = vxor.u32 %v5946, 2147483648
  %v5993 = vxor.u32 %v5951, 2147483648
  %v5994 = vxor.u32 %v5954, 2147483648
  %v5995 = vxor.u32 %v5959, 2147483648
  %v5996 = vxor.u32 %v5962, 2147483648
  %v5997 = vmul.f32 %v5965, 1.442695
  %v5998 = vpow.pop %v5997
  %v5999 = vmul.f32 %v5966, 1.442695
  %v6000 = vpow.pop %v5999
  %v6001 = vmul.f32 %v5967, 1.442695
  %v6002 = vpow.pop %v6001
  %v6003 = vmul.f32 %v5968, 1.442695
  %v6004 = vpow.pop %v6003
  %v6005 = vmul.f32 %v5969, 1.442695
  %v6006 = vpow.pop %v6005
  %v6007 = vmul.f32 %v5970, 1.442695
  %v6008 = vpow.pop %v6007
  %v6009 = vmul.f32 %v5971, 1.442695
  %v6010 = vpow.pop %v6009
  %v6011 = vmul.f32 %v5972, 1.442695
  %v6012 = vpow.pop %v6011
  %v6013 = vmul.f32 %v5973, 1.442695
  %v6014 = vpow.pop %v6013
  %v6015 = vmul.f32 %v5974, 1.442695
  %v6016 = vpow.pop %v6015
  %v6017 = vmul.f32 %v5975, 1.442695
  %v6018 = vpow.pop %v6017
  %v6019 = vmul.f32 %v5976, 1.442695
  %v6020 = vpow.pop %v6019
  %v6021 = vmul.f32 %v5977, 1.442695
  %v6022 = vpow.pop %v6021
  %v6023 = vmul.f32 %v5978, 1.442695
  %v6024 = vpow.pop %v6023
  %v6025 = vmul.f32 %v5979, 1.442695
  %v6026 = vpow.pop %v6025
  %v6027 = vmul.f32 %v5980, 1.442695
  %v6028 = vpow.pop %v6027
  %v6029 = vmul.f32 %v5981, 1.442695
  %v6030 = vpow.pop %v6029
  %v6031 = vmul.f32 %v5982, 1.442695
  %v6032 = vpow.pop %v6031
  %v6033 = vmul.f32 %v5983, 1.442695
  %v6034 = vpow.pop %v6033
  %v6035 = vmul.f32 %v5984, 1.442695
  %v6036 = vpow.pop %v6035
  %v6037 = vmul.f32 %v5985, 1.442695
  %v6038 = vpow.pop %v6037
  %v6039 = vmul.f32 %v5986, 1.442695
  %v6040 = vpow.pop %v6039
  %v6041 = vmul.f32 %v5987, 1.442695
  %v6042 = vpow.pop %v6041
  %v6043 = vmul.f32 %v5988, 1.442695
  %v6044 = vpow.pop %v6043
  %v6045 = vmul.f32 %v5989, 1.442695
  %v6046 = vpow.pop %v6045
  %v6047 = vmul.f32 %v5990, 1.442695
  %v6048 = vpow.pop %v6047
  %v6049 = vmul.f32 %v5991, 1.442695
  %v6050 = vpow.pop %v6049
  %v6051 = vmul.f32 %v5992, 1.442695
  %v6052 = vpow.pop %v6051
  %v6053 = vmul.f32 %v5993, 1.442695
  %v6054 = vpow.pop %v6053
  %v6055 = vmul.f32 %v5994, 1.442695
  %v6056 = vpow.pop %v6055
  %v6057 = vmul.f32 %v5995, 1.442695
  %v6058 = vpow.pop %v6057
  %v6059 = vmul.f32 %v5996, 1.442695
  %v6060 = vpow.pop %v6059
  %v6061 = vadd.f32 %v5998, 1.0
  %v6062 = vadd.f32 %v6000, 1.0
  %v6063 = vadd.f32 %v6002, 1.0
  %v6064 = vadd.f32 %v6004, 1.0
  %v6065 = vadd.f32 %v6006, 1.0
  %v6066 = vadd.f32 %v6008, 1.0
  %v6067 = vadd.f32 %v6010, 1.0
  %v6068 = vadd.f32 %v6012, 1.0
  %v6069 = vadd.f32 %v6014, 1.0
  %v6070 = vadd.f32 %v6016, 1.0
  %v6071 = vadd.f32 %v6018, 1.0
  %v6072 = vadd.f32 %v6020, 1.0
  %v6073 = vadd.f32 %v6022, 1.0
  %v6074 = vadd.f32 %v6024, 1.0
  %v6075 = vadd.f32 %v6026, 1.0
  %v6076 = vadd.f32 %v6028, 1.0
  %v6077 = vadd.f32 %v6030, 1.0
  %v6078 = vadd.f32 %v6032, 1.0
  %v6079 = vadd.f32 %v6034, 1.0
  %v6080 = vadd.f32 %v6036, 1.0
  %v6081 = vadd.f32 %v6038, 1.0
  %v6082 = vadd.f32 %v6040, 1.0
  %v6083 = vadd.f32 %v6042, 1.0
  %v6084 = vadd.f32 %v6044, 1.0
  %v6085 = vadd.f32 %v6046, 1.0
  %v6086 = vadd.f32 %v6048, 1.0
  %v6087 = vadd.f32 %v6050, 1.0
  %v6088 = vadd.f32 %v6052, 1.0
  %v6089 = vadd.f32 %v6054, 1.0
  %v6090 = vadd.f32 %v6056, 1.0
  %v6091 = vadd.f32 %v6058, 1.0
  %v6092 = vadd.f32 %v6060, 1.0
  %v6093 = vrcp.pop %v6061
  %v6094 = vmul.f32 1.0, %v6093
  %v6095 = vrcp.pop %v6062
  %v6096 = vmul.f32 1.0, %v6095
  %v6097 = vrcp.pop %v6063
  %v6098 = vmul.f32 1.0, %v6097
  %v6099 = vrcp.pop %v6064
  %v6100 = vmul.f32 1.0, %v6099
  %v6101 = vrcp.pop %v6065
  %v6102 = vmul.f32 1.0, %v6101
  %v6103 = vrcp.pop %v6066
  %v6104 = vmul.f32 1.0, %v6103
  %v6105 = vrcp.pop %v6067
  %v6106 = vmul.f32 1.0, %v6105
  %v6107 = vrcp.pop %v6068
  %v6108 = vmul.f32 1.0, %v6107
  %v6109 = vrcp.pop %v6069
  %v6110 = vmul.f32 1.0, %v6109
  %v6111 = vrcp.pop %v6070
  %v6112 = vmul.f32 1.0, %v6111
  %v6113 = vrcp.pop %v6071
  %v6114 = vmul.f32 1.0, %v6113
  %v6115 = vrcp.pop %v6072
  %v6116 = vmul.f32 1.0, %v6115
  %v6117 = vrcp.pop %v6073
  %v6118 = vmul.f32 1.0, %v6117
  %v6119 = vrcp.pop %v6074
  %v6120 = vmul.f32 1.0, %v6119
  %v6121 = vrcp.pop %v6075
  %v6122 = vmul.f32 1.0, %v6121
  %v6123 = vrcp.pop %v6076
  %v6124 = vmul.f32 1.0, %v6123
  %v6125 = vrcp.pop %v6077
  %v6126 = vmul.f32 1.0, %v6125
  %v6127 = vrcp.pop %v6078
  %v6128 = vmul.f32 1.0, %v6127
  %v6129 = vrcp.pop %v6079
  %v6130 = vmul.f32 1.0, %v6129
  %v6131 = vrcp.pop %v6080
  %v6132 = vmul.f32 1.0, %v6131
  %v6133 = vrcp.pop %v6081
  %v6134 = vmul.f32 1.0, %v6133
  %v6135 = vrcp.pop %v6082
  %v6136 = vmul.f32 1.0, %v6135
  %v6137 = vrcp.pop %v6083
  %v6138 = vmul.f32 1.0, %v6137
  %v6139 = vrcp.pop %v6084
  %v6140 = vmul.f32 1.0, %v6139
  %v6141 = vrcp.pop %v6085
  %v6142 = vmul.f32 1.0, %v6141
  %v6143 = vrcp.pop %v6086
  %v6144 = vmul.f32 1.0, %v6143
  %v6145 = vrcp.pop %v6087
  %v6146 = vmul.f32 1.0, %v6145
  %v6147 = vrcp.pop %v6088
  %v6148 = vmul.f32 1.0, %v6147
  %v6149 = vrcp.pop %v6089
  %v6150 = vmul.f32 1.0, %v6149
  %v6151 = vrcp.pop %v6090
  %v6152 = vmul.f32 1.0, %v6151
  %v6153 = vrcp.pop %v6091
  %v6154 = vmul.f32 1.0, %v6153
  %v6155 = vrcp.pop %v6092
  %v6156 = vmul.f32 1.0, %v6155
  %6157 = vst [vmem:[#allocation4] sm:$0xff] %v6094
  %6158 = vst [vmem:[#allocation4 + $0x8] sm:$0xff] %v6096
  %6159 = vst [vmem:[#allocation4 + $0x10] sm:$0xff] %v6098
  %6160 = vst [vmem:[#allocation4 + $0x18] sm:$0xff] %v6100
  %6161 = vst [vmem:[#allocation4 + $0x20] sm:$0xff] %v6102
  %6162 = vst [vmem:[#allocation4 + $0x28] sm:$0xff] %v6104
  %6163 = vst [vmem:[#allocation4 + $0x30] sm:$0xff] %v6106
  %6164 = vst [vmem:[#allocation4 + $0x38] sm:$0xff] %v6108
  %6165 = vst [vmem:[#allocation4 + $0x40] sm:$0xff] %v6110
  %6166 = vst [vmem:[#allocation4 + $0x48] sm:$0xff] %v6112
  %6167 = vst [vmem:[#allocation4 + $0x50] sm:$0xff] %v6114
  %6168 = vst [vmem:[#allocation4 + $0x58] sm:$0xff] %v6116
  %6169 = vst [vmem:[#allocation4 + $0x60] sm:$0xff] %v6118
  %6170 = vst [vmem:[#allocation4 + $0x68] sm:$0xff] %v6120
  %6171 = vst [vmem:[#allocation4 + $0x70] sm:$0xff] %v6122
  %6172 = vst [vmem:[#allocation4 + $0x78] sm:$0xff] %v6124
  %6173 = vst [vmem:[#allocation4 + $0x80] sm:$0xff] %v6126
  %6174 = vst [vmem:[#allocation4 + $0x88] sm:$0xff] %v6128
  %6175 = vst [vmem:[#allocation4 + $0x90] sm:$0xff] %v6130
  %6176 = vst [vmem:[#allocation4 + $0x98] sm:$0xff] %v6132
  %6177 = vst [vmem:[#allocation4 + $0xa0] sm:$0xff] %v6134
  %6178 = vst [vmem:[#allocation4 + $0xa8] sm:$0xff] %v6136
  %6179 = vst [vmem:[#allocation4 + $0xb0] sm:$0xff] %v6138
  %6180 = vst [vmem:[#allocation4 + $0xb8] sm:$0xff] %v6140
  %6181 = vst [vmem:[#allocation4 + $0xc0] sm:$0xff] %v6142
  %6182 = vst [vmem:[#allocation4 + $0xc8] sm:$0xff] %v6144
  %6183 = vst [vmem:[#allocation4 + $0xd0] sm:$0xff] %v6146
  %6184 = vst [vmem:[#allocation4 + $0xd8] sm:$0xff] %v6148
  %6185 = vst [vmem:[#allocation4 + $0xe0] sm:$0xff] %v6150
  %6186 = vst [vmem:[#allocation4 + $0xe8] sm:$0xff] %v6152
  %6187 = vst [vmem:[#allocation4 + $0xf0] sm:$0xff] %v6154
  %6188 = vst [vmem:[#allocation4 + $0xf8] sm:$0xff] %v6156
  %v6189 = vadd.f32 %v6094, %v6096
  %v6190 = vadd.f32 %v6189, %v6098
  %v6191 = vadd.f32 %v6190, %v6100
  %v6192 = vadd.f32 %v6191, %v6102
  %v6193 = vadd.f32 %v6192, %v6104
  %v6194 = vadd.f32 %v6193, %v6106
  %v6195 = vadd.f32 %v6194, %v6108
  %v6196 = vadd.f32 %v6195, %v6110
  %v6197 = vadd.f32 %v6196, %v6112
  %v6198 = vadd.f32 %v6197, %v6114
  %v6199 = vadd.f32 %v6198, %v6116
  %v6200 = vadd.f32 %v6199, %v6118
  %v6201 = vadd.f32 %v6200, %v6120
  %v6202 = vadd.f32 %v6201, %v6122
  %v6203 = vadd.f32 %v6202, %v6124
  %v6204 = vadd.f32 %v6203, %v6126
  %v6205 = vadd.f32 %v6204, %v6128
  %v6206 = vadd.f32 %v6205, %v6130
  %v6207 = vadd.f32 %v6206, %v6132
  %v6208 = vadd.f32 %v6207, %v6134
  %v6209 = vadd.f32 %v6208, %v6136
  %v6210 = vadd.f32 %v6209, %v6138
  %v6211 = vadd.f32 %v6210, %v6140
  %v6212 = vadd.f32 %v6211, %v6142
  %v6213 = vadd.f32 %v6212, %v6144
  %v6214 = vadd.f32 %v6213, %v6146
  %v6215 = vadd.f32 %v6214, %v6148
  %v6216 = vadd.f32 %v6215, %v6150
  %v6217 = vadd.f32 %v6216, %v6152
  %v6218 = vadd.f32 %v6217, %v6154
  %v6219 = vadd.f32 %v6218, %v6156
  %v6220 = vrot.slane %v6219, 4
  %v6221 = vadd.f32 %v6219, %v6220
  %v6222 = vrot.slane %v6221, 2
  %v6223 = vadd.f32 %v6221, %v6222
  %v6224 = vrot.slane %v6223, 1
  %v6225 = vadd.f32 %v6223, %v6224
  %v6226 = vrcp.pop 256.0
  %v6227 = vmul.f32 %v6225, %v6226
  %v6228 = vmax.f32 %v6094, %v6102
  %v6229 = vmax.f32 %v6096, %v6104
  %v6230 = vmax.f32 %v6098, %v6106
  %v6231 = vmax.f32 %v6100, %v6108
  %v6232 = vmax.f32 %v6228, %v6110
  %v6233 = vmax.f32 %v6229, %v6112
  %v6234 = vmax.f32 %v6230, %v6114
  %v6235 = vmax.f32 %v6231, %v6116
  %v6236 = vmax.f32 %v6232, %v6118
  %v6237 = vmax.f32 %v6233, %v6120
  %v6238 = vmax.f32 %v6234, %v6122
  %v6239 = vmax.f32 %v6235, %v6124
  %v6240 = vmax.f32 %v6236, %v6126
  %v6241 = vmax.f32 %v6237, %v6128
  %v6242 = vmax.f32 %v6238, %v6130
  %v6243 = vmax.f32 %v6239, %v6132
  %v6244 = vmax.f32 %v6240, %v6134
  %v6245 = vmax.f32 %v6241, %v6136
  %v6246 = vmax.f32 %v6242, %v6138
  %v6247 = vmax.f32 %v6243, %v6140
  %v6248 = vmax.f32 %v6244, %v6142
  %v6249 = vmax.f32 %v6245, %v6144
  %v6250 = vmax.f32 %v6246, %v6146
  %v6251 = vmax.f32 %v6247, %v6148
  %v6252 = vmax.f32 %v6248, %v6150
  %v6253 = vmax.f32 %v6249, %v6152
  %v6254 = vmax.f32 %v6250, %v6154
  %v6255 = vmax.f32 %v6251, %v6156
  %v6256 = vmax.f32 %v6252, %v6253
  %v6257 = vmax.f32 %v6254, %v6255
  %v6258 = vmax.f32 %v6256, %v6257
  %v6259 = vrot.slane %v6258, 4
  %v6260 = vmax.f32 %v6258, %v6259
  %v6261 = vrot.slane %v6260, 2
  %v6262 = vmax.f32 %v6260, %v6261
  %v6263 = vrot.slane %v6262, 1
  %v6264 = vmax.f32 %v6262, %v6263
  %vm6265 = vcmask 1040384
  %v6266 = vsel %vm6265, %v6227, %v6264
  %v6267 = vpack.c.bf16 %v6266, %v6266
  %v6268 = vld [vmem:[%s3] sm:$0xf]
  %v6269 = vld [vmem:[%s3 + $0x4] sm:$0xf]
  %v6270 = vld [vmem:[%s3 + $0x8] sm:$0xf]
  %v6271 = vld [vmem:[%s3 + $0xc] sm:$0xf]
  %v6272 = vld [vmem:[%s3 + $0x10] sm:$0xf]
  %v6273 = vld [vmem:[%s3 + $0x14] sm:$0xf]
  %v6274 = vld [vmem:[%s3 + $0x18] sm:$0xf]
  %v6275 = vld [vmem:[%s3 + $0x1c] sm:$0xf]
  %v6276 = vld [vmem:[%s3 + $0x20] sm:$0xf]
  %v6277 = vld [vmem:[%s3 + $0x24] sm:$0xf]
  %v6278 = vld [vmem:[%s3 + $0x28] sm:$0xf]
  %v6279 = vld [vmem:[%s3 + $0x2c] sm:$0xf]
  %v6280 = vld [vmem:[%s3 + $0x30] sm:$0xf]
  %v6281 = vld [vmem:[%s3 + $0x34] sm:$0xf]
  %v6282 = vld [vmem:[%s3 + $0x38] sm:$0xf]
  %v6283 = vld [vmem:[%s3 + $0x3c] sm:$0xf]
  %v6300 = vunpack.c.l.b16 %v6268
  %v6301 = vunpack.c.l.b16 %v6269
  %v6302 = vunpack.c.l.b16 %v6270
  %v6303 = vunpack.c.l.b16 %v6271
  %v6304 = vunpack.c.l.b16 %v6272
  %v6305 = vunpack.c.l.b16 %v6273
  %v6306 = vunpack.c.l.b16 %v6274
  %v6307 = vunpack.c.l.b16 %v6275
  %v6308 = vunpack.c.l.b16 %v6276
  %v6309 = vunpack.c.l.b16 %v6277
  %v6310 = vunpack.c.l.b16 %v6278
  %v6311 = vunpack.c.l.b16 %v6279
  %v6312 = vunpack.c.l.b16 %v6280
  %v6313 = vunpack.c.l.b16 %v6281
  %v6314 = vunpack.c.l.b16 %v6282
  %v6315 = vunpack.c.l.b16 %v6283
  %v6316 = vpack.c.b16 %v6301, %v6300
  %v6317 = vpack.c.b16 %v6303, %v6302
  %v6318 = vpack.c.b16 %v6305, %v6304
  %v6319 = vpack.c.b16 %v6307, %v6306
  %v6320 = vpack.c.b16 %v6309, %v6308
  %v6321 = vpack.c.b16 %v6311, %v6310
  %v6322 = vpack.c.b16 %v6313, %v6312
  %v6323 = vpack.c.b16 %v6315, %v6314
  %6332 = vmatprep.subr.bf16.mxu0 0
  %6333 = vmatpush1.bf16.msra.mxu0 %v6323
  %6334 = vmatprep.subr.bf16.mxu0 0
  %6335 = vmatpush1.bf16.msra.mxu0 %v6322
  %6336 = vmatprep.subr.bf16.mxu0 0
  %6337 = vmatpush1.bf16.msra.mxu0 %v6321
  %6338 = vmatprep.subr.bf16.mxu0 0
  %6339 = vmatpush1.bf16.msra.mxu0 %v6320
  %6340 = vmatprep.subr.bf16.mxu0 0
  %6341 = vmatpush1.bf16.msra.mxu0 %v6319
  %6342 = vmatprep.subr.bf16.mxu0 0
  %6343 = vmatpush1.bf16.msra.mxu0 %v6318
  %6344 = vmatprep.subr.bf16.mxu0 0
  %6345 = vmatpush1.bf16.msra.mxu0 %v6317
  %6346 = vmatprep.subr.bf16.mxu0 0
  %6347 = vmatpush1.bf16.msra.mxu0 %v6316
  %6348 = vmatprep.subr.bf16.mxu0 0
  %6349 = vmatpush2.bf16.msra.mxu0 0
  %6350 = vmatprep.subr.bf16.mxu0 0
  %6351 = vmatpush2.bf16.msra.mxu0 0
  %6352 = vmatprep.subr.bf16.mxu0 0
  %6353 = vmatpush2.bf16.msra.mxu0 0
  %6354 = vmatprep.subr.bf16.mxu0 0
  %6355 = vmatpush2.bf16.msra.mxu0 0
  %6356 = vmatprep.subr.bf16.mxu0 0
  %6357 = vmatpush2.bf16.msra.mxu0 0
  %6358 = vmatprep.subr.bf16.mxu0 0
  %6359 = vmatpush2.bf16.msra.mxu0 0
  %6360 = vmatprep.subr.bf16.mxu0 0
  %6361 = vmatpush2.bf16.msra.mxu0 0
  %6362 = vmatprep.subr.bf16.mxu0 0
  %6363 = vmatpush2.bf16.msra.mxu0 0
  %6364 = vmatprep.mubr.bf16.mxu0 0
  %6365 = vmatmul.mubr.bf16.gmra.mxu0 %v6267
  %v6366 = vpop.f32.mrf.mxu0
  %v6367 = vadd.f32 0.0, %v6366
  %v6368 = vpop.f32.mrf.mxu0
  %v6369 = vpop.f32.mrf.mxu0
  %v6370 = vpop.f32.mrf.mxu0
  %6371 = vdwg.mxu0
  %v6372 = vmax.f32 %v6367, 0.0
  %v6373 = vpack.c.bf16 %v6372, %v6372
  %v6374 = vld [vmem:[%s4] sm:$0xf]
  %v6375 = vld [vmem:[%s4 + $0x4] sm:$0xf]
  %v6376 = vld [vmem:[%s4 + $0x8] sm:$0xf]
  %v6377 = vld [vmem:[%s4 + $0xc] sm:$0xf]
  %v6378 = vld [vmem:[%s4 + $0x10] sm:$0xf]
  %v6379 = vld [vmem:[%s4 + $0x14] sm:$0xf]
  %v6380 = vld [vmem:[%s4 + $0x18] sm:$0xf]
  %v6381 = vld [vmem:[%s4 + $0x1c] sm:$0xf]
  %v6390 = vunpack.c.l.b16 %v6374
  %v6391 = vunpack.c.l.b16 %v6375
  %v6392 = vunpack.c.l.b16 %v6376
  %v6393 = vunpack.c.l.b16 %v6377
  %v6394 = vunpack.c.l.b16 %v6378
  %v6395 = vunpack.c.l.b16 %v6379
  %v6396 = vunpack.c.l.b16 %v6380
  %v6397 = vunpack.c.l.b16 %v6381
  %v6398 = vpack.c.b16 %v6391, %v6390
  %v6399 = vpack.c.b16 %v6393, %v6392
  %v6400 = vpack.c.b16 %v6395, %v6394
  %v6401 = vpack.c.b16 %v6397, %v6396
  %vm6406 = vcmask 523264
  %v6408 = vsel %vm6406, %v6373, 0
  %6410 = vmatprep.subr.bf16.mxu0 0
  %6411 = vmatpush1.bf16.msra.mxu0 0
  %6412 = vmatprep.subr.bf16.mxu0 0
  %6413 = vmatpush1.bf16.msra.mxu0 0
  %6414 = vmatprep.subr.bf16.mxu0 0
  %6415 = vmatpush1.bf16.msra.mxu0 0
  %6416 = vmatprep.subr.bf16.mxu0 0
  %6417 = vmatpush1.bf16.msra.mxu0 0
  %6418 = vmatprep.subr.bf16.mxu0 0
  %6419 = vmatpush1.bf16.msra.mxu0 %v6401
  %6420 = vmatprep.subr.bf16.mxu0 0
  %6421 = vmatpush1.bf16.msra.mxu0 %v6400
  %6422 = vmatprep.subr.bf16.mxu0 0
  %6423 = vmatpush1.bf16.msra.mxu0 %v6399
  %6424 = vmatprep.subr.bf16.mxu0 0
  %6425 = vmatpush1.bf16.msra.mxu0 %v6398
  %6426 = vmatprep.subr.bf16.mxu0 0
  %6427 = vmatpush2.bf16.msra.mxu0 0
  %6428 = vmatprep.subr.bf16.mxu0 0
  %6429 = vmatpush2.bf16.msra.mxu0 0
  %6430 = vmatprep.subr.bf16.mxu0 0
  %6431 = vmatpush2.bf16.msra.mxu0 0
  %6432 = vmatprep.subr.bf16.mxu0 0
  %6433 = vmatpush2.bf16.msra.mxu0 0
  %6434 = vmatprep.subr.bf16.mxu0 0
  %6435 = vmatpush2.bf16.msra.mxu0 0
  %6436 = vmatprep.subr.bf16.mxu0 0
  %6437 = vmatpush2.bf16.msra.mxu0 0
  %6438 = vmatprep.subr.bf16.mxu0 0
  %6439 = vmatpush2.bf16.msra.mxu0 0
  %6440 = vmatprep.subr.bf16.mxu0 0
  %6441 = vmatpush2.bf16.msra.mxu0 0
  %6442 = vmatprep.mubr.bf16.mxu0 0
  %6443 = vmatmul.mubr.bf16.gmra.mxu0 %v6408
  %v6444 = vpop.f32.mrf.mxu0
  %v6445 = vadd.f32 0.0, %v6444
  %v6446 = vpop.f32.mrf.mxu0
  %v6447 = vpop.f32.mrf.mxu0
  %v6448 = vpop.f32.mrf.mxu0
  %6449 = vdwg.mxu0
  %v6451 = vrot.slane %v6445, 1
  %v6453 = vmul.f32 %v6445, %v6451
  %v6454 = vxor.u32 %v6453, 2147483648
  %v6455 = vmul.f32 %v6454, 1.442695
  %v6456 = vpow.pop %v6455
  %v6457 = vadd.f32 %v6456, 1.0
  %v6458 = vrcp.pop %v6457
  %v6459 = vmul.f32 1.0, %v6458
  %s6460 = scalar_lea.vmem [#allocation5], 96
  %6461 = vst [vmem:[%s6460 + $0x4] sm:$0xff] %v6094
  %6462 = vst [vmem:[%s6460 + $0xc] sm:$0xff] %v6096
  %6463 = vst [vmem:[%s6460 + $0x1c] sm:$0xff] %v6098
  %6464 = vst [vmem:[%s6460 + $0x24] sm:$0xff] %v6100
  %6465 = vst [vmem:[%s6460 + $0x34] sm:$0xff] %v6102
  %6466 = vst [vmem:[%s6460 + $0x3c] sm:$0xff] %v6104
  %6467 = vst [vmem:[%s6460 + $0x4c] sm:$0xff] %v6106
  %6468 = vst [vmem:[%s6460 + $0x54] sm:$0xff] %v6108
  %6469 = vst [vmem:[%s6460 + $0x64] sm:$0xff] %v6110
  %6470 = vst [vmem:[%s6460 + $0x6c] sm:$0xff] %v6112
  %6471 = vst [vmem:[%s6460 + $0x7c] sm:$0xff] %v6114
  %6472 = vst [vmem:[%s6460 + $0x84] sm:$0xff] %v6116
  %6473 = vst [vmem:[%s6460 + $0x94] sm:$0xff] %v6118
  %6474 = vst [vmem:[%s6460 + $0x9c] sm:$0xff] %v6120
  %6475 = vst [vmem:[%s6460 + $0xac] sm:$0xff] %v6122
  %6476 = vst [vmem:[%s6460 + $0xb4] sm:$0xff] %v6124
  %6477 = vst [vmem:[%s6460 + $0xc4] sm:$0xff] %v6126
  %6478 = vst [vmem:[%s6460 + $0xcc] sm:$0xff] %v6128
  %6479 = vst [vmem:[%s6460 + $0xdc] sm:$0xff] %v6130
  %6480 = vst [vmem:[%s6460 + $0xe4] sm:$0xff] %v6132
  %6481 = vst [vmem:[%s6460 + $0xf4] sm:$0xff] %v6134
  %6482 = vst [vmem:[%s6460 + $0xfc] sm:$0xff] %v6136
  %6483 = vst [vmem:[%s6460 + $0x10c] sm:$0xff] %v6138
  %6484 = vst [vmem:[%s6460 + $0x114] sm:$0xff] %v6140
  %6485 = vst [vmem:[%s6460 + $0x124] sm:$0xff] %v6142
  %6486 = vst [vmem:[%s6460 + $0x12c] sm:$0xff] %v6144
  %6487 = vst [vmem:[%s6460 + $0x13c] sm:$0xff] %v6146
  %6488 = vst [vmem:[%s6460 + $0x144] sm:$0xff] %v6148
  %6489 = vst [vmem:[%s6460 + $0x154] sm:$0xff] %v6150
  %6490 = vst [vmem:[%s6460 + $0x15c] sm:$0xff] %v6152
  %6491 = vst [vmem:[%s6460 + $0x16c] sm:$0xff] %v6154
  %6492 = vst [vmem:[%s6460 + $0x174] sm:$0xff] %v6156
  %s6493 = scalar_lea.vmem [#allocation5], 72
  %6494 = vst [vmem:[%s6493 + $0x4] sm:$0xff] %v6098
  %6495 = vst [vmem:[%s6493 + $0xc] sm:$0xff] %v6100
  %s6496 = scalar_lea.vmem [#allocation5], 480
  %6497 = vst [vmem:[%s6496 + $0x4] sm:$0xff] %v6150
  %6498 = vst [vmem:[%s6496 + $0xc] sm:$0xff] %v6152
  %s6499 = scalar_lea.vmem [#allocation5], 48
  %6500 = vst [vmem:[%s6499 + $0x4] sm:$0xff] %v6102
  %6501 = vst [vmem:[%s6499 + $0xc] sm:$0xff] %v6104
  %s6502 = scalar_lea.vmem [#allocation5], 504
  %6503 = vst [vmem:[%s6502 + $0x4] sm:$0xff] %v6146
  %6504 = vst [vmem:[%s6502 + $0xc] sm:$0xff] %v6148
  %s6505 = scalar_lea.vmem [#allocation5], 24
  %6506 = vst [vmem:[%s6505 + $0x4] sm:$0xff] %v6106
  %6507 = vst [vmem:[%s6505 + $0xc] sm:$0xff] %v6108
  %s6508 = scalar_lea.vmem [#allocation5], 528
  %6509 = vst [vmem:[%s6508 + $0x4] sm:$0xff] %v6142
  %6510 = vst [vmem:[%s6508 + $0xc] sm:$0xff] %v6144
  %6511 = vst [vmem:[#allocation5 + $0x4] sm:$0xff] %v6110
  %6512 = vst [vmem:[#allocation5 + $0xc] sm:$0xff] %v6112
  %s6513 = scalar_lea.vmem [#allocation5], 552
  %6514 = vst [vmem:[%s6513 + $0x4] sm:$0xff] %v6138
  %6515 = vst [vmem:[%s6513 + $0xc] sm:$0xff] %v6140
  %v6516 = vld [vmem:[#allocation5 + $0x5] sm:$0x1]
  %v6517 = vld [vmem:[#allocation5 + $0x1d] sm:$0x1]
  %v6518 = vld [vmem:[#allocation5 + $0x35] sm:$0x1]
  %v6519 = vld [vmem:[#allocation5 + $0x4d] sm:$0x1]
  %v6520 = vld [vmem:[#allocation5 + $0x65] sm:$0x1]
  %v6521 = vld [vmem:[#allocation5 + $0x7d] sm:$0x1]
  %v6522 = vld [vmem:[#allocation5 + $0x95] sm:$0x1]
  %v6523 = vld [vmem:[#allocation5 + $0xad] sm:$0x1]
  %v6524 = vld [vmem:[#allocation5 + $0xc5] sm:$0x1]
  %v6525 = vld [vmem:[#allocation5 + $0xdd] sm:$0x1]
  %v6526 = vld [vmem:[#allocation5 + $0xf5] sm:$0x1]
  %v6527 = vld [vmem:[#allocation5 + $0x10d] sm:$0x1]
  %v6528 = vld [vmem:[#allocation5 + $0x125] sm:$0x1]
  %v6529 = vld [vmem:[#allocation5 + $0x13d] sm:$0x1]
  %v6530 = vld [vmem:[#allocation5 + $0x155] sm:$0x1]
  %v6531 = vld [vmem:[#allocation5 + $0x16d] sm:$0x1]
  %v6532 = vld [vmem:[#allocation5 + $0x185] sm:$0x1]
  %v6533 = vld [vmem:[#allocation5 + $0x19d] sm:$0x1]
  %v6534 = vld [vmem:[#allocation5 + $0x1b5] sm:$0x1]
  %v6535 = vld [vmem:[#allocation5 + $0x1cd] sm:$0x1]
  %v6536 = vld [vmem:[#allocation5 + $0x1e5] sm:$0x1]
  %v6537 = vld [vmem:[#allocation5 + $0x1fd] sm:$0x1]
  %v6538 = vld [vmem:[#allocation5 + $0x215] sm:$0x1]
  %v6539 = vld [vmem:[#allocation5 + $0x22d] sm:$0x1]
  %6540 = vst [vmem:[#allocation5 + $0x3] sm:$0x1] %v6516
  %6541 = vst [vmem:[#allocation5 + $0x1b] sm:$0x1] %v6517
  %6542 = vst [vmem:[#allocation5 + $0x33] sm:$0x1] %v6518
  %6543 = vst [vmem:[#allocation5 + $0x4b] sm:$0x1] %v6519
  %6544 = vst [vmem:[#allocation5 + $0x63] sm:$0x1] %v6520
  %6545 = vst [vmem:[#allocation5 + $0x7b] sm:$0x1] %v6521
  %6546 = vst [vmem:[#allocation5 + $0x93] sm:$0x1] %v6522
  %6547 = vst [vmem:[#allocation5 + $0xab] sm:$0x1] %v6523
  %6548 = vst [vmem:[#allocation5 + $0xc3] sm:$0x1] %v6524
  %6549 = vst [vmem:[#allocation5 + $0xdb] sm:$0x1] %v6525
  %6550 = vst [vmem:[#allocation5 + $0xf3] sm:$0x1] %v6526
  %6551 = vst [vmem:[#allocation5 + $0x10b] sm:$0x1] %v6527
  %6552 = vst [vmem:[#allocation5 + $0x123] sm:$0x1] %v6528
  %6553 = vst [vmem:[#allocation5 + $0x13b] sm:$0x1] %v6529
  %6554 = vst [vmem:[#allocation5 + $0x153] sm:$0x1] %v6530
  %6555 = vst [vmem:[#allocation5 + $0x16b] sm:$0x1] %v6531
  %6556 = vst [vmem:[#allocation5 + $0x183] sm:$0x1] %v6532
  %6557 = vst [vmem:[#allocation5 + $0x19b] sm:$0x1] %v6533
  %6558 = vst [vmem:[#allocation5 + $0x1b3] sm:$0x1] %v6534
  %6559 = vst [vmem:[#allocation5 + $0x1cb] sm:$0x1] %v6535
  %6560 = vst [vmem:[#allocation5 + $0x1e3] sm:$0x1] %v6536
  %6561 = vst [vmem:[#allocation5 + $0x1fb] sm:$0x1] %v6537
  %6562 = vst [vmem:[#allocation5 + $0x213] sm:$0x1] %v6538
  %6563 = vst [vmem:[#allocation5 + $0x22b] sm:$0x1] %v6539
  %v6564 = vld [vmem:[#allocation5 + $0x12] sm:$0x1]
  %v6565 = vld [vmem:[#allocation5 + $0x2a] sm:$0x1]
  %v6566 = vld [vmem:[#allocation5 + $0x42] sm:$0x1]
  %v6567 = vld [vmem:[#allocation5 + $0x5a] sm:$0x1]
  %v6568 = vld [vmem:[#allocation5 + $0x72] sm:$0x1]
  %v6569 = vld [vmem:[#allocation5 + $0x8a] sm:$0x1]
  %v6570 = vld [vmem:[#allocation5 + $0xa2] sm:$0x1]
  %v6571 = vld [vmem:[#allocation5 + $0xba] sm:$0x1]
  %v6572 = vld [vmem:[#allocation5 + $0xd2] sm:$0x1]
  %v6573 = vld [vmem:[#allocation5 + $0xea] sm:$0x1]
  %v6574 = vld [vmem:[#allocation5 + $0x102] sm:$0x1]
  %v6575 = vld [vmem:[#allocation5 + $0x11a] sm:$0x1]
  %v6576 = vld [vmem:[#allocation5 + $0x132] sm:$0x1]
  %v6577 = vld [vmem:[#allocation5 + $0x14a] sm:$0x1]
  %v6578 = vld [vmem:[#allocation5 + $0x162] sm:$0x1]
  %v6579 = vld [vmem:[#allocation5 + $0x17a] sm:$0x1]
  %v6580 = vld [vmem:[#allocation5 + $0x192] sm:$0x1]
  %v6581 = vld [vmem:[#allocation5 + $0x1aa] sm:$0x1]
  %v6582 = vld [vmem:[#allocation5 + $0x1c2] sm:$0x1]
  %v6583 = vld [vmem:[#allocation5 + $0x1da] sm:$0x1]
  %v6584 = vld [vmem:[#allocation5 + $0x1f2] sm:$0x1]
  %v6585 = vld [vmem:[#allocation5 + $0x20a] sm:$0x1]
  %v6586 = vld [vmem:[#allocation5 + $0x222] sm:$0x1]
  %v6587 = vld [vmem:[#allocation5 + $0x23a] sm:$0x1]
  %6588 = vst [vmem:[#allocation5 + $0x14] sm:$0x1] %v6564
  %6589 = vst [vmem:[#allocation5 + $0x2c] sm:$0x1] %v6565
  %6590 = vst [vmem:[#allocation5 + $0x44] sm:$0x1] %v6566
  %6591 = vst [vmem:[#allocation5 + $0x5c] sm:$0x1] %v6567
  %6592 = vst [vmem:[#allocation5 + $0x74] sm:$0x1] %v6568
  %6593 = vst [vmem:[#allocation5 + $0x8c] sm:$0x1] %v6569
  %6594 = vst [vmem:[#allocation5 + $0xa4] sm:$0x1] %v6570
  %6595 = vst [vmem:[#allocation5 + $0xbc] sm:$0x1] %v6571
  %6596 = vst [vmem:[#allocation5 + $0xd4] sm:$0x1] %v6572
  %6597 = vst [vmem:[#allocation5 + $0xec] sm:$0x1] %v6573
  %6598 = vst [vmem:[#allocation5 + $0x104] sm:$0x1] %v6574
  %6599 = vst [vmem:[#allocation5 + $0x11c] sm:$0x1] %v6575
  %6600 = vst [vmem:[#allocation5 + $0x134] sm:$0x1] %v6576
  %6601 = vst [vmem:[#allocation5 + $0x14c] sm:$0x1] %v6577
  %6602 = vst [vmem:[#allocation5 + $0x164] sm:$0x1] %v6578
  %6603 = vst [vmem:[#allocation5 + $0x17c] sm:$0x1] %v6579
  %6604 = vst [vmem:[#allocation5 + $0x194] sm:$0x1] %v6580
  %6605 = vst [vmem:[#allocation5 + $0x1ac] sm:$0x1] %v6581
  %6606 = vst [vmem:[#allocation5 + $0x1c4] sm:$0x1] %v6582
  %6607 = vst [vmem:[#allocation5 + $0x1dc] sm:$0x1] %v6583
  %6608 = vst [vmem:[#allocation5 + $0x1f4] sm:$0x1] %v6584
  %6609 = vst [vmem:[#allocation5 + $0x20c] sm:$0x1] %v6585
  %6610 = vst [vmem:[#allocation5 + $0x224] sm:$0x1] %v6586
  %6611 = vst [vmem:[#allocation5 + $0x23c] sm:$0x1] %v6587
  %v6612 = vld [vmem:[#allocation5 + $0x6] sm:$0x1]
  %v6613 = vld [vmem:[#allocation5 + $0x1e] sm:$0x1]
  %v6614 = vld [vmem:[#allocation5 + $0x36] sm:$0x1]
  %v6615 = vld [vmem:[#allocation5 + $0x4e] sm:$0x1]
  %v6616 = vld [vmem:[#allocation5 + $0x66] sm:$0x1]
  %v6617 = vld [vmem:[#allocation5 + $0x7e] sm:$0x1]
  %v6618 = vld [vmem:[#allocation5 + $0x96] sm:$0x1]
  %v6619 = vld [vmem:[#allocation5 + $0xae] sm:$0x1]
  %v6620 = vld [vmem:[#allocation5 + $0xc6] sm:$0x1]
  %v6621 = vld [vmem:[#allocation5 + $0xde] sm:$0x1]
  %v6622 = vld [vmem:[#allocation5 + $0xf6] sm:$0x1]
  %v6623 = vld [vmem:[#allocation5 + $0x10e] sm:$0x1]
  %v6624 = vld [vmem:[#allocation5 + $0x126] sm:$0x1]
  %v6625 = vld [vmem:[#allocation5 + $0x13e] sm:$0x1]
  %v6626 = vld [vmem:[#allocation5 + $0x156] sm:$0x1]
  %v6627 = vld [vmem:[#allocation5 + $0x16e] sm:$0x1]
  %v6628 = vld [vmem:[#allocation5 + $0x186] sm:$0x1]
  %v6629 = vld [vmem:[#allocation5 + $0x19e] sm:$0x1]
  %v6630 = vld [vmem:[#allocation5 + $0x1b6] sm:$0x1]
  %v6631 = vld [vmem:[#allocation5 + $0x1ce] sm:$0x1]
  %v6632 = vld [vmem:[#allocation5 + $0x1e6] sm:$0x1]
  %v6633 = vld [vmem:[#allocation5 + $0x1fe] sm:$0x1]
  %v6634 = vld [vmem:[#allocation5 + $0x216] sm:$0x1]
  %v6635 = vld [vmem:[#allocation5 + $0x22e] sm:$0x1]
  %6636 = vst [vmem:[#allocation5 + $0x2] sm:$0x1] %v6612
  %6637 = vst [vmem:[#allocation5 + $0x1a] sm:$0x1] %v6613
  %6638 = vst [vmem:[#allocation5 + $0x32] sm:$0x1] %v6614
  %6639 = vst [vmem:[#allocation5 + $0x4a] sm:$0x1] %v6615
  %6640 = vst [vmem:[#allocation5 + $0x62] sm:$0x1] %v6616
  %6641 = vst [vmem:[#allocation5 + $0x7a] sm:$0x1] %v6617
  %6642 = vst [vmem:[#allocation5 + $0x92] sm:$0x1] %v6618
  %6643 = vst [vmem:[#allocation5 + $0xaa] sm:$0x1] %v6619
  %6644 = vst [vmem:[#allocation5 + $0xc2] sm:$0x1] %v6620
  %6645 = vst [vmem:[#allocation5 + $0xda] sm:$0x1] %v6621
  %6646 = vst [vmem:[#allocation5 + $0xf2] sm:$0x1] %v6622
  %6647 = vst [vmem:[#allocation5 + $0x10a] sm:$0x1] %v6623
  %6648 = vst [vmem:[#allocation5 + $0x122] sm:$0x1] %v6624
  %6649 = vst [vmem:[#allocation5 + $0x13a] sm:$0x1] %v6625
  %6650 = vst [vmem:[#allocation5 + $0x152] sm:$0x1] %v6626
  %6651 = vst [vmem:[#allocation5 + $0x16a] sm:$0x1] %v6627
  %6652 = vst [vmem:[#allocation5 + $0x182] sm:$0x1] %v6628
  %6653 = vst [vmem:[#allocation5 + $0x19a] sm:$0x1] %v6629
  %6654 = vst [vmem:[#allocation5 + $0x1b2] sm:$0x1] %v6630
  %6655 = vst [vmem:[#allocation5 + $0x1ca] sm:$0x1] %v6631
  %6656 = vst [vmem:[#allocation5 + $0x1e2] sm:$0x1] %v6632
  %6657 = vst [vmem:[#allocation5 + $0x1fa] sm:$0x1] %v6633
  %6658 = vst [vmem:[#allocation5 + $0x212] sm:$0x1] %v6634
  %6659 = vst [vmem:[#allocation5 + $0x22a] sm:$0x1] %v6635
  %v6660 = vld [vmem:[#allocation5 + $0x11] sm:$0x1]
  %v6661 = vld [vmem:[#allocation5 + $0x29] sm:$0x1]
  %v6662 = vld [vmem:[#allocation5 + $0x41] sm:$0x1]
  %v6663 = vld [vmem:[#allocation5 + $0x59] sm:$0x1]
  %v6664 = vld [vmem:[#allocation5 + $0x71] sm:$0x1]
  %v6665 = vld [vmem:[#allocation5 + $0x89] sm:$0x1]
  %v6666 = vld [vmem:[#allocation5 + $0xa1] sm:$0x1]
  %v6667 = vld [vmem:[#allocation5 + $0xb9] sm:$0x1]
  %v6668 = vld [vmem:[#allocation5 + $0xd1] sm:$0x1]
  %v6669 = vld [vmem:[#allocation5 + $0xe9] sm:$0x1]
  %v6670 = vld [vmem:[#allocation5 + $0x101] sm:$0x1]
  %v6671 = vld [vmem:[#allocation5 + $0x119] sm:$0x1]
  %v6672 = vld [vmem:[#allocation5 + $0x131] sm:$0x1]
  %v6673 = vld [vmem:[#allocation5 + $0x149] sm:$0x1]
  %v6674 = vld [vmem:[#allocation5 + $0x161] sm:$0x1]
  %v6675 = vld [vmem:[#allocation5 + $0x179] sm:$0x1]
  %v6676 = vld [vmem:[#allocation5 + $0x191] sm:$0x1]
  %v6677 = vld [vmem:[#allocation5 + $0x1a9] sm:$0x1]
  %v6678 = vld [vmem:[#allocation5 + $0x1c1] sm:$0x1]
  %v6679 = vld [vmem:[#allocation5 + $0x1d9] sm:$0x1]
  %v6680 = vld [vmem:[#allocation5 + $0x1f1] sm:$0x1]
  %v6681 = vld [vmem:[#allocation5 + $0x209] sm:$0x1]
  %v6682 = vld [vmem:[#allocation5 + $0x221] sm:$0x1]
  %v6683 = vld [vmem:[#allocation5 + $0x239] sm:$0x1]
  %6684 = vst [vmem:[#allocation5 + $0x15] sm:$0x1] %v6660
  %6685 = vst [vmem:[#allocation5 + $0x2d] sm:$0x1] %v6661
  %6686 = vst [vmem:[#allocation5 + $0x45] sm:$0x1] %v6662
  %6687 = vst [vmem:[#allocation5 + $0x5d] sm:$0x1] %v6663
  %6688 = vst [vmem:[#allocation5 + $0x75] sm:$0x1] %v6664
  %6689 = vst [vmem:[#allocation5 + $0x8d] sm:$0x1] %v6665
  %6690 = vst [vmem:[#allocation5 + $0xa5] sm:$0x1] %v6666
  %6691 = vst [vmem:[#allocation5 + $0xbd] sm:$0x1] %v6667
  %6692 = vst [vmem:[#allocation5 + $0xd5] sm:$0x1] %v6668
  %6693 = vst [vmem:[#allocation5 + $0xed] sm:$0x1] %v6669
  %6694 = vst [vmem:[#allocation5 + $0x105] sm:$0x1] %v6670
  %6695 = vst [vmem:[#allocation5 + $0x11d] sm:$0x1] %v6671
  %6696 = vst [vmem:[#allocation5 + $0x135] sm:$0x1] %v6672
  %6697 = vst [vmem:[#allocation5 + $0x14d] sm:$0x1] %v6673
  %6698 = vst [vmem:[#allocation5 + $0x165] sm:$0x1] %v6674
  %6699 = vst [vmem:[#allocation5 + $0x17d] sm:$0x1] %v6675
  %6700 = vst [vmem:[#allocation5 + $0x195] sm:$0x1] %v6676
  %6701 = vst [vmem:[#allocation5 + $0x1ad] sm:$0x1] %v6677
  %6702 = vst [vmem:[#allocation5 + $0x1c5] sm:$0x1] %v6678
  %6703 = vst [vmem:[#allocation5 + $0x1dd] sm:$0x1] %v6679
  %6704 = vst [vmem:[#allocation5 + $0x1f5] sm:$0x1] %v6680
  %6705 = vst [vmem:[#allocation5 + $0x20d] sm:$0x1] %v6681
  %6706 = vst [vmem:[#allocation5 + $0x225] sm:$0x1] %v6682
  %6707 = vst [vmem:[#allocation5 + $0x23d] sm:$0x1] %v6683
  %v6708 = vld [vmem:[#allocation5 + $0x7] sm:$0x1]
  %v6709 = vld [vmem:[#allocation5 + $0x1f] sm:$0x1]
  %v6710 = vld [vmem:[#allocation5 + $0x37] sm:$0x1]
  %v6711 = vld [vmem:[#allocation5 + $0x4f] sm:$0x1]
  %v6712 = vld [vmem:[#allocation5 + $0x67] sm:$0x1]
  %v6713 = vld [vmem:[#allocation5 + $0x7f] sm:$0x1]
  %v6714 = vld [vmem:[#allocation5 + $0x97] sm:$0x1]
  %v6715 = vld [vmem:[#allocation5 + $0xaf] sm:$0x1]
  %v6716 = vld [vmem:[#allocation5 + $0xc7] sm:$0x1]
  %v6717 = vld [vmem:[#allocation5 + $0xdf] sm:$0x1]
  %v6718 = vld [vmem:[#allocation5 + $0xf7] sm:$0x1]
  %v6719 = vld [vmem:[#allocation5 + $0x10f] sm:$0x1]
  %v6720 = vld [vmem:[#allocation5 + $0x127] sm:$0x1]
  %v6721 = vld [vmem:[#allocation5 + $0x13f] sm:$0x1]
  %v6722 = vld [vmem:[#allocation5 + $0x157] sm:$0x1]
  %v6723 = vld [vmem:[#allocation5 + $0x16f] sm:$0x1]
  %v6724 = vld [vmem:[#allocation5 + $0x187] sm:$0x1]
  %v6725 = vld [vmem:[#allocation5 + $0x19f] sm:$0x1]
  %v6726 = vld [vmem:[#allocation5 + $0x1b7] sm:$0x1]
  %v6727 = vld [vmem:[#allocation5 + $0x1cf] sm:$0x1]
  %v6728 = vld [vmem:[#allocation5 + $0x1e7] sm:$0x1]
  %v6729 = vld [vmem:[#allocation5 + $0x1ff] sm:$0x1]
  %v6730 = vld [vmem:[#allocation5 + $0x217] sm:$0x1]
  %v6731 = vld [vmem:[#allocation5 + $0x22f] sm:$0x1]
  %6732 = vst [vmem:[#allocation5 + $0x1] sm:$0x1] %v6708
  %6733 = vst [vmem:[#allocation5 + $0x19] sm:$0x1] %v6709
  %6734 = vst [vmem:[#allocation5 + $0x31] sm:$0x1] %v6710
  %6735 = vst [vmem:[#allocation5 + $0x49] sm:$0x1] %v6711
  %6736 = vst [vmem:[#allocation5 + $0x61] sm:$0x1] %v6712
  %6737 = vst [vmem:[#allocation5 + $0x79] sm:$0x1] %v6713
  %6738 = vst [vmem:[#allocation5 + $0x91] sm:$0x1] %v6714
  %6739 = vst [vmem:[#allocation5 + $0xa9] sm:$0x1] %v6715
  %6740 = vst [vmem:[#allocation5 + $0xc1] sm:$0x1] %v6716
  %6741 = vst [vmem:[#allocation5 + $0xd9] sm:$0x1] %v6717
  %6742 = vst [vmem:[#allocation5 + $0xf1] sm:$0x1] %v6718
  %6743 = vst [vmem:[#allocation5 + $0x109] sm:$0x1] %v6719
  %6744 = vst [vmem:[#allocation5 + $0x121] sm:$0x1] %v6720
  %6745 = vst [vmem:[#allocation5 + $0x139] sm:$0x1] %v6721
  %6746 = vst [vmem:[#allocation5 + $0x151] sm:$0x1] %v6722
  %6747 = vst [vmem:[#allocation5 + $0x169] sm:$0x1] %v6723
  %6748 = vst [vmem:[#allocation5 + $0x181] sm:$0x1] %v6724
  %6749 = vst [vmem:[#allocation5 + $0x199] sm:$0x1] %v6725
  %6750 = vst [vmem:[#allocation5 + $0x1b1] sm:$0x1] %v6726
  %6751 = vst [vmem:[#allocation5 + $0x1c9] sm:$0x1] %v6727
  %6752 = vst [vmem:[#allocation5 + $0x1e1] sm:$0x1] %v6728
  %6753 = vst [vmem:[#allocation5 + $0x1f9] sm:$0x1] %v6729
  %6754 = vst [vmem:[#allocation5 + $0x211] sm:$0x1] %v6730
  %6755 = vst [vmem:[#allocation5 + $0x229] sm:$0x1] %v6731
  %v6756 = vld [vmem:[#allocation5 + $0x10] sm:$0x1]
  %v6757 = vld [vmem:[#allocation5 + $0x28] sm:$0x1]
  %v6758 = vld [vmem:[#allocation5 + $0x40] sm:$0x1]
  %v6759 = vld [vmem:[#allocation5 + $0x58] sm:$0x1]
  %v6760 = vld [vmem:[#allocation5 + $0x70] sm:$0x1]
  %v6761 = vld [vmem:[#allocation5 + $0x88] sm:$0x1]
  %v6762 = vld [vmem:[#allocation5 + $0xa0] sm:$0x1]
  %v6763 = vld [vmem:[#allocation5 + $0xb8] sm:$0x1]
  %v6764 = vld [vmem:[#allocation5 + $0xd0] sm:$0x1]
  %v6765 = vld [vmem:[#allocation5 + $0xe8] sm:$0x1]
  %v6766 = vld [vmem:[#allocation5 + $0x100] sm:$0x1]
  %v6767 = vld [vmem:[#allocation5 + $0x118] sm:$0x1]
  %v6768 = vld [vmem:[#allocation5 + $0x130] sm:$0x1]
  %v6769 = vld [vmem:[#allocation5 + $0x148] sm:$0x1]
  %v6770 = vld [vmem:[#allocation5 + $0x160] sm:$0x1]
  %v6771 = vld [vmem:[#allocation5 + $0x178] sm:$0x1]
  %v6772 = vld [vmem:[#allocation5 + $0x190] sm:$0x1]
  %v6773 = vld [vmem:[#allocation5 + $0x1a8] sm:$0x1]
  %v6774 = vld [vmem:[#allocation5 + $0x1c0] sm:$0x1]
  %v6775 = vld [vmem:[#allocation5 + $0x1d8] sm:$0x1]
  %v6776 = vld [vmem:[#allocation5 + $0x1f0] sm:$0x1]
  %v6777 = vld [vmem:[#allocation5 + $0x208] sm:$0x1]
  %v6778 = vld [vmem:[#allocation5 + $0x220] sm:$0x1]
  %v6779 = vld [vmem:[#allocation5 + $0x238] sm:$0x1]
  %6780 = vst [vmem:[#allocation5 + $0x16] sm:$0x1] %v6756
  %6781 = vst [vmem:[#allocation5 + $0x2e] sm:$0x1] %v6757
  %6782 = vst [vmem:[#allocation5 + $0x46] sm:$0x1] %v6758
  %6783 = vst [vmem:[#allocation5 + $0x5e] sm:$0x1] %v6759
  %6784 = vst [vmem:[#allocation5 + $0x76] sm:$0x1] %v6760
  %6785 = vst [vmem:[#allocation5 + $0x8e] sm:$0x1] %v6761
  %6786 = vst [vmem:[#allocation5 + $0xa6] sm:$0x1] %v6762
  %6787 = vst [vmem:[#allocation5 + $0xbe] sm:$0x1] %v6763
  %6788 = vst [vmem:[#allocation5 + $0xd6] sm:$0x1] %v6764
  %6789 = vst [vmem:[#allocation5 + $0xee] sm:$0x1] %v6765
  %6790 = vst [vmem:[#allocation5 + $0x106] sm:$0x1] %v6766
  %6791 = vst [vmem:[#allocation5 + $0x11e] sm:$0x1] %v6767
  %6792 = vst [vmem:[#allocation5 + $0x136] sm:$0x1] %v6768
  %6793 = vst [vmem:[#allocation5 + $0x14e] sm:$0x1] %v6769
  %6794 = vst [vmem:[#allocation5 + $0x166] sm:$0x1] %v6770
  %6795 = vst [vmem:[#allocation5 + $0x17e] sm:$0x1] %v6771
  %6796 = vst [vmem:[#allocation5 + $0x196] sm:$0x1] %v6772
  %6797 = vst [vmem:[#allocation5 + $0x1ae] sm:$0x1] %v6773
  %6798 = vst [vmem:[#allocation5 + $0x1c6] sm:$0x1] %v6774
  %6799 = vst [vmem:[#allocation5 + $0x1de] sm:$0x1] %v6775
  %6800 = vst [vmem:[#allocation5 + $0x1f6] sm:$0x1] %v6776
  %6801 = vst [vmem:[#allocation5 + $0x20e] sm:$0x1] %v6777
  %6802 = vst [vmem:[#allocation5 + $0x226] sm:$0x1] %v6778
  %6803 = vst [vmem:[#allocation5 + $0x23e] sm:$0x1] %v6779
  %v6804 = vld [vmem:[#allocation5 + $0x8] sm:$0x1]
  %v6805 = vld [vmem:[#allocation5 + $0x20] sm:$0x1]
  %v6806 = vld [vmem:[#allocation5 + $0x38] sm:$0x1]
  %v6807 = vld [vmem:[#allocation5 + $0x50] sm:$0x1]
  %v6808 = vld [vmem:[#allocation5 + $0x68] sm:$0x1]
  %v6809 = vld [vmem:[#allocation5 + $0x80] sm:$0x1]
  %v6810 = vld [vmem:[#allocation5 + $0x98] sm:$0x1]
  %v6811 = vld [vmem:[#allocation5 + $0xb0] sm:$0x1]
  %v6812 = vld [vmem:[#allocation5 + $0xc8] sm:$0x1]
  %v6813 = vld [vmem:[#allocation5 + $0xe0] sm:$0x1]
  %v6814 = vld [vmem:[#allocation5 + $0xf8] sm:$0x1]
  %v6815 = vld [vmem:[#allocation5 + $0x110] sm:$0x1]
  %v6816 = vld [vmem:[#allocation5 + $0x128] sm:$0x1]
  %v6817 = vld [vmem:[#allocation5 + $0x140] sm:$0x1]
  %v6818 = vld [vmem:[#allocation5 + $0x158] sm:$0x1]
  %v6819 = vld [vmem:[#allocation5 + $0x170] sm:$0x1]
  %v6820 = vld [vmem:[#allocation5 + $0x188] sm:$0x1]
  %v6821 = vld [vmem:[#allocation5 + $0x1a0] sm:$0x1]
  %v6822 = vld [vmem:[#allocation5 + $0x1b8] sm:$0x1]
  %v6823 = vld [vmem:[#allocation5 + $0x1d0] sm:$0x1]
  %v6824 = vld [vmem:[#allocation5 + $0x1e8] sm:$0x1]
  %v6825 = vld [vmem:[#allocation5 + $0x200] sm:$0x1]
  %v6826 = vld [vmem:[#allocation5 + $0x218] sm:$0x1]
  %v6827 = vld [vmem:[#allocation5 + $0x230] sm:$0x1]
  %6828 = vst [vmem:[#allocation5] sm:$0x1] %v6804
  %6829 = vst [vmem:[#allocation5 + $0x18] sm:$0x1] %v6805
  %6830 = vst [vmem:[#allocation5 + $0x30] sm:$0x1] %v6806
  %6831 = vst [vmem:[#allocation5 + $0x48] sm:$0x1] %v6807
  %6832 = vst [vmem:[#allocation5 + $0x60] sm:$0x1] %v6808
  %6833 = vst [vmem:[#allocation5 + $0x78] sm:$0x1] %v6809
  %6834 = vst [vmem:[#allocation5 + $0x90] sm:$0x1] %v6810
  %6835 = vst [vmem:[#allocation5 + $0xa8] sm:$0x1] %v6811
  %6836 = vst [vmem:[#allocation5 + $0xc0] sm:$0x1] %v6812
  %6837 = vst [vmem:[#allocation5 + $0xd8] sm:$0x1] %v6813
  %6838 = vst [vmem:[#allocation5 + $0xf0] sm:$0x1] %v6814
  %6839 = vst [vmem:[#allocation5 + $0x108] sm:$0x1] %v6815
  %6840 = vst [vmem:[#allocation5 + $0x120] sm:$0x1] %v6816
  %6841 = vst [vmem:[#allocation5 + $0x138] sm:$0x1] %v6817
  %6842 = vst [vmem:[#allocation5 + $0x150] sm:$0x1] %v6818
  %6843 = vst [vmem:[#allocation5 + $0x168] sm:$0x1] %v6819
  %6844 = vst [vmem:[#allocation5 + $0x180] sm:$0x1] %v6820
  %6845 = vst [vmem:[#allocation5 + $0x198] sm:$0x1] %v6821
  %6846 = vst [vmem:[#allocation5 + $0x1b0] sm:$0x1] %v6822
  %6847 = vst [vmem:[#allocation5 + $0x1c8] sm:$0x1] %v6823
  %6848 = vst [vmem:[#allocation5 + $0x1e0] sm:$0x1] %v6824
  %6849 = vst [vmem:[#allocation5 + $0x1f8] sm:$0x1] %v6825
  %6850 = vst [vmem:[#allocation5 + $0x210] sm:$0x1] %v6826
  %6851 = vst [vmem:[#allocation5 + $0x228] sm:$0x1] %v6827
  %v6852 = vld [vmem:[#allocation5 + $0xf] sm:$0x1]
  %v6853 = vld [vmem:[#allocation5 + $0x27] sm:$0x1]
  %v6854 = vld [vmem:[#allocation5 + $0x3f] sm:$0x1]
  %v6855 = vld [vmem:[#allocation5 + $0x57] sm:$0x1]
  %v6856 = vld [vmem:[#allocation5 + $0x6f] sm:$0x1]
  %v6857 = vld [vmem:[#allocation5 + $0x87] sm:$0x1]
  %v6858 = vld [vmem:[#allocation5 + $0x9f] sm:$0x1]
  %v6859 = vld [vmem:[#allocation5 + $0xb7] sm:$0x1]
  %v6860 = vld [vmem:[#allocation5 + $0xcf] sm:$0x1]
  %v6861 = vld [vmem:[#allocation5 + $0xe7] sm:$0x1]
  %v6862 = vld [vmem:[#allocation5 + $0xff] sm:$0x1]
  %v6863 = vld [vmem:[#allocation5 + $0x117] sm:$0x1]
  %v6864 = vld [vmem:[#allocation5 + $0x12f] sm:$0x1]
  %v6865 = vld [vmem:[#allocation5 + $0x147] sm:$0x1]
  %v6866 = vld [vmem:[#allocation5 + $0x15f] sm:$0x1]
  %v6867 = vld [vmem:[#allocation5 + $0x177] sm:$0x1]
  %v6868 = vld [vmem:[#allocation5 + $0x18f] sm:$0x1]
  %v6869 = vld [vmem:[#allocation5 + $0x1a7] sm:$0x1]
  %v6870 = vld [vmem:[#allocation5 + $0x1bf] sm:$0x1]
  %v6871 = vld [vmem:[#allocation5 + $0x1d7] sm:$0x1]
  %v6872 = vld [vmem:[#allocation5 + $0x1ef] sm:$0x1]
  %v6873 = vld [vmem:[#allocation5 + $0x207] sm:$0x1]
  %v6874 = vld [vmem:[#allocation5 + $0x21f] sm:$0x1]
  %v6875 = vld [vmem:[#allocation5 + $0x237] sm:$0x1]
  %6876 = vst [vmem:[#allocation5 + $0x17] sm:$0x1] %v6852
  %6877 = vst [vmem:[#allocation5 + $0x2f] sm:$0x1] %v6853
  %6878 = vst [vmem:[#allocation5 + $0x47] sm:$0x1] %v6854
  %6879 = vst [vmem:[#allocation5 + $0x5f] sm:$0x1] %v6855
  %6880 = vst [vmem:[#allocation5 + $0x77] sm:$0x1] %v6856
  %6881 = vst [vmem:[#allocation5 + $0x8f] sm:$0x1] %v6857
  %6882 = vst [vmem:[#allocation5 + $0xa7] sm:$0x1] %v6858
  %6883 = vst [vmem:[#allocation5 + $0xbf] sm:$0x1] %v6859
  %6884 = vst [vmem:[#allocation5 + $0xd7] sm:$0x1] %v6860
  %6885 = vst [vmem:[#allocation5 + $0xef] sm:$0x1] %v6861
  %6886 = vst [vmem:[#allocation5 + $0x107] sm:$0x1] %v6862
  %6887 = vst [vmem:[#allocation5 + $0x11f] sm:$0x1] %v6863
  %6888 = vst [vmem:[#allocation5 + $0x137] sm:$0x1] %v6864
  %6889 = vst [vmem:[#allocation5 + $0x14f] sm:$0x1] %v6865
  %6890 = vst [vmem:[#allocation5 + $0x167] sm:$0x1] %v6866
  %6891 = vst [vmem:[#allocation5 + $0x17f] sm:$0x1] %v6867
  %6892 = vst [vmem:[#allocation5 + $0x197] sm:$0x1] %v6868
  %6893 = vst [vmem:[#allocation5 + $0x1af] sm:$0x1] %v6869
  %6894 = vst [vmem:[#allocation5 + $0x1c7] sm:$0x1] %v6870
  %6895 = vst [vmem:[#allocation5 + $0x1df] sm:$0x1] %v6871
  %6896 = vst [vmem:[#allocation5 + $0x1f7] sm:$0x1] %v6872
  %6897 = vst [vmem:[#allocation5 + $0x20f] sm:$0x1] %v6873
  %6898 = vst [vmem:[#allocation5 + $0x227] sm:$0x1] %v6874
  %6899 = vst [vmem:[#allocation5 + $0x23f] sm:$0x1] %v6875
  %v6900 = vld [vmem:[%s5] sm:$0xff]
  %v6901 = vld [vmem:[%s5 + $0x8] sm:$0xff]
  %v6902 = vld [vmem:[%s5 + $0x10] sm:$0xff]
  %v6903 = vld [vmem:[%s5 + $0x18] sm:$0x1]
  %v6904 = vld [vmem:[#allocation5] sm:$0xff]
  %v6905 = vld [vmem:[#allocation5 + $0x8] sm:$0xff]
  %v6906 = vld [vmem:[#allocation5 + $0x18] sm:$0xff]
  %v6907 = vld [vmem:[#allocation5 + $0x20] sm:$0xff]
  %v6908 = vld [vmem:[#allocation5 + $0x30] sm:$0xff]
  %v6909 = vld [vmem:[#allocation5 + $0x38] sm:$0xff]
  %v6910 = vld [vmem:[#allocation5 + $0x48] sm:$0xff]
  %v6911 = vld [vmem:[#allocation5 + $0x50] sm:$0xff]
  %v6912 = vld [vmem:[#allocation5 + $0x60] sm:$0xff]
  %v6913 = vld [vmem:[#allocation5 + $0x68] sm:$0xff]
  %v6914 = vld [vmem:[#allocation5 + $0x78] sm:$0xff]
  %v6915 = vld [vmem:[#allocation5 + $0x80] sm:$0xff]
  %v6916 = vld [vmem:[#allocation5 + $0x90] sm:$0xff]
  %v6917 = vld [vmem:[#allocation5 + $0x98] sm:$0xff]
  %v6918 = vld [vmem:[#allocation5 + $0xa8] sm:$0xff]
  %v6919 = vld [vmem:[#allocation5 + $0xb0] sm:$0xff]
  %v6920 = vld [vmem:[#allocation5 + $0xc0] sm:$0xff]
  %v6921 = vld [vmem:[#allocation5 + $0xc8] sm:$0xff]
  %v6922 = vld [vmem:[#allocation5 + $0xd8] sm:$0xff]
  %v6923 = vld [vmem:[#allocation5 + $0xe0] sm:$0xff]
  %v6924 = vld [vmem:[#allocation5 + $0xf0] sm:$0xff]
  %v6925 = vld [vmem:[#allocation5 + $0xf8] sm:$0xff]
  %v6926 = vld [vmem:[#allocation5 + $0x108] sm:$0xff]
  %v6927 = vld [vmem:[#allocation5 + $0x110] sm:$0xff]
  %v6928 = vld [vmem:[#allocation5 + $0x120] sm:$0xff]
  %v6929 = vld [vmem:[#allocation5 + $0x128] sm:$0xff]
  %v6930 = vld [vmem:[#allocation5 + $0x138] sm:$0xff]
  %v6931 = vld [vmem:[#allocation5 + $0x140] sm:$0xff]
  %v6932 = vld [vmem:[#allocation5 + $0x150] sm:$0xff]
  %v6933 = vld [vmem:[#allocation5 + $0x158] sm:$0xff]
  %v6934 = vld [vmem:[#allocation5 + $0x168] sm:$0xff]
  %v6935 = vld [vmem:[#allocation5 + $0x170] sm:$0xff]
  %v6936 = vld [vmem:[#allocation5 + $0x180] sm:$0xff]
  %v6937 = vld [vmem:[#allocation5 + $0x188] sm:$0xff]
  %v6938 = vld [vmem:[#allocation5 + $0x198] sm:$0xff]
  %v6939 = vld [vmem:[#allocation5 + $0x1a0] sm:$0xff]
  %v6940 = vld [vmem:[#allocation5 + $0x1b0] sm:$0xff]
  %v6941 = vld [vmem:[#allocation5 + $0x1b8] sm:$0xff]
  %v6942 = vld [vmem:[#allocation5 + $0x1c8] sm:$0xff]
  %v6943 = vld [vmem:[#allocation5 + $0x1d0] sm:$0xff]
  %v6944 = vld [vmem:[#allocation5 + $0x1e0] sm:$0xff]
  %v6945 = vld [vmem:[#allocation5 + $0x1e8] sm:$0xff]
  %v6946 = vld [vmem:[#allocation5 + $0x1f8] sm:$0xff]
  %v6947 = vld [vmem:[#allocation5 + $0x200] sm:$0xff]
  %v6948 = vld [vmem:[#allocation5 + $0x210] sm:$0xff]
  %v6949 = vld [vmem:[#allocation5 + $0x218] sm:$0xff]
  %v6950 = vld [vmem:[#allocation5 + $0x228] sm:$0xff]
  %v6951 = vld [vmem:[#allocation5 + $0x230] sm:$0xff]
  %v6952 = vlaneseq
  %v6953 = vshrl.u32 %v6952, 7
  %v6954 = vsub.s32 0, %v6953
  %v6955 = vrot.slane %v6900, %v6954
  %v6956 = vmul.f32 %v6904, %v6955
  %v6957 = vmul.f32 %v6905, %v6955
  %v6958 = vmul.f32 %v6906, %v6955
  %v6959 = vmul.f32 %v6907, %v6955
  %v6960 = vmul.f32 %v6908, %v6955
  %v6961 = vmul.f32 %v6909, %v6955
  %v6962 = vmul.f32 %v6910, %v6955
  %v6963 = vmul.f32 %v6911, %v6955
  %v6964 = vmul.f32 %v6912, %v6955
  %v6965 = vmul.f32 %v6913, %v6955
  %v6966 = vmul.f32 %v6914, %v6955
  %v6967 = vmul.f32 %v6915, %v6955
  %v6968 = vmul.f32 %v6916, %v6955
  %v6969 = vmul.f32 %v6917, %v6955
  %v6970 = vmul.f32 %v6918, %v6955
  %v6971 = vmul.f32 %v6919, %v6955
  %v6972 = vmul.f32 %v6920, %v6955
  %v6973 = vmul.f32 %v6921, %v6955
  %v6974 = vmul.f32 %v6922, %v6955
  %v6975 = vmul.f32 %v6923, %v6955
  %v6976 = vmul.f32 %v6924, %v6955
  %v6977 = vmul.f32 %v6925, %v6955
  %v6978 = vmul.f32 %v6926, %v6955
  %v6979 = vmul.f32 %v6927, %v6955
  %v6980 = vmul.f32 %v6928, %v6955
  %v6981 = vmul.f32 %v6929, %v6955
  %v6982 = vmul.f32 %v6930, %v6955
  %v6983 = vmul.f32 %v6931, %v6955
  %v6984 = vmul.f32 %v6932, %v6955
  %v6985 = vmul.f32 %v6933, %v6955
  %v6986 = vmul.f32 %v6934, %v6955
  %v6987 = vmul.f32 %v6935, %v6955
  %v6988 = vadd.f32 %v6956, 0.0
  %v6989 = vadd.f32 %v6957, 0.0
  %v6990 = vadd.f32 %v6958, 0.0
  %v6991 = vadd.f32 %v6959, 0.0
  %v6992 = vadd.f32 %v6960, 0.0
  %v6993 = vadd.f32 %v6961, 0.0
  %v6994 = vadd.f32 %v6962, 0.0
  %v6995 = vadd.f32 %v6963, 0.0
  %v6996 = vadd.f32 %v6964, 0.0
  %v6997 = vadd.f32 %v6965, 0.0
  %v6998 = vadd.f32 %v6966, 0.0
  %v6999 = vadd.f32 %v6967, 0.0
  %v7000 = vadd.f32 %v6968, 0.0
  %v7001 = vadd.f32 %v6969, 0.0
  %v7002 = vadd.f32 %v6970, 0.0
  %v7003 = vadd.f32 %v6971, 0.0
  %v7004 = vadd.f32 %v6972, 0.0
  %v7005 = vadd.f32 %v6973, 0.0
  %v7006 = vadd.f32 %v6974, 0.0
  %v7007 = vadd.f32 %v6975, 0.0
  %v7008 = vadd.f32 %v6976, 0.0
  %v7009 = vadd.f32 %v6977, 0.0
  %v7010 = vadd.f32 %v6978, 0.0
  %v7011 = vadd.f32 %v6979, 0.0
  %v7012 = vadd.f32 %v6980, 0.0
  %v7013 = vadd.f32 %v6981, 0.0
  %v7014 = vadd.f32 %v6982, 0.0
  %v7015 = vadd.f32 %v6983, 0.0
  %v7016 = vadd.f32 %v6984, 0.0
  %v7017 = vadd.f32 %v6985, 0.0
  %v7018 = vadd.f32 %v6986, 0.0
  %v7019 = vadd.f32 %v6987, 0.0
  %v7020 = vlaneseq
  %v7021 = vshrl.u32 %v7020, 7
  %v7022 = vsub.s32 5, %v7021
  %v7023 = vrot.slane %v6900, %v7022
  %v7024 = vmul.f32 %v6908, %v7023
  %v7025 = vmul.f32 %v6909, %v7023
  %v7026 = vmul.f32 %v6910, %v7023
  %v7027 = vmul.f32 %v6911, %v7023
  %v7028 = vmul.f32 %v6912, %v7023
  %v7029 = vmul.f32 %v6913, %v7023
  %v7030 = vmul.f32 %v6914, %v7023
  %v7031 = vmul.f32 %v6915, %v7023
  %v7032 = vmul.f32 %v6916, %v7023
  %v7033 = vmul.f32 %v6917, %v7023
  %v7034 = vmul.f32 %v6918, %v7023
  %v7035 = vmul.f32 %v6919, %v7023
  %v7036 = vmul.f32 %v6920, %v7023
  %v7037 = vmul.f32 %v6921, %v7023
  %v7038 = vmul.f32 %v6922, %v7023
  %v7039 = vmul.f32 %v6923, %v7023
  %v7040 = vmul.f32 %v6924, %v7023
  %v7041 = vmul.f32 %v6925, %v7023
  %v7042 = vmul.f32 %v6926, %v7023
  %v7043 = vmul.f32 %v6927, %v7023
  %v7044 = vmul.f32 %v6928, %v7023
  %v7045 = vmul.f32 %v6929, %v7023
  %v7046 = vmul.f32 %v6930, %v7023
  %v7047 = vmul.f32 %v6931, %v7023
  %v7048 = vmul.f32 %v6932, %v7023
  %v7049 = vmul.f32 %v6933, %v7023
  %v7050 = vmul.f32 %v6934, %v7023
  %v7051 = vmul.f32 %v6935, %v7023
  %v7052 = vmul.f32 %v6936, %v7023
  %v7053 = vmul.f32 %v6937, %v7023
  %v7054 = vmul.f32 %v6938, %v7023
  %v7055 = vmul.f32 %v6939, %v7023
  %v7056 = vadd.f32 %v6988, %v7024
  %v7057 = vadd.f32 %v6989, %v7025
  %v7058 = vadd.f32 %v6990, %v7026
  %v7059 = vadd.f32 %v6991, %v7027
  %v7060 = vadd.f32 %v6992, %v7028
  %v7061 = vadd.f32 %v6993, %v7029
  %v7062 = vadd.f32 %v6994, %v7030
  %v7063 = vadd.f32 %v6995, %v7031
  %v7064 = vadd.f32 %v6996, %v7032
  %v7065 = vadd.f32 %v6997, %v7033
  %v7066 = vadd.f32 %v6998, %v7034
  %v7067 = vadd.f32 %v6999, %v7035
  %v7068 = vadd.f32 %v7000, %v7036
  %v7069 = vadd.f32 %v7001, %v7037
  %v7070 = vadd.f32 %v7002, %v7038
  %v7071 = vadd.f32 %v7003, %v7039
  %v7072 = vadd.f32 %v7004, %v7040
  %v7073 = vadd.f32 %v7005, %v7041
  %v7074 = vadd.f32 %v7006, %v7042
  %v7075 = vadd.f32 %v7007, %v7043
  %v7076 = vadd.f32 %v7008, %v7044
  %v7077 = vadd.f32 %v7009, %v7045
  %v7078 = vadd.f32 %v7010, %v7046
  %v7079 = vadd.f32 %v7011, %v7047
  %v7080 = vadd.f32 %v7012, %v7048
  %v7081 = vadd.f32 %v7013, %v7049
  %v7082 = vadd.f32 %v7014, %v7050
  %v7083 = vadd.f32 %v7015, %v7051
  %v7084 = vadd.f32 %v7016, %v7052
  %v7085 = vadd.f32 %v7017, %v7053
  %v7086 = vadd.f32 %v7018, %v7054
  %v7087 = vadd.f32 %v7019, %v7055
  %v7088 = vlaneseq
  %v7089 = vshrl.u32 %v7088, 7
  %v7090 = vsub.s32 2, %v7089
  %v7091 = vrot.slane %v6901, %v7090
  %v7092 = vmul.f32 %v6912, %v7091
  %v7093 = vmul.f32 %v6913, %v7091
  %v7094 = vmul.f32 %v6914, %v7091
  %v7095 = vmul.f32 %v6915, %v7091
  %v7096 = vmul.f32 %v6916, %v7091
  %v7097 = vmul.f32 %v6917, %v7091
  %v7098 = vmul.f32 %v6918, %v7091
  %v7099 = vmul.f32 %v6919, %v7091
  %v7100 = vmul.f32 %v6920, %v7091
  %v7101 = vmul.f32 %v6921, %v7091
  %v7102 = vmul.f32 %v6922, %v7091
  %v7103 = vmul.f32 %v6923, %v7091
  %v7104 = vmul.f32 %v6924, %v7091
  %v7105 = vmul.f32 %v6925, %v7091
  %v7106 = vmul.f32 %v6926, %v7091
  %v7107 = vmul.f32 %v6927, %v7091
  %v7108 = vmul.f32 %v6928, %v7091
  %v7109 = vmul.f32 %v6929, %v7091
  %v7110 = vmul.f32 %v6930, %v7091
  %v7111 = vmul.f32 %v6931, %v7091
  %v7112 = vmul.f32 %v6932, %v7091
  %v7113 = vmul.f32 %v6933, %v7091
  %v7114 = vmul.f32 %v6934, %v7091
  %v7115 = vmul.f32 %v6935, %v7091
  %v7116 = vmul.f32 %v6936, %v7091
  %v7117 = vmul.f32 %v6937, %v7091
  %v7118 = vmul.f32 %v6938, %v7091
  %v7119 = vmul.f32 %v6939, %v7091
  %v7120 = vmul.f32 %v6940, %v7091
  %v7121 = vmul.f32 %v6941, %v7091
  %v7122 = vmul.f32 %v6942, %v7091
  %v7123 = vmul.f32 %v6943, %v7091
  %v7124 = vadd.f32 %v7056, %v7092
  %v7125 = vadd.f32 %v7057, %v7093
  %v7126 = vadd.f32 %v7058, %v7094
  %v7127 = vadd.f32 %v7059, %v7095
  %v7128 = vadd.f32 %v7060, %v7096
  %v7129 = vadd.f32 %v7061, %v7097
  %v7130 = vadd.f32 %v7062, %v7098
  %v7131 = vadd.f32 %v7063, %v7099
  %v7132 = vadd.f32 %v7064, %v7100
  %v7133 = vadd.f32 %v7065, %v7101
  %v7134 = vadd.f32 %v7066, %v7102
  %v7135 = vadd.f32 %v7067, %v7103
  %v7136 = vadd.f32 %v7068, %v7104
  %v7137 = vadd.f32 %v7069, %v7105
  %v7138 = vadd.f32 %v7070, %v7106
  %v7139 = vadd.f32 %v7071, %v7107
  %v7140 = vadd.f32 %v7072, %v7108
  %v7141 = vadd.f32 %v7073, %v7109
  %v7142 = vadd.f32 %v7074, %v7110
  %v7143 = vadd.f32 %v7075, %v7111
  %v7144 = vadd.f32 %v7076, %v7112
  %v7145 = vadd.f32 %v7077, %v7113
  %v7146 = vadd.f32 %v7078, %v7114
  %v7147 = vadd.f32 %v7079, %v7115
  %v7148 = vadd.f32 %v7080, %v7116
  %v7149 = vadd.f32 %v7081, %v7117
  %v7150 = vadd.f32 %v7082, %v7118
  %v7151 = vadd.f32 %v7083, %v7119
  %v7152 = vadd.f32 %v7084, %v7120
  %v7153 = vadd.f32 %v7085, %v7121
  %v7154 = vadd.f32 %v7086, %v7122
  %v7155 = vadd.f32 %v7087, %v7123
  %v7156 = vlaneseq
  %v7157 = vshrl.u32 %v7156, 7
  %v7158 = vsub.s32 7, %v7157
  %v7159 = vrot.slane %v6901, %v7158
  %v7160 = vmul.f32 %v6916, %v7159
  %v7161 = vmul.f32 %v6917, %v7159
  %v7162 = vmul.f32 %v6918, %v7159
  %v7163 = vmul.f32 %v6919, %v7159
  %v7164 = vmul.f32 %v6920, %v7159
  %v7165 = vmul.f32 %v6921, %v7159
  %v7166 = vmul.f32 %v6922, %v7159
  %v7167 = vmul.f32 %v6923, %v7159
  %v7168 = vmul.f32 %v6924, %v7159
  %v7169 = vmul.f32 %v6925, %v7159
  %v7170 = vmul.f32 %v6926, %v7159
  %v7171 = vmul.f32 %v6927, %v7159
  %v7172 = vmul.f32 %v6928, %v7159
  %v7173 = vmul.f32 %v6929, %v7159
  %v7174 = vmul.f32 %v6930, %v7159
  %v7175 = vmul.f32 %v6931, %v7159
  %v7176 = vmul.f32 %v6932, %v7159
  %v7177 = vmul.f32 %v6933, %v7159
  %v7178 = vmul.f32 %v6934, %v7159
  %v7179 = vmul.f32 %v6935, %v7159
  %v7180 = vmul.f32 %v6936, %v7159
  %v7181 = vmul.f32 %v6937, %v7159
  %v7182 = vmul.f32 %v6938, %v7159
  %v7183 = vmul.f32 %v6939, %v7159
  %v7184 = vmul.f32 %v6940, %v7159
  %v7185 = vmul.f32 %v6941, %v7159
  %v7186 = vmul.f32 %v6942, %v7159
  %v7187 = vmul.f32 %v6943, %v7159
  %v7188 = vmul.f32 %v6944, %v7159
  %v7189 = vmul.f32 %v6945, %v7159
  %v7190 = vmul.f32 %v6946, %v7159
  %v7191 = vmul.f32 %v6947, %v7159
  %v7192 = vadd.f32 %v7124, %v7160
  %v7193 = vadd.f32 %v7125, %v7161
  %v7194 = vadd.f32 %v7126, %v7162
  %v7195 = vadd.f32 %v7127, %v7163
  %v7196 = vadd.f32 %v7128, %v7164
  %v7197 = vadd.f32 %v7129, %v7165
  %v7198 = vadd.f32 %v7130, %v7166
  %v7199 = vadd.f32 %v7131, %v7167
  %v7200 = vadd.f32 %v7132, %v7168
  %v7201 = vadd.f32 %v7133, %v7169
  %v7202 = vadd.f32 %v7134, %v7170
  %v7203 = vadd.f32 %v7135, %v7171
  %v7204 = vadd.f32 %v7136, %v7172
  %v7205 = vadd.f32 %v7137, %v7173
  %v7206 = vadd.f32 %v7138, %v7174
  %v7207 = vadd.f32 %v7139, %v7175
  %v7208 = vadd.f32 %v7140, %v7176
  %v7209 = vadd.f32 %v7141, %v7177
  %v7210 = vadd.f32 %v7142, %v7178
  %v7211 = vadd.f32 %v7143, %v7179
  %v7212 = vadd.f32 %v7144, %v7180
  %v7213 = vadd.f32 %v7145, %v7181
  %v7214 = vadd.f32 %v7146, %v7182
  %v7215 = vadd.f32 %v7147, %v7183
  %v7216 = vadd.f32 %v7148, %v7184
  %v7217 = vadd.f32 %v7149, %v7185
  %v7218 = vadd.f32 %v7150, %v7186
  %v7219 = vadd.f32 %v7151, %v7187
  %v7220 = vadd.f32 %v7152, %v7188
  %v7221 = vadd.f32 %v7153, %v7189
  %v7222 = vadd.f32 %v7154, %v7190
  %v7223 = vadd.f32 %v7155, %v7191
  %v7224 = vlaneseq
  %v7225 = vshrl.u32 %v7224, 7
  %v7226 = vsub.s32 4, %v7225
  %v7227 = vrot.slane %v6902, %v7226
  %v7228 = vmul.f32 %v6920, %v7227
  %v7229 = vmul.f32 %v6921, %v7227
  %v7230 = vmul.f32 %v6922, %v7227
  %v7231 = vmul.f32 %v6923, %v7227
  %v7232 = vmul.f32 %v6924, %v7227
  %v7233 = vmul.f32 %v6925, %v7227
  %v7234 = vmul.f32 %v6926, %v7227
  %v7235 = vmul.f32 %v6927, %v7227
  %v7236 = vmul.f32 %v6928, %v7227
  %v7237 = vmul.f32 %v6929, %v7227
  %v7238 = vmul.f32 %v6930, %v7227
  %v7239 = vmul.f32 %v6931, %v7227
  %v7240 = vmul.f32 %v6932, %v7227
  %v7241 = vmul.f32 %v6933, %v7227
  %v7242 = vmul.f32 %v6934, %v7227
  %v7243 = vmul.f32 %v6935, %v7227
  %v7244 = vmul.f32 %v6936, %v7227
  %v7245 = vmul.f32 %v6937, %v7227
  %v7246 = vmul.f32 %v6938, %v7227
  %v7247 = vmul.f32 %v6939, %v7227
  %v7248 = vmul.f32 %v6940, %v7227
  %v7249 = vmul.f32 %v6941, %v7227
  %v7250 = vmul.f32 %v6942, %v7227
  %v7251 = vmul.f32 %v6943, %v7227
  %v7252 = vmul.f32 %v6944, %v7227
  %v7253 = vmul.f32 %v6945, %v7227
  %v7254 = vmul.f32 %v6946, %v7227
  %v7255 = vmul.f32 %v6947, %v7227
  %v7256 = vmul.f32 %v6948, %v7227
  %v7257 = vmul.f32 %v6949, %v7227
  %v7258 = vmul.f32 %v6950, %v7227
  %v7259 = vmul.f32 %v6951, %v7227
  %v7260 = vadd.f32 %v7192, %v7228
  %v7261 = vadd.f32 %v7193, %v7229
  %v7262 = vadd.f32 %v7194, %v7230
  %v7263 = vadd.f32 %v7195, %v7231
  %v7264 = vadd.f32 %v7196, %v7232
  %v7265 = vadd.f32 %v7197, %v7233
  %v7266 = vadd.f32 %v7198, %v7234
  %v7267 = vadd.f32 %v7199, %v7235
  %v7268 = vadd.f32 %v7200, %v7236
  %v7269 = vadd.f32 %v7201, %v7237
  %v7270 = vadd.f32 %v7202, %v7238
  %v7271 = vadd.f32 %v7203, %v7239
  %v7272 = vadd.f32 %v7204, %v7240
  %v7273 = vadd.f32 %v7205, %v7241
  %v7274 = vadd.f32 %v7206, %v7242
  %v7275 = vadd.f32 %v7207, %v7243
  %v7276 = vadd.f32 %v7208, %v7244
  %v7277 = vadd.f32 %v7209, %v7245
  %v7278 = vadd.f32 %v7210, %v7246
  %v7279 = vadd.f32 %v7211, %v7247
  %v7280 = vadd.f32 %v7212, %v7248
  %v7281 = vadd.f32 %v7213, %v7249
  %v7282 = vadd.f32 %v7214, %v7250
  %v7283 = vadd.f32 %v7215, %v7251
  %v7284 = vadd.f32 %v7216, %v7252
  %v7285 = vadd.f32 %v7217, %v7253
  %v7286 = vadd.f32 %v7218, %v7254
  %v7287 = vadd.f32 %v7219, %v7255
  %v7288 = vadd.f32 %v7220, %v7256
  %v7289 = vadd.f32 %v7221, %v7257
  %v7290 = vadd.f32 %v7222, %v7258
  %v7291 = vadd.f32 %v7223, %v7259
  %v7292 = vld [vmem:[#allocation5 + $0x2] sm:$0xff]
  %v7293 = vld [vmem:[#allocation5 + $0xa] sm:$0xff]
  %v7294 = vld [vmem:[#allocation5 + $0x1a] sm:$0xff]
  %v7295 = vld [vmem:[#allocation5 + $0x22] sm:$0xff]
  %v7296 = vld [vmem:[#allocation5 + $0x32] sm:$0xff]
  %v7297 = vld [vmem:[#allocation5 + $0x3a] sm:$0xff]
  %v7298 = vld [vmem:[#allocation5 + $0x4a] sm:$0xff]
  %v7299 = vld [vmem:[#allocation5 + $0x52] sm:$0xff]
  %v7300 = vld [vmem:[#allocation5 + $0x62] sm:$0xff]
  %v7301 = vld [vmem:[#allocation5 + $0x6a] sm:$0xff]
  %v7302 = vld [vmem:[#allocation5 + $0x7a] sm:$0xff]
  %v7303 = vld [vmem:[#allocation5 + $0x82] sm:$0xff]
  %v7304 = vld [vmem:[#allocation5 + $0x92] sm:$0xff]
  %v7305 = vld [vmem:[#allocation5 + $0x9a] sm:$0xff]
  %v7306 = vld [vmem:[#allocation5 + $0xaa] sm:$0xff]
  %v7307 = vld [vmem:[#allocation5 + $0xb2] sm:$0xff]
  %v7308 = vld [vmem:[#allocation5 + $0xc2] sm:$0xff]
  %v7309 = vld [vmem:[#allocation5 + $0xca] sm:$0xff]
  %v7310 = vld [vmem:[#allocation5 + $0xda] sm:$0xff]
  %v7311 = vld [vmem:[#allocation5 + $0xe2] sm:$0xff]
  %v7312 = vld [vmem:[#allocation5 + $0xf2] sm:$0xff]
  %v7313 = vld [vmem:[#allocation5 + $0xfa] sm:$0xff]
  %v7314 = vld [vmem:[#allocation5 + $0x10a] sm:$0xff]
  %v7315 = vld [vmem:[#allocation5 + $0x112] sm:$0xff]
  %v7316 = vld [vmem:[#allocation5 + $0x122] sm:$0xff]
  %v7317 = vld [vmem:[#allocation5 + $0x12a] sm:$0xff]
  %v7318 = vld [vmem:[#allocation5 + $0x13a] sm:$0xff]
  %v7319 = vld [vmem:[#allocation5 + $0x142] sm:$0xff]
  %v7320 = vld [vmem:[#allocation5 + $0x152] sm:$0xff]
  %v7321 = vld [vmem:[#allocation5 + $0x15a] sm:$0xff]
  %v7322 = vld [vmem:[#allocation5 + $0x16a] sm:$0xff]
  %v7323 = vld [vmem:[#allocation5 + $0x172] sm:$0xff]
  %v7324 = vld [vmem:[#allocation5 + $0x182] sm:$0xff]
  %v7325 = vld [vmem:[#allocation5 + $0x18a] sm:$0xff]
  %v7326 = vld [vmem:[#allocation5 + $0x19a] sm:$0xff]
  %v7327 = vld [vmem:[#allocation5 + $0x1a2] sm:$0xff]
  %v7328 = vld [vmem:[#allocation5 + $0x1b2] sm:$0xff]
  %v7329 = vld [vmem:[#allocation5 + $0x1ba] sm:$0xff]
  %v7330 = vld [vmem:[#allocation5 + $0x1ca] sm:$0xff]
  %v7331 = vld [vmem:[#allocation5 + $0x1d2] sm:$0xff]
  %v7332 = vld [vmem:[#allocation5 + $0x1e2] sm:$0xff]
  %v7333 = vld [vmem:[#allocation5 + $0x1ea] sm:$0xff]
  %v7334 = vld [vmem:[#allocation5 + $0x1fa] sm:$0xff]
  %v7335 = vld [vmem:[#allocation5 + $0x202] sm:$0xff]
  %v7336 = vld [vmem:[#allocation5 + $0x212] sm:$0xff]
  %v7337 = vld [vmem:[#allocation5 + $0x21a] sm:$0xff]
  %v7338 = vld [vmem:[#allocation5 + $0x22a] sm:$0xff]
  %v7339 = vld [vmem:[#allocation5 + $0x232] sm:$0xff]
  %v7340 = vlaneseq
  %v7341 = vshrl.u32 %v7340, 7
  %v7342 = vsub.s32 1, %v7341
  %v7343 = vrot.slane %v6900, %v7342
  %v7344 = vmul.f32 %v7292, %v7343
  %v7345 = vmul.f32 %v7293, %v7343
  %v7346 = vmul.f32 %v7294, %v7343
  %v7347 = vmul.f32 %v7295, %v7343
  %v7348 = vmul.f32 %v7296, %v7343
  %v7349 = vmul.f32 %v7297, %v7343
  %v7350 = vmul.f32 %v7298, %v7343
  %v7351 = vmul.f32 %v7299, %v7343
  %v7352 = vmul.f32 %v7300, %v7343
  %v7353 = vmul.f32 %v7301, %v7343
  %v7354 = vmul.f32 %v7302, %v7343
  %v7355 = vmul.f32 %v7303, %v7343
  %v7356 = vmul.f32 %v7304, %v7343
  %v7357 = vmul.f32 %v7305, %v7343
  %v7358 = vmul.f32 %v7306, %v7343
  %v7359 = vmul.f32 %v7307, %v7343
  %v7360 = vmul.f32 %v7308, %v7343
  %v7361 = vmul.f32 %v7309, %v7343
  %v7362 = vmul.f32 %v7310, %v7343
  %v7363 = vmul.f32 %v7311, %v7343
  %v7364 = vmul.f32 %v7312, %v7343
  %v7365 = vmul.f32 %v7313, %v7343
  %v7366 = vmul.f32 %v7314, %v7343
  %v7367 = vmul.f32 %v7315, %v7343
  %v7368 = vmul.f32 %v7316, %v7343
  %v7369 = vmul.f32 %v7317, %v7343
  %v7370 = vmul.f32 %v7318, %v7343
  %v7371 = vmul.f32 %v7319, %v7343
  %v7372 = vmul.f32 %v7320, %v7343
  %v7373 = vmul.f32 %v7321, %v7343
  %v7374 = vmul.f32 %v7322, %v7343
  %v7375 = vmul.f32 %v7323, %v7343
  %v7376 = vadd.f32 %v7260, %v7344
  %v7377 = vadd.f32 %v7261, %v7345
  %v7378 = vadd.f32 %v7262, %v7346
  %v7379 = vadd.f32 %v7263, %v7347
  %v7380 = vadd.f32 %v7264, %v7348
  %v7381 = vadd.f32 %v7265, %v7349
  %v7382 = vadd.f32 %v7266, %v7350
  %v7383 = vadd.f32 %v7267, %v7351
  %v7384 = vadd.f32 %v7268, %v7352
  %v7385 = vadd.f32 %v7269, %v7353
  %v7386 = vadd.f32 %v7270, %v7354
  %v7387 = vadd.f32 %v7271, %v7355
  %v7388 = vadd.f32 %v7272, %v7356
  %v7389 = vadd.f32 %v7273, %v7357
  %v7390 = vadd.f32 %v7274, %v7358
  %v7391 = vadd.f32 %v7275, %v7359
  %v7392 = vadd.f32 %v7276, %v7360
  %v7393 = vadd.f32 %v7277, %v7361
  %v7394 = vadd.f32 %v7278, %v7362
  %v7395 = vadd.f32 %v7279, %v7363
  %v7396 = vadd.f32 %v7280, %v7364
  %v7397 = vadd.f32 %v7281, %v7365
  %v7398 = vadd.f32 %v7282, %v7366
  %v7399 = vadd.f32 %v7283, %v7367
  %v7400 = vadd.f32 %v7284, %v7368
  %v7401 = vadd.f32 %v7285, %v7369
  %v7402 = vadd.f32 %v7286, %v7370
  %v7403 = vadd.f32 %v7287, %v7371
  %v7404 = vadd.f32 %v7288, %v7372
  %v7405 = vadd.f32 %v7289, %v7373
  %v7406 = vadd.f32 %v7290, %v7374
  %v7407 = vadd.f32 %v7291, %v7375
  %v7408 = vlaneseq
  %v7409 = vshrl.u32 %v7408, 7
  %v7410 = vsub.s32 6, %v7409
  %v7411 = vrot.slane %v6900, %v7410
  %v7412 = vmul.f32 %v7296, %v7411
  %v7413 = vmul.f32 %v7297, %v7411
  %v7414 = vmul.f32 %v7298, %v7411
  %v7415 = vmul.f32 %v7299, %v7411
  %v7416 = vmul.f32 %v7300, %v7411
  %v7417 = vmul.f32 %v7301, %v7411
  %v7418 = vmul.f32 %v7302, %v7411
  %v7419 = vmul.f32 %v7303, %v7411
  %v7420 = vmul.f32 %v7304, %v7411
  %v7421 = vmul.f32 %v7305, %v7411
  %v7422 = vmul.f32 %v7306, %v7411
  %v7423 = vmul.f32 %v7307, %v7411
  %v7424 = vmul.f32 %v7308, %v7411
  %v7425 = vmul.f32 %v7309, %v7411
  %v7426 = vmul.f32 %v7310, %v7411
  %v7427 = vmul.f32 %v7311, %v7411
  %v7428 = vmul.f32 %v7312, %v7411
  %v7429 = vmul.f32 %v7313, %v7411
  %v7430 = vmul.f32 %v7314, %v7411
  %v7431 = vmul.f32 %v7315, %v7411
  %v7432 = vmul.f32 %v7316, %v7411
  %v7433 = vmul.f32 %v7317, %v7411
  %v7434 = vmul.f32 %v7318, %v7411
  %v7435 = vmul.f32 %v7319, %v7411
  %v7436 = vmul.f32 %v7320, %v7411
  %v7437 = vmul.f32 %v7321, %v7411
  %v7438 = vmul.f32 %v7322, %v7411
  %v7439 = vmul.f32 %v7323, %v7411
  %v7440 = vmul.f32 %v7324, %v7411
  %v7441 = vmul.f32 %v7325, %v7411
  %v7442 = vmul.f32 %v7326, %v7411
  %v7443 = vmul.f32 %v7327, %v7411
  %v7444 = vadd.f32 %v7376, %v7412
  %v7445 = vadd.f32 %v7377, %v7413
  %v7446 = vadd.f32 %v7378, %v7414
  %v7447 = vadd.f32 %v7379, %v7415
  %v7448 = vadd.f32 %v7380, %v7416
  %v7449 = vadd.f32 %v7381, %v7417
  %v7450 = vadd.f32 %v7382, %v7418
  %v7451 = vadd.f32 %v7383, %v7419
  %v7452 = vadd.f32 %v7384, %v7420
  %v7453 = vadd.f32 %v7385, %v7421
  %v7454 = vadd.f32 %v7386, %v7422
  %v7455 = vadd.f32 %v7387, %v7423
  %v7456 = vadd.f32 %v7388, %v7424
  %v7457 = vadd.f32 %v7389, %v7425
  %v7458 = vadd.f32 %v7390, %v7426
  %v7459 = vadd.f32 %v7391, %v7427
  %v7460 = vadd.f32 %v7392, %v7428
  %v7461 = vadd.f32 %v7393, %v7429
  %v7462 = vadd.f32 %v7394, %v7430
  %v7463 = vadd.f32 %v7395, %v7431
  %v7464 = vadd.f32 %v7396, %v7432
  %v7465 = vadd.f32 %v7397, %v7433
  %v7466 = vadd.f32 %v7398, %v7434
  %v7467 = vadd.f32 %v7399, %v7435
  %v7468 = vadd.f32 %v7400, %v7436
  %v7469 = vadd.f32 %v7401, %v7437
  %v7470 = vadd.f32 %v7402, %v7438
  %v7471 = vadd.f32 %v7403, %v7439
  %v7472 = vadd.f32 %v7404, %v7440
  %v7473 = vadd.f32 %v7405, %v7441
  %v7474 = vadd.f32 %v7406, %v7442
  %v7475 = vadd.f32 %v7407, %v7443
  %v7476 = vlaneseq
  %v7477 = vshrl.u32 %v7476, 7
  %v7478 = vsub.s32 3, %v7477
  %v7479 = vrot.slane %v6901, %v7478
  %v7480 = vmul.f32 %v7300, %v7479
  %v7481 = vmul.f32 %v7301, %v7479
  %v7482 = vmul.f32 %v7302, %v7479
  %v7483 = vmul.f32 %v7303, %v7479
  %v7484 = vmul.f32 %v7304, %v7479
  %v7485 = vmul.f32 %v7305, %v7479
  %v7486 = vmul.f32 %v7306, %v7479
  %v7487 = vmul.f32 %v7307, %v7479
  %v7488 = vmul.f32 %v7308, %v7479
  %v7489 = vmul.f32 %v7309, %v7479
  %v7490 = vmul.f32 %v7310, %v7479
  %v7491 = vmul.f32 %v7311, %v7479
  %v7492 = vmul.f32 %v7312, %v7479
  %v7493 = vmul.f32 %v7313, %v7479
  %v7494 = vmul.f32 %v7314, %v7479
  %v7495 = vmul.f32 %v7315, %v7479
  %v7496 = vmul.f32 %v7316, %v7479
  %v7497 = vmul.f32 %v7317, %v7479
  %v7498 = vmul.f32 %v7318, %v7479
  %v7499 = vmul.f32 %v7319, %v7479
  %v7500 = vmul.f32 %v7320, %v7479
  %v7501 = vmul.f32 %v7321, %v7479
  %v7502 = vmul.f32 %v7322, %v7479
  %v7503 = vmul.f32 %v7323, %v7479
  %v7504 = vmul.f32 %v7324, %v7479
  %v7505 = vmul.f32 %v7325, %v7479
  %v7506 = vmul.f32 %v7326, %v7479
  %v7507 = vmul.f32 %v7327, %v7479
  %v7508 = vmul.f32 %v7328, %v7479
  %v7509 = vmul.f32 %v7329, %v7479
  %v7510 = vmul.f32 %v7330, %v7479
  %v7511 = vmul.f32 %v7331, %v7479
  %v7512 = vadd.f32 %v7444, %v7480
  %v7513 = vadd.f32 %v7445, %v7481
  %v7514 = vadd.f32 %v7446, %v7482
  %v7515 = vadd.f32 %v7447, %v7483
  %v7516 = vadd.f32 %v7448, %v7484
  %v7517 = vadd.f32 %v7449, %v7485
  %v7518 = vadd.f32 %v7450, %v7486
  %v7519 = vadd.f32 %v7451, %v7487
  %v7520 = vadd.f32 %v7452, %v7488
  %v7521 = vadd.f32 %v7453, %v7489
  %v7522 = vadd.f32 %v7454, %v7490
  %v7523 = vadd.f32 %v7455, %v7491
  %v7524 = vadd.f32 %v7456, %v7492
  %v7525 = vadd.f32 %v7457, %v7493
  %v7526 = vadd.f32 %v7458, %v7494
  %v7527 = vadd.f32 %v7459, %v7495
  %v7528 = vadd.f32 %v7460, %v7496
  %v7529 = vadd.f32 %v7461, %v7497
  %v7530 = vadd.f32 %v7462, %v7498
  %v7531 = vadd.f32 %v7463, %v7499
  %v7532 = vadd.f32 %v7464, %v7500
  %v7533 = vadd.f32 %v7465, %v7501
  %v7534 = vadd.f32 %v7466, %v7502
  %v7535 = vadd.f32 %v7467, %v7503
  %v7536 = vadd.f32 %v7468, %v7504
  %v7537 = vadd.f32 %v7469, %v7505
  %v7538 = vadd.f32 %v7470, %v7506
  %v7539 = vadd.f32 %v7471, %v7507
  %v7540 = vadd.f32 %v7472, %v7508
  %v7541 = vadd.f32 %v7473, %v7509
  %v7542 = vadd.f32 %v7474, %v7510
  %v7543 = vadd.f32 %v7475, %v7511
  %v7544 = vlaneseq
  %v7545 = vshrl.u32 %v7544, 7
  %v7546 = vsub.s32 0, %v7545
  %v7547 = vrot.slane %v6902, %v7546
  %v7548 = vmul.f32 %v7304, %v7547
  %v7549 = vmul.f32 %v7305, %v7547
  %v7550 = vmul.f32 %v7306, %v7547
  %v7551 = vmul.f32 %v7307, %v7547
  %v7552 = vmul.f32 %v7308, %v7547
  %v7553 = vmul.f32 %v7309, %v7547
  %v7554 = vmul.f32 %v7310, %v7547
  %v7555 = vmul.f32 %v7311, %v7547
  %v7556 = vmul.f32 %v7312, %v7547
  %v7557 = vmul.f32 %v7313, %v7547
  %v7558 = vmul.f32 %v7314, %v7547
  %v7559 = vmul.f32 %v7315, %v7547
  %v7560 = vmul.f32 %v7316, %v7547
  %v7561 = vmul.f32 %v7317, %v7547
  %v7562 = vmul.f32 %v7318, %v7547
  %v7563 = vmul.f32 %v7319, %v7547
  %v7564 = vmul.f32 %v7320, %v7547
  %v7565 = vmul.f32 %v7321, %v7547
  %v7566 = vmul.f32 %v7322, %v7547
  %v7567 = vmul.f32 %v7323, %v7547
  %v7568 = vmul.f32 %v7324, %v7547
  %v7569 = vmul.f32 %v7325, %v7547
  %v7570 = vmul.f32 %v7326, %v7547
  %v7571 = vmul.f32 %v7327, %v7547
  %v7572 = vmul.f32 %v7328, %v7547
  %v7573 = vmul.f32 %v7329, %v7547
  %v7574 = vmul.f32 %v7330, %v7547
  %v7575 = vmul.f32 %v7331, %v7547
  %v7576 = vmul.f32 %v7332, %v7547
  %v7577 = vmul.f32 %v7333, %v7547
  %v7578 = vmul.f32 %v7334, %v7547
  %v7579 = vmul.f32 %v7335, %v7547
  %v7580 = vadd.f32 %v7512, %v7548
  %v7581 = vadd.f32 %v7513, %v7549
  %v7582 = vadd.f32 %v7514, %v7550
  %v7583 = vadd.f32 %v7515, %v7551
  %v7584 = vadd.f32 %v7516, %v7552
  %v7585 = vadd.f32 %v7517, %v7553
  %v7586 = vadd.f32 %v7518, %v7554
  %v7587 = vadd.f32 %v7519, %v7555
  %v7588 = vadd.f32 %v7520, %v7556
  %v7589 = vadd.f32 %v7521, %v7557
  %v7590 = vadd.f32 %v7522, %v7558
  %v7591 = vadd.f32 %v7523, %v7559
  %v7592 = vadd.f32 %v7524, %v7560
  %v7593 = vadd.f32 %v7525, %v7561
  %v7594 = vadd.f32 %v7526, %v7562
  %v7595 = vadd.f32 %v7527, %v7563
  %v7596 = vadd.f32 %v7528, %v7564
  %v7597 = vadd.f32 %v7529, %v7565
  %v7598 = vadd.f32 %v7530, %v7566
  %v7599 = vadd.f32 %v7531, %v7567
  %v7600 = vadd.f32 %v7532, %v7568
  %v7601 = vadd.f32 %v7533, %v7569
  %v7602 = vadd.f32 %v7534, %v7570
  %v7603 = vadd.f32 %v7535, %v7571
  %v7604 = vadd.f32 %v7536, %v7572
  %v7605 = vadd.f32 %v7537, %v7573
  %v7606 = vadd.f32 %v7538, %v7574
  %v7607 = vadd.f32 %v7539, %v7575
  %v7608 = vadd.f32 %v7540, %v7576
  %v7609 = vadd.f32 %v7541, %v7577
  %v7610 = vadd.f32 %v7542, %v7578
  %v7611 = vadd.f32 %v7543, %v7579
  %v7612 = vlaneseq
  %v7613 = vshrl.u32 %v7612, 7
  %v7614 = vsub.s32 5, %v7613
  %v7615 = vrot.slane %v6902, %v7614
  %v7616 = vmul.f32 %v7308, %v7615
  %v7617 = vmul.f32 %v7309, %v7615
  %v7618 = vmul.f32 %v7310, %v7615
  %v7619 = vmul.f32 %v7311, %v7615
  %v7620 = vmul.f32 %v7312, %v7615
  %v7621 = vmul.f32 %v7313, %v7615
  %v7622 = vmul.f32 %v7314, %v7615
  %v7623 = vmul.f32 %v7315, %v7615
  %v7624 = vmul.f32 %v7316, %v7615
  %v7625 = vmul.f32 %v7317, %v7615
  %v7626 = vmul.f32 %v7318, %v7615
  %v7627 = vmul.f32 %v7319, %v7615
  %v7628 = vmul.f32 %v7320, %v7615
  %v7629 = vmul.f32 %v7321, %v7615
  %v7630 = vmul.f32 %v7322, %v7615
  %v7631 = vmul.f32 %v7323, %v7615
  %v7632 = vmul.f32 %v7324, %v7615
  %v7633 = vmul.f32 %v7325, %v7615
  %v7634 = vmul.f32 %v7326, %v7615
  %v7635 = vmul.f32 %v7327, %v7615
  %v7636 = vmul.f32 %v7328, %v7615
  %v7637 = vmul.f32 %v7329, %v7615
  %v7638 = vmul.f32 %v7330, %v7615
  %v7639 = vmul.f32 %v7331, %v7615
  %v7640 = vmul.f32 %v7332, %v7615
  %v7641 = vmul.f32 %v7333, %v7615
  %v7642 = vmul.f32 %v7334, %v7615
  %v7643 = vmul.f32 %v7335, %v7615
  %v7644 = vmul.f32 %v7336, %v7615
  %v7645 = vmul.f32 %v7337, %v7615
  %v7646 = vmul.f32 %v7338, %v7615
  %v7647 = vmul.f32 %v7339, %v7615
  %v7648 = vadd.f32 %v7580, %v7616
  %v7649 = vadd.f32 %v7581, %v7617
  %v7650 = vadd.f32 %v7582, %v7618
  %v7651 = vadd.f32 %v7583, %v7619
  %v7652 = vadd.f32 %v7584, %v7620
  %v7653 = vadd.f32 %v7585, %v7621
  %v7654 = vadd.f32 %v7586, %v7622
  %v7655 = vadd.f32 %v7587, %v7623
  %v7656 = vadd.f32 %v7588, %v7624
  %v7657 = vadd.f32 %v7589, %v7625
  %v7658 = vadd.f32 %v7590, %v7626
  %v7659 = vadd.f32 %v7591, %v7627
  %v7660 = vadd.f32 %v7592, %v7628
  %v7661 = vadd.f32 %v7593, %v7629
  %v7662 = vadd.f32 %v7594, %v7630
  %v7663 = vadd.f32 %v7595, %v7631
  %v7664 = vadd.f32 %v7596, %v7632
  %v7665 = vadd.f32 %v7597, %v7633
  %v7666 = vadd.f32 %v7598, %v7634
  %v7667 = vadd.f32 %v7599, %v7635
  %v7668 = vadd.f32 %v7600, %v7636
  %v7669 = vadd.f32 %v7601, %v7637
  %v7670 = vadd.f32 %v7602, %v7638
  %v7671 = vadd.f32 %v7603, %v7639
  %v7672 = vadd.f32 %v7604, %v7640
  %v7673 = vadd.f32 %v7605, %v7641
  %v7674 = vadd.f32 %v7606, %v7642
  %v7675 = vadd.f32 %v7607, %v7643
  %v7676 = vadd.f32 %v7608, %v7644
  %v7677 = vadd.f32 %v7609, %v7645
  %v7678 = vadd.f32 %v7610, %v7646
  %v7679 = vadd.f32 %v7611, %v7647
  %v7680 = vld [vmem:[#allocation5 + $0x4] sm:$0xff]
  %v7681 = vld [vmem:[#allocation5 + $0xc] sm:$0xff]
  %v7682 = vld [vmem:[#allocation5 + $0x1c] sm:$0xff]
  %v7683 = vld [vmem:[#allocation5 + $0x24] sm:$0xff]
  %v7684 = vld [vmem:[#allocation5 + $0x34] sm:$0xff]
  %v7685 = vld [vmem:[#allocation5 + $0x3c] sm:$0xff]
  %v7686 = vld [vmem:[#allocation5 + $0x4c] sm:$0xff]
  %v7687 = vld [vmem:[#allocation5 + $0x54] sm:$0xff]
  %v7688 = vld [vmem:[#allocation5 + $0x64] sm:$0xff]
  %v7689 = vld [vmem:[#allocation5 + $0x6c] sm:$0xff]
  %v7690 = vld [vmem:[#allocation5 + $0x7c] sm:$0xff]
  %v7691 = vld [vmem:[#allocation5 + $0x84] sm:$0xff]
  %v7692 = vld [vmem:[#allocation5 + $0x94] sm:$0xff]
  %v7693 = vld [vmem:[#allocation5 + $0x9c] sm:$0xff]
  %v7694 = vld [vmem:[#allocation5 + $0xac] sm:$0xff]
  %v7695 = vld [vmem:[#allocation5 + $0xb4] sm:$0xff]
  %v7696 = vld [vmem:[#allocation5 + $0xc4] sm:$0xff]
  %v7697 = vld [vmem:[#allocation5 + $0xcc] sm:$0xff]
  %v7698 = vld [vmem:[#allocation5 + $0xdc] sm:$0xff]
  %v7699 = vld [vmem:[#allocation5 + $0xe4] sm:$0xff]
  %v7700 = vld [vmem:[#allocation5 + $0xf4] sm:$0xff]
  %v7701 = vld [vmem:[#allocation5 + $0xfc] sm:$0xff]
  %v7702 = vld [vmem:[#allocation5 + $0x10c] sm:$0xff]
  %v7703 = vld [vmem:[#allocation5 + $0x114] sm:$0xff]
  %v7704 = vld [vmem:[#allocation5 + $0x124] sm:$0xff]
  %v7705 = vld [vmem:[#allocation5 + $0x12c] sm:$0xff]
  %v7706 = vld [vmem:[#allocation5 + $0x13c] sm:$0xff]
  %v7707 = vld [vmem:[#allocation5 + $0x144] sm:$0xff]
  %v7708 = vld [vmem:[#allocation5 + $0x154] sm:$0xff]
  %v7709 = vld [vmem:[#allocation5 + $0x15c] sm:$0xff]
  %v7710 = vld [vmem:[#allocation5 + $0x16c] sm:$0xff]
  %v7711 = vld [vmem:[#allocation5 + $0x174] sm:$0xff]
  %v7712 = vld [vmem:[#allocation5 + $0x184] sm:$0xff]
  %v7713 = vld [vmem:[#allocation5 + $0x18c] sm:$0xff]
  %v7714 = vld [vmem:[#allocation5 + $0x19c] sm:$0xff]
  %v7715 = vld [vmem:[#allocation5 + $0x1a4] sm:$0xff]
  %v7716 = vld [vmem:[#allocation5 + $0x1b4] sm:$0xff]
  %v7717 = vld [vmem:[#allocation5 + $0x1bc] sm:$0xff]
  %v7718 = vld [vmem:[#allocation5 + $0x1cc] sm:$0xff]
  %v7719 = vld [vmem:[#allocation5 + $0x1d4] sm:$0xff]
  %v7720 = vld [vmem:[#allocation5 + $0x1e4] sm:$0xff]
  %v7721 = vld [vmem:[#allocation5 + $0x1ec] sm:$0xff]
  %v7722 = vld [vmem:[#allocation5 + $0x1fc] sm:$0xff]
  %v7723 = vld [vmem:[#allocation5 + $0x204] sm:$0xff]
  %v7724 = vld [vmem:[#allocation5 + $0x214] sm:$0xff]
  %v7725 = vld [vmem:[#allocation5 + $0x21c] sm:$0xff]
  %v7726 = vld [vmem:[#allocation5 + $0x22c] sm:$0xff]
  %v7727 = vld [vmem:[#allocation5 + $0x234] sm:$0xff]
  %v7728 = vlaneseq
  %v7729 = vshrl.u32 %v7728, 7
  %v7730 = vsub.s32 2, %v7729
  %v7731 = vrot.slane %v6900, %v7730
  %v7732 = vmul.f32 %v7680, %v7731
  %v7733 = vmul.f32 %v7681, %v7731
  %v7734 = vmul.f32 %v7682, %v7731
  %v7735 = vmul.f32 %v7683, %v7731
  %v7736 = vmul.f32 %v7684, %v7731
  %v7737 = vmul.f32 %v7685, %v7731
  %v7738 = vmul.f32 %v7686, %v7731
  %v7739 = vmul.f32 %v7687, %v7731
  %v7740 = vmul.f32 %v7688, %v7731
  %v7741 = vmul.f32 %v7689, %v7731
  %v7742 = vmul.f32 %v7690, %v7731
  %v7743 = vmul.f32 %v7691, %v7731
  %v7744 = vmul.f32 %v7692, %v7731
  %v7745 = vmul.f32 %v7693, %v7731
  %v7746 = vmul.f32 %v7694, %v7731
  %v7747 = vmul.f32 %v7695, %v7731
  %v7748 = vmul.f32 %v7696, %v7731
  %v7749 = vmul.f32 %v7697, %v7731
  %v7750 = vmul.f32 %v7698, %v7731
  %v7751 = vmul.f32 %v7699, %v7731
  %v7752 = vmul.f32 %v7700, %v7731
  %v7753 = vmul.f32 %v7701, %v7731
  %v7754 = vmul.f32 %v7702, %v7731
  %v7755 = vmul.f32 %v7703, %v7731
  %v7756 = vmul.f32 %v7704, %v7731
  %v7757 = vmul.f32 %v7705, %v7731
  %v7758 = vmul.f32 %v7706, %v7731
  %v7759 = vmul.f32 %v7707, %v7731
  %v7760 = vmul.f32 %v7708, %v7731
  %v7761 = vmul.f32 %v7709, %v7731
  %v7762 = vmul.f32 %v7710, %v7731
  %v7763 = vmul.f32 %v7711, %v7731
  %v7764 = vadd.f32 %v7648, %v7732
  %v7765 = vadd.f32 %v7649, %v7733
  %v7766 = vadd.f32 %v7650, %v7734
  %v7767 = vadd.f32 %v7651, %v7735
  %v7768 = vadd.f32 %v7652, %v7736
  %v7769 = vadd.f32 %v7653, %v7737
  %v7770 = vadd.f32 %v7654, %v7738
  %v7771 = vadd.f32 %v7655, %v7739
  %v7772 = vadd.f32 %v7656, %v7740
  %v7773 = vadd.f32 %v7657, %v7741
  %v7774 = vadd.f32 %v7658, %v7742
  %v7775 = vadd.f32 %v7659, %v7743
  %v7776 = vadd.f32 %v7660, %v7744
  %v7777 = vadd.f32 %v7661, %v7745
  %v7778 = vadd.f32 %v7662, %v7746
  %v7779 = vadd.f32 %v7663, %v7747
  %v7780 = vadd.f32 %v7664, %v7748
  %v7781 = vadd.f32 %v7665, %v7749
  %v7782 = vadd.f32 %v7666, %v7750
  %v7783 = vadd.f32 %v7667, %v7751
  %v7784 = vadd.f32 %v7668, %v7752
  %v7785 = vadd.f32 %v7669, %v7753
  %v7786 = vadd.f32 %v7670, %v7754
  %v7787 = vadd.f32 %v7671, %v7755
  %v7788 = vadd.f32 %v7672, %v7756
  %v7789 = vadd.f32 %v7673, %v7757
  %v7790 = vadd.f32 %v7674, %v7758
  %v7791 = vadd.f32 %v7675, %v7759
  %v7792 = vadd.f32 %v7676, %v7760
  %v7793 = vadd.f32 %v7677, %v7761
  %v7794 = vadd.f32 %v7678, %v7762
  %v7795 = vadd.f32 %v7679, %v7763
  %v7796 = vlaneseq
  %v7797 = vshrl.u32 %v7796, 7
  %v7798 = vsub.s32 7, %v7797
  %v7799 = vrot.slane %v6900, %v7798
  %v7800 = vmul.f32 %v7684, %v7799
  %v7801 = vmul.f32 %v7685, %v7799
  %v7802 = vmul.f32 %v7686, %v7799
  %v7803 = vmul.f32 %v7687, %v7799
  %v7804 = vmul.f32 %v7688, %v7799
  %v7805 = vmul.f32 %v7689, %v7799
  %v7806 = vmul.f32 %v7690, %v7799
  %v7807 = vmul.f32 %v7691, %v7799
  %v7808 = vmul.f32 %v7692, %v7799
  %v7809 = vmul.f32 %v7693, %v7799
  %v7810 = vmul.f32 %v7694, %v7799
  %v7811 = vmul.f32 %v7695, %v7799
  %v7812 = vmul.f32 %v7696, %v7799
  %v7813 = vmul.f32 %v7697, %v7799
  %v7814 = vmul.f32 %v7698, %v7799
  %v7815 = vmul.f32 %v7699, %v7799
  %v7816 = vmul.f32 %v7700, %v7799
  %v7817 = vmul.f32 %v7701, %v7799
  %v7818 = vmul.f32 %v7702, %v7799
  %v7819 = vmul.f32 %v7703, %v7799
  %v7820 = vmul.f32 %v7704, %v7799
  %v7821 = vmul.f32 %v7705, %v7799
  %v7822 = vmul.f32 %v7706, %v7799
  %v7823 = vmul.f32 %v7707, %v7799
  %v7824 = vmul.f32 %v7708, %v7799
  %v7825 = vmul.f32 %v7709, %v7799
  %v7826 = vmul.f32 %v7710, %v7799
  %v7827 = vmul.f32 %v7711, %v7799
  %v7828 = vmul.f32 %v7712, %v7799
  %v7829 = vmul.f32 %v7713, %v7799
  %v7830 = vmul.f32 %v7714, %v7799
  %v7831 = vmul.f32 %v7715, %v7799
  %v7832 = vadd.f32 %v7764, %v7800
  %v7833 = vadd.f32 %v7765, %v7801
  %v7834 = vadd.f32 %v7766, %v7802
  %v7835 = vadd.f32 %v7767, %v7803
  %v7836 = vadd.f32 %v7768, %v7804
  %v7837 = vadd.f32 %v7769, %v7805
  %v7838 = vadd.f32 %v7770, %v7806
  %v7839 = vadd.f32 %v7771, %v7807
  %v7840 = vadd.f32 %v7772, %v7808
  %v7841 = vadd.f32 %v7773, %v7809
  %v7842 = vadd.f32 %v7774, %v7810
  %v7843 = vadd.f32 %v7775, %v7811
  %v7844 = vadd.f32 %v7776, %v7812
  %v7845 = vadd.f32 %v7777, %v7813
  %v7846 = vadd.f32 %v7778, %v7814
  %v7847 = vadd.f32 %v7779, %v7815
  %v7848 = vadd.f32 %v7780, %v7816
  %v7849 = vadd.f32 %v7781, %v7817
  %v7850 = vadd.f32 %v7782, %v7818
  %v7851 = vadd.f32 %v7783, %v7819
  %v7852 = vadd.f32 %v7784, %v7820
  %v7853 = vadd.f32 %v7785, %v7821
  %v7854 = vadd.f32 %v7786, %v7822
  %v7855 = vadd.f32 %v7787, %v7823
  %v7856 = vadd.f32 %v7788, %v7824
  %v7857 = vadd.f32 %v7789, %v7825
  %v7858 = vadd.f32 %v7790, %v7826
  %v7859 = vadd.f32 %v7791, %v7827
  %v7860 = vadd.f32 %v7792, %v7828
  %v7861 = vadd.f32 %v7793, %v7829
  %v7862 = vadd.f32 %v7794, %v7830
  %v7863 = vadd.f32 %v7795, %v7831
  %v7864 = vlaneseq
  %v7865 = vshrl.u32 %v7864, 7
  %v7866 = vsub.s32 4, %v7865
  %v7867 = vrot.slane %v6901, %v7866
  %v7868 = vmul.f32 %v7688, %v7867
  %v7869 = vmul.f32 %v7689, %v7867
  %v7870 = vmul.f32 %v7690, %v7867
  %v7871 = vmul.f32 %v7691, %v7867
  %v7872 = vmul.f32 %v7692, %v7867
  %v7873 = vmul.f32 %v7693, %v7867
  %v7874 = vmul.f32 %v7694, %v7867
  %v7875 = vmul.f32 %v7695, %v7867
  %v7876 = vmul.f32 %v7696, %v7867
  %v7877 = vmul.f32 %v7697, %v7867
  %v7878 = vmul.f32 %v7698, %v7867
  %v7879 = vmul.f32 %v7699, %v7867
  %v7880 = vmul.f32 %v7700, %v7867
  %v7881 = vmul.f32 %v7701, %v7867
  %v7882 = vmul.f32 %v7702, %v7867
  %v7883 = vmul.f32 %v7703, %v7867
  %v7884 = vmul.f32 %v7704, %v7867
  %v7885 = vmul.f32 %v7705, %v7867
  %v7886 = vmul.f32 %v7706, %v7867
  %v7887 = vmul.f32 %v7707, %v7867
  %v7888 = vmul.f32 %v7708, %v7867
  %v7889 = vmul.f32 %v7709, %v7867
  %v7890 = vmul.f32 %v7710, %v7867
  %v7891 = vmul.f32 %v7711, %v7867
  %v7892 = vmul.f32 %v7712, %v7867
  %v7893 = vmul.f32 %v7713, %v7867
  %v7894 = vmul.f32 %v7714, %v7867
  %v7895 = vmul.f32 %v7715, %v7867
  %v7896 = vmul.f32 %v7716, %v7867
  %v7897 = vmul.f32 %v7717, %v7867
  %v7898 = vmul.f32 %v7718, %v7867
  %v7899 = vmul.f32 %v7719, %v7867
  %v7900 = vadd.f32 %v7832, %v7868
  %v7901 = vadd.f32 %v7833, %v7869
  %v7902 = vadd.f32 %v7834, %v7870
  %v7903 = vadd.f32 %v7835, %v7871
  %v7904 = vadd.f32 %v7836, %v7872
  %v7905 = vadd.f32 %v7837, %v7873
  %v7906 = vadd.f32 %v7838, %v7874
  %v7907 = vadd.f32 %v7839, %v7875
  %v7908 = vadd.f32 %v7840, %v7876
  %v7909 = vadd.f32 %v7841, %v7877
  %v7910 = vadd.f32 %v7842, %v7878
  %v7911 = vadd.f32 %v7843, %v7879
  %v7912 = vadd.f32 %v7844, %v7880
  %v7913 = vadd.f32 %v7845, %v7881
  %v7914 = vadd.f32 %v7846, %v7882
  %v7915 = vadd.f32 %v7847, %v7883
  %v7916 = vadd.f32 %v7848, %v7884
  %v7917 = vadd.f32 %v7849, %v7885
  %v7918 = vadd.f32 %v7850, %v7886
  %v7919 = vadd.f32 %v7851, %v7887
  %v7920 = vadd.f32 %v7852, %v7888
  %v7921 = vadd.f32 %v7853, %v7889
  %v7922 = vadd.f32 %v7854, %v7890
  %v7923 = vadd.f32 %v7855, %v7891
  %v7924 = vadd.f32 %v7856, %v7892
  %v7925 = vadd.f32 %v7857, %v7893
  %v7926 = vadd.f32 %v7858, %v7894
  %v7927 = vadd.f32 %v7859, %v7895
  %v7928 = vadd.f32 %v7860, %v7896
  %v7929 = vadd.f32 %v7861, %v7897
  %v7930 = vadd.f32 %v7862, %v7898
  %v7931 = vadd.f32 %v7863, %v7899
  %v7932 = vlaneseq
  %v7933 = vshrl.u32 %v7932, 7
  %v7934 = vsub.s32 1, %v7933
  %v7935 = vrot.slane %v6902, %v7934
  %v7936 = vmul.f32 %v7692, %v7935
  %v7937 = vmul.f32 %v7693, %v7935
  %v7938 = vmul.f32 %v7694, %v7935
  %v7939 = vmul.f32 %v7695, %v7935
  %v7940 = vmul.f32 %v7696, %v7935
  %v7941 = vmul.f32 %v7697, %v7935
  %v7942 = vmul.f32 %v7698, %v7935
  %v7943 = vmul.f32 %v7699, %v7935
  %v7944 = vmul.f32 %v7700, %v7935
  %v7945 = vmul.f32 %v7701, %v7935
  %v7946 = vmul.f32 %v7702, %v7935
  %v7947 = vmul.f32 %v7703, %v7935
  %v7948 = vmul.f32 %v7704, %v7935
  %v7949 = vmul.f32 %v7705, %v7935
  %v7950 = vmul.f32 %v7706, %v7935
  %v7951 = vmul.f32 %v7707, %v7935
  %v7952 = vmul.f32 %v7708, %v7935
  %v7953 = vmul.f32 %v7709, %v7935
  %v7954 = vmul.f32 %v7710, %v7935
  %v7955 = vmul.f32 %v7711, %v7935
  %v7956 = vmul.f32 %v7712, %v7935
  %v7957 = vmul.f32 %v7713, %v7935
  %v7958 = vmul.f32 %v7714, %v7935
  %v7959 = vmul.f32 %v7715, %v7935
  %v7960 = vmul.f32 %v7716, %v7935
  %v7961 = vmul.f32 %v7717, %v7935
  %v7962 = vmul.f32 %v7718, %v7935
  %v7963 = vmul.f32 %v7719, %v7935
  %v7964 = vmul.f32 %v7720, %v7935
  %v7965 = vmul.f32 %v7721, %v7935
  %v7966 = vmul.f32 %v7722, %v7935
  %v7967 = vmul.f32 %v7723, %v7935
  %v7968 = vadd.f32 %v7900, %v7936
  %v7969 = vadd.f32 %v7901, %v7937
  %v7970 = vadd.f32 %v7902, %v7938
  %v7971 = vadd.f32 %v7903, %v7939
  %v7972 = vadd.f32 %v7904, %v7940
  %v7973 = vadd.f32 %v7905, %v7941
  %v7974 = vadd.f32 %v7906, %v7942
  %v7975 = vadd.f32 %v7907, %v7943
  %v7976 = vadd.f32 %v7908, %v7944
  %v7977 = vadd.f32 %v7909, %v7945
  %v7978 = vadd.f32 %v7910, %v7946
  %v7979 = vadd.f32 %v7911, %v7947
  %v7980 = vadd.f32 %v7912, %v7948
  %v7981 = vadd.f32 %v7913, %v7949
  %v7982 = vadd.f32 %v7914, %v7950
  %v7983 = vadd.f32 %v7915, %v7951
  %v7984 = vadd.f32 %v7916, %v7952
  %v7985 = vadd.f32 %v7917, %v7953
  %v7986 = vadd.f32 %v7918, %v7954
  %v7987 = vadd.f32 %v7919, %v7955
  %v7988 = vadd.f32 %v7920, %v7956
  %v7989 = vadd.f32 %v7921, %v7957
  %v7990 = vadd.f32 %v7922, %v7958
  %v7991 = vadd.f32 %v7923, %v7959
  %v7992 = vadd.f32 %v7924, %v7960
  %v7993 = vadd.f32 %v7925, %v7961
  %v7994 = vadd.f32 %v7926, %v7962
  %v7995 = vadd.f32 %v7927, %v7963
  %v7996 = vadd.f32 %v7928, %v7964
  %v7997 = vadd.f32 %v7929, %v7965
  %v7998 = vadd.f32 %v7930, %v7966
  %v7999 = vadd.f32 %v7931, %v7967
  %v8000 = vlaneseq
  %v8001 = vshrl.u32 %v8000, 7
  %v8002 = vsub.s32 6, %v8001
  %v8003 = vrot.slane %v6902, %v8002
  %v8004 = vmul.f32 %v7696, %v8003
  %v8005 = vmul.f32 %v7697, %v8003
  %v8006 = vmul.f32 %v7698, %v8003
  %v8007 = vmul.f32 %v7699, %v8003
  %v8008 = vmul.f32 %v7700, %v8003
  %v8009 = vmul.f32 %v7701, %v8003
  %v8010 = vmul.f32 %v7702, %v8003
  %v8011 = vmul.f32 %v7703, %v8003
  %v8012 = vmul.f32 %v7704, %v8003
  %v8013 = vmul.f32 %v7705, %v8003
  %v8014 = vmul.f32 %v7706, %v8003
  %v8015 = vmul.f32 %v7707, %v8003
  %v8016 = vmul.f32 %v7708, %v8003
  %v8017 = vmul.f32 %v7709, %v8003
  %v8018 = vmul.f32 %v7710, %v8003
  %v8019 = vmul.f32 %v7711, %v8003
  %v8020 = vmul.f32 %v7712, %v8003
  %v8021 = vmul.f32 %v7713, %v8003
  %v8022 = vmul.f32 %v7714, %v8003
  %v8023 = vmul.f32 %v7715, %v8003
  %v8024 = vmul.f32 %v7716, %v8003
  %v8025 = vmul.f32 %v7717, %v8003
  %v8026 = vmul.f32 %v7718, %v8003
  %v8027 = vmul.f32 %v7719, %v8003
  %v8028 = vmul.f32 %v7720, %v8003
  %v8029 = vmul.f32 %v7721, %v8003
  %v8030 = vmul.f32 %v7722, %v8003
  %v8031 = vmul.f32 %v7723, %v8003
  %v8032 = vmul.f32 %v7724, %v8003
  %v8033 = vmul.f32 %v7725, %v8003
  %v8034 = vmul.f32 %v7726, %v8003
  %v8035 = vmul.f32 %v7727, %v8003
  %v8036 = vadd.f32 %v7968, %v8004
  %v8037 = vadd.f32 %v7969, %v8005
  %v8038 = vadd.f32 %v7970, %v8006
  %v8039 = vadd.f32 %v7971, %v8007
  %v8040 = vadd.f32 %v7972, %v8008
  %v8041 = vadd.f32 %v7973, %v8009
  %v8042 = vadd.f32 %v7974, %v8010
  %v8043 = vadd.f32 %v7975, %v8011
  %v8044 = vadd.f32 %v7976, %v8012
  %v8045 = vadd.f32 %v7977, %v8013
  %v8046 = vadd.f32 %v7978, %v8014
  %v8047 = vadd.f32 %v7979, %v8015
  %v8048 = vadd.f32 %v7980, %v8016
  %v8049 = vadd.f32 %v7981, %v8017
  %v8050 = vadd.f32 %v7982, %v8018
  %v8051 = vadd.f32 %v7983, %v8019
  %v8052 = vadd.f32 %v7984, %v8020
  %v8053 = vadd.f32 %v7985, %v8021
  %v8054 = vadd.f32 %v7986, %v8022
  %v8055 = vadd.f32 %v7987, %v8023
  %v8056 = vadd.f32 %v7988, %v8024
  %v8057 = vadd.f32 %v7989, %v8025
  %v8058 = vadd.f32 %v7990, %v8026
  %v8059 = vadd.f32 %v7991, %v8027
  %v8060 = vadd.f32 %v7992, %v8028
  %v8061 = vadd.f32 %v7993, %v8029
  %v8062 = vadd.f32 %v7994, %v8030
  %v8063 = vadd.f32 %v7995, %v8031
  %v8064 = vadd.f32 %v7996, %v8032
  %v8065 = vadd.f32 %v7997, %v8033
  %v8066 = vadd.f32 %v7998, %v8034
  %v8067 = vadd.f32 %v7999, %v8035
  %v8068 = vld [vmem:[#allocation5 + $0x6] sm:$0xff]
  %v8069 = vld [vmem:[#allocation5 + $0xe] sm:$0xff]
  %v8070 = vld [vmem:[#allocation5 + $0x1e] sm:$0xff]
  %v8071 = vld [vmem:[#allocation5 + $0x26] sm:$0xff]
  %v8072 = vld [vmem:[#allocation5 + $0x36] sm:$0xff]
  %v8073 = vld [vmem:[#allocation5 + $0x3e] sm:$0xff]
  %v8074 = vld [vmem:[#allocation5 + $0x4e] sm:$0xff]
  %v8075 = vld [vmem:[#allocation5 + $0x56] sm:$0xff]
  %v8076 = vld [vmem:[#allocation5 + $0x66] sm:$0xff]
  %v8077 = vld [vmem:[#allocation5 + $0x6e] sm:$0xff]
  %v8078 = vld [vmem:[#allocation5 + $0x7e] sm:$0xff]
  %v8079 = vld [vmem:[#allocation5 + $0x86] sm:$0xff]
  %v8080 = vld [vmem:[#allocation5 + $0x96] sm:$0xff]
  %v8081 = vld [vmem:[#allocation5 + $0x9e] sm:$0xff]
  %v8082 = vld [vmem:[#allocation5 + $0xae] sm:$0xff]
  %v8083 = vld [vmem:[#allocation5 + $0xb6] sm:$0xff]
  %v8084 = vld [vmem:[#allocation5 + $0xc6] sm:$0xff]
  %v8085 = vld [vmem:[#allocation5 + $0xce] sm:$0xff]
  %v8086 = vld [vmem:[#allocation5 + $0xde] sm:$0xff]
  %v8087 = vld [vmem:[#allocation5 + $0xe6] sm:$0xff]
  %v8088 = vld [vmem:[#allocation5 + $0xf6] sm:$0xff]
  %v8089 = vld [vmem:[#allocation5 + $0xfe] sm:$0xff]
  %v8090 = vld [vmem:[#allocation5 + $0x10e] sm:$0xff]
  %v8091 = vld [vmem:[#allocation5 + $0x116] sm:$0xff]
  %v8092 = vld [vmem:[#allocation5 + $0x126] sm:$0xff]
  %v8093 = vld [vmem:[#allocation5 + $0x12e] sm:$0xff]
  %v8094 = vld [vmem:[#allocation5 + $0x13e] sm:$0xff]
  %v8095 = vld [vmem:[#allocation5 + $0x146] sm:$0xff]
  %v8096 = vld [vmem:[#allocation5 + $0x156] sm:$0xff]
  %v8097 = vld [vmem:[#allocation5 + $0x15e] sm:$0xff]
  %v8098 = vld [vmem:[#allocation5 + $0x16e] sm:$0xff]
  %v8099 = vld [vmem:[#allocation5 + $0x176] sm:$0xff]
  %v8100 = vld [vmem:[#allocation5 + $0x186] sm:$0xff]
  %v8101 = vld [vmem:[#allocation5 + $0x18e] sm:$0xff]
  %v8102 = vld [vmem:[#allocation5 + $0x19e] sm:$0xff]
  %v8103 = vld [vmem:[#allocation5 + $0x1a6] sm:$0xff]
  %v8104 = vld [vmem:[#allocation5 + $0x1b6] sm:$0xff]
  %v8105 = vld [vmem:[#allocation5 + $0x1be] sm:$0xff]
  %v8106 = vld [vmem:[#allocation5 + $0x1ce] sm:$0xff]
  %v8107 = vld [vmem:[#allocation5 + $0x1d6] sm:$0xff]
  %v8108 = vld [vmem:[#allocation5 + $0x1e6] sm:$0xff]
  %v8109 = vld [vmem:[#allocation5 + $0x1ee] sm:$0xff]
  %v8110 = vld [vmem:[#allocation5 + $0x1fe] sm:$0xff]
  %v8111 = vld [vmem:[#allocation5 + $0x206] sm:$0xff]
  %v8112 = vld [vmem:[#allocation5 + $0x216] sm:$0xff]
  %v8113 = vld [vmem:[#allocation5 + $0x21e] sm:$0xff]
  %v8114 = vld [vmem:[#allocation5 + $0x22e] sm:$0xff]
  %v8115 = vld [vmem:[#allocation5 + $0x236] sm:$0xff]
  %v8116 = vlaneseq
  %v8117 = vshrl.u32 %v8116, 7
  %v8118 = vsub.s32 3, %v8117
  %v8119 = vrot.slane %v6900, %v8118
  %v8120 = vmul.f32 %v8068, %v8119
  %v8121 = vmul.f32 %v8069, %v8119
  %v8122 = vmul.f32 %v8070, %v8119
  %v8123 = vmul.f32 %v8071, %v8119
  %v8124 = vmul.f32 %v8072, %v8119
  %v8125 = vmul.f32 %v8073, %v8119
  %v8126 = vmul.f32 %v8074, %v8119
  %v8127 = vmul.f32 %v8075, %v8119
  %v8128 = vmul.f32 %v8076, %v8119
  %v8129 = vmul.f32 %v8077, %v8119
  %v8130 = vmul.f32 %v8078, %v8119
  %v8131 = vmul.f32 %v8079, %v8119
  %v8132 = vmul.f32 %v8080, %v8119
  %v8133 = vmul.f32 %v8081, %v8119
  %v8134 = vmul.f32 %v8082, %v8119
  %v8135 = vmul.f32 %v8083, %v8119
  %v8136 = vmul.f32 %v8084, %v8119
  %v8137 = vmul.f32 %v8085, %v8119
  %v8138 = vmul.f32 %v8086, %v8119
  %v8139 = vmul.f32 %v8087, %v8119
  %v8140 = vmul.f32 %v8088, %v8119
  %v8141 = vmul.f32 %v8089, %v8119
  %v8142 = vmul.f32 %v8090, %v8119
  %v8143 = vmul.f32 %v8091, %v8119
  %v8144 = vmul.f32 %v8092, %v8119
  %v8145 = vmul.f32 %v8093, %v8119
  %v8146 = vmul.f32 %v8094, %v8119
  %v8147 = vmul.f32 %v8095, %v8119
  %v8148 = vmul.f32 %v8096, %v8119
  %v8149 = vmul.f32 %v8097, %v8119
  %v8150 = vmul.f32 %v8098, %v8119
  %v8151 = vmul.f32 %v8099, %v8119
  %v8152 = vadd.f32 %v8036, %v8120
  %v8153 = vadd.f32 %v8037, %v8121
  %v8154 = vadd.f32 %v8038, %v8122
  %v8155 = vadd.f32 %v8039, %v8123
  %v8156 = vadd.f32 %v8040, %v8124
  %v8157 = vadd.f32 %v8041, %v8125
  %v8158 = vadd.f32 %v8042, %v8126
  %v8159 = vadd.f32 %v8043, %v8127
  %v8160 = vadd.f32 %v8044, %v8128
  %v8161 = vadd.f32 %v8045, %v8129
  %v8162 = vadd.f32 %v8046, %v8130
  %v8163 = vadd.f32 %v8047, %v8131
  %v8164 = vadd.f32 %v8048, %v8132
  %v8165 = vadd.f32 %v8049, %v8133
  %v8166 = vadd.f32 %v8050, %v8134
  %v8167 = vadd.f32 %v8051, %v8135
  %v8168 = vadd.f32 %v8052, %v8136
  %v8169 = vadd.f32 %v8053, %v8137
  %v8170 = vadd.f32 %v8054, %v8138
  %v8171 = vadd.f32 %v8055, %v8139
  %v8172 = vadd.f32 %v8056, %v8140
  %v8173 = vadd.f32 %v8057, %v8141
  %v8174 = vadd.f32 %v8058, %v8142
  %v8175 = vadd.f32 %v8059, %v8143
  %v8176 = vadd.f32 %v8060, %v8144
  %v8177 = vadd.f32 %v8061, %v8145
  %v8178 = vadd.f32 %v8062, %v8146
  %v8179 = vadd.f32 %v8063, %v8147
  %v8180 = vadd.f32 %v8064, %v8148
  %v8181 = vadd.f32 %v8065, %v8149
  %v8182 = vadd.f32 %v8066, %v8150
  %v8183 = vadd.f32 %v8067, %v8151
  %v8184 = vlaneseq
  %v8185 = vshrl.u32 %v8184, 7
  %v8186 = vsub.s32 0, %v8185
  %v8187 = vrot.slane %v6901, %v8186
  %v8188 = vmul.f32 %v8072, %v8187
  %v8189 = vmul.f32 %v8073, %v8187
  %v8190 = vmul.f32 %v8074, %v8187
  %v8191 = vmul.f32 %v8075, %v8187
  %v8192 = vmul.f32 %v8076, %v8187
  %v8193 = vmul.f32 %v8077, %v8187
  %v8194 = vmul.f32 %v8078, %v8187
  %v8195 = vmul.f32 %v8079, %v8187
  %v8196 = vmul.f32 %v8080, %v8187
  %v8197 = vmul.f32 %v8081, %v8187
  %v8198 = vmul.f32 %v8082, %v8187
  %v8199 = vmul.f32 %v8083, %v8187
  %v8200 = vmul.f32 %v8084, %v8187
  %v8201 = vmul.f32 %v8085, %v8187
  %v8202 = vmul.f32 %v8086, %v8187
  %v8203 = vmul.f32 %v8087, %v8187
  %v8204 = vmul.f32 %v8088, %v8187
  %v8205 = vmul.f32 %v8089, %v8187
  %v8206 = vmul.f32 %v8090, %v8187
  %v8207 = vmul.f32 %v8091, %v8187
  %v8208 = vmul.f32 %v8092, %v8187
  %v8209 = vmul.f32 %v8093, %v8187
  %v8210 = vmul.f32 %v8094, %v8187
  %v8211 = vmul.f32 %v8095, %v8187
  %v8212 = vmul.f32 %v8096, %v8187
  %v8213 = vmul.f32 %v8097, %v8187
  %v8214 = vmul.f32 %v8098, %v8187
  %v8215 = vmul.f32 %v8099, %v8187
  %v8216 = vmul.f32 %v8100, %v8187
  %v8217 = vmul.f32 %v8101, %v8187
  %v8218 = vmul.f32 %v8102, %v8187
  %v8219 = vmul.f32 %v8103, %v8187
  %v8220 = vadd.f32 %v8152, %v8188
  %v8221 = vadd.f32 %v8153, %v8189
  %v8222 = vadd.f32 %v8154, %v8190
  %v8223 = vadd.f32 %v8155, %v8191
  %v8224 = vadd.f32 %v8156, %v8192
  %v8225 = vadd.f32 %v8157, %v8193
  %v8226 = vadd.f32 %v8158, %v8194
  %v8227 = vadd.f32 %v8159, %v8195
  %v8228 = vadd.f32 %v8160, %v8196
  %v8229 = vadd.f32 %v8161, %v8197
  %v8230 = vadd.f32 %v8162, %v8198
  %v8231 = vadd.f32 %v8163, %v8199
  %v8232 = vadd.f32 %v8164, %v8200
  %v8233 = vadd.f32 %v8165, %v8201
  %v8234 = vadd.f32 %v8166, %v8202
  %v8235 = vadd.f32 %v8167, %v8203
  %v8236 = vadd.f32 %v8168, %v8204
  %v8237 = vadd.f32 %v8169, %v8205
  %v8238 = vadd.f32 %v8170, %v8206
  %v8239 = vadd.f32 %v8171, %v8207
  %v8240 = vadd.f32 %v8172, %v8208
  %v8241 = vadd.f32 %v8173, %v8209
  %v8242 = vadd.f32 %v8174, %v8210
  %v8243 = vadd.f32 %v8175, %v8211
  %v8244 = vadd.f32 %v8176, %v8212
  %v8245 = vadd.f32 %v8177, %v8213
  %v8246 = vadd.f32 %v8178, %v8214
  %v8247 = vadd.f32 %v8179, %v8215
  %v8248 = vadd.f32 %v8180, %v8216
  %v8249 = vadd.f32 %v8181, %v8217
  %v8250 = vadd.f32 %v8182, %v8218
  %v8251 = vadd.f32 %v8183, %v8219
  %v8252 = vlaneseq
  %v8253 = vshrl.u32 %v8252, 7
  %v8254 = vsub.s32 5, %v8253
  %v8255 = vrot.slane %v6901, %v8254
  %v8256 = vmul.f32 %v8076, %v8255
  %v8257 = vmul.f32 %v8077, %v8255
  %v8258 = vmul.f32 %v8078, %v8255
  %v8259 = vmul.f32 %v8079, %v8255
  %v8260 = vmul.f32 %v8080, %v8255
  %v8261 = vmul.f32 %v8081, %v8255
  %v8262 = vmul.f32 %v8082, %v8255
  %v8263 = vmul.f32 %v8083, %v8255
  %v8264 = vmul.f32 %v8084, %v8255
  %v8265 = vmul.f32 %v8085, %v8255
  %v8266 = vmul.f32 %v8086, %v8255
  %v8267 = vmul.f32 %v8087, %v8255
  %v8268 = vmul.f32 %v8088, %v8255
  %v8269 = vmul.f32 %v8089, %v8255
  %v8270 = vmul.f32 %v8090, %v8255
  %v8271 = vmul.f32 %v8091, %v8255
  %v8272 = vmul.f32 %v8092, %v8255
  %v8273 = vmul.f32 %v8093, %v8255
  %v8274 = vmul.f32 %v8094, %v8255
  %v8275 = vmul.f32 %v8095, %v8255
  %v8276 = vmul.f32 %v8096, %v8255
  %v8277 = vmul.f32 %v8097, %v8255
  %v8278 = vmul.f32 %v8098, %v8255
  %v8279 = vmul.f32 %v8099, %v8255
  %v8280 = vmul.f32 %v8100, %v8255
  %v8281 = vmul.f32 %v8101, %v8255
  %v8282 = vmul.f32 %v8102, %v8255
  %v8283 = vmul.f32 %v8103, %v8255
  %v8284 = vmul.f32 %v8104, %v8255
  %v8285 = vmul.f32 %v8105, %v8255
  %v8286 = vmul.f32 %v8106, %v8255
  %v8287 = vmul.f32 %v8107, %v8255
  %v8288 = vadd.f32 %v8220, %v8256
  %v8289 = vadd.f32 %v8221, %v8257
  %v8290 = vadd.f32 %v8222, %v8258
  %v8291 = vadd.f32 %v8223, %v8259
  %v8292 = vadd.f32 %v8224, %v8260
  %v8293 = vadd.f32 %v8225, %v8261
  %v8294 = vadd.f32 %v8226, %v8262
  %v8295 = vadd.f32 %v8227, %v8263
  %v8296 = vadd.f32 %v8228, %v8264
  %v8297 = vadd.f32 %v8229, %v8265
  %v8298 = vadd.f32 %v8230, %v8266
  %v8299 = vadd.f32 %v8231, %v8267
  %v8300 = vadd.f32 %v8232, %v8268
  %v8301 = vadd.f32 %v8233, %v8269
  %v8302 = vadd.f32 %v8234, %v8270
  %v8303 = vadd.f32 %v8235, %v8271
  %v8304 = vadd.f32 %v8236, %v8272
  %v8305 = vadd.f32 %v8237, %v8273
  %v8306 = vadd.f32 %v8238, %v8274
  %v8307 = vadd.f32 %v8239, %v8275
  %v8308 = vadd.f32 %v8240, %v8276
  %v8309 = vadd.f32 %v8241, %v8277
  %v8310 = vadd.f32 %v8242, %v8278
  %v8311 = vadd.f32 %v8243, %v8279
  %v8312 = vadd.f32 %v8244, %v8280
  %v8313 = vadd.f32 %v8245, %v8281
  %v8314 = vadd.f32 %v8246, %v8282
  %v8315 = vadd.f32 %v8247, %v8283
  %v8316 = vadd.f32 %v8248, %v8284
  %v8317 = vadd.f32 %v8249, %v8285
  %v8318 = vadd.f32 %v8250, %v8286
  %v8319 = vadd.f32 %v8251, %v8287
  %v8320 = vlaneseq
  %v8321 = vshrl.u32 %v8320, 7
  %v8322 = vsub.s32 2, %v8321
  %v8323 = vrot.slane %v6902, %v8322
  %v8324 = vmul.f32 %v8080, %v8323
  %v8325 = vmul.f32 %v8081, %v8323
  %v8326 = vmul.f32 %v8082, %v8323
  %v8327 = vmul.f32 %v8083, %v8323
  %v8328 = vmul.f32 %v8084, %v8323
  %v8329 = vmul.f32 %v8085, %v8323
  %v8330 = vmul.f32 %v8086, %v8323
  %v8331 = vmul.f32 %v8087, %v8323
  %v8332 = vmul.f32 %v8088, %v8323
  %v8333 = vmul.f32 %v8089, %v8323
  %v8334 = vmul.f32 %v8090, %v8323
  %v8335 = vmul.f32 %v8091, %v8323
  %v8336 = vmul.f32 %v8092, %v8323
  %v8337 = vmul.f32 %v8093, %v8323
  %v8338 = vmul.f32 %v8094, %v8323
  %v8339 = vmul.f32 %v8095, %v8323
  %v8340 = vmul.f32 %v8096, %v8323
  %v8341 = vmul.f32 %v8097, %v8323
  %v8342 = vmul.f32 %v8098, %v8323
  %v8343 = vmul.f32 %v8099, %v8323
  %v8344 = vmul.f32 %v8100, %v8323
  %v8345 = vmul.f32 %v8101, %v8323
  %v8346 = vmul.f32 %v8102, %v8323
  %v8347 = vmul.f32 %v8103, %v8323
  %v8348 = vmul.f32 %v8104, %v8323
  %v8349 = vmul.f32 %v8105, %v8323
  %v8350 = vmul.f32 %v8106, %v8323
  %v8351 = vmul.f32 %v8107, %v8323
  %v8352 = vmul.f32 %v8108, %v8323
  %v8353 = vmul.f32 %v8109, %v8323
  %v8354 = vmul.f32 %v8110, %v8323
  %v8355 = vmul.f32 %v8111, %v8323
  %v8356 = vadd.f32 %v8288, %v8324
  %v8357 = vadd.f32 %v8289, %v8325
  %v8358 = vadd.f32 %v8290, %v8326
  %v8359 = vadd.f32 %v8291, %v8327
  %v8360 = vadd.f32 %v8292, %v8328
  %v8361 = vadd.f32 %v8293, %v8329
  %v8362 = vadd.f32 %v8294, %v8330
  %v8363 = vadd.f32 %v8295, %v8331
  %v8364 = vadd.f32 %v8296, %v8332
  %v8365 = vadd.f32 %v8297, %v8333
  %v8366 = vadd.f32 %v8298, %v8334
  %v8367 = vadd.f32 %v8299, %v8335
  %v8368 = vadd.f32 %v8300, %v8336
  %v8369 = vadd.f32 %v8301, %v8337
  %v8370 = vadd.f32 %v8302, %v8338
  %v8371 = vadd.f32 %v8303, %v8339
  %v8372 = vadd.f32 %v8304, %v8340
  %v8373 = vadd.f32 %v8305, %v8341
  %v8374 = vadd.f32 %v8306, %v8342
  %v8375 = vadd.f32 %v8307, %v8343
  %v8376 = vadd.f32 %v8308, %v8344
  %v8377 = vadd.f32 %v8309, %v8345
  %v8378 = vadd.f32 %v8310, %v8346
  %v8379 = vadd.f32 %v8311, %v8347
  %v8380 = vadd.f32 %v8312, %v8348
  %v8381 = vadd.f32 %v8313, %v8349
  %v8382 = vadd.f32 %v8314, %v8350
  %v8383 = vadd.f32 %v8315, %v8351
  %v8384 = vadd.f32 %v8316, %v8352
  %v8385 = vadd.f32 %v8317, %v8353
  %v8386 = vadd.f32 %v8318, %v8354
  %v8387 = vadd.f32 %v8319, %v8355
  %v8388 = vlaneseq
  %v8389 = vshrl.u32 %v8388, 7
  %v8390 = vsub.s32 7, %v8389
  %v8391 = vrot.slane %v6902, %v8390
  %v8392 = vmul.f32 %v8084, %v8391
  %v8393 = vmul.f32 %v8085, %v8391
  %v8394 = vmul.f32 %v8086, %v8391
  %v8395 = vmul.f32 %v8087, %v8391
  %v8396 = vmul.f32 %v8088, %v8391
  %v8397 = vmul.f32 %v8089, %v8391
  %v8398 = vmul.f32 %v8090, %v8391
  %v8399 = vmul.f32 %v8091, %v8391
  %v8400 = vmul.f32 %v8092, %v8391
  %v8401 = vmul.f32 %v8093, %v8391
  %v8402 = vmul.f32 %v8094, %v8391
  %v8403 = vmul.f32 %v8095, %v8391
  %v8404 = vmul.f32 %v8096, %v8391
  %v8405 = vmul.f32 %v8097, %v8391
  %v8406 = vmul.f32 %v8098, %v8391
  %v8407 = vmul.f32 %v8099, %v8391
  %v8408 = vmul.f32 %v8100, %v8391
  %v8409 = vmul.f32 %v8101, %v8391
  %v8410 = vmul.f32 %v8102, %v8391
  %v8411 = vmul.f32 %v8103, %v8391
  %v8412 = vmul.f32 %v8104, %v8391
  %v8413 = vmul.f32 %v8105, %v8391
  %v8414 = vmul.f32 %v8106, %v8391
  %v8415 = vmul.f32 %v8107, %v8391
  %v8416 = vmul.f32 %v8108, %v8391
  %v8417 = vmul.f32 %v8109, %v8391
  %v8418 = vmul.f32 %v8110, %v8391
  %v8419 = vmul.f32 %v8111, %v8391
  %v8420 = vmul.f32 %v8112, %v8391
  %v8421 = vmul.f32 %v8113, %v8391
  %v8422 = vmul.f32 %v8114, %v8391
  %v8423 = vmul.f32 %v8115, %v8391
  %v8424 = vadd.f32 %v8356, %v8392
  %v8425 = vadd.f32 %v8357, %v8393
  %v8426 = vadd.f32 %v8358, %v8394
  %v8427 = vadd.f32 %v8359, %v8395
  %v8428 = vadd.f32 %v8360, %v8396
  %v8429 = vadd.f32 %v8361, %v8397
  %v8430 = vadd.f32 %v8362, %v8398
  %v8431 = vadd.f32 %v8363, %v8399
  %v8432 = vadd.f32 %v8364, %v8400
  %v8433 = vadd.f32 %v8365, %v8401
  %v8434 = vadd.f32 %v8366, %v8402
  %v8435 = vadd.f32 %v8367, %v8403
  %v8436 = vadd.f32 %v8368, %v8404
  %v8437 = vadd.f32 %v8369, %v8405
  %v8438 = vadd.f32 %v8370, %v8406
  %v8439 = vadd.f32 %v8371, %v8407
  %v8440 = vadd.f32 %v8372, %v8408
  %v8441 = vadd.f32 %v8373, %v8409
  %v8442 = vadd.f32 %v8374, %v8410
  %v8443 = vadd.f32 %v8375, %v8411
  %v8444 = vadd.f32 %v8376, %v8412
  %v8445 = vadd.f32 %v8377, %v8413
  %v8446 = vadd.f32 %v8378, %v8414
  %v8447 = vadd.f32 %v8379, %v8415
  %v8448 = vadd.f32 %v8380, %v8416
  %v8449 = vadd.f32 %v8381, %v8417
  %v8450 = vadd.f32 %v8382, %v8418
  %v8451 = vadd.f32 %v8383, %v8419
  %v8452 = vadd.f32 %v8384, %v8420
  %v8453 = vadd.f32 %v8385, %v8421
  %v8454 = vadd.f32 %v8386, %v8422
  %v8455 = vadd.f32 %v8387, %v8423
  %v8456 = vld [vmem:[#allocation5 + $0x8] sm:$0xff]
  %v8457 = vld [vmem:[#allocation5 + $0x10] sm:$0xff]
  %v8458 = vld [vmem:[#allocation5 + $0x20] sm:$0xff]
  %v8459 = vld [vmem:[#allocation5 + $0x28] sm:$0xff]
  %v8460 = vld [vmem:[#allocation5 + $0x38] sm:$0xff]
  %v8461 = vld [vmem:[#allocation5 + $0x40] sm:$0xff]
  %v8462 = vld [vmem:[#allocation5 + $0x50] sm:$0xff]
  %v8463 = vld [vmem:[#allocation5 + $0x58] sm:$0xff]
  %v8464 = vld [vmem:[#allocation5 + $0x68] sm:$0xff]
  %v8465 = vld [vmem:[#allocation5 + $0x70] sm:$0xff]
  %v8466 = vld [vmem:[#allocation5 + $0x80] sm:$0xff]
  %v8467 = vld [vmem:[#allocation5 + $0x88] sm:$0xff]
  %v8468 = vld [vmem:[#allocation5 + $0x98] sm:$0xff]
  %v8469 = vld [vmem:[#allocation5 + $0xa0] sm:$0xff]
  %v8470 = vld [vmem:[#allocation5 + $0xb0] sm:$0xff]
  %v8471 = vld [vmem:[#allocation5 + $0xb8] sm:$0xff]
  %v8472 = vld [vmem:[#allocation5 + $0xc8] sm:$0xff]
  %v8473 = vld [vmem:[#allocation5 + $0xd0] sm:$0xff]
  %v8474 = vld [vmem:[#allocation5 + $0xe0] sm:$0xff]
  %v8475 = vld [vmem:[#allocation5 + $0xe8] sm:$0xff]
  %v8476 = vld [vmem:[#allocation5 + $0xf8] sm:$0xff]
  %v8477 = vld [vmem:[#allocation5 + $0x100] sm:$0xff]
  %v8478 = vld [vmem:[#allocation5 + $0x110] sm:$0xff]
  %v8479 = vld [vmem:[#allocation5 + $0x118] sm:$0xff]
  %v8480 = vld [vmem:[#allocation5 + $0x128] sm:$0xff]
  %v8481 = vld [vmem:[#allocation5 + $0x130] sm:$0xff]
  %v8482 = vld [vmem:[#allocation5 + $0x140] sm:$0xff]
  %v8483 = vld [vmem:[#allocation5 + $0x148] sm:$0xff]
  %v8484 = vld [vmem:[#allocation5 + $0x158] sm:$0xff]
  %v8485 = vld [vmem:[#allocation5 + $0x160] sm:$0xff]
  %v8486 = vld [vmem:[#allocation5 + $0x170] sm:$0xff]
  %v8487 = vld [vmem:[#allocation5 + $0x178] sm:$0xff]
  %v8488 = vld [vmem:[#allocation5 + $0x188] sm:$0xff]
  %v8489 = vld [vmem:[#allocation5 + $0x190] sm:$0xff]
  %v8490 = vld [vmem:[#allocation5 + $0x1a0] sm:$0xff]
  %v8491 = vld [vmem:[#allocation5 + $0x1a8] sm:$0xff]
  %v8492 = vld [vmem:[#allocation5 + $0x1b8] sm:$0xff]
  %v8493 = vld [vmem:[#allocation5 + $0x1c0] sm:$0xff]
  %v8494 = vld [vmem:[#allocation5 + $0x1d0] sm:$0xff]
  %v8495 = vld [vmem:[#allocation5 + $0x1d8] sm:$0xff]
  %v8496 = vld [vmem:[#allocation5 + $0x1e8] sm:$0xff]
  %v8497 = vld [vmem:[#allocation5 + $0x1f0] sm:$0xff]
  %v8498 = vld [vmem:[#allocation5 + $0x200] sm:$0xff]
  %v8499 = vld [vmem:[#allocation5 + $0x208] sm:$0xff]
  %v8500 = vld [vmem:[#allocation5 + $0x218] sm:$0xff]
  %v8501 = vld [vmem:[#allocation5 + $0x220] sm:$0xff]
  %v8502 = vld [vmem:[#allocation5 + $0x230] sm:$0xff]
  %v8503 = vld [vmem:[#allocation5 + $0x238] sm:$0xff]
  %v8504 = vlaneseq
  %v8505 = vshrl.u32 %v8504, 7
  %v8506 = vsub.s32 4, %v8505
  %v8507 = vrot.slane %v6900, %v8506
  %v8508 = vmul.f32 %v8456, %v8507
  %v8509 = vmul.f32 %v8457, %v8507
  %v8510 = vmul.f32 %v8458, %v8507
  %v8511 = vmul.f32 %v8459, %v8507
  %v8512 = vmul.f32 %v8460, %v8507
  %v8513 = vmul.f32 %v8461, %v8507
  %v8514 = vmul.f32 %v8462, %v8507
  %v8515 = vmul.f32 %v8463, %v8507
  %v8516 = vmul.f32 %v8464, %v8507
  %v8517 = vmul.f32 %v8465, %v8507
  %v8518 = vmul.f32 %v8466, %v8507
  %v8519 = vmul.f32 %v8467, %v8507
  %v8520 = vmul.f32 %v8468, %v8507
  %v8521 = vmul.f32 %v8469, %v8507
  %v8522 = vmul.f32 %v8470, %v8507
  %v8523 = vmul.f32 %v8471, %v8507
  %v8524 = vmul.f32 %v8472, %v8507
  %v8525 = vmul.f32 %v8473, %v8507
  %v8526 = vmul.f32 %v8474, %v8507
  %v8527 = vmul.f32 %v8475, %v8507
  %v8528 = vmul.f32 %v8476, %v8507
  %v8529 = vmul.f32 %v8477, %v8507
  %v8530 = vmul.f32 %v8478, %v8507
  %v8531 = vmul.f32 %v8479, %v8507
  %v8532 = vmul.f32 %v8480, %v8507
  %v8533 = vmul.f32 %v8481, %v8507
  %v8534 = vmul.f32 %v8482, %v8507
  %v8535 = vmul.f32 %v8483, %v8507
  %v8536 = vmul.f32 %v8484, %v8507
  %v8537 = vmul.f32 %v8485, %v8507
  %v8538 = vmul.f32 %v8486, %v8507
  %v8539 = vmul.f32 %v8487, %v8507
  %v8540 = vadd.f32 %v8424, %v8508
  %v8541 = vadd.f32 %v8425, %v8509
  %v8542 = vadd.f32 %v8426, %v8510
  %v8543 = vadd.f32 %v8427, %v8511
  %v8544 = vadd.f32 %v8428, %v8512
  %v8545 = vadd.f32 %v8429, %v8513
  %v8546 = vadd.f32 %v8430, %v8514
  %v8547 = vadd.f32 %v8431, %v8515
  %v8548 = vadd.f32 %v8432, %v8516
  %v8549 = vadd.f32 %v8433, %v8517
  %v8550 = vadd.f32 %v8434, %v8518
  %v8551 = vadd.f32 %v8435, %v8519
  %v8552 = vadd.f32 %v8436, %v8520
  %v8553 = vadd.f32 %v8437, %v8521
  %v8554 = vadd.f32 %v8438, %v8522
  %v8555 = vadd.f32 %v8439, %v8523
  %v8556 = vadd.f32 %v8440, %v8524
  %v8557 = vadd.f32 %v8441, %v8525
  %v8558 = vadd.f32 %v8442, %v8526
  %v8559 = vadd.f32 %v8443, %v8527
  %v8560 = vadd.f32 %v8444, %v8528
  %v8561 = vadd.f32 %v8445, %v8529
  %v8562 = vadd.f32 %v8446, %v8530
  %v8563 = vadd.f32 %v8447, %v8531
  %v8564 = vadd.f32 %v8448, %v8532
  %v8565 = vadd.f32 %v8449, %v8533
  %v8566 = vadd.f32 %v8450, %v8534
  %v8567 = vadd.f32 %v8451, %v8535
  %v8568 = vadd.f32 %v8452, %v8536
  %v8569 = vadd.f32 %v8453, %v8537
  %v8570 = vadd.f32 %v8454, %v8538
  %v8571 = vadd.f32 %v8455, %v8539
  %v8572 = vlaneseq
  %v8573 = vshrl.u32 %v8572, 7
  %v8574 = vsub.s32 1, %v8573
  %v8575 = vrot.slane %v6901, %v8574
  %v8576 = vmul.f32 %v8460, %v8575
  %v8577 = vmul.f32 %v8461, %v8575
  %v8578 = vmul.f32 %v8462, %v8575
  %v8579 = vmul.f32 %v8463, %v8575
  %v8580 = vmul.f32 %v8464, %v8575
  %v8581 = vmul.f32 %v8465, %v8575
  %v8582 = vmul.f32 %v8466, %v8575
  %v8583 = vmul.f32 %v8467, %v8575
  %v8584 = vmul.f32 %v8468, %v8575
  %v8585 = vmul.f32 %v8469, %v8575
  %v8586 = vmul.f32 %v8470, %v8575
  %v8587 = vmul.f32 %v8471, %v8575
  %v8588 = vmul.f32 %v8472, %v8575
  %v8589 = vmul.f32 %v8473, %v8575
  %v8590 = vmul.f32 %v8474, %v8575
  %v8591 = vmul.f32 %v8475, %v8575
  %v8592 = vmul.f32 %v8476, %v8575
  %v8593 = vmul.f32 %v8477, %v8575
  %v8594 = vmul.f32 %v8478, %v8575
  %v8595 = vmul.f32 %v8479, %v8575
  %v8596 = vmul.f32 %v8480, %v8575
  %v8597 = vmul.f32 %v8481, %v8575
  %v8598 = vmul.f32 %v8482, %v8575
  %v8599 = vmul.f32 %v8483, %v8575
  %v8600 = vmul.f32 %v8484, %v8575
  %v8601 = vmul.f32 %v8485, %v8575
  %v8602 = vmul.f32 %v8486, %v8575
  %v8603 = vmul.f32 %v8487, %v8575
  %v8604 = vmul.f32 %v8488, %v8575
  %v8605 = vmul.f32 %v8489, %v8575
  %v8606 = vmul.f32 %v8490, %v8575
  %v8607 = vmul.f32 %v8491, %v8575
  %v8608 = vadd.f32 %v8540, %v8576
  %v8609 = vadd.f32 %v8541, %v8577
  %v8610 = vadd.f32 %v8542, %v8578
  %v8611 = vadd.f32 %v8543, %v8579
  %v8612 = vadd.f32 %v8544, %v8580
  %v8613 = vadd.f32 %v8545, %v8581
  %v8614 = vadd.f32 %v8546, %v8582
  %v8615 = vadd.f32 %v8547, %v8583
  %v8616 = vadd.f32 %v8548, %v8584
  %v8617 = vadd.f32 %v8549, %v8585
  %v8618 = vadd.f32 %v8550, %v8586
  %v8619 = vadd.f32 %v8551, %v8587
  %v8620 = vadd.f32 %v8552, %v8588
  %v8621 = vadd.f32 %v8553, %v8589
  %v8622 = vadd.f32 %v8554, %v8590
  %v8623 = vadd.f32 %v8555, %v8591
  %v8624 = vadd.f32 %v8556, %v8592
  %v8625 = vadd.f32 %v8557, %v8593
  %v8626 = vadd.f32 %v8558, %v8594
  %v8627 = vadd.f32 %v8559, %v8595
  %v8628 = vadd.f32 %v8560, %v8596
  %v8629 = vadd.f32 %v8561, %v8597
  %v8630 = vadd.f32 %v8562, %v8598
  %v8631 = vadd.f32 %v8563, %v8599
  %v8632 = vadd.f32 %v8564, %v8600
  %v8633 = vadd.f32 %v8565, %v8601
  %v8634 = vadd.f32 %v8566, %v8602
  %v8635 = vadd.f32 %v8567, %v8603
  %v8636 = vadd.f32 %v8568, %v8604
  %v8637 = vadd.f32 %v8569, %v8605
  %v8638 = vadd.f32 %v8570, %v8606
  %v8639 = vadd.f32 %v8571, %v8607
  %v8640 = vlaneseq
  %v8641 = vshrl.u32 %v8640, 7
  %v8642 = vsub.s32 6, %v8641
  %v8643 = vrot.slane %v6901, %v8642
  %v8644 = vmul.f32 %v8464, %v8643
  %v8645 = vmul.f32 %v8465, %v8643
  %v8646 = vmul.f32 %v8466, %v8643
  %v8647 = vmul.f32 %v8467, %v8643
  %v8648 = vmul.f32 %v8468, %v8643
  %v8649 = vmul.f32 %v8469, %v8643
  %v8650 = vmul.f32 %v8470, %v8643
  %v8651 = vmul.f32 %v8471, %v8643
  %v8652 = vmul.f32 %v8472, %v8643
  %v8653 = vmul.f32 %v8473, %v8643
  %v8654 = vmul.f32 %v8474, %v8643
  %v8655 = vmul.f32 %v8475, %v8643
  %v8656 = vmul.f32 %v8476, %v8643
  %v8657 = vmul.f32 %v8477, %v8643
  %v8658 = vmul.f32 %v8478, %v8643
  %v8659 = vmul.f32 %v8479, %v8643
  %v8660 = vmul.f32 %v8480, %v8643
  %v8661 = vmul.f32 %v8481, %v8643
  %v8662 = vmul.f32 %v8482, %v8643
  %v8663 = vmul.f32 %v8483, %v8643
  %v8664 = vmul.f32 %v8484, %v8643
  %v8665 = vmul.f32 %v8485, %v8643
  %v8666 = vmul.f32 %v8486, %v8643
  %v8667 = vmul.f32 %v8487, %v8643
  %v8668 = vmul.f32 %v8488, %v8643
  %v8669 = vmul.f32 %v8489, %v8643
  %v8670 = vmul.f32 %v8490, %v8643
  %v8671 = vmul.f32 %v8491, %v8643
  %v8672 = vmul.f32 %v8492, %v8643
  %v8673 = vmul.f32 %v8493, %v8643
  %v8674 = vmul.f32 %v8494, %v8643
  %v8675 = vmul.f32 %v8495, %v8643
  %v8676 = vadd.f32 %v8608, %v8644
  %v8677 = vadd.f32 %v8609, %v8645
  %v8678 = vadd.f32 %v8610, %v8646
  %v8679 = vadd.f32 %v8611, %v8647
  %v8680 = vadd.f32 %v8612, %v8648
  %v8681 = vadd.f32 %v8613, %v8649
  %v8682 = vadd.f32 %v8614, %v8650
  %v8683 = vadd.f32 %v8615, %v8651
  %v8684 = vadd.f32 %v8616, %v8652
  %v8685 = vadd.f32 %v8617, %v8653
  %v8686 = vadd.f32 %v8618, %v8654
  %v8687 = vadd.f32 %v8619, %v8655
  %v8688 = vadd.f32 %v8620, %v8656
  %v8689 = vadd.f32 %v8621, %v8657
  %v8690 = vadd.f32 %v8622, %v8658
  %v8691 = vadd.f32 %v8623, %v8659
  %v8692 = vadd.f32 %v8624, %v8660
  %v8693 = vadd.f32 %v8625, %v8661
  %v8694 = vadd.f32 %v8626, %v8662
  %v8695 = vadd.f32 %v8627, %v8663
  %v8696 = vadd.f32 %v8628, %v8664
  %v8697 = vadd.f32 %v8629, %v8665
  %v8698 = vadd.f32 %v8630, %v8666
  %v8699 = vadd.f32 %v8631, %v8667
  %v8700 = vadd.f32 %v8632, %v8668
  %v8701 = vadd.f32 %v8633, %v8669
  %v8702 = vadd.f32 %v8634, %v8670
  %v8703 = vadd.f32 %v8635, %v8671
  %v8704 = vadd.f32 %v8636, %v8672
  %v8705 = vadd.f32 %v8637, %v8673
  %v8706 = vadd.f32 %v8638, %v8674
  %v8707 = vadd.f32 %v8639, %v8675
  %v8708 = vlaneseq
  %v8709 = vshrl.u32 %v8708, 7
  %v8710 = vsub.s32 3, %v8709
  %v8711 = vrot.slane %v6902, %v8710
  %v8712 = vmul.f32 %v8468, %v8711
  %v8713 = vmul.f32 %v8469, %v8711
  %v8714 = vmul.f32 %v8470, %v8711
  %v8715 = vmul.f32 %v8471, %v8711
  %v8716 = vmul.f32 %v8472, %v8711
  %v8717 = vmul.f32 %v8473, %v8711
  %v8718 = vmul.f32 %v8474, %v8711
  %v8719 = vmul.f32 %v8475, %v8711
  %v8720 = vmul.f32 %v8476, %v8711
  %v8721 = vmul.f32 %v8477, %v8711
  %v8722 = vmul.f32 %v8478, %v8711
  %v8723 = vmul.f32 %v8479, %v8711
  %v8724 = vmul.f32 %v8480, %v8711
  %v8725 = vmul.f32 %v8481, %v8711
  %v8726 = vmul.f32 %v8482, %v8711
  %v8727 = vmul.f32 %v8483, %v8711
  %v8728 = vmul.f32 %v8484, %v8711
  %v8729 = vmul.f32 %v8485, %v8711
  %v8730 = vmul.f32 %v8486, %v8711
  %v8731 = vmul.f32 %v8487, %v8711
  %v8732 = vmul.f32 %v8488, %v8711
  %v8733 = vmul.f32 %v8489, %v8711
  %v8734 = vmul.f32 %v8490, %v8711
  %v8735 = vmul.f32 %v8491, %v8711
  %v8736 = vmul.f32 %v8492, %v8711
  %v8737 = vmul.f32 %v8493, %v8711
  %v8738 = vmul.f32 %v8494, %v8711
  %v8739 = vmul.f32 %v8495, %v8711
  %v8740 = vmul.f32 %v8496, %v8711
  %v8741 = vmul.f32 %v8497, %v8711
  %v8742 = vmul.f32 %v8498, %v8711
  %v8743 = vmul.f32 %v8499, %v8711
  %v8744 = vadd.f32 %v8676, %v8712
  %v8745 = vadd.f32 %v8677, %v8713
  %v8746 = vadd.f32 %v8678, %v8714
  %v8747 = vadd.f32 %v8679, %v8715
  %v8748 = vadd.f32 %v8680, %v8716
  %v8749 = vadd.f32 %v8681, %v8717
  %v8750 = vadd.f32 %v8682, %v8718
  %v8751 = vadd.f32 %v8683, %v8719
  %v8752 = vadd.f32 %v8684, %v8720
  %v8753 = vadd.f32 %v8685, %v8721
  %v8754 = vadd.f32 %v8686, %v8722
  %v8755 = vadd.f32 %v8687, %v8723
  %v8756 = vadd.f32 %v8688, %v8724
  %v8757 = vadd.f32 %v8689, %v8725
  %v8758 = vadd.f32 %v8690, %v8726
  %v8759 = vadd.f32 %v8691, %v8727
  %v8760 = vadd.f32 %v8692, %v8728
  %v8761 = vadd.f32 %v8693, %v8729
  %v8762 = vadd.f32 %v8694, %v8730
  %v8763 = vadd.f32 %v8695, %v8731
  %v8764 = vadd.f32 %v8696, %v8732
  %v8765 = vadd.f32 %v8697, %v8733
  %v8766 = vadd.f32 %v8698, %v8734
  %v8767 = vadd.f32 %v8699, %v8735
  %v8768 = vadd.f32 %v8700, %v8736
  %v8769 = vadd.f32 %v8701, %v8737
  %v8770 = vadd.f32 %v8702, %v8738
  %v8771 = vadd.f32 %v8703, %v8739
  %v8772 = vadd.f32 %v8704, %v8740
  %v8773 = vadd.f32 %v8705, %v8741
  %v8774 = vadd.f32 %v8706, %v8742
  %v8775 = vadd.f32 %v8707, %v8743
  %v8776 = vlaneseq
  %v8777 = vshrl.u32 %v8776, 7
  %v8778 = vsub.s32 0, %v8777
  %v8779 = vrot.slane %v6903, %v8778
  %v8780 = vmul.f32 %v8472, %v8779
  %v8781 = vmul.f32 %v8473, %v8779
  %v8782 = vmul.f32 %v8474, %v8779
  %v8783 = vmul.f32 %v8475, %v8779
  %v8784 = vmul.f32 %v8476, %v8779
  %v8785 = vmul.f32 %v8477, %v8779
  %v8786 = vmul.f32 %v8478, %v8779
  %v8787 = vmul.f32 %v8479, %v8779
  %v8788 = vmul.f32 %v8480, %v8779
  %v8789 = vmul.f32 %v8481, %v8779
  %v8790 = vmul.f32 %v8482, %v8779
  %v8791 = vmul.f32 %v8483, %v8779
  %v8792 = vmul.f32 %v8484, %v8779
  %v8793 = vmul.f32 %v8485, %v8779
  %v8794 = vmul.f32 %v8486, %v8779
  %v8795 = vmul.f32 %v8487, %v8779
  %v8796 = vmul.f32 %v8488, %v8779
  %v8797 = vmul.f32 %v8489, %v8779
  %v8798 = vmul.f32 %v8490, %v8779
  %v8799 = vmul.f32 %v8491, %v8779
  %v8800 = vmul.f32 %v8492, %v8779
  %v8801 = vmul.f32 %v8493, %v8779
  %v8802 = vmul.f32 %v8494, %v8779
  %v8803 = vmul.f32 %v8495, %v8779
  %v8804 = vmul.f32 %v8496, %v8779
  %v8805 = vmul.f32 %v8497, %v8779
  %v8806 = vmul.f32 %v8498, %v8779
  %v8807 = vmul.f32 %v8499, %v8779
  %v8808 = vmul.f32 %v8500, %v8779
  %v8809 = vmul.f32 %v8501, %v8779
  %v8810 = vmul.f32 %v8502, %v8779
  %v8811 = vmul.f32 %v8503, %v8779
  %v8812 = vadd.f32 %v8744, %v8780
  %v8813 = vadd.f32 %v8745, %v8781
  %v8814 = vadd.f32 %v8746, %v8782
  %v8815 = vadd.f32 %v8747, %v8783
  %v8816 = vadd.f32 %v8748, %v8784
  %v8817 = vadd.f32 %v8749, %v8785
  %v8818 = vadd.f32 %v8750, %v8786
  %v8819 = vadd.f32 %v8751, %v8787
  %v8820 = vadd.f32 %v8752, %v8788
  %v8821 = vadd.f32 %v8753, %v8789
  %v8822 = vadd.f32 %v8754, %v8790
  %v8823 = vadd.f32 %v8755, %v8791
  %v8824 = vadd.f32 %v8756, %v8792
  %v8825 = vadd.f32 %v8757, %v8793
  %v8826 = vadd.f32 %v8758, %v8794
  %v8827 = vadd.f32 %v8759, %v8795
  %v8828 = vadd.f32 %v8760, %v8796
  %v8829 = vadd.f32 %v8761, %v8797
  %v8830 = vadd.f32 %v8762, %v8798
  %v8831 = vadd.f32 %v8763, %v8799
  %v8832 = vadd.f32 %v8764, %v8800
  %v8833 = vadd.f32 %v8765, %v8801
  %v8834 = vadd.f32 %v8766, %v8802
  %v8835 = vadd.f32 %v8767, %v8803
  %v8836 = vadd.f32 %v8768, %v8804
  %v8837 = vadd.f32 %v8769, %v8805
  %v8838 = vadd.f32 %v8770, %v8806
  %v8839 = vadd.f32 %v8771, %v8807
  %v8840 = vadd.f32 %v8772, %v8808
  %v8841 = vadd.f32 %v8773, %v8809
  %v8842 = vadd.f32 %v8774, %v8810
  %v8843 = vadd.f32 %v8775, %v8811
  %v8844 = vld [vmem:[%s6] sm:$0x1]
  %v8846 = vlaneseq
  %v8847 = vshrl.u32 %v8846, 7
  %v8848 = vsub.s32 0, %v8847
  %v8849 = vrot.slane %v8844, %v8848
  %v8851 = vadd.f32 %v8812, %v8849
  %v8852 = vadd.f32 %v8813, %v8849
  %v8853 = vadd.f32 %v8814, %v8849
  %v8854 = vadd.f32 %v8815, %v8849
  %v8855 = vadd.f32 %v8816, %v8849
  %v8856 = vadd.f32 %v8817, %v8849
  %v8857 = vadd.f32 %v8818, %v8849
  %v8858 = vadd.f32 %v8819, %v8849
  %v8859 = vadd.f32 %v8820, %v8849
  %v8860 = vadd.f32 %v8821, %v8849
  %v8861 = vadd.f32 %v8822, %v8849
  %v8862 = vadd.f32 %v8823, %v8849
  %v8863 = vadd.f32 %v8824, %v8849
  %v8864 = vadd.f32 %v8825, %v8849
  %v8865 = vadd.f32 %v8826, %v8849
  %v8866 = vadd.f32 %v8827, %v8849
  %v8867 = vadd.f32 %v8828, %v8849
  %v8868 = vadd.f32 %v8829, %v8849
  %v8869 = vadd.f32 %v8830, %v8849
  %v8870 = vadd.f32 %v8831, %v8849
  %v8871 = vadd.f32 %v8832, %v8849
  %v8872 = vadd.f32 %v8833, %v8849
  %v8873 = vadd.f32 %v8834, %v8849
  %v8874 = vadd.f32 %v8835, %v8849
  %v8875 = vadd.f32 %v8836, %v8849
  %v8876 = vadd.f32 %v8837, %v8849
  %v8877 = vadd.f32 %v8838, %v8849
  %v8878 = vadd.f32 %v8839, %v8849
  %v8879 = vadd.f32 %v8840, %v8849
  %v8880 = vadd.f32 %v8841, %v8849
  %v8881 = vadd.f32 %v8842, %v8849
  %v8882 = vadd.f32 %v8843, %v8849
  %v8883 = vmax.f32 %v8851, 0.0
  %v8884 = vmax.f32 %v8852, 0.0
  %v8885 = vmax.f32 %v8853, 0.0
  %v8886 = vmax.f32 %v8854, 0.0
  %v8887 = vmax.f32 %v8855, 0.0
  %v8888 = vmax.f32 %v8856, 0.0
  %v8889 = vmax.f32 %v8857, 0.0
  %v8890 = vmax.f32 %v8858, 0.0
  %v8891 = vmax.f32 %v8859, 0.0
  %v8892 = vmax.f32 %v8860, 0.0
  %v8893 = vmax.f32 %v8861, 0.0
  %v8894 = vmax.f32 %v8862, 0.0
  %v8895 = vmax.f32 %v8863, 0.0
  %v8896 = vmax.f32 %v8864, 0.0
  %v8897 = vmax.f32 %v8865, 0.0
  %v8898 = vmax.f32 %v8866, 0.0
  %v8899 = vmax.f32 %v8867, 0.0
  %v8900 = vmax.f32 %v8868, 0.0
  %v8901 = vmax.f32 %v8869, 0.0
  %v8902 = vmax.f32 %v8870, 0.0
  %v8903 = vmax.f32 %v8871, 0.0
  %v8904 = vmax.f32 %v8872, 0.0
  %v8905 = vmax.f32 %v8873, 0.0
  %v8906 = vmax.f32 %v8874, 0.0
  %v8907 = vmax.f32 %v8875, 0.0
  %v8908 = vmax.f32 %v8876, 0.0
  %v8909 = vmax.f32 %v8877, 0.0
  %v8910 = vmax.f32 %v8878, 0.0
  %v8911 = vmax.f32 %v8879, 0.0
  %v8912 = vmax.f32 %v8880, 0.0
  %v8913 = vmax.f32 %v8881, 0.0
  %v8914 = vmax.f32 %v8882, 0.0
  %v8915 = vpack.c.bf16 %v8884, %v8883
  %v8916 = vpack.c.bf16 %v8886, %v8885
  %v8917 = vpack.c.bf16 %v8888, %v8887
  %v8918 = vpack.c.bf16 %v8890, %v8889
  %v8919 = vpack.c.bf16 %v8892, %v8891
  %v8920 = vpack.c.bf16 %v8894, %v8893
  %v8921 = vpack.c.bf16 %v8896, %v8895
  %v8922 = vpack.c.bf16 %v8898, %v8897
  %v8923 = vpack.c.bf16 %v8900, %v8899
  %v8924 = vpack.c.bf16 %v8902, %v8901
  %v8925 = vpack.c.bf16 %v8904, %v8903
  %v8926 = vpack.c.bf16 %v8906, %v8905
  %v8927 = vpack.c.bf16 %v8908, %v8907
  %v8928 = vpack.c.bf16 %v8910, %v8909
  %v8929 = vpack.c.bf16 %v8912, %v8911
  %v8930 = vpack.c.bf16 %v8914, %v8913
  %v8931 = vld [vmem:[%s7] sm:$0xf]
  %v8932 = vld [vmem:[%s7 + $0x4] sm:$0xf]
  %v8933 = vld [vmem:[%s7 + $0x8] sm:$0xf]
  %v8934 = vld [vmem:[%s7 + $0xc] sm:$0xf]
  %v8935 = vld [vmem:[%s7 + $0x10] sm:$0xf]
  %v8936 = vld [vmem:[%s7 + $0x14] sm:$0xf]
  %v8937 = vld [vmem:[%s7 + $0x18] sm:$0xf]
  %v8938 = vld [vmem:[%s7 + $0x1c] sm:$0xf]
  %v8939 = vld [vmem:[%s7 + $0x20] sm:$0xf]
  %v8940 = vld [vmem:[%s7 + $0x24] sm:$0xf]
  %v8941 = vld [vmem:[%s7 + $0x28] sm:$0xf]
  %v8942 = vld [vmem:[%s7 + $0x2c] sm:$0xf]
  %v8943 = vld [vmem:[%s7 + $0x30] sm:$0xf]
  %v8944 = vld [vmem:[%s7 + $0x34] sm:$0xf]
  %v8945 = vld [vmem:[%s7 + $0x38] sm:$0xf]
  %v8946 = vld [vmem:[%s7 + $0x3c] sm:$0xf]
  %v8947 = vld [vmem:[%s8] sm:$0x1]
  %v8949 = vlaneseq
  %v8950 = vshrl.u32 %v8949, 7
  %v8951 = vsub.s32 0, %v8950
  %v8952 = vrot.slane %v8947, %v8951
  %v8970 = vunpack.c.l.b16 %v8931
  %v8971 = vunpack.c.l.b16 %v8932
  %v8972 = vunpack.c.l.b16 %v8933
  %v8973 = vunpack.c.l.b16 %v8934
  %v8974 = vunpack.c.l.b16 %v8935
  %v8975 = vunpack.c.l.b16 %v8936
  %v8976 = vunpack.c.l.b16 %v8937
  %v8977 = vunpack.c.l.b16 %v8938
  %v8978 = vunpack.c.l.b16 %v8939
  %v8979 = vunpack.c.l.b16 %v8940
  %v8980 = vunpack.c.l.b16 %v8941
  %v8981 = vunpack.c.l.b16 %v8942
  %v8982 = vunpack.c.l.b16 %v8943
  %v8983 = vunpack.c.l.b16 %v8944
  %v8984 = vunpack.c.l.b16 %v8945
  %v8985 = vunpack.c.l.b16 %v8946
  %v8986 = vpack.c.b16 %v8971, %v8970
  %v8987 = vpack.c.b16 %v8973, %v8972
  %v8988 = vpack.c.b16 %v8975, %v8974
  %v8989 = vpack.c.b16 %v8977, %v8976
  %v8990 = vpack.c.b16 %v8979, %v8978
  %v8991 = vpack.c.b16 %v8981, %v8980
  %v8992 = vpack.c.b16 %v8983, %v8982
  %v8993 = vpack.c.b16 %v8985, %v8984
  %9002 = vmatprep.subr.bf16.mxu0 0
  %9003 = vmatpush1.bf16.msra.mxu0 %v8993
  %9004 = vmatprep.subr.bf16.mxu0 0
  %9005 = vmatpush1.bf16.msra.mxu0 %v8992
  %9006 = vmatprep.subr.bf16.mxu0 0
  %9007 = vmatpush1.bf16.msra.mxu0 %v8991
  %9008 = vmatprep.subr.bf16.mxu0 0
  %9009 = vmatpush1.bf16.msra.mxu0 %v8990
  %9010 = vmatprep.subr.bf16.mxu0 0
  %9011 = vmatpush1.bf16.msra.mxu0 %v8989
  %9012 = vmatprep.subr.bf16.mxu0 0
  %9013 = vmatpush1.bf16.msra.mxu0 %v8988
  %9014 = vmatprep.subr.bf16.mxu0 0
  %9015 = vmatpush1.bf16.msra.mxu0 %v8987
  %9016 = vmatprep.subr.bf16.mxu0 0
  %9017 = vmatpush1.bf16.msra.mxu0 %v8986
  %9018 = vmatprep.subr.bf16.mxu0 0
  %9019 = vmatpush2.bf16.msra.mxu0 0
  %9020 = vmatprep.subr.bf16.mxu0 0
  %9021 = vmatpush2.bf16.msra.mxu0 0
  %9022 = vmatprep.subr.bf16.mxu0 0
  %9023 = vmatpush2.bf16.msra.mxu0 0
  %9024 = vmatprep.subr.bf16.mxu0 0
  %9025 = vmatpush2.bf16.msra.mxu0 0
  %9026 = vmatprep.subr.bf16.mxu0 0
  %9027 = vmatpush2.bf16.msra.mxu0 0
  %9028 = vmatprep.subr.bf16.mxu0 0
  %9029 = vmatpush2.bf16.msra.mxu0 0
  %9030 = vmatprep.subr.bf16.mxu0 0
  %9031 = vmatpush2.bf16.msra.mxu0 0
  %9032 = vmatprep.subr.bf16.mxu0 0
  %9033 = vmatpush2.bf16.msra.mxu0 0
  %9034 = vmatprep.mubr.bf16.mxu0 0
  %9035 = vmatmul.mubr.bf16.gmra.mxu0 %v8915
  %v9036 = vpop.f32.mrf.mxu0
  %v9037 = vadd.f32 %v8952, %v9036
  %v9038 = vpop.f32.mrf.mxu0
  %v9039 = vpop.f32.mrf.mxu0
  %v9040 = vadd.f32 %v8952, %v9039
  %v9041 = vpop.f32.mrf.mxu0
  %9042 = vmatprep.mubr.bf16.mxu0 0
  %9043 = vmatmul.mubr.bf16.gmra.mxu0 %v8916
  %v9044 = vpop.f32.mrf.mxu0
  %v9045 = vadd.f32 %v8952, %v9044
  %v9046 = vpop.f32.mrf.mxu0
  %v9047 = vpop.f32.mrf.mxu0
  %v9048 = vadd.f32 %v8952, %v9047
  %v9049 = vpop.f32.mrf.mxu0
  %9050 = vmatprep.mubr.bf16.mxu0 0
  %9051 = vmatmul.mubr.bf16.gmra.mxu0 %v8917
  %v9052 = vpop.f32.mrf.mxu0
  %v9053 = vadd.f32 %v8952, %v9052
  %v9054 = vpop.f32.mrf.mxu0
  %v9055 = vpop.f32.mrf.mxu0
  %v9056 = vadd.f32 %v8952, %v9055
  %v9057 = vpop.f32.mrf.mxu0
  %9058 = vmatprep.mubr.bf16.mxu0 0
  %9059 = vmatmul.mubr.bf16.gmra.mxu0 %v8918
  %v9060 = vpop.f32.mrf.mxu0
  %v9061 = vadd.f32 %v8952, %v9060
  %v9062 = vpop.f32.mrf.mxu0
  %v9063 = vpop.f32.mrf.mxu0
  %v9064 = vadd.f32 %v8952, %v9063
  %v9065 = vpop.f32.mrf.mxu0
  %9066 = vmatprep.mubr.bf16.mxu0 0
  %9067 = vmatmul.mubr.bf16.gmra.mxu0 %v8919
  %v9068 = vpop.f32.mrf.mxu0
  %v9069 = vadd.f32 %v8952, %v9068
  %v9070 = vpop.f32.mrf.mxu0
  %v9071 = vpop.f32.mrf.mxu0
  %v9072 = vadd.f32 %v8952, %v9071
  %v9073 = vpop.f32.mrf.mxu0
  %9074 = vmatprep.mubr.bf16.mxu0 0
  %9075 = vmatmul.mubr.bf16.gmra.mxu0 %v8920
  %v9076 = vpop.f32.mrf.mxu0
  %v9077 = vadd.f32 %v8952, %v9076
  %v9078 = vpop.f32.mrf.mxu0
  %v9079 = vpop.f32.mrf.mxu0
  %v9080 = vadd.f32 %v8952, %v9079
  %v9081 = vpop.f32.mrf.mxu0
  %9082 = vmatprep.mubr.bf16.mxu0 0
  %9083 = vmatmul.mubr.bf16.gmra.mxu0 %v8921
  %v9084 = vpop.f32.mrf.mxu0
  %v9085 = vadd.f32 %v8952, %v9084
  %v9086 = vpop.f32.mrf.mxu0
  %v9087 = vpop.f32.mrf.mxu0
  %v9088 = vadd.f32 %v8952, %v9087
  %v9089 = vpop.f32.mrf.mxu0
  %9090 = vmatprep.mubr.bf16.mxu0 0
  %9091 = vmatmul.mubr.bf16.gmra.mxu0 %v8922
  %v9092 = vpop.f32.mrf.mxu0
  %v9093 = vadd.f32 %v8952, %v9092
  %v9094 = vpop.f32.mrf.mxu0
  %v9095 = vpop.f32.mrf.mxu0
  %v9096 = vadd.f32 %v8952, %v9095
  %v9097 = vpop.f32.mrf.mxu0
  %9098 = vmatprep.mubr.bf16.mxu0 0
  %9099 = vmatmul.mubr.bf16.gmra.mxu0 %v8923
  %v9100 = vpop.f32.mrf.mxu0
  %v9101 = vadd.f32 %v8952, %v9100
  %v9102 = vpop.f32.mrf.mxu0
  %v9103 = vpop.f32.mrf.mxu0
  %v9104 = vadd.f32 %v8952, %v9103
  %v9105 = vpop.f32.mrf.mxu0
  %9106 = vmatprep.mubr.bf16.mxu0 0
  %9107 = vmatmul.mubr.bf16.gmra.mxu0 %v8924
  %v9108 = vpop.f32.mrf.mxu0
  %v9109 = vadd.f32 %v8952, %v9108
  %v9110 = vpop.f32.mrf.mxu0
  %v9111 = vpop.f32.mrf.mxu0
  %v9112 = vadd.f32 %v8952, %v9111
  %v9113 = vpop.f32.mrf.mxu0
  %9114 = vmatprep.mubr.bf16.mxu0 0
  %9115 = vmatmul.mubr.bf16.gmra.mxu0 %v8925
  %v9116 = vpop.f32.mrf.mxu0
  %v9117 = vadd.f32 %v8952, %v9116
  %v9118 = vpop.f32.mrf.mxu0
  %v9119 = vpop.f32.mrf.mxu0
  %v9120 = vadd.f32 %v8952, %v9119
  %v9121 = vpop.f32.mrf.mxu0
  %9122 = vmatprep.mubr.bf16.mxu0 0
  %9123 = vmatmul.mubr.bf16.gmra.mxu0 %v8926
  %v9124 = vpop.f32.mrf.mxu0
  %v9125 = vadd.f32 %v8952, %v9124
  %v9126 = vpop.f32.mrf.mxu0
  %v9127 = vpop.f32.mrf.mxu0
  %v9128 = vadd.f32 %v8952, %v9127
  %v9129 = vpop.f32.mrf.mxu0
  %9130 = vmatprep.mubr.bf16.mxu0 0
  %9131 = vmatmul.mubr.bf16.gmra.mxu0 %v8927
  %v9132 = vpop.f32.mrf.mxu0
  %v9133 = vadd.f32 %v8952, %v9132
  %v9134 = vpop.f32.mrf.mxu0
  %v9135 = vpop.f32.mrf.mxu0
  %v9136 = vadd.f32 %v8952, %v9135
  %v9137 = vpop.f32.mrf.mxu0
  %9138 = vmatprep.mubr.bf16.mxu0 0
  %9139 = vmatmul.mubr.bf16.gmra.mxu0 %v8928
  %v9140 = vpop.f32.mrf.mxu0
  %v9141 = vadd.f32 %v8952, %v9140
  %v9142 = vpop.f32.mrf.mxu0
  %v9143 = vpop.f32.mrf.mxu0
  %v9144 = vadd.f32 %v8952, %v9143
  %v9145 = vpop.f32.mrf.mxu0
  %9146 = vmatprep.mubr.bf16.mxu0 0
  %9147 = vmatmul.mubr.bf16.gmra.mxu0 %v8929
  %v9148 = vpop.f32.mrf.mxu0
  %v9149 = vadd.f32 %v8952, %v9148
  %v9150 = vpop.f32.mrf.mxu0
  %v9151 = vpop.f32.mrf.mxu0
  %v9152 = vadd.f32 %v8952, %v9151
  %v9153 = vpop.f32.mrf.mxu0
  %9154 = vmatprep.mubr.bf16.mxu0 0
  %9155 = vmatmul.mubr.bf16.gmra.mxu0 %v8930
  %v9156 = vpop.f32.mrf.mxu0
  %v9157 = vadd.f32 %v8952, %v9156
  %v9158 = vpop.f32.mrf.mxu0
  %v9159 = vpop.f32.mrf.mxu0
  %v9160 = vadd.f32 %v8952, %v9159
  %v9161 = vpop.f32.mrf.mxu0
  %9162 = vdwg.mxu0
  %v9163 = vld [vmem:[#allocation4] sm:$0xff]
  %v9164 = vld [vmem:[#allocation4 + $0x8] sm:$0xff]
  %v9165 = vld [vmem:[#allocation4 + $0x10] sm:$0xff]
  %v9166 = vld [vmem:[#allocation4 + $0x18] sm:$0xff]
  %v9167 = vld [vmem:[#allocation4 + $0x20] sm:$0xff]
  %v9168 = vld [vmem:[#allocation4 + $0x28] sm:$0xff]
  %v9169 = vld [vmem:[#allocation4 + $0x30] sm:$0xff]
  %v9170 = vld [vmem:[#allocation4 + $0x38] sm:$0xff]
  %v9171 = vld [vmem:[#allocation4 + $0x40] sm:$0xff]
  %v9172 = vld [vmem:[#allocation4 + $0x48] sm:$0xff]
  %v9173 = vld [vmem:[#allocation4 + $0x50] sm:$0xff]
  %v9174 = vld [vmem:[#allocation4 + $0x58] sm:$0xff]
  %v9175 = vld [vmem:[#allocation4 + $0x60] sm:$0xff]
  %v9176 = vld [vmem:[#allocation4 + $0x68] sm:$0xff]
  %v9177 = vld [vmem:[#allocation4 + $0x70] sm:$0xff]
  %v9178 = vld [vmem:[#allocation4 + $0x78] sm:$0xff]
  %v9179 = vld [vmem:[#allocation4 + $0x80] sm:$0xff]
  %v9180 = vld [vmem:[#allocation4 + $0x88] sm:$0xff]
  %v9181 = vld [vmem:[#allocation4 + $0x90] sm:$0xff]
  %v9182 = vld [vmem:[#allocation4 + $0x98] sm:$0xff]
  %v9183 = vld [vmem:[#allocation4 + $0xa0] sm:$0xff]
  %v9184 = vld [vmem:[#allocation4 + $0xa8] sm:$0xff]
  %v9185 = vld [vmem:[#allocation4 + $0xb0] sm:$0xff]
  %v9186 = vld [vmem:[#allocation4 + $0xb8] sm:$0xff]
  %v9187 = vld [vmem:[#allocation4 + $0xc0] sm:$0xff]
  %v9188 = vld [vmem:[#allocation4 + $0xc8] sm:$0xff]
  %v9189 = vld [vmem:[#allocation4 + $0xd0] sm:$0xff]
  %v9190 = vld [vmem:[#allocation4 + $0xd8] sm:$0xff]
  %v9191 = vld [vmem:[#allocation4 + $0xe0] sm:$0xff]
  %v9192 = vld [vmem:[#allocation4 + $0xe8] sm:$0xff]
  %v9193 = vld [vmem:[#allocation4 + $0xf0] sm:$0xff]
  %v9194 = vld [vmem:[#allocation4 + $0xf8] sm:$0xff]
  %v9195 = vlaneseq
  %v9196 = vshrl.u32 %v9195, 7
  %v9197 = vsub.s32 0, %v9196
  %v9198 = vrot.slane %v6459, %v9197
  %v9199 = vmul.f32 %v9163, %v9198
  %v9200 = vmul.f32 %v9164, %v9198
  %v9201 = vmul.f32 %v9165, %v9198
  %v9202 = vmul.f32 %v9166, %v9198
  %v9203 = vmul.f32 %v9167, %v9198
  %v9204 = vmul.f32 %v9168, %v9198
  %v9205 = vmul.f32 %v9169, %v9198
  %v9206 = vmul.f32 %v9170, %v9198
  %v9207 = vmul.f32 %v9171, %v9198
  %v9208 = vmul.f32 %v9172, %v9198
  %v9209 = vmul.f32 %v9173, %v9198
  %v9210 = vmul.f32 %v9174, %v9198
  %v9211 = vmul.f32 %v9175, %v9198
  %v9212 = vmul.f32 %v9176, %v9198
  %v9213 = vmul.f32 %v9177, %v9198
  %v9214 = vmul.f32 %v9178, %v9198
  %v9215 = vmul.f32 %v9179, %v9198
  %v9216 = vmul.f32 %v9180, %v9198
  %v9217 = vmul.f32 %v9181, %v9198
  %v9218 = vmul.f32 %v9182, %v9198
  %v9219 = vmul.f32 %v9183, %v9198
  %v9220 = vmul.f32 %v9184, %v9198
  %v9221 = vmul.f32 %v9185, %v9198
  %v9222 = vmul.f32 %v9186, %v9198
  %v9223 = vmul.f32 %v9187, %v9198
  %v9224 = vmul.f32 %v9188, %v9198
  %v9225 = vmul.f32 %v9189, %v9198
  %v9226 = vmul.f32 %v9190, %v9198
  %v9227 = vmul.f32 %v9191, %v9198
  %v9228 = vmul.f32 %v9192, %v9198
  %v9229 = vmul.f32 %v9193, %v9198
  %v9230 = vmul.f32 %v9194, %v9198
  %v9231 = vxor.u32 %v9037, 2147483648
  %v9232 = vxor.u32 %v9040, 2147483648
  %v9233 = vxor.u32 %v9045, 2147483648
  %v9234 = vxor.u32 %v9048, 2147483648
  %v9235 = vxor.u32 %v9053, 2147483648
  %v9236 = vxor.u32 %v9056, 2147483648
  %v9237 = vxor.u32 %v9061, 2147483648
  %v9238 = vxor.u32 %v9064, 2147483648
  %v9239 = vxor.u32 %v9069, 2147483648
  %v9240 = vxor.u32 %v9072, 2147483648
  %v9241 = vxor.u32 %v9077, 2147483648
  %v9242 = vxor.u32 %v9080, 2147483648
  %v9243 = vxor.u32 %v9085, 2147483648
  %v9244 = vxor.u32 %v9088, 2147483648
  %v9245 = vxor.u32 %v9093, 2147483648
  %v9246 = vxor.u32 %v9096, 2147483648
  %v9247 = vxor.u32 %v9101, 2147483648
  %v9248 = vxor.u32 %v9104, 2147483648
  %v9249 = vxor.u32 %v9109, 2147483648
  %v9250 = vxor.u32 %v9112, 2147483648
  %v9251 = vxor.u32 %v9117, 2147483648
  %v9252 = vxor.u32 %v9120, 2147483648
  %v9253 = vxor.u32 %v9125, 2147483648
  %v9254 = vxor.u32 %v9128, 2147483648
  %v9255 = vxor.u32 %v9133, 2147483648
  %v9256 = vxor.u32 %v9136, 2147483648
  %v9257 = vxor.u32 %v9141, 2147483648
  %v9258 = vxor.u32 %v9144, 2147483648
  %v9259 = vxor.u32 %v9149, 2147483648
  %v9260 = vxor.u32 %v9152, 2147483648
  %v9261 = vxor.u32 %v9157, 2147483648
  %v9262 = vxor.u32 %v9160, 2147483648
  %v9263 = vmul.f32 %v9231, 1.442695
  %v9264 = vpow.pop %v9263
  %v9265 = vmul.f32 %v9232, 1.442695
  %v9266 = vpow.pop %v9265
  %v9267 = vmul.f32 %v9233, 1.442695
  %v9268 = vpow.pop %v9267
  %v9269 = vmul.f32 %v9234, 1.442695
  %v9270 = vpow.pop %v9269
  %v9271 = vmul.f32 %v9235, 1.442695
  %v9272 = vpow.pop %v9271
  %v9273 = vmul.f32 %v9236, 1.442695
  %v9274 = vpow.pop %v9273
  %v9275 = vmul.f32 %v9237, 1.442695
  %v9276 = vpow.pop %v9275
  %v9277 = vmul.f32 %v9238, 1.442695
  %v9278 = vpow.pop %v9277
  %v9279 = vmul.f32 %v9239, 1.442695
  %v9280 = vpow.pop %v9279
  %v9281 = vmul.f32 %v9240, 1.442695
  %v9282 = vpow.pop %v9281
  %v9283 = vmul.f32 %v9241, 1.442695
  %v9284 = vpow.pop %v9283
  %v9285 = vmul.f32 %v9242, 1.442695
  %v9286 = vpow.pop %v9285
  %v9287 = vmul.f32 %v9243, 1.442695
  %v9288 = vpow.pop %v9287
  %v9289 = vmul.f32 %v9244, 1.442695
  %v9290 = vpow.pop %v9289
  %v9291 = vmul.f32 %v9245, 1.442695
  %v9292 = vpow.pop %v9291
  %v9293 = vmul.f32 %v9246, 1.442695
  %v9294 = vpow.pop %v9293
  %v9295 = vmul.f32 %v9247, 1.442695
  %v9296 = vpow.pop %v9295
  %v9297 = vmul.f32 %v9248, 1.442695
  %v9298 = vpow.pop %v9297
  %v9299 = vmul.f32 %v9249, 1.442695
  %v9300 = vpow.pop %v9299
  %v9301 = vmul.f32 %v9250, 1.442695
  %v9302 = vpow.pop %v9301
  %v9303 = vmul.f32 %v9251, 1.442695
  %v9304 = vpow.pop %v9303
  %v9305 = vmul.f32 %v9252, 1.442695
  %v9306 = vpow.pop %v9305
  %v9307 = vmul.f32 %v9253, 1.442695
  %v9308 = vpow.pop %v9307
  %v9309 = vmul.f32 %v9254, 1.442695
  %v9310 = vpow.pop %v9309
  %v9311 = vmul.f32 %v9255, 1.442695
  %v9312 = vpow.pop %v9311
  %v9313 = vmul.f32 %v9256, 1.442695
  %v9314 = vpow.pop %v9313
  %v9315 = vmul.f32 %v9257, 1.442695
  %v9316 = vpow.pop %v9315
  %v9317 = vmul.f32 %v9258, 1.442695
  %v9318 = vpow.pop %v9317
  %v9319 = vmul.f32 %v9259, 1.442695
  %v9320 = vpow.pop %v9319
  %v9321 = vmul.f32 %v9260, 1.442695
  %v9322 = vpow.pop %v9321
  %v9323 = vmul.f32 %v9261, 1.442695
  %v9324 = vpow.pop %v9323
  %v9325 = vmul.f32 %v9262, 1.442695
  %v9326 = vpow.pop %v9325
  %v9327 = vadd.f32 %v9264, 1.0
  %v9328 = vadd.f32 %v9266, 1.0
  %v9329 = vadd.f32 %v9268, 1.0
  %v9330 = vadd.f32 %v9270, 1.0
  %v9331 = vadd.f32 %v9272, 1.0
  %v9332 = vadd.f32 %v9274, 1.0
  %v9333 = vadd.f32 %v9276, 1.0
  %v9334 = vadd.f32 %v9278, 1.0
  %v9335 = vadd.f32 %v9280, 1.0
  %v9336 = vadd.f32 %v9282, 1.0
  %v9337 = vadd.f32 %v9284, 1.0
  %v9338 = vadd.f32 %v9286, 1.0
  %v9339 = vadd.f32 %v9288, 1.0
  %v9340 = vadd.f32 %v9290, 1.0
  %v9341 = vadd.f32 %v9292, 1.0
  %v9342 = vadd.f32 %v9294, 1.0
  %v9343 = vadd.f32 %v9296, 1.0
  %v9344 = vadd.f32 %v9298, 1.0
  %v9345 = vadd.f32 %v9300, 1.0
  %v9346 = vadd.f32 %v9302, 1.0
  %v9347 = vadd.f32 %v9304, 1.0
  %v9348 = vadd.f32 %v9306, 1.0
  %v9349 = vadd.f32 %v9308, 1.0
  %v9350 = vadd.f32 %v9310, 1.0
  %v9351 = vadd.f32 %v9312, 1.0
  %v9352 = vadd.f32 %v9314, 1.0
  %v9353 = vadd.f32 %v9316, 1.0
  %v9354 = vadd.f32 %v9318, 1.0
  %v9355 = vadd.f32 %v9320, 1.0
  %v9356 = vadd.f32 %v9322, 1.0
  %v9357 = vadd.f32 %v9324, 1.0
  %v9358 = vadd.f32 %v9326, 1.0
  %v9359 = vrcp.pop %v9327
  %v9360 = vmul.f32 1.0, %v9359
  %v9361 = vrcp.pop %v9328
  %v9362 = vmul.f32 1.0, %v9361
  %v9363 = vrcp.pop %v9329
  %v9364 = vmul.f32 1.0, %v9363
  %v9365 = vrcp.pop %v9330
  %v9366 = vmul.f32 1.0, %v9365
  %v9367 = vrcp.pop %v9331
  %v9368 = vmul.f32 1.0, %v9367
  %v9369 = vrcp.pop %v9332
  %v9370 = vmul.f32 1.0, %v9369
  %v9371 = vrcp.pop %v9333
  %v9372 = vmul.f32 1.0, %v9371
  %v9373 = vrcp.pop %v9334
  %v9374 = vmul.f32 1.0, %v9373
  %v9375 = vrcp.pop %v9335
  %v9376 = vmul.f32 1.0, %v9375
  %v9377 = vrcp.pop %v9336
  %v9378 = vmul.f32 1.0, %v9377
  %v9379 = vrcp.pop %v9337
  %v9380 = vmul.f32 1.0, %v9379
  %v9381 = vrcp.pop %v9338
  %v9382 = vmul.f32 1.0, %v9381
  %v9383 = vrcp.pop %v9339
  %v9384 = vmul.f32 1.0, %v9383
  %v9385 = vrcp.pop %v9340
  %v9386 = vmul.f32 1.0, %v9385
  %v9387 = vrcp.pop %v9341
  %v9388 = vmul.f32 1.0, %v9387
  %v9389 = vrcp.pop %v9342
  %v9390 = vmul.f32 1.0, %v9389
  %v9391 = vrcp.pop %v9343
  %v9392 = vmul.f32 1.0, %v9391
  %v9393 = vrcp.pop %v9344
  %v9394 = vmul.f32 1.0, %v9393
  %v9395 = vrcp.pop %v9345
  %v9396 = vmul.f32 1.0, %v9395
  %v9397 = vrcp.pop %v9346
  %v9398 = vmul.f32 1.0, %v9397
  %v9399 = vrcp.pop %v9347
  %v9400 = vmul.f32 1.0, %v9399
  %v9401 = vrcp.pop %v9348
  %v9402 = vmul.f32 1.0, %v9401
  %v9403 = vrcp.pop %v9349
  %v9404 = vmul.f32 1.0, %v9403
  %v9405 = vrcp.pop %v9350
  %v9406 = vmul.f32 1.0, %v9405
  %v9407 = vrcp.pop %v9351
  %v9408 = vmul.f32 1.0, %v9407
  %v9409 = vrcp.pop %v9352
  %v9410 = vmul.f32 1.0, %v9409
  %v9411 = vrcp.pop %v9353
  %v9412 = vmul.f32 1.0, %v9411
  %v9413 = vrcp.pop %v9354
  %v9414 = vmul.f32 1.0, %v9413
  %v9415 = vrcp.pop %v9355
  %v9416 = vmul.f32 1.0, %v9415
  %v9417 = vrcp.pop %v9356
  %v9418 = vmul.f32 1.0, %v9417
  %v9419 = vrcp.pop %v9357
  %v9420 = vmul.f32 1.0, %v9419
  %v9421 = vrcp.pop %v9358
  %v9422 = vmul.f32 1.0, %v9421
  %v9423 = vxor.u32 %v9360, 2147483648
  %v9424 = vxor.u32 %v9362, 2147483648
  %v9425 = vxor.u32 %v9364, 2147483648
  %v9426 = vxor.u32 %v9366, 2147483648
  %v9427 = vxor.u32 %v9368, 2147483648
  %v9428 = vxor.u32 %v9370, 2147483648
  %v9429 = vxor.u32 %v9372, 2147483648
  %v9430 = vxor.u32 %v9374, 2147483648
  %v9431 = vxor.u32 %v9376, 2147483648
  %v9432 = vxor.u32 %v9378, 2147483648
  %v9433 = vxor.u32 %v9380, 2147483648
  %v9434 = vxor.u32 %v9382, 2147483648
  %v9435 = vxor.u32 %v9384, 2147483648
  %v9436 = vxor.u32 %v9386, 2147483648
  %v9437 = vxor.u32 %v9388, 2147483648
  %v9438 = vxor.u32 %v9390, 2147483648
  %v9439 = vxor.u32 %v9392, 2147483648
  %v9440 = vxor.u32 %v9394, 2147483648
  %v9441 = vxor.u32 %v9396, 2147483648
  %v9442 = vxor.u32 %v9398, 2147483648
  %v9443 = vxor.u32 %v9400, 2147483648
  %v9444 = vxor.u32 %v9402, 2147483648
  %v9445 = vxor.u32 %v9404, 2147483648
  %v9446 = vxor.u32 %v9406, 2147483648
  %v9447 = vxor.u32 %v9408, 2147483648
  %v9448 = vxor.u32 %v9410, 2147483648
  %v9449 = vxor.u32 %v9412, 2147483648
  %v9450 = vxor.u32 %v9414, 2147483648
  %v9451 = vxor.u32 %v9416, 2147483648
  %v9452 = vxor.u32 %v9418, 2147483648
  %v9453 = vxor.u32 %v9420, 2147483648
  %v9454 = vxor.u32 %v9422, 2147483648
  %v9455 = vmul.f32 %v9423, 1.442695
  %v9456 = vpow.pop %v9455
  %v9457 = vmul.f32 %v9424, 1.442695
  %v9458 = vpow.pop %v9457
  %v9459 = vmul.f32 %v9425, 1.442695
  %v9460 = vpow.pop %v9459
  %v9461 = vmul.f32 %v9426, 1.442695
  %v9462 = vpow.pop %v9461
  %v9463 = vmul.f32 %v9427, 1.442695
  %v9464 = vpow.pop %v9463
  %v9465 = vmul.f32 %v9428, 1.442695
  %v9466 = vpow.pop %v9465
  %v9467 = vmul.f32 %v9429, 1.442695
  %v9468 = vpow.pop %v9467
  %v9469 = vmul.f32 %v9430, 1.442695
  %v9470 = vpow.pop %v9469
  %v9471 = vmul.f32 %v9431, 1.442695
  %v9472 = vpow.pop %v9471
  %v9473 = vmul.f32 %v9432, 1.442695
  %v9474 = vpow.pop %v9473
  %v9475 = vmul.f32 %v9433, 1.442695
  %v9476 = vpow.pop %v9475
  %v9477 = vmul.f32 %v9434, 1.442695
  %v9478 = vpow.pop %v9477
  %v9479 = vmul.f32 %v9435, 1.442695
  %v9480 = vpow.pop %v9479
  %v9481 = vmul.f32 %v9436, 1.442695
  %v9482 = vpow.pop %v9481
  %v9483 = vmul.f32 %v9437, 1.442695
  %v9484 = vpow.pop %v9483
  %v9485 = vmul.f32 %v9438, 1.442695
  %v9486 = vpow.pop %v9485
  %v9487 = vmul.f32 %v9439, 1.442695
  %v9488 = vpow.pop %v9487
  %v9489 = vmul.f32 %v9440, 1.442695
  %v9490 = vpow.pop %v9489
  %v9491 = vmul.f32 %v9441, 1.442695
  %v9492 = vpow.pop %v9491
  %v9493 = vmul.f32 %v9442, 1.442695
  %v9494 = vpow.pop %v9493
  %v9495 = vmul.f32 %v9443, 1.442695
  %v9496 = vpow.pop %v9495
  %v9497 = vmul.f32 %v9444, 1.442695
  %v9498 = vpow.pop %v9497
  %v9499 = vmul.f32 %v9445, 1.442695
  %v9500 = vpow.pop %v9499
  %v9501 = vmul.f32 %v9446, 1.442695
  %v9502 = vpow.pop %v9501
  %v9503 = vmul.f32 %v9447, 1.442695
  %v9504 = vpow.pop %v9503
  %v9505 = vmul.f32 %v9448, 1.442695
  %v9506 = vpow.pop %v9505
  %v9507 = vmul.f32 %v9449, 1.442695
  %v9508 = vpow.pop %v9507
  %v9509 = vmul.f32 %v9450, 1.442695
  %v9510 = vpow.pop %v9509
  %v9511 = vmul.f32 %v9451, 1.442695
  %v9512 = vpow.pop %v9511
  %v9513 = vmul.f32 %v9452, 1.442695
  %v9514 = vpow.pop %v9513
  %v9515 = vmul.f32 %v9453, 1.442695
  %v9516 = vpow.pop %v9515
  %v9517 = vmul.f32 %v9454, 1.442695
  %v9518 = vpow.pop %v9517
  %v9519 = vadd.f32 %v9456, 1.0
  %v9520 = vadd.f32 %v9458, 1.0
  %v9521 = vadd.f32 %v9460, 1.0
  %v9522 = vadd.f32 %v9462, 1.0
  %v9523 = vadd.f32 %v9464, 1.0
  %v9524 = vadd.f32 %v9466, 1.0
  %v9525 = vadd.f32 %v9468, 1.0
  %v9526 = vadd.f32 %v9470, 1.0
  %v9527 = vadd.f32 %v9472, 1.0
  %v9528 = vadd.f32 %v9474, 1.0
  %v9529 = vadd.f32 %v9476, 1.0
  %v9530 = vadd.f32 %v9478, 1.0
  %v9531 = vadd.f32 %v9480, 1.0
  %v9532 = vadd.f32 %v9482, 1.0
  %v9533 = vadd.f32 %v9484, 1.0
  %v9534 = vadd.f32 %v9486, 1.0
  %v9535 = vadd.f32 %v9488, 1.0
  %v9536 = vadd.f32 %v9490, 1.0
  %v9537 = vadd.f32 %v9492, 1.0
  %v9538 = vadd.f32 %v9494, 1.0
  %v9539 = vadd.f32 %v9496, 1.0
  %v9540 = vadd.f32 %v9498, 1.0
  %v9541 = vadd.f32 %v9500, 1.0
  %v9542 = vadd.f32 %v9502, 1.0
  %v9543 = vadd.f32 %v9504, 1.0
  %v9544 = vadd.f32 %v9506, 1.0
  %v9545 = vadd.f32 %v9508, 1.0
  %v9546 = vadd.f32 %v9510, 1.0
  %v9547 = vadd.f32 %v9512, 1.0
  %v9548 = vadd.f32 %v9514, 1.0
  %v9549 = vadd.f32 %v9516, 1.0
  %v9550 = vadd.f32 %v9518, 1.0
  %v9551 = vrcp.pop %v9519
  %v9552 = vmul.f32 1.0, %v9551
  %v9553 = vrcp.pop %v9520
  %v9554 = vmul.f32 1.0, %v9553
  %v9555 = vrcp.pop %v9521
  %v9556 = vmul.f32 1.0, %v9555
  %v9557 = vrcp.pop %v9522
  %v9558 = vmul.f32 1.0, %v9557
  %v9559 = vrcp.pop %v9523
  %v9560 = vmul.f32 1.0, %v9559
  %v9561 = vrcp.pop %v9524
  %v9562 = vmul.f32 1.0, %v9561
  %v9563 = vrcp.pop %v9525
  %v9564 = vmul.f32 1.0, %v9563
  %v9565 = vrcp.pop %v9526
  %v9566 = vmul.f32 1.0, %v9565
  %v9567 = vrcp.pop %v9527
  %v9568 = vmul.f32 1.0, %v9567
  %v9569 = vrcp.pop %v9528
  %v9570 = vmul.f32 1.0, %v9569
  %v9571 = vrcp.pop %v9529
  %v9572 = vmul.f32 1.0, %v9571
  %v9573 = vrcp.pop %v9530
  %v9574 = vmul.f32 1.0, %v9573
  %v9575 = vrcp.pop %v9531
  %v9576 = vmul.f32 1.0, %v9575
  %v9577 = vrcp.pop %v9532
  %v9578 = vmul.f32 1.0, %v9577
  %v9579 = vrcp.pop %v9533
  %v9580 = vmul.f32 1.0, %v9579
  %v9581 = vrcp.pop %v9534
  %v9582 = vmul.f32 1.0, %v9581
  %v9583 = vrcp.pop %v9535
  %v9584 = vmul.f32 1.0, %v9583
  %v9585 = vrcp.pop %v9536
  %v9586 = vmul.f32 1.0, %v9585
  %v9587 = vrcp.pop %v9537
  %v9588 = vmul.f32 1.0, %v9587
  %v9589 = vrcp.pop %v9538
  %v9590 = vmul.f32 1.0, %v9589
  %v9591 = vrcp.pop %v9539
  %v9592 = vmul.f32 1.0, %v9591
  %v9593 = vrcp.pop %v9540
  %v9594 = vmul.f32 1.0, %v9593
  %v9595 = vrcp.pop %v9541
  %v9596 = vmul.f32 1.0, %v9595
  %v9597 = vrcp.pop %v9542
  %v9598 = vmul.f32 1.0, %v9597
  %v9599 = vrcp.pop %v9543
  %v9600 = vmul.f32 1.0, %v9599
  %v9601 = vrcp.pop %v9544
  %v9602 = vmul.f32 1.0, %v9601
  %v9603 = vrcp.pop %v9545
  %v9604 = vmul.f32 1.0, %v9603
  %v9605 = vrcp.pop %v9546
  %v9606 = vmul.f32 1.0, %v9605
  %v9607 = vrcp.pop %v9547
  %v9608 = vmul.f32 1.0, %v9607
  %v9609 = vrcp.pop %v9548
  %v9610 = vmul.f32 1.0, %v9609
  %v9611 = vrcp.pop %v9549
  %v9612 = vmul.f32 1.0, %v9611
  %v9613 = vrcp.pop %v9550
  %v9614 = vmul.f32 1.0, %v9613
  %v9615 = vmul.f32 %v9163, %v9552
  %v9616 = vmul.f32 %v9164, %v9554
  %v9617 = vmul.f32 %v9165, %v9556
  %v9618 = vmul.f32 %v9166, %v9558
  %v9619 = vmul.f32 %v9167, %v9560
  %v9620 = vmul.f32 %v9168, %v9562
  %v9621 = vmul.f32 %v9169, %v9564
  %v9622 = vmul.f32 %v9170, %v9566
  %v9623 = vmul.f32 %v9171, %v9568
  %v9624 = vmul.f32 %v9172, %v9570
  %v9625 = vmul.f32 %v9173, %v9572
  %v9626 = vmul.f32 %v9174, %v9574
  %v9627 = vmul.f32 %v9175, %v9576
  %v9628 = vmul.f32 %v9176, %v9578
  %v9629 = vmul.f32 %v9177, %v9580
  %v9630 = vmul.f32 %v9178, %v9582
  %v9631 = vmul.f32 %v9179, %v9584
  %v9632 = vmul.f32 %v9180, %v9586
  %v9633 = vmul.f32 %v9181, %v9588
  %v9634 = vmul.f32 %v9182, %v9590
  %v9635 = vmul.f32 %v9183, %v9592
  %v9636 = vmul.f32 %v9184, %v9594
  %v9637 = vmul.f32 %v9185, %v9596
  %v9638 = vmul.f32 %v9186, %v9598
  %v9639 = vmul.f32 %v9187, %v9600
  %v9640 = vmul.f32 %v9188, %v9602
  %v9641 = vmul.f32 %v9189, %v9604
  %v9642 = vmul.f32 %v9190, %v9606
  %v9643 = vmul.f32 %v9191, %v9608
  %v9644 = vmul.f32 %v9192, %v9610
  %v9645 = vmul.f32 %v9193, %v9612
  %v9646 = vmul.f32 %v9194, %v9614
  %v9647 = vld [vmem:[%s9] sm:$0xf]
  %v9648 = vld [vmem:[%s9 + $0x4] sm:$0xf]
  %v9649 = vld [vmem:[%s9 + $0x8] sm:$0xf]
  %v9650 = vld [vmem:[%s9 + $0xc] sm:$0xf]
  %v9651 = vld [vmem:[%s9 + $0x10] sm:$0xf]
  %v9652 = vld [vmem:[%s9 + $0x14] sm:$0xf]
  %v9653 = vld [vmem:[%s9 + $0x18] sm:$0xf]
  %v9654 = vld [vmem:[%s9 + $0x1c] sm:$0xf]
  %v9655 = vld [vmem:[%s9 + $0x20] sm:$0xf]
  %v9656 = vld [vmem:[%s9 + $0x24] sm:$0xf]
  %v9657 = vld [vmem:[%s9 + $0x28] sm:$0xf]
  %v9658 = vld [vmem:[%s9 + $0x2c] sm:$0xf]
  %v9659 = vld [vmem:[%s9 + $0x30] sm:$0xf]
  %v9660 = vld [vmem:[%s9 + $0x34] sm:$0xf]
  %v9661 = vld [vmem:[%s9 + $0x38] sm:$0xf]
  %v9662 = vld [vmem:[%s9 + $0x3c] sm:$0xf]
  %v9663 = vpack.c.bf16 %v9200, %v9199
  %v9664 = vpack.c.bf16 %v9202, %v9201
  %v9665 = vpack.c.bf16 %v9204, %v9203
  %v9666 = vpack.c.bf16 %v9206, %v9205
  %v9667 = vpack.c.bf16 %v9208, %v9207
  %v9668 = vpack.c.bf16 %v9210, %v9209
  %v9669 = vpack.c.bf16 %v9212, %v9211
  %v9670 = vpack.c.bf16 %v9214, %v9213
  %v9671 = vpack.c.bf16 %v9216, %v9215
  %v9672 = vpack.c.bf16 %v9218, %v9217
  %v9673 = vpack.c.bf16 %v9220, %v9219
  %v9674 = vpack.c.bf16 %v9222, %v9221
  %v9675 = vpack.c.bf16 %v9224, %v9223
  %v9676 = vpack.c.bf16 %v9226, %v9225
  %v9677 = vpack.c.bf16 %v9228, %v9227
  %v9678 = vpack.c.bf16 %v9230, %v9229
  %v9679 = vld [vmem:[%s10] sm:$0xf]
  %v9680 = vld [vmem:[%s10 + $0x4] sm:$0xf]
  %v9681 = vld [vmem:[%s10 + $0x8] sm:$0xf]
  %v9682 = vld [vmem:[%s10 + $0xc] sm:$0xf]
  %v9683 = vld [vmem:[%s10 + $0x10] sm:$0xf]
  %v9684 = vld [vmem:[%s10 + $0x14] sm:$0xf]
  %v9685 = vld [vmem:[%s10 + $0x18] sm:$0xf]
  %v9686 = vld [vmem:[%s10 + $0x1c] sm:$0xf]
  %v9687 = vld [vmem:[%s10 + $0x20] sm:$0xf]
  %v9688 = vld [vmem:[%s10 + $0x24] sm:$0xf]
  %v9689 = vld [vmem:[%s10 + $0x28] sm:$0xf]
  %v9690 = vld [vmem:[%s10 + $0x2c] sm:$0xf]
  %v9691 = vld [vmem:[%s10 + $0x30] sm:$0xf]
  %v9692 = vld [vmem:[%s10 + $0x34] sm:$0xf]
  %v9693 = vld [vmem:[%s10 + $0x38] sm:$0xf]
  %v9694 = vld [vmem:[%s10 + $0x3c] sm:$0xf]
  %v9695 = vpack.c.bf16 %v9616, %v9615
  %v9696 = vpack.c.bf16 %v9618, %v9617
  %v9697 = vpack.c.bf16 %v9620, %v9619
  %v9698 = vpack.c.bf16 %v9622, %v9621
  %v9699 = vpack.c.bf16 %v9624, %v9623
  %v9700 = vpack.c.bf16 %v9626, %v9625
  %v9701 = vpack.c.bf16 %v9628, %v9627
  %v9702 = vpack.c.bf16 %v9630, %v9629
  %v9703 = vpack.c.bf16 %v9632, %v9631
  %v9704 = vpack.c.bf16 %v9634, %v9633
  %v9705 = vpack.c.bf16 %v9636, %v9635
  %v9706 = vpack.c.bf16 %v9638, %v9637
  %v9707 = vpack.c.bf16 %v9640, %v9639
  %v9708 = vpack.c.bf16 %v9642, %v9641
  %v9709 = vpack.c.bf16 %v9644, %v9643
  %v9710 = vpack.c.bf16 %v9646, %v9645
  %v9727 = vunpack.c.l.b16 %v9679
  %v9728 = vunpack.c.l.b16 %v9680
  %v9729 = vunpack.c.l.b16 %v9681
  %v9730 = vunpack.c.l.b16 %v9682
  %v9731 = vunpack.c.l.b16 %v9683
  %v9732 = vunpack.c.l.b16 %v9684
  %v9733 = vunpack.c.l.b16 %v9685
  %v9734 = vunpack.c.l.b16 %v9686
  %v9735 = vunpack.c.l.b16 %v9687
  %v9736 = vunpack.c.l.b16 %v9688
  %v9737 = vunpack.c.l.b16 %v9689
  %v9738 = vunpack.c.l.b16 %v9690
  %v9739 = vunpack.c.l.b16 %v9691
  %v9740 = vunpack.c.l.b16 %v9692
  %v9741 = vunpack.c.l.b16 %v9693
  %v9742 = vunpack.c.l.b16 %v9694
  %v9743 = vpack.c.b16 %v9728, %v9727
  %v9744 = vpack.c.b16 %v9730, %v9729
  %v9745 = vpack.c.b16 %v9732, %v9731
  %v9746 = vpack.c.b16 %v9734, %v9733
  %v9747 = vpack.c.b16 %v9736, %v9735
  %v9748 = vpack.c.b16 %v9738, %v9737
  %v9749 = vpack.c.b16 %v9740, %v9739
  %v9750 = vpack.c.b16 %v9742, %v9741
  %9759 = vmatprep.subr.bf16.mxu0 0
  %9760 = vmatpush1.bf16.xpose.msra.mxu0 %v9702
  %9761 = vmatprep.subr.bf16.mxu0 0
  %9762 = vmatpush1.bf16.xpose.msra.mxu0 %v9701
  %9763 = vmatprep.subr.bf16.mxu0 0
  %9764 = vmatpush1.bf16.xpose.msra.mxu0 %v9700
  %9765 = vmatprep.subr.bf16.mxu0 0
  %9766 = vmatpush1.bf16.xpose.msra.mxu0 %v9699
  %9767 = vmatprep.subr.bf16.mxu0 0
  %9768 = vmatpush1.bf16.xpose.msra.mxu0 %v9698
  %9769 = vmatprep.subr.bf16.mxu0 0
  %9770 = vmatpush1.bf16.xpose.msra.mxu0 %v9697
  %9771 = vmatprep.subr.bf16.mxu0 0
  %9772 = vmatpush1.bf16.xpose.msra.mxu0 %v9696
  %9773 = vmatprep.subr.bf16.mxu0 0
  %9774 = vmatpush1.bf16.xpose.msra.mxu0 %v9695
  %9775 = vmatprep.subr.bf16.mxu0 0
  %9776 = vmatpush2.bf16.xpose.msra.mxu0 %v9710
  %9777 = vmatprep.subr.bf16.mxu0 0
  %9778 = vmatpush2.bf16.xpose.msra.mxu0 %v9709
  %9779 = vmatprep.subr.bf16.mxu0 0
  %9780 = vmatpush2.bf16.xpose.msra.mxu0 %v9708
  %9781 = vmatprep.subr.bf16.mxu0 0
  %9782 = vmatpush2.bf16.xpose.msra.mxu0 %v9707
  %9783 = vmatprep.subr.bf16.mxu0 0
  %9784 = vmatpush2.bf16.xpose.msra.mxu0 %v9706
  %9785 = vmatprep.subr.bf16.mxu0 0
  %9786 = vmatpush2.bf16.xpose.msra.mxu0 %v9705
  %9787 = vmatprep.subr.bf16.mxu0 0
  %9788 = vmatpush2.bf16.xpose.msra.mxu0 %v9704
  %9789 = vmatprep.subr.bf16.mxu0 0
  %9790 = vmatpush2.bf16.xpose.msra.mxu0 %v9703
  %9791 = vmatprep.mubr.bf16.mxu0 0
  %9792 = vmatmul.mubr.bf16.gmra.mxu0 %v9743
  %v9793 = vpop.f32.mrf.mxu0
  %v9794 = vadd.f32 0.0, %v9793
  %v9795 = vpop.f32.mrf.mxu0
  %v9796 = vadd.f32 0.0, %v9795
  %v9797 = vpop.f32.mrf.mxu0
  %v9798 = vadd.f32 0.0, %v9797
  %v9799 = vpop.f32.mrf.mxu0
  %v9800 = vadd.f32 0.0, %v9799
  %9801 = vmatprep.mubr.bf16.mxu0 0
  %9802 = vmatmul.mubr.bf16.gmra.mxu0 %v9744
  %v9803 = vpop.f32.mrf.mxu0
  %v9804 = vadd.f32 0.0, %v9803
  %v9805 = vpop.f32.mrf.mxu0
  %v9806 = vadd.f32 0.0, %v9805
  %v9807 = vpop.f32.mrf.mxu0
  %v9808 = vadd.f32 0.0, %v9807
  %v9809 = vpop.f32.mrf.mxu0
  %v9810 = vadd.f32 0.0, %v9809
  %9811 = vmatprep.mubr.bf16.mxu0 0
  %9812 = vmatmul.mubr.bf16.gmra.mxu0 %v9745
  %v9813 = vpop.f32.mrf.mxu0
  %v9814 = vadd.f32 0.0, %v9813
  %v9815 = vpop.f32.mrf.mxu0
  %v9816 = vadd.f32 0.0, %v9815
  %v9817 = vpop.f32.mrf.mxu0
  %v9818 = vadd.f32 0.0, %v9817
  %v9819 = vpop.f32.mrf.mxu0
  %v9820 = vadd.f32 0.0, %v9819
  %9821 = vmatprep.mubr.bf16.mxu0 0
  %9822 = vmatmul.mubr.bf16.gmra.mxu0 %v9746
  %v9823 = vpop.f32.mrf.mxu0
  %v9824 = vadd.f32 0.0, %v9823
  %v9825 = vpop.f32.mrf.mxu0
  %v9826 = vadd.f32 0.0, %v9825
  %v9827 = vpop.f32.mrf.mxu0
  %v9828 = vadd.f32 0.0, %v9827
  %v9829 = vpop.f32.mrf.mxu0
  %v9830 = vadd.f32 0.0, %v9829
  %9831 = vmatprep.mubr.bf16.mxu0 0
  %9832 = vmatmul.mubr.bf16.gmra.mxu0 %v9747
  %v9833 = vpop.f32.mrf.mxu0
  %v9834 = vadd.f32 0.0, %v9833
  %v9835 = vpop.f32.mrf.mxu0
  %v9836 = vadd.f32 0.0, %v9835
  %v9837 = vpop.f32.mrf.mxu0
  %v9838 = vadd.f32 0.0, %v9837
  %v9839 = vpop.f32.mrf.mxu0
  %v9840 = vadd.f32 0.0, %v9839
  %9841 = vmatprep.mubr.bf16.mxu0 0
  %9842 = vmatmul.mubr.bf16.gmra.mxu0 %v9748
  %v9843 = vpop.f32.mrf.mxu0
  %v9844 = vadd.f32 0.0, %v9843
  %v9845 = vpop.f32.mrf.mxu0
  %v9846 = vadd.f32 0.0, %v9845
  %v9847 = vpop.f32.mrf.mxu0
  %v9848 = vadd.f32 0.0, %v9847
  %v9849 = vpop.f32.mrf.mxu0
  %v9850 = vadd.f32 0.0, %v9849
  %9851 = vmatprep.mubr.bf16.mxu0 0
  %9852 = vmatmul.mubr.bf16.gmra.mxu0 %v9749
  %v9853 = vpop.f32.mrf.mxu0
  %v9854 = vadd.f32 0.0, %v9853
  %v9855 = vpop.f32.mrf.mxu0
  %v9856 = vadd.f32 0.0, %v9855
  %v9857 = vpop.f32.mrf.mxu0
  %v9858 = vadd.f32 0.0, %v9857
  %v9859 = vpop.f32.mrf.mxu0
  %v9860 = vadd.f32 0.0, %v9859
  %9861 = vmatprep.mubr.bf16.mxu0 0
  %9862 = vmatmul.mubr.bf16.gmra.mxu0 %v9750
  %v9863 = vpop.f32.mrf.mxu0
  %v9864 = vadd.f32 0.0, %v9863
  %v9865 = vpop.f32.mrf.mxu0
  %v9866 = vadd.f32 0.0, %v9865
  %v9867 = vpop.f32.mrf.mxu0
  %v9868 = vadd.f32 0.0, %v9867
  %v9869 = vpop.f32.mrf.mxu0
  %v9870 = vadd.f32 0.0, %v9869
  %9871 = vdwg.mxu0
  %v9888 = vunpack.c.l.b16 %v9647
  %v9889 = vunpack.c.l.b16 %v9648
  %v9890 = vunpack.c.l.b16 %v9649
  %v9891 = vunpack.c.l.b16 %v9650
  %v9892 = vunpack.c.l.b16 %v9651
  %v9893 = vunpack.c.l.b16 %v9652
  %v9894 = vunpack.c.l.b16 %v9653
  %v9895 = vunpack.c.l.b16 %v9654
  %v9896 = vunpack.c.l.b16 %v9655
  %v9897 = vunpack.c.l.b16 %v9656
  %v9898 = vunpack.c.l.b16 %v9657
  %v9899 = vunpack.c.l.b16 %v9658
  %v9900 = vunpack.c.l.b16 %v9659
  %v9901 = vunpack.c.l.b16 %v9660
  %v9902 = vunpack.c.l.b16 %v9661
  %v9903 = vunpack.c.l.b16 %v9662
  %v9904 = vpack.c.b16 %v9889, %v9888
  %v9905 = vpack.c.b16 %v9891, %v9890
  %v9906 = vpack.c.b16 %v9893, %v9892
  %v9907 = vpack.c.b16 %v9895, %v9894
  %v9908 = vpack.c.b16 %v9897, %v9896
  %v9909 = vpack.c.b16 %v9899, %v9898
  %v9910 = vpack.c.b16 %v9901, %v9900
  %v9911 = vpack.c.b16 %v9903, %v9902
  %9920 = vmatprep.subr.bf16.mxu0 0
  %9921 = vmatpush1.bf16.xpose.msra.mxu0 %v9670
  %9922 = vmatprep.subr.bf16.mxu0 0
  %9923 = vmatpush1.bf16.xpose.msra.mxu0 %v9669
  %9924 = vmatprep.subr.bf16.mxu0 0
  %9925 = vmatpush1.bf16.xpose.msra.mxu0 %v9668
  %9926 = vmatprep.subr.bf16.mxu0 0
  %9927 = vmatpush1.bf16.xpose.msra.mxu0 %v9667
  %9928 = vmatprep.subr.bf16.mxu0 0
  %9929 = vmatpush1.bf16.xpose.msra.mxu0 %v9666
  %9930 = vmatprep.subr.bf16.mxu0 0
  %9931 = vmatpush1.bf16.xpose.msra.mxu0 %v9665
  %9932 = vmatprep.subr.bf16.mxu0 0
  %9933 = vmatpush1.bf16.xpose.msra.mxu0 %v9664
  %9934 = vmatprep.subr.bf16.mxu0 0
  %9935 = vmatpush1.bf16.xpose.msra.mxu0 %v9663
  %9936 = vmatprep.subr.bf16.mxu0 0
  %9937 = vmatpush2.bf16.xpose.msra.mxu0 %v9678
  %9938 = vmatprep.subr.bf16.mxu0 0
  %9939 = vmatpush2.bf16.xpose.msra.mxu0 %v9677
  %9940 = vmatprep.subr.bf16.mxu0 0
  %9941 = vmatpush2.bf16.xpose.msra.mxu0 %v9676
  %9942 = vmatprep.subr.bf16.mxu0 0
  %9943 = vmatpush2.bf16.xpose.msra.mxu0 %v9675
  %9944 = vmatprep.subr.bf16.mxu0 0
  %9945 = vmatpush2.bf16.xpose.msra.mxu0 %v9674
  %9946 = vmatprep.subr.bf16.mxu0 0
  %9947 = vmatpush2.bf16.xpose.msra.mxu0 %v9673
  %9948 = vmatprep.subr.bf16.mxu0 0
  %9949 = vmatpush2.bf16.xpose.msra.mxu0 %v9672
  %9950 = vmatprep.subr.bf16.mxu0 0
  %9951 = vmatpush2.bf16.xpose.msra.mxu0 %v9671
  %9952 = vmatprep.mubr.bf16.mxu0 0
  %9953 = vmatmul.mubr.bf16.gmra.mxu0 %v9904
  %v9954 = vpop.f32.mrf.mxu0
  %v9955 = vadd.f32 %v9794, %v9954
  %v9956 = vpop.f32.mrf.mxu0
  %v9957 = vadd.f32 %v9796, %v9956
  %v9958 = vpop.f32.mrf.mxu0
  %v9959 = vadd.f32 %v9798, %v9958
  %v9960 = vpop.f32.mrf.mxu0
  %v9961 = vadd.f32 %v9800, %v9960
  %9962 = vmatprep.mubr.bf16.mxu0 0
  %9963 = vmatmul.mubr.bf16.gmra.mxu0 %v9905
  %v9964 = vpop.f32.mrf.mxu0
  %v9965 = vadd.f32 %v9804, %v9964
  %v9966 = vpop.f32.mrf.mxu0
  %v9967 = vadd.f32 %v9806, %v9966
  %v9968 = vpop.f32.mrf.mxu0
  %v9969 = vadd.f32 %v9808, %v9968
  %v9970 = vpop.f32.mrf.mxu0
  %v9971 = vadd.f32 %v9810, %v9970
  %9972 = vmatprep.mubr.bf16.mxu0 0
  %9973 = vmatmul.mubr.bf16.gmra.mxu0 %v9906
  %v9974 = vpop.f32.mrf.mxu0
  %v9975 = vadd.f32 %v9814, %v9974
  %v9976 = vpop.f32.mrf.mxu0
  %v9977 = vadd.f32 %v9816, %v9976
  %v9978 = vpop.f32.mrf.mxu0
  %v9979 = vadd.f32 %v9818, %v9978
  %v9980 = vpop.f32.mrf.mxu0
  %v9981 = vadd.f32 %v9820, %v9980
  %9982 = vmatprep.mubr.bf16.mxu0 0
  %9983 = vmatmul.mubr.bf16.gmra.mxu0 %v9907
  %v9984 = vpop.f32.mrf.mxu0
  %v9985 = vadd.f32 %v9824, %v9984
  %v9986 = vpop.f32.mrf.mxu0
  %v9987 = vadd.f32 %v9826, %v9986
  %v9988 = vpop.f32.mrf.mxu0
  %v9989 = vadd.f32 %v9828, %v9988
  %v9990 = vpop.f32.mrf.mxu0
  %v9991 = vadd.f32 %v9830, %v9990
  %9992 = vmatprep.mubr.bf16.mxu0 0
  %9993 = vmatmul.mubr.bf16.gmra.mxu0 %v9908
  %v9994 = vpop.f32.mrf.mxu0
  %v9995 = vadd.f32 %v9834, %v9994
  %v9996 = vpop.f32.mrf.mxu0
  %v9997 = vadd.f32 %v9836, %v9996
  %v9998 = vpop.f32.mrf.mxu0
  %v9999 = vadd.f32 %v9838, %v9998
  %v10000 = vpop.f32.mrf.mxu0
  %v10001 = vadd.f32 %v9840, %v10000
  %10002 = vmatprep.mubr.bf16.mxu0 0
  %10003 = vmatmul.mubr.bf16.gmra.mxu0 %v9909
  %v10004 = vpop.f32.mrf.mxu0
  %v10005 = vadd.f32 %v9844, %v10004
  %v10006 = vpop.f32.mrf.mxu0
  %v10007 = vadd.f32 %v9846, %v10006
  %v10008 = vpop.f32.mrf.mxu0
  %v10009 = vadd.f32 %v9848, %v10008
  %v10010 = vpop.f32.mrf.mxu0
  %v10011 = vadd.f32 %v9850, %v10010
  %10012 = vmatprep.mubr.bf16.mxu0 0
  %10013 = vmatmul.mubr.bf16.gmra.mxu0 %v9910
  %v10014 = vpop.f32.mrf.mxu0
  %v10015 = vadd.f32 %v9854, %v10014
  %v10016 = vpop.f32.mrf.mxu0
  %v10017 = vadd.f32 %v9856, %v10016
  %v10018 = vpop.f32.mrf.mxu0
  %v10019 = vadd.f32 %v9858, %v10018
  %v10020 = vpop.f32.mrf.mxu0
  %v10021 = vadd.f32 %v9860, %v10020
  %10022 = vmatprep.mubr.bf16.mxu0 0
  %10023 = vmatmul.mubr.bf16.gmra.mxu0 %v9911
  %v10024 = vpop.f32.mrf.mxu0
  %v10025 = vadd.f32 %v9864, %v10024
  %v10026 = vpop.f32.mrf.mxu0
  %v10027 = vadd.f32 %v9866, %v10026
  %v10028 = vpop.f32.mrf.mxu0
  %v10029 = vadd.f32 %v9868, %v10028
  %v10030 = vpop.f32.mrf.mxu0
  %v10031 = vadd.f32 %v9870, %v10030
  %10032 = vdwg.mxu0
  %10033 = vst [vmem:[%s11] sm:$0xff] %v9955
  %10034 = vst [vmem:[%s11 + $0x8] sm:$0xff] %v9957
  %10035 = vst [vmem:[%s11 + $0x10] sm:$0xff] %v9959
  %10036 = vst [vmem:[%s11 + $0x18] sm:$0xff] %v9961
  %10037 = vst [vmem:[%s11 + $0x20] sm:$0xff] %v9965
  %10038 = vst [vmem:[%s11 + $0x28] sm:$0xff] %v9967
  %10039 = vst [vmem:[%s11 + $0x30] sm:$0xff] %v9969
  %10040 = vst [vmem:[%s11 + $0x38] sm:$0xff] %v9971
  %10041 = vst [vmem:[%s11 + $0x40] sm:$0xff] %v9975
  %10042 = vst [vmem:[%s11 + $0x48] sm:$0xff] %v9977
  %10043 = vst [vmem:[%s11 + $0x50] sm:$0xff] %v9979
  %10044 = vst [vmem:[%s11 + $0x58] sm:$0xff] %v9981
  %10045 = vst [vmem:[%s11 + $0x60] sm:$0xff] %v9985
  %10046 = vst [vmem:[%s11 + $0x68] sm:$0xff] %v9987
  %10047 = vst [vmem:[%s11 + $0x70] sm:$0xff] %v9989
  %10048 = vst [vmem:[%s11 + $0x78] sm:$0xff] %v9991
  %10049 = vst [vmem:[%s11 + $0x80] sm:$0xff] %v9995
  %10050 = vst [vmem:[%s11 + $0x88] sm:$0xff] %v9997
  %10051 = vst [vmem:[%s11 + $0x90] sm:$0xff] %v9999
  %10052 = vst [vmem:[%s11 + $0x98] sm:$0xff] %v10001
  %10053 = vst [vmem:[%s11 + $0xa0] sm:$0xff] %v10005
  %10054 = vst [vmem:[%s11 + $0xa8] sm:$0xff] %v10007
  %10055 = vst [vmem:[%s11 + $0xb0] sm:$0xff] %v10009
  %10056 = vst [vmem:[%s11 + $0xb8] sm:$0xff] %v10011
  %10057 = vst [vmem:[%s11 + $0xc0] sm:$0xff] %v10015
  %10058 = vst [vmem:[%s11 + $0xc8] sm:$0xff] %v10017
  %10059 = vst [vmem:[%s11 + $0xd0] sm:$0xff] %v10019
  %10060 = vst [vmem:[%s11 + $0xd8] sm:$0xff] %v10021
  %10061 = vst [vmem:[%s11 + $0xe0] sm:$0xff] %v10025
  %10062 = vst [vmem:[%s11 + $0xe8] sm:$0xff] %v10027
  %10063 = vst [vmem:[%s11 + $0xf0] sm:$0xff] %v10029
  %10064 = vst [vmem:[%s11 + $0xf8] sm:$0xff] %v10031
  // Predicated region
  $region46: #{_forward_impl.1} parent=0 // pred_check
    _
  $region47: #{_forward_impl.1} parent=0 // pred_check_branch
    %10066 = sbr.rel (0) target = $region49
  $region48: #{_forward_impl.1} parent=0 // pred_region
    _
  $region49: #{_forward_impl.1} parent=0 // pred_fallthru
    _
  // Predicated region
  $region50: #{_forward_impl.1} parent=0 // pred_check
    _
  $region51: #{_forward_impl.1} parent=0 // pred_check_branch
    %10068 = sbr.rel (0) target = $region53
  $region52: #{_forward_impl.1} parent=0 // pred_region
    _
  $region53: #{_forward_impl.1} parent=0 // pred_fallthru
    _

</llo_original>
